<compile_context>
chip_gen: v7x
topology: tpu7x:2x2x1
jax: 0.10.0
libtpu: 0.0.40
codegen_flags: <defaults>
</compile_context>

<pallas_src>
import functools

import numpy as np
import jax
import jax.numpy as jnp
from jax.experimental import pallas as pl
from jax.experimental.pallas import tpu as pltpu


# ----------------------------------------------------------------------------
# small helpers
# ----------------------------------------------------------------------------
def _sum_keep2(x):
    """Sum a 2-D tile down to a (1, 1) array (keeps everything 2-D for Mosaic)."""
    return jnp.sum(jnp.sum(x, axis=1, keepdims=True), axis=0, keepdims=True)


def _scalars_to_lane_row(values):
    """Pack a short list of (1,1) scalars into lanes 0..k-1 of a (1,128) row."""
    lane = jax.lax.broadcasted_iota(jnp.int32, (1, 128), 1)
    row = jnp.zeros((1, 128), jnp.float32)
    for idx, v in enumerate(values):
        row = jnp.where(lane == idx, v, row)
    return row


# ----------------------------------------------------------------------------
# MS-SSIM constants and host-side matrix builders
# ----------------------------------------------------------------------------
_MS_SSIM_WEIGHTS = (0.0448, 0.2856, 0.3001, 0.2363, 0.1333)
_WIN_SIZE = 11
_WIN_SIGMA = 1.5


def _gauss_win(size, sigma):
    coords = np.arange(size, dtype=np.float64) - size // 2
    g = np.exp(-(coords ** 2) / (2.0 * sigma ** 2))
    g = g / g.sum()
    return g.astype(np.float32)


def _band_matrix_np(win, size):
    """(size, size-ws+1) band matrix so `x @ M` is a valid 1-D correlation with win."""
    ws = len(win)
    out = size - ws + 1
    m = np.zeros((size, out), np.float32)
    idx = np.arange(out)
    for k in range(ws):
        m[idx + k, idx] = np.float32(win[k])
    return m


def _pool_matrix_np(size):
    """(size, out) matrix so that `x @ M` == F.avg_pool1d(k=2, s=2, pad=size%2,
    count_include_pad=True) (PyTorch / pytorch_msssim downsample semantics)."""
    pad = size % 2
    out = (size + pad) // 2
    m = np.zeros((size, out), np.float32)
    for j in range(out):
        for t in (0, 1):
            src = 2 * j + t - pad
            if 0 <= src < size:
                m[src, j] = 0.5
    return m


def _group_sum_matrix_np(n_pix):
    """(3*n_pix, n_pix) matrix: column j sums lanes 3j, 3j+1, 3j+2 (per-pixel
    3-component dot product without any channel-planar transpose)."""
    m = np.zeros((3 * n_pix, n_pix), np.float32)
    j = np.arange(n_pix)
    for t in range(3):
        m[3 * j + t, j] = 1.0
    return m


# ----------------------------------------------------------------------------
# kernel 1: all 5 MS-SSIM levels for one channel (bf16 MXU band matmuls),
#           fused 2x2 avg-pool between levels, fused sum((x-y)^2)
# ----------------------------------------------------------------------------
def _msssim_kernel(x_ref, y_ref, *refs, C1, C2, levels):
    nl = levels
    bw_refs = refs[0:nl]                  # per-level (W_l, Wo_l)  bf16
    bh_refs = refs[nl:2 * nl]             # per-level (Ho_l, H_l)  bf16
    pw_refs = refs[2 * nl:3 * nl - 1]     # per-level (W_l, Wp_l)  bf16
    ph_refs = refs[3 * nl - 1:4 * nl - 2] # per-level (Hp_l, H_l)  bf16
    out_ref = refs[4 * nl - 2]            # (1, 1, 128) f32

    f32 = jnp.float32
    bf16 = jnp.bfloat16

    x = x_ref[...][0].astype(f32)         # (H, W)
    y = y_ref[...][0].astype(f32)

    # Fused squared-error partial (full f32 precision -> MSE / PSNR).
    d = x - y
    mse_part = _sum_keep2(d * d)

    per_level = []
    for lvl in range(levels):
        bw = bw_refs[lvl][...]
        bh = bh_refs[lvl][...]

        # Centre around 0.5 (data_range == 1): the E[x^2] - mu^2 cancellation in
        # the sigma terms then operates on much smaller magnitudes, which keeps
        # the bf16 MXU operands within tolerance.  Centring is exact algebra.
        xc = x - 0.5
        yc = y - 0.5

        def gfilt(p):
            # Separable "valid" 11-tap Gaussian as two bf16 band matmuls (f32 acc).
            t = jnp.dot(p.astype(bf16), bw, preferred_element_type=f32)
            return jnp.dot(bh, t.astype(bf16), preferred_element_type=f32)

        mu1c = gfilt(xc)
        mu2c = gfilt(yc)
        e_xx = gfilt(xc * xc)             # products computed in f32 on the VPU
        e_yy = gfilt(yc * yc)
        e_xy = gfilt(xc * yc)

        sigma1_sq = e_xx - mu1c * mu1c
        sigma2_sq = e_yy - mu2c * mu2c
        sigma12 = e_xy - mu1c * mu2c
        cs_map = (2.0 * sigma12 + C2) / (sigma1_sq + sigma2_sq + C2)
        inv = 1.0 / float(cs_map.shape[0] * cs_map.shape[1])

        if lvl < levels - 1:
            per_level.append(jnp.maximum(_sum_keep2(cs_map) * inv, 0.0))  # relu(cs)
            # Fused avg_pool2d(kernel=2, pad=s%2, count_include_pad=True) as two
            # more bf16 MXU matmuls; the pooled image stays in VMEM for the next
            # level (no HBM round-trip).
            pw = pw_refs[lvl][...]
            ph = ph_refs[lvl][...]
            x = jnp.dot(ph, jnp.dot(x.astype(bf16), pw,
                                    preferred_element_type=f32).astype(bf16),
                        preferred_element_type=f32)
            y = jnp.dot(ph, jnp.dot(y.astype(bf16), pw,
                                    preferred_element_type=f32).astype(bf16),
                        preferred_element_type=f32)
        else:
            mu1 = mu1c + 0.5
            mu2 = mu2c + 0.5
            lum = (2.0 * mu1 * mu2 + C1) / (mu1 * mu1 + mu2 * mu2 + C1)
            per_level.append(jnp.maximum(_sum_keep2(lum * cs_map) * inv, 0.0))

    # lanes 0..levels-1: relu'd cs (levels 0..L-2) + relu'd ssim (last level);
    # lane `levels`: per-channel sum of squared error.
    out_ref[...] = _scalars_to_lane_row(per_level + [mse_part])[None]


def ms_ssim_and_mse_pallas(X, Y, data_range=1.0, K=(0.01, 0.03)):
    """pytorch_msssim.MS_SSIM(data_range=1.0, size_average=True, channel=3) on NCHW
    inputs, plus the fused mean((X-Y)^2), in a single pallas_call."""
    C1 = (K[0] * data_range) ** 2
    C2 = (K[1] * data_range) ** 2
    win = _gauss_win(_WIN_SIZE, _WIN_SIGMA)
    weights = _MS_SSIM_WEIGHTS
    levels = len(weights)

    B, C, H, W = X.shape
    assert min(H, W) > (_WIN_SIZE - 1) * (2 ** (levels - 1)), \
        "MS-SSIM (5 levels, win=11) requires spatial sides > 160"
    N = B * C
    numel = X.size

    x = X.reshape(N, H, W).astype(jnp.float32)
    y = Y.reshape(N, H, W).astype(jnp.float32)

    # Per-level spatial sizes (pool halves with PyTorch odd-size padding).
    sizes = [(H, W)]
    for _ in range(levels - 1):
        h, w = sizes[-1]
        sizes.append(((h + h % 2) // 2, (w + w % 2) // 2))

    bf16 = jnp.bfloat16
    bws = [jnp.asarray(_band_matrix_np(win, w), bf16) for (_, w) in sizes]
    bhs = [jnp.asarray(_band_matrix_np(win, h).T, bf16) for (h, _) in sizes]
    pws = [jnp.asarray(_pool_matrix_np(w), bf16) for (_, w) in sizes[:-1]]
    phs = [jnp.asarray(_pool_matrix_np(h).T, bf16) for (h, _) in sizes[:-1]]
    mats = bws + bhs + pws + phs

    in_specs = [pl.BlockSpec((1, H, W), lambda n: (n, 0, 0)),
                pl.BlockSpec((1, H, W), lambda n: (n, 0, 0))]
    in_specs += [pl.BlockSpec(m.shape, lambda n: (0, 0)) for m in mats]

    out = pl.pallas_call(
        functools.partial(_msssim_kernel, C1=C1, C2=C2, levels=levels),
        out_shape=jax.ShapeDtypeStruct((N, 1, 128), jnp.float32),
        grid=(N,),
        in_specs=in_specs,
        out_specs=pl.BlockSpec((1, 1, 128), lambda n: (n, 0, 0)),
        compiler_params=pltpu.CompilerParams(
            dimension_semantics=("parallel",),
            vmem_limit_bytes=32 * 1024 * 1024),
    )(x, y, *mats)

    per_chan = out[:, 0, :]                           # (N, 128)
    vals = per_chan[:, :levels]                       # relu'd cs l0..3 + ssim l4
    w = jnp.asarray(weights, jnp.float32)
    ms_val = jnp.prod(vals ** w[None, :], axis=1)     # (N,)
    mse = jnp.sum(per_chan[:, levels]) / numel
    return ms_val.mean(), mse


# ----------------------------------------------------------------------------
# kernel 2: fused normal losses (cos loss sums/count + depth-normal error)
#           + rend_dist sum; natural (row, pix*3) layout, per-tile partial sums
# ----------------------------------------------------------------------------
def _normal_dist_kernel(rn_ref, gt_ref, dn_ref, m_ref, am_ref, rd_ref, s_ref,
                        out_ref, *, cos_thr, total_rows, tile_rows, masked):
    f32 = jnp.float32
    bf16 = jnp.bfloat16

    rn = rn_ref[...]                      # (tr, 3*P) f32, xyz interleaved on lanes
    gt = gt_ref[...]
    dn = dn_ref[...]
    S = s_ref[...]                        # (3*P, P) bf16 group-sum matrix

    # Per-pixel 3-component dot products via one MXU matmul each (no transpose).
    cosv = jnp.dot((rn * gt).astype(bf16), S, preferred_element_type=f32)  # (tr, P)
    dotv = jnp.dot((rn * dn).astype(bf16), S, preferred_element_type=f32)  # (tr, P)

    m = m_ref[...]
    am = am_ref[...]
    rd = rd_ref[...]

    cosm = cosv * m
    sel = jnp.logical_and(m == 1.0, cosm < cos_thr)
    nerr_map = (1.0 - dotv) * am

    if masked:
        r0 = pl.program_id(0) * tile_rows
        rows = jax.lax.broadcasted_iota(jnp.int32, (tile_rows, 1), 0) + r0
        valid = rows < total_rows
        sel = jnp.logical_and(sel, valid)
        nerr_map = jnp.where(valid, nerr_map, 0.0)
        rd = jnp.where(valid, rd, 0.0)

    cos_sum = _sum_keep2(jnp.where(sel, 1.0 - cosm, 0.0))
    cos_cnt = _sum_keep2(sel.astype(f32))
    nerr = _sum_keep2(nerr_map)
    dist = _sum_keep2(rd)

    out_ref[...] = _scalars_to_lane_row((cos_sum, cos_cnt, nerr, dist))[None]


def pallas_normal_dist_losses(rn, gt, dn, m, am, rd, *, n_pix, cos_thr):
    """rn/gt/dn: (R, 3*n_pix) interleaved-xyz; m/am: (R, n_pix); rd: (R, Crd).
    Returns (cos_sum, cos_cnt, nerr_sum, dist_sum)."""
    R, W3 = rn.shape
    assert W3 == 3 * n_pix
    Crd = rd.shape[1]
    S = jnp.asarray(_group_sum_matrix_np(n_pix), jnp.bfloat16)

    # Budget-driven row tile (~4 MiB of f32 blocks per step before double-buffering).
    bytes_per_row = (3 * W3 + 2 * n_pix + Crd) * 4
    max_rows = max(8, (4 * 1024 * 1024) // max(bytes_per_row, 1))
    if R <= max_rows:
        tr, grid_r, masked = R, 1, False
    else:
        tr = max(8, (max_rows // 8) * 8)
        grid_r = -(-R // tr)
        masked = (R % tr != 0)

    vec_spec = pl.BlockSpec((tr, W3), lambda i: (i, 0))
    sc_spec = pl.BlockSpec((tr, n_pix), lambda i: (i, 0))
    rd_spec = pl.BlockSpec((tr, Crd), lambda i: (i, 0))
    s_spec = pl.BlockSpec((W3, n_pix), lambda i: (0, 0))
    out_spec = pl.BlockSpec((1, 1, 128), lambda i: (i, 0, 0))

    out = pl.pallas_call(
        functools.partial(_normal_dist_kernel, cos_thr=cos_thr,
                          total_rows=R, tile_rows=tr, masked=masked),
        out_shape=jax.ShapeDtypeStruct((grid_r, 1, 128), jnp.float32),
        grid=(grid_r,),
        in_specs=[vec_spec, vec_spec, vec_spec, sc_spec, sc_spec, rd_spec, s_spec],
        out_specs=out_spec,
        compiler_params=pltpu.CompilerParams(dimension_semantics=("parallel",)),
    )(rn.astype(jnp.float32), gt.astype(jnp.float32), dn.astype(jnp.float32),
      m.astype(jnp.float32), am.astype(jnp.float32), rd.astype(jnp.float32), S)

    sums = jnp.sum(out[:, 0, :], axis=0)        # reduce per-tile partials in XLA
    return sums[0], sums[1], sums[2], sums[3]


# ----------------------------------------------------------------------------
# Losses.forward
# ----------------------------------------------------------------------------
def losses_forward(batch, output, iteration, start_triplane):
    scalar_stats = {}
    loss = jnp.float32(0.0)

    B, V, H, W = batch['tar_rgb'].shape[:4]
    VW = V * W
    tar_rgb = jnp.transpose(batch['tar_rgb'], (0, 2, 1, 3, 4)).reshape(B, H, VW, 3)
    mask = jnp.transpose(batch['mask'], (0, 2, 1, 3)).reshape(B, H, VW)[..., None]

    if 'image' in output:
        for prex in ['', '_fine']:
            if prex == '_fine' and f'acc_map{prex}' not in output:
                continue
            if start_triplane:
                img = output[f'image{prex}']

                # ---- MS-SSIM (all 5 levels, 1 launch) + fused MSE/PSNR ------
                X = jnp.transpose(img, (0, 3, 1, 2))        # (B, 3, H, VW)
                Y = jnp.transpose(tar_rgb, (0, 3, 1, 2))
                ssim_val, mse = ms_ssim_and_mse_pallas(X, Y)

                loss = loss + mse
                psnr = -10.0 * jnp.log(mse) / jnp.log(jnp.float32(10.0))
                scalar_stats[f'mse{prex}'] = mse
                scalar_stats[f'psnr{prex}'] = psnr
                scalar_stats[f'ssim{prex}'] = ssim_val
                loss = loss + 0.02 * (1.0 - ssim_val)

                # ---- distortion + normal losses (one fused kernel) ---------
                if f'rend_dist{prex}' in output and prex != '_fine':
                    rd = output[f'rend_dist{prex}']
                    rd2 = rd.reshape(B * H, -1)
                    rn2 = output[f'rend_normal{prex}'].reshape(B * H, VW * 3)
                    dn2 = output[f'depth_normal{prex}'].reshape(B * H, VW * 3)
                    am2 = output[f'acc_map{prex}'].reshape(B * H, VW)
                    m2 = mask.reshape(B * H, VW)
                    gt_nrm = batch['tar_nrm'] if 'tar_nrm' in batch else None
                    gt2 = (gt_nrm.reshape(B * H, VW * 3) if gt_nrm is not None
                           else jnp.zeros_like(rn2))

                    cos_sum, cos_cnt, nerr_sum, dist_sum = pallas_normal_dist_losses(
                        rn2, gt2, dn2, m2, am2, rd2,
                        n_pix=VW, cos_thr=float(np.cos(0.0)))

                    distortion = dist_sum / rd.size
                    scalar_stats[f'distortion{prex}'] = distortion
                    loss = loss + distortion * 1000.0

                    if gt_nrm is not None:
                        # NaN if the mask selects no pixels, matching torch's
                        # mean-of-empty behaviour.
                        loss_surface = cos_sum / cos_cnt
                        scalar_stats[f'normal{prex}'] = loss_surface
                        loss = loss + loss_surface * 0.2

                    normal_error = nerr_sum / (B * H * VW)
                    scalar_stats[f'depth_norm{prex}'] = normal_error
                    loss = loss + normal_error * 0.2
            elif 'pred_pc' in output:
                # TODO(synk): chamfer_distance point-cloud branch has no clean Pallas port here.
                raise NotImplementedError("chamfer_distance branch not implemented")
            else:
                raise NotImplementedError("There's no predicted point cloud in the output!!!")

    return loss, scalar_stats


# ----------------------------------------------------------------------------
# demo
# ----------------------------------------------------------------------------
if __name__ == "__main__":
    key = jax.random.PRNGKey(0)
    # MS-SSIM (5 levels, win=11) requires min spatial side > 160, so H = V*W = 176.
    B, V, H, W = 2, 2, 176, 88
    VW = V * W
    ks = jax.random.split(key, 8)

    def unit(k, shape):
        v = jax.random.normal(k, shape, jnp.float32)
        return v / (jnp.linalg.norm(v, axis=-1, keepdims=True) + 1e-8)

    tar_rgb = jax.random.uniform(ks[0], (B, V, H, W, 3), jnp.float32)
    mask = (jax.random.uniform(ks[1], (B, V, H, W), jnp.float32) > 0.3).astype(jnp.float32)
    tar_nrm = unit(ks[2], (B, H, VW, 3))
    batch = {'tar_rgb': tar_rgb, 'mask': mask, 'tar_nrm': tar_nrm}

    tar_rgb_r = jnp.transpose(tar_rgb, (0, 2, 1, 3, 4)).reshape(B, H, VW, 3)
    image = jnp.clip(tar_rgb_r + 0.1 * jax.random.normal(ks[3], tar_rgb_r.shape, jnp.float32),
                     0.0, 1.0)
    output = {
        'image': image,
        'rend_dist': 0.001 * jax.random.uniform(ks[4], (B, H, VW, 1), jnp.float32),
        'rend_normal': unit(ks[5], (B, H, VW, 3)),
        'depth_normal': unit(ks[6], (B, H, VW, 3)),
        'acc_map': jax.random.uniform(ks[7], (B, H, VW), jnp.float32),
    }

    loss, stats = losses_forward(batch, output, iteration=0, start_triplane=True)
    loss, stats = jax.block_until_ready((loss, stats))
    assert bool(jnp.isfinite(loss)), "loss is not finite"
    print("KERNEL_OK")
</pallas_src>

<mosaic_0001>
module attributes {stable_mosaic.version = 11 : i64} {
  func.func @_msssim_kernel(%arg0: i32, %arg1: memref<1x176x176xf32, #tpu.memory_space<vmem>>, %arg2: memref<1x176x176xf32, #tpu.memory_space<vmem>>, %arg3: memref<176x166xbf16, #tpu.memory_space<vmem>>, %arg4: memref<88x78xbf16, #tpu.memory_space<vmem>>, %arg5: memref<44x34xbf16, #tpu.memory_space<vmem>>, %arg6: memref<22x12xbf16, #tpu.memory_space<vmem>>, %arg7: memref<11x1xbf16, #tpu.memory_space<vmem>>, %arg8: memref<166x176xbf16, #tpu.memory_space<vmem>>, %arg9: memref<78x88xbf16, #tpu.memory_space<vmem>>, %arg10: memref<34x44xbf16, #tpu.memory_space<vmem>>, %arg11: memref<12x22xbf16, #tpu.memory_space<vmem>>, %arg12: memref<1x11xbf16, #tpu.memory_space<vmem>>, %arg13: memref<176x88xbf16, #tpu.memory_space<vmem>>, %arg14: memref<88x44xbf16, #tpu.memory_space<vmem>>, %arg15: memref<44x22xbf16, #tpu.memory_space<vmem>>, %arg16: memref<22x11xbf16, #tpu.memory_space<vmem>>, %arg17: memref<88x176xbf16, #tpu.memory_space<vmem>>, %arg18: memref<44x88xbf16, #tpu.memory_space<vmem>>, %arg19: memref<22x44xbf16, #tpu.memory_space<vmem>>, %arg20: memref<11x22xbf16, #tpu.memory_space<vmem>>, %arg21: memref<1x1x128xf32, #tpu.memory_space<vmem>>) attributes {dimension_semantics = [#tpu.dimension_semantics<parallel>], iteration_bounds = array<i64: 6>, scalar_prefetch = 0 : i64, scratch_operands = 0 : i64, tpu.core_type = #tpu.core_type<tc>, window_params = [{transform_indices = @transform_0, window_bounds = array<i64: 1, 176, 176>}, {transform_indices = @transform_1, window_bounds = array<i64: 1, 176, 176>}, {pipeline_mode = #tpu.pipeline_mode<synchronous>, transform_indices = @transform_2, window_bounds = array<i64: 176, 166>}, {pipeline_mode = #tpu.pipeline_mode<synchronous>, transform_indices = @transform_3, window_bounds = array<i64: 88, 78>}, {pipeline_mode = #tpu.pipeline_mode<synchronous>, transform_indices = @transform_4, window_bounds = array<i64: 44, 34>}, {pipeline_mode = #tpu.pipeline_mode<synchronous>, transform_indices = @transform_5, window_bounds = array<i64: 22, 12>}, {pipeline_mode = #tpu.pipeline_mode<synchronous>, transform_indices = @transform_6, window_bounds = array<i64: 11, 1>}, {pipeline_mode = #tpu.pipeline_mode<synchronous>, transform_indices = @transform_7, window_bounds = array<i64: 166, 176>}, {pipeline_mode = #tpu.pipeline_mode<synchronous>, transform_indices = @transform_8, window_bounds = array<i64: 78, 88>}, {pipeline_mode = #tpu.pipeline_mode<synchronous>, transform_indices = @transform_9, window_bounds = array<i64: 34, 44>}, {pipeline_mode = #tpu.pipeline_mode<synchronous>, transform_indices = @transform_10, window_bounds = array<i64: 12, 22>}, {pipeline_mode = #tpu.pipeline_mode<synchronous>, transform_indices = @transform_11, window_bounds = array<i64: 1, 11>}, {pipeline_mode = #tpu.pipeline_mode<synchronous>, transform_indices = @transform_12, window_bounds = array<i64: 176, 88>}, {pipeline_mode = #tpu.pipeline_mode<synchronous>, transform_indices = @transform_13, window_bounds = array<i64: 88, 44>}, {pipeline_mode = #tpu.pipeline_mode<synchronous>, transform_indices = @transform_14, window_bounds = array<i64: 44, 22>}, {pipeline_mode = #tpu.pipeline_mode<synchronous>, transform_indices = @transform_15, window_bounds = array<i64: 22, 11>}, {pipeline_mode = #tpu.pipeline_mode<synchronous>, transform_indices = @transform_16, window_bounds = array<i64: 88, 176>}, {pipeline_mode = #tpu.pipeline_mode<synchronous>, transform_indices = @transform_17, window_bounds = array<i64: 44, 88>}, {pipeline_mode = #tpu.pipeline_mode<synchronous>, transform_indices = @transform_18, window_bounds = array<i64: 22, 44>}, {pipeline_mode = #tpu.pipeline_mode<synchronous>, transform_indices = @transform_19, window_bounds = array<i64: 11, 22>}, {transform_indices = @transform_20, window_bounds = array<i64: 1, 1, 128>}]} {
    %c0 = arith.constant 0 : index
    %c0_0 = arith.constant 0 : index
    %c0_1 = arith.constant 0 : index
    %0 = vector.load %arg1[%c0, %c0_0, %c0_1] : memref<1x176x176xf32, #tpu.memory_space<vmem>>, vector<1x176x176xf32>
    %1 = vector.shape_cast %0 : vector<1x176x176xf32> to vector<176x176xf32>
    %c0_2 = arith.constant 0 : index
    %c0_3 = arith.constant 0 : index
    %c0_4 = arith.constant 0 : index
    %2 = vector.load %arg2[%c0_2, %c0_3, %c0_4] : memref<1x176x176xf32, #tpu.memory_space<vmem>>, vector<1x176x176xf32>
    %3 = vector.shape_cast %2 : vector<1x176x176xf32> to vector<176x176xf32>
    %4 = arith.subf %1, %3 : vector<176x176xf32>
    %5 = arith.mulf %4, %4 : vector<176x176xf32>
    %cst = arith.constant dense<0.000000e+00> : vector<176xf32>
    %6 = vector.multi_reduction <add>, %5, %cst [1] : vector<176x176xf32> to vector<176xf32>
    %7 = vector.shape_cast %6 : vector<176xf32> to vector<176x1xf32>
    %cst_5 = arith.constant dense<0.000000e+00> : vector<1xf32>
    %8 = vector.multi_reduction <add>, %7, %cst_5 [0] : vector<176x1xf32> to vector<1xf32>
    %9 = vector.shape_cast %8 : vector<1xf32> to vector<1x1xf32>
    %c0_6 = arith.constant 0 : index
    %c0_7 = arith.constant 0 : index
    %10 = vector.load %arg3[%c0_6, %c0_7] : memref<176x166xbf16, #tpu.memory_space<vmem>>, vector<176x166xbf16>
    %c0_8 = arith.constant 0 : index
    %c0_9 = arith.constant 0 : index
    %11 = vector.load %arg8[%c0_8, %c0_9] : memref<166x176xbf16, #tpu.memory_space<vmem>>, vector<166x176xbf16>
    %cst_10 = arith.constant 5.000000e-01 : f32
    %12 = vector.broadcast %cst_10 : f32 to vector<176x176xf32>
    %13 = arith.subf %1, %12 : vector<176x176xf32>
    %cst_11 = arith.constant 5.000000e-01 : f32
    %14 = vector.broadcast %cst_11 : f32 to vector<176x176xf32>
    %15 = arith.subf %3, %14 : vector<176x176xf32>
    %16 = arith.truncf %13 : vector<176x176xf32> to vector<176x176xbf16>
    %cst_12 = arith.constant dense<0.000000e+00> : vector<176x166xf32>
    %17 = tpu.matmul %16, %10, %cst_12 {dimension_numbers = #tpu.dot_dimension_numbers<[1], [0], [0], [1], [0, 0, 1, 1], [], []>} : vector<176x176xbf16>, vector<176x166xbf16>, vector<176x166xf32> -> vector<176x166xf32>
    %18 = arith.truncf %17 : vector<176x166xf32> to vector<176x166xbf16>
    %cst_13 = arith.constant dense<0.000000e+00> : vector<166x166xf32>
    %19 = tpu.matmul %11, %18, %cst_13 {dimension_numbers = #tpu.dot_dimension_numbers<[1], [0], [0], [1], [0, 0, 1, 1], [], []>} : vector<166x176xbf16>, vector<176x166xbf16>, vector<166x166xf32> -> vector<166x166xf32>
    %20 = arith.truncf %15 : vector<176x176xf32> to vector<176x176xbf16>
    %cst_14 = arith.constant dense<0.000000e+00> : vector<176x166xf32>
    %21 = tpu.matmul %20, %10, %cst_14 {dimension_numbers = #tpu.dot_dimension_numbers<[1], [0], [0], [1], [0, 0, 1, 1], [], []>} : vector<176x176xbf16>, vector<176x166xbf16>, vector<176x166xf32> -> vector<176x166xf32>
    %22 = arith.truncf %21 : vector<176x166xf32> to vector<176x166xbf16>
    %cst_15 = arith.constant dense<0.000000e+00> : vector<166x166xf32>
    %23 = tpu.matmul %11, %22, %cst_15 {dimension_numbers = #tpu.dot_dimension_numbers<[1], [0], [0], [1], [0, 0, 1, 1], [], []>} : vector<166x176xbf16>, vector<176x166xbf16>, vector<166x166xf32> -> vector<166x166xf32>
    %24 = arith.mulf %13, %13 : vector<176x176xf32>
    %25 = arith.truncf %24 : vector<176x176xf32> to vector<176x176xbf16>
    %cst_16 = arith.constant dense<0.000000e+00> : vector<176x166xf32>
    %26 = tpu.matmul %25, %10, %cst_16 {dimension_numbers = #tpu.dot_dimension_numbers<[1], [0], [0], [1], [0, 0, 1, 1], [], []>} : vector<176x176xbf16>, vector<176x166xbf16>, vector<176x166xf32> -> vector<176x166xf32>
    %27 = arith.truncf %26 : vector<176x166xf32> to vector<176x166xbf16>
    %cst_17 = arith.constant dense<0.000000e+00> : vector<166x166xf32>
    %28 = tpu.matmul %11, %27, %cst_17 {dimension_numbers = #tpu.dot_dimension_numbers<[1], [0], [0], [1], [0, 0, 1, 1], [], []>} : vector<166x176xbf16>, vector<176x166xbf16>, vector<166x166xf32> -> vector<166x166xf32>
    %29 = arith.mulf %15, %15 : vector<176x176xf32>
    %30 = arith.truncf %29 : vector<176x176xf32> to vector<176x176xbf16>
    %cst_18 = arith.constant dense<0.000000e+00> : vector<176x166xf32>
    %31 = tpu.matmul %30, %10, %cst_18 {dimension_numbers = #tpu.dot_dimension_numbers<[1], [0], [0], [1], [0, 0, 1, 1], [], []>} : vector<176x176xbf16>, vector<176x166xbf16>, vector<176x166xf32> -> vector<176x166xf32>
    %32 = arith.truncf %31 : vector<176x166xf32> to vector<176x166xbf16>
    %cst_19 = arith.constant dense<0.000000e+00> : vector<166x166xf32>
    %33 = tpu.matmul %11, %32, %cst_19 {dimension_numbers = #tpu.dot_dimension_numbers<[1], [0], [0], [1], [0, 0, 1, 1], [], []>} : vector<166x176xbf16>, vector<176x166xbf16>, vector<166x166xf32> -> vector<166x166xf32>
    %34 = arith.mulf %13, %15 : vector<176x176xf32>
    %35 = arith.truncf %34 : vector<176x176xf32> to vector<176x176xbf16>
    %cst_20 = arith.constant dense<0.000000e+00> : vector<176x166xf32>
    %36 = tpu.matmul %35, %10, %cst_20 {dimension_numbers = #tpu.dot_dimension_numbers<[1], [0], [0], [1], [0, 0, 1, 1], [], []>} : vector<176x176xbf16>, vector<176x166xbf16>, vector<176x166xf32> -> vector<176x166xf32>
    %37 = arith.truncf %36 : vector<176x166xf32> to vector<176x166xbf16>
    %cst_21 = arith.constant dense<0.000000e+00> : vector<166x166xf32>
    %38 = tpu.matmul %11, %37, %cst_21 {dimension_numbers = #tpu.dot_dimension_numbers<[1], [0], [0], [1], [0, 0, 1, 1], [], []>} : vector<166x176xbf16>, vector<176x166xbf16>, vector<166x166xf32> -> vector<166x166xf32>
    %39 = arith.mulf %19, %19 : vector<166x166xf32>
    %40 = arith.subf %28, %39 : vector<166x166xf32>
    %41 = arith.mulf %23, %23 : vector<166x166xf32>
    %42 = arith.subf %33, %41 : vector<166x166xf32>
    %43 = arith.mulf %19, %23 : vector<166x166xf32>
    %44 = arith.subf %38, %43 : vector<166x166xf32>
    %cst_22 = arith.constant 2.000000e+00 : f32
    %45 = vector.broadcast %cst_22 : f32 to vector<166x166xf32>
    %46 = arith.mulf %45, %44 : vector<166x166xf32>
    %cst_23 = arith.constant 8.99999984E-4 : f32
    %47 = vector.broadcast %cst_23 : f32 to vector<166x166xf32>
    %48 = arith.addf %46, %47 : vector<166x166xf32>
    %49 = arith.addf %40, %42 : vector<166x166xf32>
    %cst_24 = arith.constant 8.99999984E-4 : f32
    %50 = vector.broadcast %cst_24 : f32 to vector<166x166xf32>
    %51 = arith.addf %49, %50 : vector<166x166xf32>
    %52 = arith.divf %48, %51 : vector<166x166xf32>
    %cst_25 = arith.constant dense<0.000000e+00> : vector<166xf32>
    %53 = vector.multi_reduction <add>, %52, %cst_25 [1] : vector<166x166xf32> to vector<166xf32>
    %54 = vector.shape_cast %53 : vector<166xf32> to vector<166x1xf32>
    %cst_26 = arith.constant dense<0.000000e+00> : vector<1xf32>
    %55 = vector.multi_reduction <add>, %54, %cst_26 [0] : vector<166x1xf32> to vector<1xf32>
    %56 = vector.shape_cast %55 : vector<1xf32> to vector<1x1xf32>
    %cst_27 = arith.constant 3.62897372E-5 : f32
    %57 = vector.broadcast %cst_27 : f32 to vector<1x1xf32>
    %58 = arith.mulf %56, %57 : vector<1x1xf32>
    %cst_28 = arith.constant 0.000000e+00 : f32
    %59 = vector.broadcast %cst_28 : f32 to vector<1x1xf32>
    %60 = arith.maximumf %58, %59 : vector<1x1xf32>
    %c0_29 = arith.constant 0 : index
    %c0_30 = arith.constant 0 : index
    %61 = vector.load %arg13[%c0_29, %c0_30] : memref<176x88xbf16, #tpu.memory_space<vmem>>, vector<176x88xbf16>
    %c0_31 = arith.constant 0 : index
    %c0_32 = arith.constant 0 : index
    %62 = vector.load %arg17[%c0_31, %c0_32] : memref<88x176xbf16, #tpu.memory_space<vmem>>, vector<88x176xbf16>
    %63 = arith.truncf %1 : vector<176x176xf32> to vector<176x176xbf16>
    %cst_33 = arith.constant dense<0.000000e+00> : vector<176x88xf32>
    %64 = tpu.matmul %63, %61, %cst_33 {dimension_numbers = #tpu.dot_dimension_numbers<[1], [0], [0], [1], [0, 0, 1, 1], [], []>} : vector<176x176xbf16>, vector<176x88xbf16>, vector<176x88xf32> -> vector<176x88xf32>
    %65 = arith.truncf %64 : vector<176x88xf32> to vector<176x88xbf16>
    %cst_34 = arith.constant dense<0.000000e+00> : vector<88x88xf32>
    %66 = tpu.matmul %62, %65, %cst_34 {dimension_numbers = #tpu.dot_dimension_numbers<[1], [0], [0], [1], [0, 0, 1, 1], [], []>} : vector<88x176xbf16>, vector<176x88xbf16>, vector<88x88xf32> -> vector<88x88xf32>
    %67 = arith.truncf %3 : vector<176x176xf32> to vector<176x176xbf16>
    %cst_35 = arith.constant dense<0.000000e+00> : vector<176x88xf32>
    %68 = tpu.matmul %67, %61, %cst_35 {dimension_numbers = #tpu.dot_dimension_numbers<[1], [0], [0], [1], [0, 0, 1, 1], [], []>} : vector<176x176xbf16>, vector<176x88xbf16>, vector<176x88xf32> -> vector<176x88xf32>
    %69 = arith.truncf %68 : vector<176x88xf32> to vector<176x88xbf16>
    %cst_36 = arith.constant dense<0.000000e+00> : vector<88x88xf32>
    %70 = tpu.matmul %62, %69, %cst_36 {dimension_numbers = #tpu.dot_dimension_numbers<[1], [0], [0], [1], [0, 0, 1, 1], [], []>} : vector<88x176xbf16>, vector<176x88xbf16>, vector<88x88xf32> -> vector<88x88xf32>
    %c0_37 = arith.constant 0 : index
    %c0_38 = arith.constant 0 : index
    %71 = vector.load %arg4[%c0_37, %c0_38] : memref<88x78xbf16, #tpu.memory_space<vmem>>, vector<88x78xbf16>
    %c0_39 = arith.constant 0 : index
    %c0_40 = arith.constant 0 : index
    %72 = vector.load %arg9[%c0_39, %c0_40] : memref<78x88xbf16, #tpu.memory_space<vmem>>, vector<78x88xbf16>
    %cst_41 = arith.constant 5.000000e-01 : f32
    %73 = vector.broadcast %cst_41 : f32 to vector<88x88xf32>
    %74 = arith.subf %66, %73 : vector<88x88xf32>
    %cst_42 = arith.constant 5.000000e-01 : f32
    %75 = vector.broadcast %cst_42 : f32 to vector<88x88xf32>
    %76 = arith.subf %70, %75 : vector<88x88xf32>
    %77 = arith.truncf %74 : vector<88x88xf32> to vector<88x88xbf16>
    %cst_43 = arith.constant dense<0.000000e+00> : vector<88x78xf32>
    %78 = tpu.matmul %77, %71, %cst_43 {dimension_numbers = #tpu.dot_dimension_numbers<[1], [0], [0], [1], [0, 0, 1, 1], [], []>} : vector<88x88xbf16>, vector<88x78xbf16>, vector<88x78xf32> -> vector<88x78xf32>
    %79 = arith.truncf %78 : vector<88x78xf32> to vector<88x78xbf16>
    %cst_44 = arith.constant dense<0.000000e+00> : vector<78x78xf32>
    %80 = tpu.matmul %72, %79, %cst_44 {dimension_numbers = #tpu.dot_dimension_numbers<[1], [0], [0], [1], [0, 0, 1, 1], [], []>} : vector<78x88xbf16>, vector<88x78xbf16>, vector<78x78xf32> -> vector<78x78xf32>
    %81 = arith.truncf %76 : vector<88x88xf32> to vector<88x88xbf16>
    %cst_45 = arith.constant dense<0.000000e+00> : vector<88x78xf32>
    %82 = tpu.matmul %81, %71, %cst_45 {dimension_numbers = #tpu.dot_dimension_numbers<[1], [0], [0], [1], [0, 0, 1, 1], [], []>} : vector<88x88xbf16>, vector<88x78xbf16>, vector<88x78xf32> -> vector<88x78xf32>
    %83 = arith.truncf %82 : vector<88x78xf32> to vector<88x78xbf16>
    %cst_46 = arith.constant dense<0.000000e+00> : vector<78x78xf32>
    %84 = tpu.matmul %72, %83, %cst_46 {dimension_numbers = #tpu.dot_dimension_numbers<[1], [0], [0], [1], [0, 0, 1, 1], [], []>} : vector<78x88xbf16>, vector<88x78xbf16>, vector<78x78xf32> -> vector<78x78xf32>
    %85 = arith.mulf %74, %74 : vector<88x88xf32>
    %86 = arith.truncf %85 : vector<88x88xf32> to vector<88x88xbf16>
    %cst_47 = arith.constant dense<0.000000e+00> : vector<88x78xf32>
    %87 = tpu.matmul %86, %71, %cst_47 {dimension_numbers = #tpu.dot_dimension_numbers<[1], [0], [0], [1], [0, 0, 1, 1], [], []>} : vector<88x88xbf16>, vector<88x78xbf16>, vector<88x78xf32> -> vector<88x78xf32>
    %88 = arith.truncf %87 : vector<88x78xf32> to vector<88x78xbf16>
    %cst_48 = arith.constant dense<0.000000e+00> : vector<78x78xf32>
    %89 = tpu.matmul %72, %88, %cst_48 {dimension_numbers = #tpu.dot_dimension_numbers<[1], [0], [0], [1], [0, 0, 1, 1], [], []>} : vector<78x88xbf16>, vector<88x78xbf16>, vector<78x78xf32> -> vector<78x78xf32>
    %90 = arith.mulf %76, %76 : vector<88x88xf32>
    %91 = arith.truncf %90 : vector<88x88xf32> to vector<88x88xbf16>
    %cst_49 = arith.constant dense<0.000000e+00> : vector<88x78xf32>
    %92 = tpu.matmul %91, %71, %cst_49 {dimension_numbers = #tpu.dot_dimension_numbers<[1], [0], [0], [1], [0, 0, 1, 1], [], []>} : vector<88x88xbf16>, vector<88x78xbf16>, vector<88x78xf32> -> vector<88x78xf32>
    %93 = arith.truncf %92 : vector<88x78xf32> to vector<88x78xbf16>
    %cst_50 = arith.constant dense<0.000000e+00> : vector<78x78xf32>
    %94 = tpu.matmul %72, %93, %cst_50 {dimension_numbers = #tpu.dot_dimension_numbers<[1], [0], [0], [1], [0, 0, 1, 1], [], []>} : vector<78x88xbf16>, vector<88x78xbf16>, vector<78x78xf32> -> vector<78x78xf32>
    %95 = arith.mulf %74, %76 : vector<88x88xf32>
    %96 = arith.truncf %95 : vector<88x88xf32> to vector<88x88xbf16>
    %cst_51 = arith.constant dense<0.000000e+00> : vector<88x78xf32>
    %97 = tpu.matmul %96, %71, %cst_51 {dimension_numbers = #tpu.dot_dimension_numbers<[1], [0], [0], [1], [0, 0, 1, 1], [], []>} : vector<88x88xbf16>, vector<88x78xbf16>, vector<88x78xf32> -> vector<88x78xf32>
    %98 = arith.truncf %97 : vector<88x78xf32> to vector<88x78xbf16>
    %cst_52 = arith.constant dense<0.000000e+00> : vector<78x78xf32>
    %99 = tpu.matmul %72, %98, %cst_52 {dimension_numbers = #tpu.dot_dimension_numbers<[1], [0], [0], [1], [0, 0, 1, 1], [], []>} : vector<78x88xbf16>, vector<88x78xbf16>, vector<78x78xf32> -> vector<78x78xf32>
    %100 = arith.mulf %80, %80 : vector<78x78xf32>
    %101 = arith.subf %89, %100 : vector<78x78xf32>
    %102 = arith.mulf %84, %84 : vector<78x78xf32>
    %103 = arith.subf %94, %102 : vector<78x78xf32>
    %104 = arith.mulf %80, %84 : vector<78x78xf32>
    %105 = arith.subf %99, %104 : vector<78x78xf32>
    %cst_53 = arith.constant 2.000000e+00 : f32
    %106 = vector.broadcast %cst_53 : f32 to vector<78x78xf32>
    %107 = arith.mulf %106, %105 : vector<78x78xf32>
    %cst_54 = arith.constant 8.99999984E-4 : f32
    %108 = vector.broadcast %cst_54 : f32 to vector<78x78xf32>
    %109 = arith.addf %107, %108 : vector<78x78xf32>
    %110 = arith.addf %101, %103 : vector<78x78xf32>
    %cst_55 = arith.constant 8.99999984E-4 : f32
    %111 = vector.broadcast %cst_55 : f32 to vector<78x78xf32>
    %112 = arith.addf %110, %111 : vector<78x78xf32>
    %113 = arith.divf %109, %112 : vector<78x78xf32>
    %cst_56 = arith.constant dense<0.000000e+00> : vector<78xf32>
    %114 = vector.multi_reduction <add>, %113, %cst_56 [1] : vector<78x78xf32> to vector<78xf32>
    %115 = vector.shape_cast %114 : vector<78xf32> to vector<78x1xf32>
    %cst_57 = arith.constant dense<0.000000e+00> : vector<1xf32>
    %116 = vector.multi_reduction <add>, %115, %cst_57 [0] : vector<78x1xf32> to vector<1xf32>
    %117 = vector.shape_cast %116 : vector<1xf32> to vector<1x1xf32>
    %cst_58 = arith.constant 1.64365556E-4 : f32
    %118 = vector.broadcast %cst_58 : f32 to vector<1x1xf32>
    %119 = arith.mulf %117, %118 : vector<1x1xf32>
    %cst_59 = arith.constant 0.000000e+00 : f32
    %120 = vector.broadcast %cst_59 : f32 to vector<1x1xf32>
    %121 = arith.maximumf %119, %120 : vector<1x1xf32>
    %c0_60 = arith.constant 0 : index
    %c0_61 = arith.constant 0 : index
    %122 = vector.load %arg14[%c0_60, %c0_61] : memref<88x44xbf16, #tpu.memory_space<vmem>>, vector<88x44xbf16>
    %c0_62 = arith.constant 0 : index
    %c0_63 = arith.constant 0 : index
    %123 = vector.load %arg18[%c0_62, %c0_63] : memref<44x88xbf16, #tpu.memory_space<vmem>>, vector<44x88xbf16>
    %124 = arith.truncf %66 : vector<88x88xf32> to vector<88x88xbf16>
    %cst_64 = arith.constant dense<0.000000e+00> : vector<88x44xf32>
    %125 = tpu.matmul %124, %122, %cst_64 {dimension_numbers = #tpu.dot_dimension_numbers<[1], [0], [0], [1], [0, 0, 1, 1], [], []>} : vector<88x88xbf16>, vector<88x44xbf16>, vector<88x44xf32> -> vector<88x44xf32>
    %126 = arith.truncf %125 : vector<88x44xf32> to vector<88x44xbf16>
    %cst_65 = arith.constant dense<0.000000e+00> : vector<44x44xf32>
    %127 = tpu.matmul %123, %126, %cst_65 {dimension_numbers = #tpu.dot_dimension_numbers<[1], [0], [0], [1], [0, 0, 1, 1], [], []>} : vector<44x88xbf16>, vector<88x44xbf16>, vector<44x44xf32> -> vector<44x44xf32>
    %128 = arith.truncf %70 : vector<88x88xf32> to vector<88x88xbf16>
    %cst_66 = arith.constant dense<0.000000e+00> : vector<88x44xf32>
    %129 = tpu.matmul %128, %122, %cst_66 {dimension_numbers = #tpu.dot_dimension_numbers<[1], [0], [0], [1], [0, 0, 1, 1], [], []>} : vector<88x88xbf16>, vector<88x44xbf16>, vector<88x44xf32> -> vector<88x44xf32>
    %130 = arith.truncf %129 : vector<88x44xf32> to vector<88x44xbf16>
    %cst_67 = arith.constant dense<0.000000e+00> : vector<44x44xf32>
    %131 = tpu.matmul %123, %130, %cst_67 {dimension_numbers = #tpu.dot_dimension_numbers<[1], [0], [0], [1], [0, 0, 1, 1], [], []>} : vector<44x88xbf16>, vector<88x44xbf16>, vector<44x44xf32> -> vector<44x44xf32>
    %c0_68 = arith.constant 0 : index
    %c0_69 = arith.constant 0 : index
    %132 = vector.load %arg5[%c0_68, %c0_69] : memref<44x34xbf16, #tpu.memory_space<vmem>>, vector<44x34xbf16>
    %c0_70 = arith.constant 0 : index
    %c0_71 = arith.constant 0 : index
    %133 = vector.load %arg10[%c0_70, %c0_71] : memref<34x44xbf16, #tpu.memory_space<vmem>>, vector<34x44xbf16>
    %cst_72 = arith.constant 5.000000e-01 : f32
    %134 = vector.broadcast %cst_72 : f32 to vector<44x44xf32>
    %135 = arith.subf %127, %134 : vector<44x44xf32>
    %cst_73 = arith.constant 5.000000e-01 : f32
    %136 = vector.broadcast %cst_73 : f32 to vector<44x44xf32>
    %137 = arith.subf %131, %136 : vector<44x44xf32>
    %138 = arith.truncf %135 : vector<44x44xf32> to vector<44x44xbf16>
    %cst_74 = arith.constant dense<0.000000e+00> : vector<44x34xf32>
    %139 = tpu.matmul %138, %132, %cst_74 {dimension_numbers = #tpu.dot_dimension_numbers<[1], [0], [0], [1], [0, 0, 1, 1], [], []>} : vector<44x44xbf16>, vector<44x34xbf16>, vector<44x34xf32> -> vector<44x34xf32>
    %140 = arith.truncf %139 : vector<44x34xf32> to vector<44x34xbf16>
    %cst_75 = arith.constant dense<0.000000e+00> : vector<34x34xf32>
    %141 = tpu.matmul %133, %140, %cst_75 {dimension_numbers = #tpu.dot_dimension_numbers<[1], [0], [0], [1], [0, 0, 1, 1], [], []>} : vector<34x44xbf16>, vector<44x34xbf16>, vector<34x34xf32> -> vector<34x34xf32>
    %142 = arith.truncf %137 : vector<44x44xf32> to vector<44x44xbf16>
    %cst_76 = arith.constant dense<0.000000e+00> : vector<44x34xf32>
    %143 = tpu.matmul %142, %132, %cst_76 {dimension_numbers = #tpu.dot_dimension_numbers<[1], [0], [0], [1], [0, 0, 1, 1], [], []>} : vector<44x44xbf16>, vector<44x34xbf16>, vector<44x34xf32> -> vector<44x34xf32>
    %144 = arith.truncf %143 : vector<44x34xf32> to vector<44x34xbf16>
    %cst_77 = arith.constant dense<0.000000e+00> : vector<34x34xf32>
    %145 = tpu.matmul %133, %144, %cst_77 {dimension_numbers = #tpu.dot_dimension_numbers<[1], [0], [0], [1], [0, 0, 1, 1], [], []>} : vector<34x44xbf16>, vector<44x34xbf16>, vector<34x34xf32> -> vector<34x34xf32>
    %146 = arith.mulf %135, %135 : vector<44x44xf32>
    %147 = arith.truncf %146 : vector<44x44xf32> to vector<44x44xbf16>
    %cst_78 = arith.constant dense<0.000000e+00> : vector<44x34xf32>
    %148 = tpu.matmul %147, %132, %cst_78 {dimension_numbers = #tpu.dot_dimension_numbers<[1], [0], [0], [1], [0, 0, 1, 1], [], []>} : vector<44x44xbf16>, vector<44x34xbf16>, vector<44x34xf32> -> vector<44x34xf32>
    %149 = arith.truncf %148 : vector<44x34xf32> to vector<44x34xbf16>
    %cst_79 = arith.constant dense<0.000000e+00> : vector<34x34xf32>
    %150 = tpu.matmul %133, %149, %cst_79 {dimension_numbers = #tpu.dot_dimension_numbers<[1], [0], [0], [1], [0, 0, 1, 1], [], []>} : vector<34x44xbf16>, vector<44x34xbf16>, vector<34x34xf32> -> vector<34x34xf32>
    %151 = arith.mulf %137, %137 : vector<44x44xf32>
    %152 = arith.truncf %151 : vector<44x44xf32> to vector<44x44xbf16>
    %cst_80 = arith.constant dense<0.000000e+00> : vector<44x34xf32>
    %153 = tpu.matmul %152, %132, %cst_80 {dimension_numbers = #tpu.dot_dimension_numbers<[1], [0], [0], [1], [0, 0, 1, 1], [], []>} : vector<44x44xbf16>, vector<44x34xbf16>, vector<44x34xf32> -> vector<44x34xf32>
    %154 = arith.truncf %153 : vector<44x34xf32> to vector<44x34xbf16>
    %cst_81 = arith.constant dense<0.000000e+00> : vector<34x34xf32>
    %155 = tpu.matmul %133, %154, %cst_81 {dimension_numbers = #tpu.dot_dimension_numbers<[1], [0], [0], [1], [0, 0, 1, 1], [], []>} : vector<34x44xbf16>, vector<44x34xbf16>, vector<34x34xf32> -> vector<34x34xf32>
    %156 = arith.mulf %135, %137 : vector<44x44xf32>
    %157 = arith.truncf %156 : vector<44x44xf32> to vector<44x44xbf16>
    %cst_82 = arith.constant dense<0.000000e+00> : vector<44x34xf32>
    %158 = tpu.matmul %157, %132, %cst_82 {dimension_numbers = #tpu.dot_dimension_numbers<[1], [0], [0], [1], [0, 0, 1, 1], [], []>} : vector<44x44xbf16>, vector<44x34xbf16>, vector<44x34xf32> -> vector<44x34xf32>
    %159 = arith.truncf %158 : vector<44x34xf32> to vector<44x34xbf16>
    %cst_83 = arith.constant dense<0.000000e+00> : vector<34x34xf32>
    %160 = tpu.matmul %133, %159, %cst_83 {dimension_numbers = #tpu.dot_dimension_numbers<[1], [0], [0], [1], [0, 0, 1, 1], [], []>} : vector<34x44xbf16>, vector<44x34xbf16>, vector<34x34xf32> -> vector<34x34xf32>
    %161 = arith.mulf %141, %141 : vector<34x34xf32>
    %162 = arith.subf %150, %161 : vector<34x34xf32>
    %163 = arith.mulf %145, %145 : vector<34x34xf32>
    %164 = arith.subf %155, %163 : vector<34x34xf32>
    %165 = arith.mulf %141, %145 : vector<34x34xf32>
    %166 = arith.subf %160, %165 : vector<34x34xf32>
    %cst_84 = arith.constant 2.000000e+00 : f32
    %167 = vector.broadcast %cst_84 : f32 to vector<34x34xf32>
    %168 = arith.mulf %167, %166 : vector<34x34xf32>
    %cst_85 = arith.constant 8.99999984E-4 : f32
    %169 = vector.broadcast %cst_85 : f32 to vector<34x34xf32>
    %170 = arith.addf %168, %169 : vector<34x34xf32>
    %171 = arith.addf %162, %164 : vector<34x34xf32>
    %cst_86 = arith.constant 8.99999984E-4 : f32
    %172 = vector.broadcast %cst_86 : f32 to vector<34x34xf32>
    %173 = arith.addf %171, %172 : vector<34x34xf32>
    %174 = arith.divf %170, %173 : vector<34x34xf32>
    %cst_87 = arith.constant dense<0.000000e+00> : vector<34xf32>
    %175 = vector.multi_reduction <add>, %174, %cst_87 [1] : vector<34x34xf32> to vector<34xf32>
    %176 = vector.shape_cast %175 : vector<34xf32> to vector<34x1xf32>
    %cst_88 = arith.constant dense<0.000000e+00> : vector<1xf32>
    %177 = vector.multi_reduction <add>, %176, %cst_88 [0] : vector<34x1xf32> to vector<1xf32>
    %178 = vector.shape_cast %177 : vector<1xf32> to vector<1x1xf32>
    %cst_89 = arith.constant 8.6505193E-4 : f32
    %179 = vector.broadcast %cst_89 : f32 to vector<1x1xf32>
    %180 = arith.mulf %178, %179 : vector<1x1xf32>
    %cst_90 = arith.constant 0.000000e+00 : f32
    %181 = vector.broadcast %cst_90 : f32 to vector<1x1xf32>
    %182 = arith.maximumf %180, %181 : vector<1x1xf32>
    %c0_91 = arith.constant 0 : index
    %c0_92 = arith.constant 0 : index
    %183 = vector.load %arg15[%c0_91, %c0_92] : memref<44x22xbf16, #tpu.memory_space<vmem>>, vector<44x22xbf16>
    %c0_93 = arith.constant 0 : index
    %c0_94 = arith.constant 0 : index
    %184 = vector.load %arg19[%c0_93, %c0_94] : memref<22x44xbf16, #tpu.memory_space<vmem>>, vector<22x44xbf16>
    %185 = arith.truncf %127 : vector<44x44xf32> to vector<44x44xbf16>
    %cst_95 = arith.constant dense<0.000000e+00> : vector<44x22xf32>
    %186 = tpu.matmul %185, %183, %cst_95 {dimension_numbers = #tpu.dot_dimension_numbers<[1], [0], [0], [1], [0, 0, 1, 1], [], []>} : vector<44x44xbf16>, vector<44x22xbf16>, vector<44x22xf32> -> vector<44x22xf32>
    %187 = arith.truncf %186 : vector<44x22xf32> to vector<44x22xbf16>
    %cst_96 = arith.constant dense<0.000000e+00> : vector<22x22xf32>
    %188 = tpu.matmul %184, %187, %cst_96 {dimension_numbers = #tpu.dot_dimension_numbers<[1], [0], [0], [1], [0, 0, 1, 1], [], []>} : vector<22x44xbf16>, vector<44x22xbf16>, vector<22x22xf32> -> vector<22x22xf32>
    %189 = arith.truncf %131 : vector<44x44xf32> to vector<44x44xbf16>
    %cst_97 = arith.constant dense<0.000000e+00> : vector<44x22xf32>
    %190 = tpu.matmul %189, %183, %cst_97 {dimension_numbers = #tpu.dot_dimension_numbers<[1], [0], [0], [1], [0, 0, 1, 1], [], []>} : vector<44x44xbf16>, vector<44x22xbf16>, vector<44x22xf32> -> vector<44x22xf32>
    %191 = arith.truncf %190 : vector<44x22xf32> to vector<44x22xbf16>
    %cst_98 = arith.constant dense<0.000000e+00> : vector<22x22xf32>
    %192 = tpu.matmul %184, %191, %cst_98 {dimension_numbers = #tpu.dot_dimension_numbers<[1], [0], [0], [1], [0, 0, 1, 1], [], []>} : vector<22x44xbf16>, vector<44x22xbf16>, vector<22x22xf32> -> vector<22x22xf32>
    %c0_99 = arith.constant 0 : index
    %c0_100 = arith.constant 0 : index
    %193 = vector.load %arg6[%c0_99, %c0_100] : memref<22x12xbf16, #tpu.memory_space<vmem>>, vector<22x12xbf16>
    %c0_101 = arith.constant 0 : index
    %c0_102 = arith.constant 0 : index
    %194 = vector.load %arg11[%c0_101, %c0_102] : memref<12x22xbf16, #tpu.memory_space<vmem>>, vector<12x22xbf16>
    %cst_103 = arith.constant 5.000000e-01 : f32
    %195 = vector.broadcast %cst_103 : f32 to vector<22x22xf32>
    %196 = arith.subf %188, %195 : vector<22x22xf32>
    %cst_104 = arith.constant 5.000000e-01 : f32
    %197 = vector.broadcast %cst_104 : f32 to vector<22x22xf32>
    %198 = arith.subf %192, %197 : vector<22x22xf32>
    %199 = arith.truncf %196 : vector<22x22xf32> to vector<22x22xbf16>
    %cst_105 = arith.constant dense<0.000000e+00> : vector<22x12xf32>
    %200 = tpu.matmul %199, %193, %cst_105 {dimension_numbers = #tpu.dot_dimension_numbers<[1], [0], [0], [1], [0, 0, 1, 1], [], []>} : vector<22x22xbf16>, vector<22x12xbf16>, vector<22x12xf32> -> vector<22x12xf32>
    %201 = arith.truncf %200 : vector<22x12xf32> to vector<22x12xbf16>
    %cst_106 = arith.constant dense<0.000000e+00> : vector<12x12xf32>
    %202 = tpu.matmul %194, %201, %cst_106 {dimension_numbers = #tpu.dot_dimension_numbers<[1], [0], [0], [1], [0, 0, 1, 1], [], []>} : vector<12x22xbf16>, vector<22x12xbf16>, vector<12x12xf32> -> vector<12x12xf32>
    %203 = arith.truncf %198 : vector<22x22xf32> to vector<22x22xbf16>
    %cst_107 = arith.constant dense<0.000000e+00> : vector<22x12xf32>
    %204 = tpu.matmul %203, %193, %cst_107 {dimension_numbers = #tpu.dot_dimension_numbers<[1], [0], [0], [1], [0, 0, 1, 1], [], []>} : vector<22x22xbf16>, vector<22x12xbf16>, vector<22x12xf32> -> vector<22x12xf32>
    %205 = arith.truncf %204 : vector<22x12xf32> to vector<22x12xbf16>
    %cst_108 = arith.constant dense<0.000000e+00> : vector<12x12xf32>
    %206 = tpu.matmul %194, %205, %cst_108 {dimension_numbers = #tpu.dot_dimension_numbers<[1], [0], [0], [1], [0, 0, 1, 1], [], []>} : vector<12x22xbf16>, vector<22x12xbf16>, vector<12x12xf32> -> vector<12x12xf32>
    %207 = arith.mulf %196, %196 : vector<22x22xf32>
    %208 = arith.truncf %207 : vector<22x22xf32> to vector<22x22xbf16>
    %cst_109 = arith.constant dense<0.000000e+00> : vector<22x12xf32>
    %209 = tpu.matmul %208, %193, %cst_109 {dimension_numbers = #tpu.dot_dimension_numbers<[1], [0], [0], [1], [0, 0, 1, 1], [], []>} : vector<22x22xbf16>, vector<22x12xbf16>, vector<22x12xf32> -> vector<22x12xf32>
    %210 = arith.truncf %209 : vector<22x12xf32> to vector<22x12xbf16>
    %cst_110 = arith.constant dense<0.000000e+00> : vector<12x12xf32>
    %211 = tpu.matmul %194, %210, %cst_110 {dimension_numbers = #tpu.dot_dimension_numbers<[1], [0], [0], [1], [0, 0, 1, 1], [], []>} : vector<12x22xbf16>, vector<22x12xbf16>, vector<12x12xf32> -> vector<12x12xf32>
    %212 = arith.mulf %198, %198 : vector<22x22xf32>
    %213 = arith.truncf %212 : vector<22x22xf32> to vector<22x22xbf16>
    %cst_111 = arith.constant dense<0.000000e+00> : vector<22x12xf32>
    %214 = tpu.matmul %213, %193, %cst_111 {dimension_numbers = #tpu.dot_dimension_numbers<[1], [0], [0], [1], [0, 0, 1, 1], [], []>} : vector<22x22xbf16>, vector<22x12xbf16>, vector<22x12xf32> -> vector<22x12xf32>
    %215 = arith.truncf %214 : vector<22x12xf32> to vector<22x12xbf16>
    %cst_112 = arith.constant dense<0.000000e+00> : vector<12x12xf32>
    %216 = tpu.matmul %194, %215, %cst_112 {dimension_numbers = #tpu.dot_dimension_numbers<[1], [0], [0], [1], [0, 0, 1, 1], [], []>} : vector<12x22xbf16>, vector<22x12xbf16>, vector<12x12xf32> -> vector<12x12xf32>
    %217 = arith.mulf %196, %198 : vector<22x22xf32>
    %218 = arith.truncf %217 : vector<22x22xf32> to vector<22x22xbf16>
    %cst_113 = arith.constant dense<0.000000e+00> : vector<22x12xf32>
    %219 = tpu.matmul %218, %193, %cst_113 {dimension_numbers = #tpu.dot_dimension_numbers<[1], [0], [0], [1], [0, 0, 1, 1], [], []>} : vector<22x22xbf16>, vector<22x12xbf16>, vector<22x12xf32> -> vector<22x12xf32>
    %220 = arith.truncf %219 : vector<22x12xf32> to vector<22x12xbf16>
    %cst_114 = arith.constant dense<0.000000e+00> : vector<12x12xf32>
    %221 = tpu.matmul %194, %220, %cst_114 {dimension_numbers = #tpu.dot_dimension_numbers<[1], [0], [0], [1], [0, 0, 1, 1], [], []>} : vector<12x22xbf16>, vector<22x12xbf16>, vector<12x12xf32> -> vector<12x12xf32>
    %222 = arith.mulf %202, %202 : vector<12x12xf32>
    %223 = arith.subf %211, %222 : vector<12x12xf32>
    %224 = arith.mulf %206, %206 : vector<12x12xf32>
    %225 = arith.subf %216, %224 : vector<12x12xf32>
    %226 = arith.mulf %202, %206 : vector<12x12xf32>
    %227 = arith.subf %221, %226 : vector<12x12xf32>
    %cst_115 = arith.constant 2.000000e+00 : f32
    %228 = vector.broadcast %cst_115 : f32 to vector<12x12xf32>
    %229 = arith.mulf %228, %227 : vector<12x12xf32>
    %cst_116 = arith.constant 8.99999984E-4 : f32
    %230 = vector.broadcast %cst_116 : f32 to vector<12x12xf32>
    %231 = arith.addf %229, %230 : vector<12x12xf32>
    %232 = arith.addf %223, %225 : vector<12x12xf32>
    %cst_117 = arith.constant 8.99999984E-4 : f32
    %233 = vector.broadcast %cst_117 : f32 to vector<12x12xf32>
    %234 = arith.addf %232, %233 : vector<12x12xf32>
    %235 = arith.divf %231, %234 : vector<12x12xf32>
    %cst_118 = arith.constant dense<0.000000e+00> : vector<12xf32>
    %236 = vector.multi_reduction <add>, %235, %cst_118 [1] : vector<12x12xf32> to vector<12xf32>
    %237 = vector.shape_cast %236 : vector<12xf32> to vector<12x1xf32>
    %cst_119 = arith.constant dense<0.000000e+00> : vector<1xf32>
    %238 = vector.multi_reduction <add>, %237, %cst_119 [0] : vector<12x1xf32> to vector<1xf32>
    %239 = vector.shape_cast %238 : vector<1xf32> to vector<1x1xf32>
    %cst_120 = arith.constant 0.0069444445 : f32
    %240 = vector.broadcast %cst_120 : f32 to vector<1x1xf32>
    %241 = arith.mulf %239, %240 : vector<1x1xf32>
    %cst_121 = arith.constant 0.000000e+00 : f32
    %242 = vector.broadcast %cst_121 : f32 to vector<1x1xf32>
    %243 = arith.maximumf %241, %242 : vector<1x1xf32>
    %c0_122 = arith.constant 0 : index
    %c0_123 = arith.constant 0 : index
    %244 = vector.load %arg16[%c0_122, %c0_123] : memref<22x11xbf16, #tpu.memory_space<vmem>>, vector<22x11xbf16>
    %c0_124 = arith.constant 0 : index
    %c0_125 = arith.constant 0 : index
    %245 = vector.load %arg20[%c0_124, %c0_125] : memref<11x22xbf16, #tpu.memory_space<vmem>>, vector<11x22xbf16>
    %246 = arith.truncf %188 : vector<22x22xf32> to vector<22x22xbf16>
    %cst_126 = arith.constant dense<0.000000e+00> : vector<22x11xf32>
    %247 = tpu.matmul %246, %244, %cst_126 {dimension_numbers = #tpu.dot_dimension_numbers<[1], [0], [0], [1], [0, 0, 1, 1], [], []>} : vector<22x22xbf16>, vector<22x11xbf16>, vector<22x11xf32> -> vector<22x11xf32>
    %248 = arith.truncf %247 : vector<22x11xf32> to vector<22x11xbf16>
    %cst_127 = arith.constant dense<0.000000e+00> : vector<11x11xf32>
    %249 = tpu.matmul %245, %248, %cst_127 {dimension_numbers = #tpu.dot_dimension_numbers<[1], [0], [0], [1], [0, 0, 1, 1], [], []>} : vector<11x22xbf16>, vector<22x11xbf16>, vector<11x11xf32> -> vector<11x11xf32>
    %250 = arith.truncf %192 : vector<22x22xf32> to vector<22x22xbf16>
    %cst_128 = arith.constant dense<0.000000e+00> : vector<22x11xf32>
    %251 = tpu.matmul %250, %244, %cst_128 {dimension_numbers = #tpu.dot_dimension_numbers<[1], [0], [0], [1], [0, 0, 1, 1], [], []>} : vector<22x22xbf16>, vector<22x11xbf16>, vector<22x11xf32> -> vector<22x11xf32>
    %252 = arith.truncf %251 : vector<22x11xf32> to vector<22x11xbf16>
    %cst_129 = arith.constant dense<0.000000e+00> : vector<11x11xf32>
    %253 = tpu.matmul %245, %252, %cst_129 {dimension_numbers = #tpu.dot_dimension_numbers<[1], [0], [0], [1], [0, 0, 1, 1], [], []>} : vector<11x22xbf16>, vector<22x11xbf16>, vector<11x11xf32> -> vector<11x11xf32>
    %c0_130 = arith.constant 0 : index
    %c0_131 = arith.constant 0 : index
    %254 = vector.load %arg7[%c0_130, %c0_131] : memref<11x1xbf16, #tpu.memory_space<vmem>>, vector<11x1xbf16>
    %c0_132 = arith.constant 0 : index
    %c0_133 = arith.constant 0 : index
    %255 = vector.load %arg12[%c0_132, %c0_133] : memref<1x11xbf16, #tpu.memory_space<vmem>>, vector<1x11xbf16>
    %cst_134 = arith.constant 5.000000e-01 : f32
    %256 = vector.broadcast %cst_134 : f32 to vector<11x11xf32>
    %257 = arith.subf %249, %256 : vector<11x11xf32>
    %cst_135 = arith.constant 5.000000e-01 : f32
    %258 = vector.broadcast %cst_135 : f32 to vector<11x11xf32>
    %259 = arith.subf %253, %258 : vector<11x11xf32>
    %260 = arith.truncf %257 : vector<11x11xf32> to vector<11x11xbf16>
    %cst_136 = arith.constant dense<0.000000e+00> : vector<11x1xf32>
    %261 = tpu.matmul %260, %254, %cst_136 {dimension_numbers = #tpu.dot_dimension_numbers<[1], [0], [0], [1], [0, 0, 1, 1], [], []>} : vector<11x11xbf16>, vector<11x1xbf16>, vector<11x1xf32> -> vector<11x1xf32>
    %262 = arith.truncf %261 : vector<11x1xf32> to vector<11x1xbf16>
    %cst_137 = arith.constant dense<0.000000e+00> : vector<1x1xf32>
    %263 = tpu.matmul %255, %262, %cst_137 {dimension_numbers = #tpu.dot_dimension_numbers<[1], [0], [0], [1], [0, 0, 1, 1], [], []>} : vector<1x11xbf16>, vector<11x1xbf16>, vector<1x1xf32> -> vector<1x1xf32>
    %264 = arith.truncf %259 : vector<11x11xf32> to vector<11x11xbf16>
    %cst_138 = arith.constant dense<0.000000e+00> : vector<11x1xf32>
    %265 = tpu.matmul %264, %254, %cst_138 {dimension_numbers = #tpu.dot_dimension_numbers<[1], [0], [0], [1], [0, 0, 1, 1], [], []>} : vector<11x11xbf16>, vector<11x1xbf16>, vector<11x1xf32> -> vector<11x1xf32>
    %266 = arith.truncf %265 : vector<11x1xf32> to vector<11x1xbf16>
    %cst_139 = arith.constant dense<0.000000e+00> : vector<1x1xf32>
    %267 = tpu.matmul %255, %266, %cst_139 {dimension_numbers = #tpu.dot_dimension_numbers<[1], [0], [0], [1], [0, 0, 1, 1], [], []>} : vector<1x11xbf16>, vector<11x1xbf16>, vector<1x1xf32> -> vector<1x1xf32>
    %268 = arith.mulf %257, %257 : vector<11x11xf32>
    %269 = arith.truncf %268 : vector<11x11xf32> to vector<11x11xbf16>
    %cst_140 = arith.constant dense<0.000000e+00> : vector<11x1xf32>
    %270 = tpu.matmul %269, %254, %cst_140 {dimension_numbers = #tpu.dot_dimension_numbers<[1], [0], [0], [1], [0, 0, 1, 1], [], []>} : vector<11x11xbf16>, vector<11x1xbf16>, vector<11x1xf32> -> vector<11x1xf32>
    %271 = arith.truncf %270 : vector<11x1xf32> to vector<11x1xbf16>
    %cst_141 = arith.constant dense<0.000000e+00> : vector<1x1xf32>
    %272 = tpu.matmul %255, %271, %cst_141 {dimension_numbers = #tpu.dot_dimension_numbers<[1], [0], [0], [1], [0, 0, 1, 1], [], []>} : vector<1x11xbf16>, vector<11x1xbf16>, vector<1x1xf32> -> vector<1x1xf32>
    %273 = arith.mulf %259, %259 : vector<11x11xf32>
    %274 = arith.truncf %273 : vector<11x11xf32> to vector<11x11xbf16>
    %cst_142 = arith.constant dense<0.000000e+00> : vector<11x1xf32>
    %275 = tpu.matmul %274, %254, %cst_142 {dimension_numbers = #tpu.dot_dimension_numbers<[1], [0], [0], [1], [0, 0, 1, 1], [], []>} : vector<11x11xbf16>, vector<11x1xbf16>, vector<11x1xf32> -> vector<11x1xf32>
    %276 = arith.truncf %275 : vector<11x1xf32> to vector<11x1xbf16>
    %cst_143 = arith.constant dense<0.000000e+00> : vector<1x1xf32>
    %277 = tpu.matmul %255, %276, %cst_143 {dimension_numbers = #tpu.dot_dimension_numbers<[1], [0], [0], [1], [0, 0, 1, 1], [], []>} : vector<1x11xbf16>, vector<11x1xbf16>, vector<1x1xf32> -> vector<1x1xf32>
    %278 = arith.mulf %257, %259 : vector<11x11xf32>
    %279 = arith.truncf %278 : vector<11x11xf32> to vector<11x11xbf16>
    %cst_144 = arith.constant dense<0.000000e+00> : vector<11x1xf32>
    %280 = tpu.matmul %279, %254, %cst_144 {dimension_numbers = #tpu.dot_dimension_numbers<[1], [0], [0], [1], [0, 0, 1, 1], [], []>} : vector<11x11xbf16>, vector<11x1xbf16>, vector<11x1xf32> -> vector<11x1xf32>
    %281 = arith.truncf %280 : vector<11x1xf32> to vector<11x1xbf16>
    %cst_145 = arith.constant dense<0.000000e+00> : vector<1x1xf32>
    %282 = tpu.matmul %255, %281, %cst_145 {dimension_numbers = #tpu.dot_dimension_numbers<[1], [0], [0], [1], [0, 0, 1, 1], [], []>} : vector<1x11xbf16>, vector<11x1xbf16>, vector<1x1xf32> -> vector<1x1xf32>
    %283 = arith.mulf %263, %263 : vector<1x1xf32>
    %284 = arith.subf %272, %283 : vector<1x1xf32>
    %285 = arith.mulf %267, %267 : vector<1x1xf32>
    %286 = arith.subf %277, %285 : vector<1x1xf32>
    %287 = arith.mulf %263, %267 : vector<1x1xf32>
    %288 = arith.subf %282, %287 : vector<1x1xf32>
    %cst_146 = arith.constant 2.000000e+00 : f32
    %289 = vector.broadcast %cst_146 : f32 to vector<1x1xf32>
    %290 = arith.mulf %289, %288 : vector<1x1xf32>
    %cst_147 = arith.constant 8.99999984E-4 : f32
    %291 = vector.broadcast %cst_147 : f32 to vector<1x1xf32>
    %292 = arith.addf %290, %291 : vector<1x1xf32>
    %293 = arith.addf %284, %286 : vector<1x1xf32>
    %cst_148 = arith.constant 8.99999984E-4 : f32
    %294 = vector.broadcast %cst_148 : f32 to vector<1x1xf32>
    %295 = arith.addf %293, %294 : vector<1x1xf32>
    %296 = arith.divf %292, %295 : vector<1x1xf32>
    %cst_149 = arith.constant 5.000000e-01 : f32
    %297 = vector.broadcast %cst_149 : f32 to vector<1x1xf32>
    %298 = arith.addf %263, %297 : vector<1x1xf32>
    %cst_150 = arith.constant 5.000000e-01 : f32
    %299 = vector.broadcast %cst_150 : f32 to vector<1x1xf32>
    %300 = arith.addf %267, %299 : vector<1x1xf32>
    %cst_151 = arith.constant 2.000000e+00 : f32
    %301 = vector.broadcast %cst_151 : f32 to vector<1x1xf32>
    %302 = arith.mulf %301, %298 : vector<1x1xf32>
    %303 = arith.mulf %302, %300 : vector<1x1xf32>
    %cst_152 = arith.constant 9.99999974E-5 : f32
    %304 = vector.broadcast %cst_152 : f32 to vector<1x1xf32>
    %305 = arith.addf %303, %304 : vector<1x1xf32>
    %306 = arith.mulf %298, %298 : vector<1x1xf32>
    %307 = arith.mulf %300, %300 : vector<1x1xf32>
    %308 = arith.addf %306, %307 : vector<1x1xf32>
    %cst_153 = arith.constant 9.99999974E-5 : f32
    %309 = vector.broadcast %cst_153 : f32 to vector<1x1xf32>
    %310 = arith.addf %308, %309 : vector<1x1xf32>
    %311 = arith.divf %305, %310 : vector<1x1xf32>
    %312 = arith.mulf %311, %296 : vector<1x1xf32>
    %cst_154 = arith.constant dense<0.000000e+00> : vector<1xf32>
    %313 = vector.multi_reduction <add>, %312, %cst_154 [1] : vector<1x1xf32> to vector<1xf32>
    %314 = vector.shape_cast %313 : vector<1xf32> to vector<1x1xf32>
    %cst_155 = arith.constant dense<0.000000e+00> : vector<1xf32>
    %315 = vector.multi_reduction <add>, %314, %cst_155 [0] : vector<1x1xf32> to vector<1xf32>
    %316 = vector.shape_cast %315 : vector<1xf32> to vector<1x1xf32>
    %cst_156 = arith.constant 1.000000e+00 : f32
    %317 = vector.broadcast %cst_156 : f32 to vector<1x1xf32>
    %318 = arith.mulf %316, %317 : vector<1x1xf32>
    %cst_157 = arith.constant 0.000000e+00 : f32
    %319 = vector.broadcast %cst_157 : f32 to vector<1x1xf32>
    %320 = arith.maximumf %318, %319 : vector<1x1xf32>
    %321 = tpu.iota {dimensions = array<i32: 1>} : vector<1x128xi32>
    %cst_158 = arith.constant 0.000000e+00 : f32
    %322 = vector.broadcast %cst_158 : f32 to vector<1x128xf32>
    %c0_i32 = arith.constant 0 : i32
    %323 = vector.broadcast %c0_i32 : i32 to vector<1x128xi32>
    %324 = arith.cmpi eq, %321, %323 : vector<1x128xi32>
    %325 = vector.shape_cast %60 : vector<1x1xf32> to vector<1x1xf32>
    %326 = vector.broadcast %325 : vector<1x1xf32> to vector<1x128xf32>
    %327 = arith.select %324, %326, %322 : vector<1x128xi1>, vector<1x128xf32>
    %c1_i32 = arith.constant 1 : i32
    %328 = vector.broadcast %c1_i32 : i32 to vector<1x128xi32>
    %329 = arith.cmpi eq, %321, %328 : vector<1x128xi32>
    %330 = vector.shape_cast %121 : vector<1x1xf32> to vector<1x1xf32>
    %331 = vector.broadcast %330 : vector<1x1xf32> to vector<1x128xf32>
    %332 = arith.select %329, %331, %327 : vector<1x128xi1>, vector<1x128xf32>
    %c2_i32 = arith.constant 2 : i32
    %333 = vector.broadcast %c2_i32 : i32 to vector<1x128xi32>
    %334 = arith.cmpi eq, %321, %333 : vector<1x128xi32>
    %335 = vector.shape_cast %182 : vector<1x1xf32> to vector<1x1xf32>
    %336 = vector.broadcast %335 : vector<1x1xf32> to vector<1x128xf32>
    %337 = arith.select %334, %336, %332 : vector<1x128xi1>, vector<1x128xf32>
    %c3_i32 = arith.constant 3 : i32
    %338 = vector.broadcast %c3_i32 : i32 to vector<1x128xi32>
    %339 = arith.cmpi eq, %321, %338 : vector<1x128xi32>
    %340 = vector.shape_cast %243 : vector<1x1xf32> to vector<1x1xf32>
    %341 = vector.broadcast %340 : vector<1x1xf32> to vector<1x128xf32>
    %342 = arith.select %339, %341, %337 : vector<1x128xi1>, vector<1x128xf32>
    %c4_i32 = arith.constant 4 : i32
    %343 = vector.broadcast %c4_i32 : i32 to vector<1x128xi32>
    %344 = arith.cmpi eq, %321, %343 : vector<1x128xi32>
    %345 = vector.shape_cast %320 : vector<1x1xf32> to vector<1x1xf32>
    %346 = vector.broadcast %345 : vector<1x1xf32> to vector<1x128xf32>
    %347 = arith.select %344, %346, %342 : vector<1x128xi1>, vector<1x128xf32>
    %c5_i32 = arith.constant 5 : i32
    %348 = vector.broadcast %c5_i32 : i32 to vector<1x128xi32>
    %349 = arith.cmpi eq, %321, %348 : vector<1x128xi32>
    %350 = vector.shape_cast %9 : vector<1x1xf32> to vector<1x1xf32>
    %351 = vector.broadcast %350 : vector<1x1xf32> to vector<1x128xf32>
    %352 = arith.select %349, %351, %347 : vector<1x128xi1>, vector<1x128xf32>
    %353 = vector.shape_cast %352 : vector<1x128xf32> to vector<1x1x128xf32>
    %c0_159 = arith.constant 0 : index
    %c0_160 = arith.constant 0 : index
    %c0_161 = arith.constant 0 : index
    %354 = vector.load %arg21[%c0_159, %c0_160, %c0_161] : memref<1x1x128xf32, #tpu.memory_space<vmem>>, vector<1x1x128xf32>
    tpu.vector_store %arg21[%c0_159, %c0_160, %c0_161], %353 {strides = array<i32>} : memref<1x1x128xf32, #tpu.memory_space<vmem>>, vector<1x1x128xf32>,
    return
  }
  func.func @transform_0(%arg0: i32) -> (i32, i32, i32) {
    %c0_i32 = arith.constant 0 : i32
    %c0_i32_0 = arith.constant 0 : i32
    %c0_i32_1 = arith.constant 0 : i32
    return %arg0, %c0_i32, %c0_i32_0 : i32, i32, i32
  }
  func.func @transform_1(%arg0: i32) -> (i32, i32, i32) {
    %c0_i32 = arith.constant 0 : i32
    %c0_i32_0 = arith.constant 0 : i32
    %c0_i32_1 = arith.constant 0 : i32
    return %arg0, %c0_i32, %c0_i32_0 : i32, i32, i32
  }
  func.func @transform_2(%arg0: i32) -> (i32, i32) {
    %c0_i32 = arith.constant 0 : i32
    %c0_i32_0 = arith.constant 0 : i32
    %c0_i32_1 = arith.constant 0 : i32
    return %c0_i32, %c0_i32_0 : i32, i32
  }
  func.func @transform_3(%arg0: i32) -> (i32, i32) {
    %c0_i32 = arith.constant 0 : i32
    %c0_i32_0 = arith.constant 0 : i32
    %c0_i32_1 = arith.constant 0 : i32
    return %c0_i32, %c0_i32_0 : i32, i32
  }
  func.func @transform_4(%arg0: i32) -> (i32, i32) {
    %c0_i32 = arith.constant 0 : i32
    %c0_i32_0 = arith.constant 0 : i32
    %c0_i32_1 = arith.constant 0 : i32
    return %c0_i32, %c0_i32_0 : i32, i32
  }
  func.func @transform_5(%arg0: i32) -> (i32, i32) {
    %c0_i32 = arith.constant 0 : i32
    %c0_i32_0 = arith.constant 0 : i32
    %c0_i32_1 = arith.constant 0 : i32
    return %c0_i32, %c0_i32_0 : i32, i32
  }
  func.func @transform_6(%arg0: i32) -> (i32, i32) {
    %c0_i32 = arith.constant 0 : i32
    %c0_i32_0 = arith.constant 0 : i32
    %c0_i32_1 = arith.constant 0 : i32
    return %c0_i32, %c0_i32_0 : i32, i32
  }
  func.func @transform_7(%arg0: i32) -> (i32, i32) {
    %c0_i32 = arith.constant 0 : i32
    %c0_i32_0 = arith.constant 0 : i32
    %c0_i32_1 = arith.constant 0 : i32
    return %c0_i32, %c0_i32_0 : i32, i32
  }
  func.func @transform_8(%arg0: i32) -> (i32, i32) {
    %c0_i32 = arith.constant 0 : i32
    %c0_i32_0 = arith.constant 0 : i32
    %c0_i32_1 = arith.constant 0 : i32
    return %c0_i32, %c0_i32_0 : i32, i32
  }
  func.func @transform_9(%arg0: i32) -> (i32, i32) {
    %c0_i32 = arith.constant 0 : i32
    %c0_i32_0 = arith.constant 0 : i32
    %c0_i32_1 = arith.constant 0 : i32
    return %c0_i32, %c0_i32_0 : i32, i32
  }
  func.func @transform_10(%arg0: i32) -> (i32, i32) {
    %c0_i32 = arith.constant 0 : i32
    %c0_i32_0 = arith.constant 0 : i32
    %c0_i32_1 = arith.constant 0 : i32
    return %c0_i32, %c0_i32_0 : i32, i32
  }
  func.func @transform_11(%arg0: i32) -> (i32, i32) {
    %c0_i32 = arith.constant 0 : i32
    %c0_i32_0 = arith.constant 0 : i32
    %c0_i32_1 = arith.constant 0 : i32
    return %c0_i32, %c0_i32_0 : i32, i32
  }
  func.func @transform_12(%arg0: i32) -> (i32, i32) {
    %c0_i32 = arith.constant 0 : i32
    %c0_i32_0 = arith.constant 0 : i32
    %c0_i32_1 = arith.constant 0 : i32
    return %c0_i32, %c0_i32_0 : i32, i32
  }
  func.func @transform_13(%arg0: i32) -> (i32, i32) {
    %c0_i32 = arith.constant 0 : i32
    %c0_i32_0 = arith.constant 0 : i32
    %c0_i32_1 = arith.constant 0 : i32
    return %c0_i32, %c0_i32_0 : i32, i32
  }
  func.func @transform_14(%arg0: i32) -> (i32, i32) {
    %c0_i32 = arith.constant 0 : i32
    %c0_i32_0 = arith.constant 0 : i32
    %c0_i32_1 = arith.constant 0 : i32
    return %c0_i32, %c0_i32_0 : i32, i32
  }
  func.func @transform_15(%arg0: i32) -> (i32, i32) {
    %c0_i32 = arith.constant 0 : i32
    %c0_i32_0 = arith.constant 0 : i32
    %c0_i32_1 = arith.constant 0 : i32
    return %c0_i32, %c0_i32_0 : i32, i32
  }
  func.func @transform_16(%arg0: i32) -> (i32, i32) {
    %c0_i32 = arith.constant 0 : i32
    %c0_i32_0 = arith.constant 0 : i32
    %c0_i32_1 = arith.constant 0 : i32
    return %c0_i32, %c0_i32_0 : i32, i32
  }
  func.func @transform_17(%arg0: i32) -> (i32, i32) {
    %c0_i32 = arith.constant 0 : i32
    %c0_i32_0 = arith.constant 0 : i32
    %c0_i32_1 = arith.constant 0 : i32
    return %c0_i32, %c0_i32_0 : i32, i32
  }
  func.func @transform_18(%arg0: i32) -> (i32, i32) {
    %c0_i32 = arith.constant 0 : i32
    %c0_i32_0 = arith.constant 0 : i32
    %c0_i32_1 = arith.constant 0 : i32
    return %c0_i32, %c0_i32_0 : i32, i32
  }
  func.func @transform_19(%arg0: i32) -> (i32, i32) {
    %c0_i32 = arith.constant 0 : i32
    %c0_i32_0 = arith.constant 0 : i32
    %c0_i32_1 = arith.constant 0 : i32
    return %c0_i32, %c0_i32_0 : i32, i32
  }
  func.func @transform_20(%arg0: i32) -> (i32, i32, i32) {
    %c0_i32 = arith.constant 0 : i32
    %c0_i32_0 = arith.constant 0 : i32
    %c0_i32_1 = arith.constant 0 : i32
    return %arg0, %c0_i32, %c0_i32_0 : i32, i32, i32
  }
}

</mosaic_0001>

<llo_original>
// kernel: tpu_custom_call.1
$region0: #{tpu_custom_call.1}
  #allocation0 [shape = 'u32[]', space=smem, size = 0x4, offset = 0x4, fixed_abs, tag = 'smem constant byte address 0x4 - core index']
  #allocation1 [shape = 'u32[144,128]{1,0:T(1,128)}', space=vmem, size = 0x12000, scoped, tag = 'internal scratch']
  %s0 = inlined_call_operand.hbm [shape: f32[6,176,176], index: 0, kind: input, shape index: {}]
  %s1 = inlined_call_operand.hbm [shape: f32[6,176,176], index: 1, kind: input, shape index: {}]
  %s2 = inlined_call_operand.vmem [shape: bf16[176,166], index: 2, kind: input, shape index: {}]
  %s3 = inlined_call_operand.vmem [shape: bf16[88,78], index: 3, kind: input, shape index: {}]
  %s4 = inlined_call_operand.vmem [shape: bf16[44,34], index: 4, kind: input, shape index: {}]
  %s5 = inlined_call_operand.vmem [shape: bf16[22,12], index: 5, kind: input, shape index: {}]
  %s6 = inlined_call_operand.vmem [shape: bf16[11,1], index: 6, kind: input, shape index: {}]
  %s7 = inlined_call_operand.hbm [shape: bf16[166,176], index: 7, kind: input, shape index: {}]
  %s8 = inlined_call_operand.hbm [shape: bf16[78,88], index: 8, kind: input, shape index: {}]
  %s9 = inlined_call_operand.hbm [shape: bf16[34,44], index: 9, kind: input, shape index: {}]
  %s10 = inlined_call_operand.hbm [shape: bf16[12,22], index: 10, kind: input, shape index: {}]
  %s11 = inlined_call_operand.hbm [shape: bf16[1,11], index: 11, kind: input, shape index: {}]
  %s12 = inlined_call_operand.hbm [shape: bf16[176,88], index: 12, kind: input, shape index: {}]
  %s13 = inlined_call_operand.vmem [shape: bf16[88,44], index: 13, kind: input, shape index: {}]
  %s14 = inlined_call_operand.vmem [shape: bf16[44,22], index: 14, kind: input, shape index: {}]
  %s15 = inlined_call_operand.vmem [shape: bf16[22,11], index: 15, kind: input, shape index: {}]
  %s16 = inlined_call_operand.hbm [shape: bf16[88,176], index: 16, kind: input, shape index: {}]
  %s17 = inlined_call_operand.hbm [shape: bf16[44,88], index: 17, kind: input, shape index: {}]
  %s18 = inlined_call_operand.hbm [shape: bf16[22,44], index: 18, kind: input, shape index: {}]
  %s19 = inlined_call_operand.hbm [shape: bf16[11,22], index: 19, kind: input, shape index: {}]
  %s20 = inlined_call_operand.hbm [shape: f32[6,1,128], index: 20, kind: output, shape index: {}]
  %s21 = sld [smem:[#allocation0]]
  $region161: #{tpu_custom_call.1} parent=0
    _
  %s23 = ssub.s32 1, %s21
  %s24 = scalar_select 0, %s23, %s21
  $region1: #{tpu_custom_call.1} parent=0
    #allocation2 [shape = 'u8[360448]{0}', space=vmem, size = 0x58000, scoped, tag = 'input window, operand 0']
    #allocation3 [shape = 's32[2]{0}', space=sflag, size = 0x8, scoped, tag = 'scoped memory for tpu_custom_call.1']
    #allocation4 [shape = 's32[2]{0}', space=sflag, size = 0x8, scoped, tag = 'scoped memory for tpu_custom_call.1']
    #allocation5 [shape = 'u8[360448]{0}', space=vmem, size = 0x58000, scoped, tag = 'input window, operand 1']
    #allocation6 [shape = 's32[2]{0}', space=sflag, size = 0x8, scoped, tag = 'scoped memory for tpu_custom_call.1']
    #allocation7 [shape = 'u8[86016]{0}', space=vmem, size = 0x15000, scoped, tag = 'input window, operand 7, single buffered']
    #allocation8 [shape = 'u8[20480]{0}', space=vmem, size = 0x5000, scoped, tag = 'input window, operand 8, single buffered']
    #allocation9 [shape = 's32[1]{0}', space=sflag, size = 0x4, scoped, tag = 'scoped memory for tpu_custom_call.1']
    #allocation10 [shape = 'u8[10240]{0}', space=vmem, size = 0x2800, scoped, tag = 'input window, operand 9, single buffered']
    #allocation11 [shape = 'u8[4096]{0}', space=vmem, size = 0x1000, scoped, tag = 'input window, operand 10, single buffered']
    #allocation12 [shape = 's32[1]{0}', space=sflag, size = 0x4, scoped, tag = 'scoped memory for tpu_custom_call.1']
    #allocation13 [shape = 'u8[512]{0}', space=vmem, size = 0x400, scoped, tag = 'input window, operand 11, single buffered']
    #allocation14 [shape = 'u8[45056]{0}', space=vmem, size = 0xb000, scoped, tag = 'input window, operand 12, single buffered']
    #allocation15 [shape = 's32[1]{0}', space=sflag, size = 0x4, scoped, tag = 'scoped memory for tpu_custom_call.1']
    #allocation16 [shape = 'u8[45056]{0}', space=vmem, size = 0xb000, scoped, tag = 'input window, operand 16, single buffered']
    #allocation17 [shape = 'u8[12288]{0}', space=vmem, size = 0x3000, scoped, tag = 'input window, operand 17, single buffered']
    #allocation18 [shape = 's32[1]{0}', space=sflag, size = 0x4, scoped, tag = 'scoped memory for tpu_custom_call.1']
    #allocation19 [shape = 'u8[6144]{0}', space=vmem, size = 0x1800, scoped, tag = 'input window, operand 18, single buffered']
    #allocation20 [shape = 'u8[4096]{0}', space=vmem, size = 0x1000, scoped, tag = 'input window, operand 19, single buffered']
    #allocation21 [shape = 's32[1]{0}', space=sflag, size = 0x4, scoped, tag = 'scoped memory for tpu_custom_call.1']
    #allocation22 [shape = 'u8[1024]{0}', space=vmem, size = 0x400, scoped, tag = 'output window, operand 0']
    %25 = vsyncpa [#allocation3], 0
    %s26 = scalar_lea.sflag [#allocation3], 1
    %27 = vsyncpa %s26, 0
    %28 = vsyncpa [#allocation6], 0
    %s29 = scalar_lea.sflag [#allocation6], 1
    %30 = vsyncpa %s29, 0
    %31 = vsyncpa [#allocation9], 0
    %32 = vsyncpa [#allocation12], 0
    %33 = vsyncpa [#allocation15], 0
    %34 = vsyncpa [#allocation18], 0
    %35 = vsyncpa [#allocation21], 0
    %36 = vsyncpa [#allocation4], 0
    %s37 = scalar_lea.sflag [#allocation4], 1
    %38 = vsyncpa %s37, 0
    loop: start=0, step=1, limit=8
    $region2: #{tpu_custom_call.1} parent=1 // loop_pre_header
      _
    $region3: #{tpu_custom_call.1} parent=1 // loop_header
      %s40 = sphi 0, %s44
      %p41 = scmp.ge.s32.totalorder %s40, 8
      %s50 = sphi 0, %s52
      %s53 = sphi 0, %s50
      %s54 = sphi 0, %s53
      %s70 = sphi 0, %s54
      %s76 = sphi 0, %s78
      %s79 = sphi 0, %s76
      %s80 = sphi 0, %s79
      %s96 = sphi 0, %s80
      %s100 = sphi 0, %s100
      %s102 = sphi 0, %s100
      %s103 = sphi 0, %s102
      %s117 = sphi 0, %s103
      %s121 = sphi 0, %s121
      %s123 = sphi 0, %s121
      %s124 = sphi 0, %s123
      %s138 = sphi 0, %s124
      %s142 = sphi 0, %s142
      %s144 = sphi 0, %s142
      %s145 = sphi 0, %s144
      %s159 = sphi 0, %s145
      %s163 = sphi 0, %s163
      %s165 = sphi 0, %s163
      %s166 = sphi 0, %s165
      %s180 = sphi 0, %s166
      %s184 = sphi 0, %s184
      %s186 = sphi 0, %s184
      %s187 = sphi 0, %s186
      %s201 = sphi 0, %s187
      %s205 = sphi 0, %s205
      %s207 = sphi 0, %s205
      %s208 = sphi 0, %s207
      %s222 = sphi 0, %s208
      %s226 = sphi 0, %s226
      %s228 = sphi 0, %s226
      %s229 = sphi 0, %s228
      %s243 = sphi 0, %s229
      %s247 = sphi 0, %s247
      %s249 = sphi 0, %s247
      %s250 = sphi 0, %s249
      %s264 = sphi 0, %s250
      %s268 = sphi 0, %s268
      %s270 = sphi 0, %s268
      %s271 = sphi 0, %s270
      %s285 = sphi 0, %s271
      %s289 = sphi 0, %s289
      %s291 = sphi 0, %s289
      %s292 = sphi 0, %s291
      %s306 = sphi 0, %s292
      %s310 = sphi 0, %s310
      %s312 = sphi 0, %s310
      %s313 = sphi 0, %s312
      %s327 = sphi 0, %s313
      %s331 = sphi 0, %s331
      %s333 = sphi 0, %s331
      %s334 = sphi 0, %s333
      %s348 = sphi 0, %s334
      %s352 = sphi 0, %s352
      %s354 = sphi 0, %s352
      %s355 = sphi 0, %s354
      %s369 = sphi 0, %s355
      %s373 = sphi 0, %s373
      %s375 = sphi 0, %s373
      %s376 = sphi 0, %s375
      %s390 = sphi 0, %s376
      %s394 = sphi 0, %s394
      %s396 = sphi 0, %s394
      %s397 = sphi 0, %s396
      %s411 = sphi 0, %s397
      %s415 = sphi 0, %s415
      %s417 = sphi 0, %s415
      %s418 = sphi 0, %s417
      %s432 = sphi 0, %s418
      %s436 = sphi 0, %s436
      %s438 = sphi 0, %s436
      %s439 = sphi 0, %s438
      %s453 = sphi 0, %s439
      %s457 = sphi 0, %s457
      %s459 = sphi 0, %s457
      %s460 = sphi 0, %s459
      %s474 = sphi 0, %s460
      %s480 = sphi 0, %s482
      %s483 = sphi 0, %s480
      %s484 = sphi 0, %s483
      %s500 = sphi 0, %s484
    $region4: #{tpu_custom_call.1} parent=1 // loop_header_branch
      %43 = sbr.rel (%p41) target = $region8
    $region5: #{tpu_custom_call.1} parent=1 // loop_body
      %s45 = ssub.s32 %s40, 1
      %s46 = ssub.s32 %s40, 2
      %s47 = sadd.s32 %s40, 1
      %s48 = ssub.s32 %s40, %s47
      %p49 = scmp.eq.s32.totalorder %s48, 0
      %s51 = sadd.s32 %s50, 1
      %s52 = scalar_select %p49, %s50, %s51
      %p55 = pneg %p49
      %p56 = scmp.eq.s32.totalorder %s40, 5
      %p57 = por %p55, %p56
      %p58 = scmp.ne.s32.totalorder %s50, %s53
      %p59 = scmp.eq.s32.totalorder %s40, 0
      %p60 = por %p58, %p59
      %p61 = scmp.ne.s32.totalorder %s50, %s53
      %p62 = scmp.eq.s32.totalorder %s45, 5
      %p63 = por %p61, %p62
      %p64 = scmp.ne.s32.totalorder %s53, %s54
      %p65 = scmp.eq.s32.totalorder %s45, 0
      %p66 = por %p64, %p65
      %p67 = scmp.ne.s32.totalorder %s53, %s54
      %p68 = scmp.eq.s32.totalorder %s46, 5
      %p69 = por %p67, %p68
      %p71 = scmp.ne.s32.totalorder %s54, %s70
      %p72 = scmp.eq.s32.totalorder %s46, 0
      %p73 = por %p71, %p72
      %s74 = ssub.s32 %s40, %s47
      %p75 = scmp.eq.s32.totalorder %s74, 0
      %s77 = sadd.s32 %s76, 1
      %s78 = scalar_select %p75, %s76, %s77
      %p81 = pneg %p75
      %p82 = scmp.eq.s32.totalorder %s40, 5
      %p83 = por %p81, %p82
      %p84 = scmp.ne.s32.totalorder %s76, %s79
      %p85 = scmp.eq.s32.totalorder %s40, 0
      %p86 = por %p84, %p85
      %p87 = scmp.ne.s32.totalorder %s76, %s79
      %p88 = scmp.eq.s32.totalorder %s45, 5
      %p89 = por %p87, %p88
      %p90 = scmp.ne.s32.totalorder %s79, %s80
      %p91 = scmp.eq.s32.totalorder %s45, 0
      %p92 = por %p90, %p91
      %p93 = scmp.ne.s32.totalorder %s79, %s80
      %p94 = scmp.eq.s32.totalorder %s46, 5
      %p95 = por %p93, %p94
      %p97 = scmp.ne.s32.totalorder %s80, %s96
      %p98 = scmp.eq.s32.totalorder %s46, 0
      %p99 = por %p97, %p98
      %s101 = sadd.s32 %s100, 1
      %p104 = scmp.eq.s32.totalorder %s40, 5
      %p105 = scmp.ne.s32.totalorder %s100, %s102
      %p106 = scmp.eq.s32.totalorder %s40, 0
      %p107 = por %p105, %p106
      %p108 = scmp.ne.s32.totalorder %s100, %s102
      %p109 = scmp.eq.s32.totalorder %s45, 5
      %p110 = por %p108, %p109
      %p111 = scmp.ne.s32.totalorder %s102, %s103
      %p112 = scmp.eq.s32.totalorder %s45, 0
      %p113 = por %p111, %p112
      %p114 = scmp.ne.s32.totalorder %s102, %s103
      %p115 = scmp.eq.s32.totalorder %s46, 5
      %p116 = por %p114, %p115
      %p118 = scmp.ne.s32.totalorder %s103, %s117
      %p119 = scmp.eq.s32.totalorder %s46, 0
      %p120 = por %p118, %p119
      %s122 = sadd.s32 %s121, 1
      %p125 = scmp.eq.s32.totalorder %s40, 5
      %p126 = scmp.ne.s32.totalorder %s121, %s123
      %p127 = scmp.eq.s32.totalorder %s40, 0
      %p128 = por %p126, %p127
      %p129 = scmp.ne.s32.totalorder %s121, %s123
      %p130 = scmp.eq.s32.totalorder %s45, 5
      %p131 = por %p129, %p130
      %p132 = scmp.ne.s32.totalorder %s123, %s124
      %p133 = scmp.eq.s32.totalorder %s45, 0
      %p134 = por %p132, %p133
      %p135 = scmp.ne.s32.totalorder %s123, %s124
      %p136 = scmp.eq.s32.totalorder %s46, 5
      %p137 = por %p135, %p136
      %p139 = scmp.ne.s32.totalorder %s124, %s138
      %p140 = scmp.eq.s32.totalorder %s46, 0
      %p141 = por %p139, %p140
      %s143 = sadd.s32 %s142, 1
      %p146 = scmp.eq.s32.totalorder %s40, 5
      %p147 = scmp.ne.s32.totalorder %s142, %s144
      %p148 = scmp.eq.s32.totalorder %s40, 0
      %p149 = por %p147, %p148
      %p150 = scmp.ne.s32.totalorder %s142, %s144
      %p151 = scmp.eq.s32.totalorder %s45, 5
      %p152 = por %p150, %p151
      %p153 = scmp.ne.s32.totalorder %s144, %s145
      %p154 = scmp.eq.s32.totalorder %s45, 0
      %p155 = por %p153, %p154
      %p156 = scmp.ne.s32.totalorder %s144, %s145
      %p157 = scmp.eq.s32.totalorder %s46, 5
      %p158 = por %p156, %p157
      %p160 = scmp.ne.s32.totalorder %s145, %s159
      %p161 = scmp.eq.s32.totalorder %s46, 0
      %p162 = por %p160, %p161
      %s164 = sadd.s32 %s163, 1
      %p167 = scmp.eq.s32.totalorder %s40, 5
      %p168 = scmp.ne.s32.totalorder %s163, %s165
      %p169 = scmp.eq.s32.totalorder %s40, 0
      %p170 = por %p168, %p169
      %p171 = scmp.ne.s32.totalorder %s163, %s165
      %p172 = scmp.eq.s32.totalorder %s45, 5
      %p173 = por %p171, %p172
      %p174 = scmp.ne.s32.totalorder %s165, %s166
      %p175 = scmp.eq.s32.totalorder %s45, 0
      %p176 = por %p174, %p175
      %p177 = scmp.ne.s32.totalorder %s165, %s166
      %p178 = scmp.eq.s32.totalorder %s46, 5
      %p179 = por %p177, %p178
      %p181 = scmp.ne.s32.totalorder %s166, %s180
      %p182 = scmp.eq.s32.totalorder %s46, 0
      %p183 = por %p181, %p182
      %s185 = sadd.s32 %s184, 1
      %p188 = scmp.eq.s32.totalorder %s40, 5
      %p189 = scmp.ne.s32.totalorder %s184, %s186
      %p190 = scmp.eq.s32.totalorder %s40, 0
      %p191 = por %p189, %p190
      %p192 = scmp.ne.s32.totalorder %s184, %s186
      %p193 = scmp.eq.s32.totalorder %s45, 5
      %p194 = por %p192, %p193
      %p195 = scmp.ne.s32.totalorder %s186, %s187
      %p196 = scmp.eq.s32.totalorder %s45, 0
      %p197 = por %p195, %p196
      %p198 = scmp.ne.s32.totalorder %s186, %s187
      %p199 = scmp.eq.s32.totalorder %s46, 5
      %p200 = por %p198, %p199
      %p202 = scmp.ne.s32.totalorder %s187, %s201
      %p203 = scmp.eq.s32.totalorder %s46, 0
      %p204 = por %p202, %p203
      %s206 = sadd.s32 %s205, 1
      %p209 = scmp.eq.s32.totalorder %s40, 5
      %p210 = scmp.ne.s32.totalorder %s205, %s207
      %p211 = scmp.eq.s32.totalorder %s40, 0
      %p212 = por %p210, %p211
      %p213 = scmp.ne.s32.totalorder %s205, %s207
      %p214 = scmp.eq.s32.totalorder %s45, 5
      %p215 = por %p213, %p214
      %p216 = scmp.ne.s32.totalorder %s207, %s208
      %p217 = scmp.eq.s32.totalorder %s45, 0
      %p218 = por %p216, %p217
      %p219 = scmp.ne.s32.totalorder %s207, %s208
      %p220 = scmp.eq.s32.totalorder %s46, 5
      %p221 = por %p219, %p220
      %p223 = scmp.ne.s32.totalorder %s208, %s222
      %p224 = scmp.eq.s32.totalorder %s46, 0
      %p225 = por %p223, %p224
      %s227 = sadd.s32 %s226, 1
      %p230 = scmp.eq.s32.totalorder %s40, 5
      %p231 = scmp.ne.s32.totalorder %s226, %s228
      %p232 = scmp.eq.s32.totalorder %s40, 0
      %p233 = por %p231, %p232
      %p234 = scmp.ne.s32.totalorder %s226, %s228
      %p235 = scmp.eq.s32.totalorder %s45, 5
      %p236 = por %p234, %p235
      %p237 = scmp.ne.s32.totalorder %s228, %s229
      %p238 = scmp.eq.s32.totalorder %s45, 0
      %p239 = por %p237, %p238
      %p240 = scmp.ne.s32.totalorder %s228, %s229
      %p241 = scmp.eq.s32.totalorder %s46, 5
      %p242 = por %p240, %p241
      %p244 = scmp.ne.s32.totalorder %s229, %s243
      %p245 = scmp.eq.s32.totalorder %s46, 0
      %p246 = por %p244, %p245
      %s248 = sadd.s32 %s247, 1
      %p251 = scmp.eq.s32.totalorder %s40, 5
      %p252 = scmp.ne.s32.totalorder %s247, %s249
      %p253 = scmp.eq.s32.totalorder %s40, 0
      %p254 = por %p252, %p253
      %p255 = scmp.ne.s32.totalorder %s247, %s249
      %p256 = scmp.eq.s32.totalorder %s45, 5
      %p257 = por %p255, %p256
      %p258 = scmp.ne.s32.totalorder %s249, %s250
      %p259 = scmp.eq.s32.totalorder %s45, 0
      %p260 = por %p258, %p259
      %p261 = scmp.ne.s32.totalorder %s249, %s250
      %p262 = scmp.eq.s32.totalorder %s46, 5
      %p263 = por %p261, %p262
      %p265 = scmp.ne.s32.totalorder %s250, %s264
      %p266 = scmp.eq.s32.totalorder %s46, 0
      %p267 = por %p265, %p266
      %s269 = sadd.s32 %s268, 1
      %p272 = scmp.eq.s32.totalorder %s40, 5
      %p273 = scmp.ne.s32.totalorder %s268, %s270
      %p274 = scmp.eq.s32.totalorder %s40, 0
      %p275 = por %p273, %p274
      %p276 = scmp.ne.s32.totalorder %s268, %s270
      %p277 = scmp.eq.s32.totalorder %s45, 5
      %p278 = por %p276, %p277
      %p279 = scmp.ne.s32.totalorder %s270, %s271
      %p280 = scmp.eq.s32.totalorder %s45, 0
      %p281 = por %p279, %p280
      %p282 = scmp.ne.s32.totalorder %s270, %s271
      %p283 = scmp.eq.s32.totalorder %s46, 5
      %p284 = por %p282, %p283
      %p286 = scmp.ne.s32.totalorder %s271, %s285
      %p287 = scmp.eq.s32.totalorder %s46, 0
      %p288 = por %p286, %p287
      %s290 = sadd.s32 %s289, 1
      %p293 = scmp.eq.s32.totalorder %s40, 5
      %p294 = scmp.ne.s32.totalorder %s289, %s291
      %p295 = scmp.eq.s32.totalorder %s40, 0
      %p296 = por %p294, %p295
      %p297 = scmp.ne.s32.totalorder %s289, %s291
      %p298 = scmp.eq.s32.totalorder %s45, 5
      %p299 = por %p297, %p298
      %p300 = scmp.ne.s32.totalorder %s291, %s292
      %p301 = scmp.eq.s32.totalorder %s45, 0
      %p302 = por %p300, %p301
      %p303 = scmp.ne.s32.totalorder %s291, %s292
      %p304 = scmp.eq.s32.totalorder %s46, 5
      %p305 = por %p303, %p304
      %p307 = scmp.ne.s32.totalorder %s292, %s306
      %p308 = scmp.eq.s32.totalorder %s46, 0
      %p309 = por %p307, %p308
      %s311 = sadd.s32 %s310, 1
      %p314 = scmp.eq.s32.totalorder %s40, 5
      %p315 = scmp.ne.s32.totalorder %s310, %s312
      %p316 = scmp.eq.s32.totalorder %s40, 0
      %p317 = por %p315, %p316
      %p318 = scmp.ne.s32.totalorder %s310, %s312
      %p319 = scmp.eq.s32.totalorder %s45, 5
      %p320 = por %p318, %p319
      %p321 = scmp.ne.s32.totalorder %s312, %s313
      %p322 = scmp.eq.s32.totalorder %s45, 0
      %p323 = por %p321, %p322
      %p324 = scmp.ne.s32.totalorder %s312, %s313
      %p325 = scmp.eq.s32.totalorder %s46, 5
      %p326 = por %p324, %p325
      %p328 = scmp.ne.s32.totalorder %s313, %s327
      %p329 = scmp.eq.s32.totalorder %s46, 0
      %p330 = por %p328, %p329
      %s332 = sadd.s32 %s331, 1
      %p335 = scmp.eq.s32.totalorder %s40, 5
      %p336 = scmp.ne.s32.totalorder %s331, %s333
      %p337 = scmp.eq.s32.totalorder %s40, 0
      %p338 = por %p336, %p337
      %p339 = scmp.ne.s32.totalorder %s331, %s333
      %p340 = scmp.eq.s32.totalorder %s45, 5
      %p341 = por %p339, %p340
      %p342 = scmp.ne.s32.totalorder %s333, %s334
      %p343 = scmp.eq.s32.totalorder %s45, 0
      %p344 = por %p342, %p343
      %p345 = scmp.ne.s32.totalorder %s333, %s334
      %p346 = scmp.eq.s32.totalorder %s46, 5
      %p347 = por %p345, %p346
      %p349 = scmp.ne.s32.totalorder %s334, %s348
      %p350 = scmp.eq.s32.totalorder %s46, 0
      %p351 = por %p349, %p350
      %s353 = sadd.s32 %s352, 1
      %p356 = scmp.eq.s32.totalorder %s40, 5
      %p357 = scmp.ne.s32.totalorder %s352, %s354
      %p358 = scmp.eq.s32.totalorder %s40, 0
      %p359 = por %p357, %p358
      %p360 = scmp.ne.s32.totalorder %s352, %s354
      %p361 = scmp.eq.s32.totalorder %s45, 5
      %p362 = por %p360, %p361
      %p363 = scmp.ne.s32.totalorder %s354, %s355
      %p364 = scmp.eq.s32.totalorder %s45, 0
      %p365 = por %p363, %p364
      %p366 = scmp.ne.s32.totalorder %s354, %s355
      %p367 = scmp.eq.s32.totalorder %s46, 5
      %p368 = por %p366, %p367
      %p370 = scmp.ne.s32.totalorder %s355, %s369
      %p371 = scmp.eq.s32.totalorder %s46, 0
      %p372 = por %p370, %p371
      %s374 = sadd.s32 %s373, 1
      %p377 = scmp.eq.s32.totalorder %s40, 5
      %p378 = scmp.ne.s32.totalorder %s373, %s375
      %p379 = scmp.eq.s32.totalorder %s40, 0
      %p380 = por %p378, %p379
      %p381 = scmp.ne.s32.totalorder %s373, %s375
      %p382 = scmp.eq.s32.totalorder %s45, 5
      %p383 = por %p381, %p382
      %p384 = scmp.ne.s32.totalorder %s375, %s376
      %p385 = scmp.eq.s32.totalorder %s45, 0
      %p386 = por %p384, %p385
      %p387 = scmp.ne.s32.totalorder %s375, %s376
      %p388 = scmp.eq.s32.totalorder %s46, 5
      %p389 = por %p387, %p388
      %p391 = scmp.ne.s32.totalorder %s376, %s390
      %p392 = scmp.eq.s32.totalorder %s46, 0
      %p393 = por %p391, %p392
      %s395 = sadd.s32 %s394, 1
      %p398 = scmp.eq.s32.totalorder %s40, 5
      %p399 = scmp.ne.s32.totalorder %s394, %s396
      %p400 = scmp.eq.s32.totalorder %s40, 0
      %p401 = por %p399, %p400
      %p402 = scmp.ne.s32.totalorder %s394, %s396
      %p403 = scmp.eq.s32.totalorder %s45, 5
      %p404 = por %p402, %p403
      %p405 = scmp.ne.s32.totalorder %s396, %s397
      %p406 = scmp.eq.s32.totalorder %s45, 0
      %p407 = por %p405, %p406
      %p408 = scmp.ne.s32.totalorder %s396, %s397
      %p409 = scmp.eq.s32.totalorder %s46, 5
      %p410 = por %p408, %p409
      %p412 = scmp.ne.s32.totalorder %s397, %s411
      %p413 = scmp.eq.s32.totalorder %s46, 0
      %p414 = por %p412, %p413
      %s416 = sadd.s32 %s415, 1
      %p419 = scmp.eq.s32.totalorder %s40, 5
      %p420 = scmp.ne.s32.totalorder %s415, %s417
      %p421 = scmp.eq.s32.totalorder %s40, 0
      %p422 = por %p420, %p421
      %p423 = scmp.ne.s32.totalorder %s415, %s417
      %p424 = scmp.eq.s32.totalorder %s45, 5
      %p425 = por %p423, %p424
      %p426 = scmp.ne.s32.totalorder %s417, %s418
      %p427 = scmp.eq.s32.totalorder %s45, 0
      %p428 = por %p426, %p427
      %p429 = scmp.ne.s32.totalorder %s417, %s418
      %p430 = scmp.eq.s32.totalorder %s46, 5
      %p431 = por %p429, %p430
      %p433 = scmp.ne.s32.totalorder %s418, %s432
      %p434 = scmp.eq.s32.totalorder %s46, 0
      %p435 = por %p433, %p434
      %s437 = sadd.s32 %s436, 1
      %p440 = scmp.eq.s32.totalorder %s40, 5
      %p441 = scmp.ne.s32.totalorder %s436, %s438
      %p442 = scmp.eq.s32.totalorder %s40, 0
      %p443 = por %p441, %p442
      %p444 = scmp.ne.s32.totalorder %s436, %s438
      %p445 = scmp.eq.s32.totalorder %s45, 5
      %p446 = por %p444, %p445
      %p447 = scmp.ne.s32.totalorder %s438, %s439
      %p448 = scmp.eq.s32.totalorder %s45, 0
      %p449 = por %p447, %p448
      %p450 = scmp.ne.s32.totalorder %s438, %s439
      %p451 = scmp.eq.s32.totalorder %s46, 5
      %p452 = por %p450, %p451
      %p454 = scmp.ne.s32.totalorder %s439, %s453
      %p455 = scmp.eq.s32.totalorder %s46, 0
      %p456 = por %p454, %p455
      %s458 = sadd.s32 %s457, 1
      %p461 = scmp.eq.s32.totalorder %s40, 5
      %p462 = scmp.ne.s32.totalorder %s457, %s459
      %p463 = scmp.eq.s32.totalorder %s40, 0
      %p464 = por %p462, %p463
      %p465 = scmp.ne.s32.totalorder %s457, %s459
      %p466 = scmp.eq.s32.totalorder %s45, 5
      %p467 = por %p465, %p466
      %p468 = scmp.ne.s32.totalorder %s459, %s460
      %p469 = scmp.eq.s32.totalorder %s45, 0
      %p470 = por %p468, %p469
      %p471 = scmp.ne.s32.totalorder %s459, %s460
      %p472 = scmp.eq.s32.totalorder %s46, 5
      %p473 = por %p471, %p472
      %p475 = scmp.ne.s32.totalorder %s460, %s474
      %p476 = scmp.eq.s32.totalorder %s46, 0
      %p477 = por %p475, %p476
      %s478 = ssub.s32 %s40, %s47
      %p479 = scmp.eq.s32.totalorder %s478, 0
      %s481 = sadd.s32 %s480, 1
      %s482 = scalar_select %p479, %s480, %s481
      %p485 = pneg %p479
      %p486 = scmp.eq.s32.totalorder %s40, 5
      %p487 = por %p485, %p486
      %p488 = scmp.ne.s32.totalorder %s480, %s483
      %p489 = scmp.eq.s32.totalorder %s40, 0
      %p490 = por %p488, %p489
      %p491 = scmp.ne.s32.totalorder %s480, %s483
      %p492 = scmp.eq.s32.totalorder %s45, 5
      %p493 = por %p491, %p492
      %p494 = scmp.ne.s32.totalorder %s483, %s484
      %p495 = scmp.eq.s32.totalorder %s45, 0
      %p496 = por %p494, %p495
      %p497 = scmp.ne.s32.totalorder %s483, %s484
      %p498 = scmp.eq.s32.totalorder %s46, 5
      %p499 = por %p497, %p498
      %p501 = scmp.ne.s32.totalorder %s484, %s500
      %p502 = scmp.eq.s32.totalorder %s46, 0
      %p503 = por %p501, %p502
      %p504 = scmp.le.s32.totalorder 1, %s40
      %p505 = scmp.lt.s32.totalorder %s40, 7
      %p506 = pnand %p504, %p505
      %p507 = pneg %p506
      // Predicated region
      $region9: #{tpu_custom_call.1} parent=5 // pred_check
        _
      $region10: #{tpu_custom_call.1} parent=5 // pred_check_branch
        %509 = sbr.rel (%p506) target = $region12
      $region11: #{tpu_custom_call.1} parent=5 // pred_region
        %s510 = ssub.s32 %s40, 1
        // Predicated region
        $region13: #{tpu_custom_call.1} parent=11 // pred_check
          %p511 = pneg %p113
        $region14: #{tpu_custom_call.1} parent=11 // pred_check_branch
          %513 = sbr.rel (%p511) target = $region16
        $region15: #{tpu_custom_call.1} parent=11 // pred_region
          _
        $region16: #{tpu_custom_call.1} parent=11 // pred_fallthru
          _
        // Predicated region
        $region17: #{tpu_custom_call.1} parent=11 // pred_check
          %p514 = pneg %p134
        $region18: #{tpu_custom_call.1} parent=11 // pred_check_branch
          %516 = sbr.rel (%p514) target = $region20
        $region19: #{tpu_custom_call.1} parent=11 // pred_region
          _
        $region20: #{tpu_custom_call.1} parent=11 // pred_fallthru
          _
        // Predicated region
        $region21: #{tpu_custom_call.1} parent=11 // pred_check
          %p517 = pneg %p155
        $region22: #{tpu_custom_call.1} parent=11 // pred_check_branch
          %519 = sbr.rel (%p517) target = $region24
        $region23: #{tpu_custom_call.1} parent=11 // pred_region
          _
        $region24: #{tpu_custom_call.1} parent=11 // pred_fallthru
          _
        // Predicated region
        $region25: #{tpu_custom_call.1} parent=11 // pred_check
          %p520 = pneg %p176
        $region26: #{tpu_custom_call.1} parent=11 // pred_check_branch
          %522 = sbr.rel (%p520) target = $region28
        $region27: #{tpu_custom_call.1} parent=11 // pred_region
          _
        $region28: #{tpu_custom_call.1} parent=11 // pred_fallthru
          _
        // Predicated region
        $region29: #{tpu_custom_call.1} parent=11 // pred_check
          %p523 = pneg %p197
        $region30: #{tpu_custom_call.1} parent=11 // pred_check_branch
          %525 = sbr.rel (%p523) target = $region32
        $region31: #{tpu_custom_call.1} parent=11 // pred_region
          _
        $region32: #{tpu_custom_call.1} parent=11 // pred_fallthru
          _
        // Predicated region
        $region33: #{tpu_custom_call.1} parent=11 // pred_check
          %p526 = pneg %p218
        $region34: #{tpu_custom_call.1} parent=11 // pred_check_branch
          %528 = sbr.rel (%p526) target = $region36
        $region35: #{tpu_custom_call.1} parent=11 // pred_region
          %s530 = ssub.s32 2688, 2688
          %531 = vsyncadd [#allocation6], %s530
          %s532 = sshll.u32 [#allocation7], 4
          %s533 = int_to_ptr.vmem [resolvable:$true] %s532
          %538 = dma.hbm_to_vmem [thread:$0]  %s7, 2688, %s533, [#allocation6], 128, 128, 8
        $region36: #{tpu_custom_call.1} parent=11 // pred_fallthru
          _
        // Predicated region
        $region37: #{tpu_custom_call.1} parent=11 // pred_check
          %p539 = pneg %p239
        $region38: #{tpu_custom_call.1} parent=11 // pred_check_branch
          %541 = sbr.rel (%p539) target = $region40
        $region39: #{tpu_custom_call.1} parent=11 // pred_region
          %s543 = ssub.s32 640, 640
          %544 = vsyncadd [#allocation9], %s543
          %s545 = sshll.u32 [#allocation8], 4
          %s546 = int_to_ptr.vmem [resolvable:$true] %s545
          %551 = dma.hbm_to_vmem [thread:$0]  %s8, 640, %s546, [#allocation9], 64, 64, 4
        $region40: #{tpu_custom_call.1} parent=11 // pred_fallthru
          _
        // Predicated region
        $region41: #{tpu_custom_call.1} parent=11 // pred_check
          %p552 = pneg %p260
        $region42: #{tpu_custom_call.1} parent=11 // pred_check_branch
          %554 = sbr.rel (%p552) target = $region44
        $region43: #{tpu_custom_call.1} parent=11 // pred_region
          %s556 = ssub.s32 320, 320
          %557 = vsyncadd [#allocation9], %s556
          %s558 = sshll.u32 [#allocation10], 4
          %s559 = int_to_ptr.vmem [resolvable:$true] %s558
          %564 = dma.hbm_to_vmem [thread:$0]  %s9, 320, %s559, [#allocation9], 64, 64, 4
        $region44: #{tpu_custom_call.1} parent=11 // pred_fallthru
          _
        // Predicated region
        $region45: #{tpu_custom_call.1} parent=11 // pred_check
          %p565 = pneg %p281
        $region46: #{tpu_custom_call.1} parent=11 // pred_check_branch
          %567 = sbr.rel (%p565) target = $region48
        $region47: #{tpu_custom_call.1} parent=11 // pred_region
          %s569 = ssub.s32 128, 128
          %570 = vsyncadd [#allocation12], %s569
          %s571 = sshll.u32 [#allocation11], 4
          %s572 = int_to_ptr.vmem [resolvable:$true] %s571
          %577 = dma.hbm_to_vmem [thread:$0]  %s10, 128, %s572, [#allocation12], 64, 64, 4
        $region48: #{tpu_custom_call.1} parent=11 // pred_fallthru
          _
        // Predicated region
        $region49: #{tpu_custom_call.1} parent=11 // pred_check
          %p578 = pneg %p302
        $region50: #{tpu_custom_call.1} parent=11 // pred_check_branch
          %580 = sbr.rel (%p578) target = $region52
        $region51: #{tpu_custom_call.1} parent=11 // pred_region
          %s582 = ssub.s32 16, 16
          %583 = vsyncadd [#allocation12], %s582
          %s585 = sshll.u32 [#allocation13], 4
          %s586 = int_to_ptr.vmem [resolvable:$true] %s585
          %588 = dma.hbm_to_vmem [thread:$0]  %s11, 16, %s586, [#allocation12]
        $region52: #{tpu_custom_call.1} parent=11 // pred_fallthru
          _
        // Predicated region
        $region53: #{tpu_custom_call.1} parent=11 // pred_check
          %p589 = pneg %p323
        $region54: #{tpu_custom_call.1} parent=11 // pred_check_branch
          %591 = sbr.rel (%p589) target = $region56
        $region55: #{tpu_custom_call.1} parent=11 // pred_region
          %s593 = ssub.s32 1408, 1408
          %594 = vsyncadd [#allocation15], %s593
          %s595 = sshll.u32 [#allocation14], 4
          %s596 = int_to_ptr.vmem [resolvable:$true] %s595
          %601 = dma.hbm_to_vmem [thread:$0]  %s12, 1408, %s596, [#allocation15], 64, 64, 4
        $region56: #{tpu_custom_call.1} parent=11 // pred_fallthru
          _
        // Predicated region
        $region57: #{tpu_custom_call.1} parent=11 // pred_check
          %p602 = pneg %p344
        $region58: #{tpu_custom_call.1} parent=11 // pred_check_branch
          %604 = sbr.rel (%p602) target = $region60
        $region59: #{tpu_custom_call.1} parent=11 // pred_region
          _
        $region60: #{tpu_custom_call.1} parent=11 // pred_fallthru
          _
        // Predicated region
        $region61: #{tpu_custom_call.1} parent=11 // pred_check
          %p605 = pneg %p365
        $region62: #{tpu_custom_call.1} parent=11 // pred_check_branch
          %607 = sbr.rel (%p605) target = $region64
        $region63: #{tpu_custom_call.1} parent=11 // pred_region
          _
        $region64: #{tpu_custom_call.1} parent=11 // pred_fallthru
          _
        // Predicated region
        $region65: #{tpu_custom_call.1} parent=11 // pred_check
          %p608 = pneg %p386
        $region66: #{tpu_custom_call.1} parent=11 // pred_check_branch
          %610 = sbr.rel (%p608) target = $region68
        $region67: #{tpu_custom_call.1} parent=11 // pred_region
          _
        $region68: #{tpu_custom_call.1} parent=11 // pred_fallthru
          _
        // Predicated region
        $region69: #{tpu_custom_call.1} parent=11 // pred_check
          %p611 = pneg %p407
        $region70: #{tpu_custom_call.1} parent=11 // pred_check_branch
          %613 = sbr.rel (%p611) target = $region72
        $region71: #{tpu_custom_call.1} parent=11 // pred_region
          %s615 = ssub.s32 1408, 1408
          %616 = vsyncadd [#allocation15], %s615
          %s617 = sshll.u32 [#allocation16], 4
          %s618 = int_to_ptr.vmem [resolvable:$true] %s617
          %623 = dma.hbm_to_vmem [thread:$0]  %s16, 1408, %s618, [#allocation15], 128, 128, 8
        $region72: #{tpu_custom_call.1} parent=11 // pred_fallthru
          _
        // Predicated region
        $region73: #{tpu_custom_call.1} parent=11 // pred_check
          %p624 = pneg %p428
        $region74: #{tpu_custom_call.1} parent=11 // pred_check_branch
          %626 = sbr.rel (%p624) target = $region76
        $region75: #{tpu_custom_call.1} parent=11 // pred_region
          %s628 = ssub.s32 384, 384
          %629 = vsyncadd [#allocation18], %s628
          %s630 = sshll.u32 [#allocation17], 4
          %s631 = int_to_ptr.vmem [resolvable:$true] %s630
          %636 = dma.hbm_to_vmem [thread:$0]  %s17, 384, %s631, [#allocation18], 64, 64, 4
        $region76: #{tpu_custom_call.1} parent=11 // pred_fallthru
          _
        // Predicated region
        $region77: #{tpu_custom_call.1} parent=11 // pred_check
          %p637 = pneg %p449
        $region78: #{tpu_custom_call.1} parent=11 // pred_check_branch
          %639 = sbr.rel (%p637) target = $region80
        $region79: #{tpu_custom_call.1} parent=11 // pred_region
          %s641 = ssub.s32 192, 192
          %642 = vsyncadd [#allocation18], %s641
          %s643 = sshll.u32 [#allocation19], 4
          %s644 = int_to_ptr.vmem [resolvable:$true] %s643
          %649 = dma.hbm_to_vmem [thread:$0]  %s18, 192, %s644, [#allocation18], 64, 64, 4
        $region80: #{tpu_custom_call.1} parent=11 // pred_fallthru
          _
        // Predicated region
        $region81: #{tpu_custom_call.1} parent=11 // pred_check
          %p650 = pneg %p470
        $region82: #{tpu_custom_call.1} parent=11 // pred_check_branch
          %652 = sbr.rel (%p650) target = $region84
        $region83: #{tpu_custom_call.1} parent=11 // pred_region
          %s654 = ssub.s32 128, 128
          %655 = vsyncadd [#allocation21], %s654
          %s656 = sshll.u32 [#allocation20], 4
          %s657 = int_to_ptr.vmem [resolvable:$true] %s656
          %662 = dma.hbm_to_vmem [thread:$0]  %s19, 128, %s657, [#allocation21], 64, 64, 4
        $region84: #{tpu_custom_call.1} parent=11 // pred_fallthru
          _
      $region12: #{tpu_custom_call.1} parent=5 // pred_fallthru
        _
      %p663 = scmp.lt.s32.totalorder %s40, 6
      // Predicated region
      $region85: #{tpu_custom_call.1} parent=5 // pred_check
        %p664 = pneg %p663
      $region86: #{tpu_custom_call.1} parent=5 // pred_check_branch
        %666 = sbr.rel (%p664) target = $region88
      $region87: #{tpu_custom_call.1} parent=5 // pred_region
        // Predicated region
        $region89: #{tpu_custom_call.1} parent=87 // pred_check
          %p667 = pneg %p60
        $region90: #{tpu_custom_call.1} parent=87 // pred_check_branch
          %669 = sbr.rel (%p667) target = $region92
        $region91: #{tpu_custom_call.1} parent=87 // pred_region
          %s670 = sand.u32 %s50, 1
          %s671 = scalar_lea.sflag [#allocation3], %s670
          %s672 = sand.u32 %s50, 1
          %s673 = smul.addr %s672, 352
          %s674 = scalar_lea.vmem [#allocation2], %s673
          %s676 = ssub.s32 5632, 5632
          %677 = vsyncadd %s671, %s676
          %s678 = smul.addr %s40, 44
          %s679 = smul.addr %s678, 128
          %s680 = scalar_lea.hbm %s0, %s679
          %s681 = sshll.u32 %s674, 4
          %s682 = int_to_ptr.vmem [resolvable:$true] %s681
          %687 = dma.hbm_to_vmem [thread:$0]  %s680, 5632, %s682, %s671, 256, 256, 16
        $region92: #{tpu_custom_call.1} parent=87 // pred_fallthru
          _
        // Predicated region
        $region93: #{tpu_custom_call.1} parent=87 // pred_check
          %p688 = pneg %p86
        $region94: #{tpu_custom_call.1} parent=87 // pred_check_branch
          %690 = sbr.rel (%p688) target = $region96
        $region95: #{tpu_custom_call.1} parent=87 // pred_region
          %s691 = sand.u32 %s40, 1
          %s692 = scalar_lea.sflag [#allocation6], %s691
          %s693 = sand.u32 %s76, 1
          %s694 = smul.addr %s693, 352
          %s695 = scalar_lea.vmem [#allocation5], %s694
          %s697 = ssub.s32 5632, 5632
          %698 = vsyncadd %s692, %s697
          %s699 = smul.addr %s40, 44
          %s700 = smul.addr %s699, 128
          %s701 = scalar_lea.hbm %s1, %s700
          %s702 = sshll.u32 %s695, 4
          %s703 = int_to_ptr.vmem [resolvable:$true] %s702
          %708 = dma.hbm_to_vmem [thread:$0]  %s701, 5632, %s703, %s692, 256, 256, 16
        $region96: #{tpu_custom_call.1} parent=87 // pred_fallthru
          _
      $region88: #{tpu_custom_call.1} parent=5 // pred_fallthru
        _
      %p709 = scmp.le.s32.totalorder 1, %s40
      %p710 = scmp.lt.s32.totalorder %s40, 7
      %p711 = pnand %p709, %p710
      %p712 = pneg %p711
      // Predicated region
      $region97: #{tpu_custom_call.1} parent=5 // pred_check
        _
      $region98: #{tpu_custom_call.1} parent=5 // pred_check_branch
        %714 = sbr.rel (%p711) target = $region100
      $region99: #{tpu_custom_call.1} parent=5 // pred_region
        %s715 = ssub.s32 %s40, 1
        %s716 = sand.u32 %s53, 1
        %s717 = scalar_lea.sflag [#allocation3], %s716
        %s718 = sand.u32 %s53, 1
        %s719 = smul.addr %s718, 352
        %s720 = scalar_lea.vmem [#allocation2], %s719
        // Predicated region
        $region101: #{tpu_custom_call.1} parent=99 // pred_check
          %p721 = pneg %p66
        $region102: #{tpu_custom_call.1} parent=99 // pred_check_branch
          %723 = sbr.rel (%p721) target = $region104
        $region103: #{tpu_custom_call.1} parent=99 // pred_region
          %724 = dma.done %s717, 5632
        $region104: #{tpu_custom_call.1} parent=99 // pred_fallthru
          _
        %s725 = sand.u32 %s45, 1
        %s726 = scalar_lea.sflag [#allocation6], %s725
        %s727 = sand.u32 %s79, 1
        %s728 = smul.addr %s727, 352
        %s729 = scalar_lea.vmem [#allocation5], %s728
        // Predicated region
        $region105: #{tpu_custom_call.1} parent=99 // pred_check
          %p730 = pneg %p92
        $region106: #{tpu_custom_call.1} parent=99 // pred_check_branch
          %732 = sbr.rel (%p730) target = $region108
        $region107: #{tpu_custom_call.1} parent=99 // pred_region
          %733 = dma.done %s726, 5632
        $region108: #{tpu_custom_call.1} parent=99 // pred_fallthru
          _
        // Predicated region
        $region109: #{tpu_custom_call.1} parent=99 // pred_check
          %p734 = pneg %p218
        $region110: #{tpu_custom_call.1} parent=99 // pred_check_branch
          %736 = sbr.rel (%p734) target = $region112
        $region111: #{tpu_custom_call.1} parent=99 // pred_region
          %737 = dma.done [#allocation6], 2688
        $region112: #{tpu_custom_call.1} parent=99 // pred_fallthru
          _
        // Predicated region
        $region113: #{tpu_custom_call.1} parent=99 // pred_check
          %p738 = pneg %p239
        $region114: #{tpu_custom_call.1} parent=99 // pred_check_branch
          %740 = sbr.rel (%p738) target = $region116
        $region115: #{tpu_custom_call.1} parent=99 // pred_region
          %741 = dma.done [#allocation9], 640
        $region116: #{tpu_custom_call.1} parent=99 // pred_fallthru
          _
        // Predicated region
        $region117: #{tpu_custom_call.1} parent=99 // pred_check
          %p742 = pneg %p260
        $region118: #{tpu_custom_call.1} parent=99 // pred_check_branch
          %744 = sbr.rel (%p742) target = $region120
        $region119: #{tpu_custom_call.1} parent=99 // pred_region
          %745 = dma.done [#allocation9], 320
        $region120: #{tpu_custom_call.1} parent=99 // pred_fallthru
          _
        // Predicated region
        $region121: #{tpu_custom_call.1} parent=99 // pred_check
          %p746 = pneg %p281
        $region122: #{tpu_custom_call.1} parent=99 // pred_check_branch
          %748 = sbr.rel (%p746) target = $region124
        $region123: #{tpu_custom_call.1} parent=99 // pred_region
          %749 = dma.done [#allocation12], 128
        $region124: #{tpu_custom_call.1} parent=99 // pred_fallthru
          _
        // Predicated region
        $region125: #{tpu_custom_call.1} parent=99 // pred_check
          %p750 = pneg %p302
        $region126: #{tpu_custom_call.1} parent=99 // pred_check_branch
          %752 = sbr.rel (%p750) target = $region128
        $region127: #{tpu_custom_call.1} parent=99 // pred_region
          %753 = dma.done [#allocation12], 16
        $region128: #{tpu_custom_call.1} parent=99 // pred_fallthru
          _
        // Predicated region
        $region129: #{tpu_custom_call.1} parent=99 // pred_check
          %p754 = pneg %p323
        $region130: #{tpu_custom_call.1} parent=99 // pred_check_branch
          %756 = sbr.rel (%p754) target = $region132
        $region131: #{tpu_custom_call.1} parent=99 // pred_region
          %757 = dma.done [#allocation15], 1408
        $region132: #{tpu_custom_call.1} parent=99 // pred_fallthru
          _
        // Predicated region
        $region133: #{tpu_custom_call.1} parent=99 // pred_check
          %p758 = pneg %p407
        $region134: #{tpu_custom_call.1} parent=99 // pred_check_branch
          %760 = sbr.rel (%p758) target = $region136
        $region135: #{tpu_custom_call.1} parent=99 // pred_region
          %761 = dma.done [#allocation15], 1408
        $region136: #{tpu_custom_call.1} parent=99 // pred_fallthru
          _
        // Predicated region
        $region137: #{tpu_custom_call.1} parent=99 // pred_check
          %p762 = pneg %p428
        $region138: #{tpu_custom_call.1} parent=99 // pred_check_branch
          %764 = sbr.rel (%p762) target = $region140
        $region139: #{tpu_custom_call.1} parent=99 // pred_region
          %765 = dma.done [#allocation18], 384
        $region140: #{tpu_custom_call.1} parent=99 // pred_fallthru
          _
        // Predicated region
        $region141: #{tpu_custom_call.1} parent=99 // pred_check
          %p766 = pneg %p449
        $region142: #{tpu_custom_call.1} parent=99 // pred_check_branch
          %768 = sbr.rel (%p766) target = $region144
        $region143: #{tpu_custom_call.1} parent=99 // pred_region
          %769 = dma.done [#allocation18], 192
        $region144: #{tpu_custom_call.1} parent=99 // pred_fallthru
          _
        // Predicated region
        $region145: #{tpu_custom_call.1} parent=99 // pred_check
          %p770 = pneg %p470
        $region146: #{tpu_custom_call.1} parent=99 // pred_check_branch
          %772 = sbr.rel (%p770) target = $region148
        $region147: #{tpu_custom_call.1} parent=99 // pred_region
          %773 = dma.done [#allocation21], 128
        $region148: #{tpu_custom_call.1} parent=99 // pred_fallthru
          _
        %s774 = sand.u32 %s53, 1
        %s775 = scalar_lea.sflag [#allocation3], %s774
        %s776 = sand.u32 %s53, 1
        %s777 = smul.addr %s776, 352
        %s778 = scalar_lea.vmem [#allocation2], %s777
        %p779 = pneg %p66
        %p780 = pneg %p63
        %s781 = sand.u32 %s45, 1
        %s782 = scalar_lea.sflag [#allocation6], %s781
        %s783 = sand.u32 %s79, 1
        %s784 = smul.addr %s783, 352
        %s785 = scalar_lea.vmem [#allocation5], %s784
        %p786 = pneg %p92
        %p787 = pneg %p89
        %p788 = pneg %p113
        %p789 = pneg %p110
        %p790 = pneg %p134
        %p791 = pneg %p131
        %p792 = pneg %p155
        %p793 = pneg %p152
        %p794 = pneg %p176
        %p795 = pneg %p173
        %p796 = pneg %p197
        %p797 = pneg %p194
        %p798 = pneg %p218
        %p799 = pneg %p215
        %p800 = pneg %p239
        %p801 = pneg %p236
        %p802 = pneg %p260
        %p803 = pneg %p257
        %p804 = pneg %p281
        %p805 = pneg %p278
        %p806 = pneg %p302
        %p807 = pneg %p299
        %p808 = pneg %p323
        %p809 = pneg %p320
        %p810 = pneg %p344
        %p811 = pneg %p341
        %p812 = pneg %p365
        %p813 = pneg %p362
        %p814 = pneg %p386
        %p815 = pneg %p383
        %p816 = pneg %p407
        %p817 = pneg %p404
        %p818 = pneg %p428
        %p819 = pneg %p425
        %p820 = pneg %p449
        %p821 = pneg %p446
        %p822 = pneg %p470
        %p823 = pneg %p467
        %p824 = pneg %p496
        %p825 = pneg %p493
        %s826 = sand.u32 %s483, 1
        %s827 = scalar_lea.sflag [#allocation4], %s826
        %s828 = sand.u32 %s483, 1
        %s829 = scalar_lea.vmem [#allocation22], %s828
        %v831 = vld [vmem:[%s720] sm:$0xff]
        %v832 = vld [vmem:[%s720 + $0x8] sm:$0xff]
        %v833 = vld [vmem:[%s720 + $0x10] sm:$0xff]
        %v834 = vld [vmem:[%s720 + $0x18] sm:$0xff]
        %v835 = vld [vmem:[%s720 + $0x20] sm:$0xff]
        %v836 = vld [vmem:[%s720 + $0x28] sm:$0xff]
        %v837 = vld [vmem:[%s720 + $0x30] sm:$0xff]
        %v838 = vld [vmem:[%s720 + $0x38] sm:$0xff]
        %v839 = vld [vmem:[%s720 + $0x40] sm:$0xff]
        %v840 = vld [vmem:[%s720 + $0x48] sm:$0xff]
        %v841 = vld [vmem:[%s720 + $0x50] sm:$0xff]
        %v842 = vld [vmem:[%s720 + $0x58] sm:$0xff]
        %v843 = vld [vmem:[%s720 + $0x60] sm:$0xff]
        %v844 = vld [vmem:[%s720 + $0x68] sm:$0xff]
        %v845 = vld [vmem:[%s720 + $0x70] sm:$0xff]
        %v846 = vld [vmem:[%s720 + $0x78] sm:$0xff]
        %v847 = vld [vmem:[%s720 + $0x80] sm:$0xff]
        %v848 = vld [vmem:[%s720 + $0x88] sm:$0xff]
        %v849 = vld [vmem:[%s720 + $0x90] sm:$0xff]
        %v850 = vld [vmem:[%s720 + $0x98] sm:$0xff]
        %v851 = vld [vmem:[%s720 + $0xa0] sm:$0xff]
        %v852 = vld [vmem:[%s720 + $0xa8] sm:$0xff]
        %v853 = vld [vmem:[%s720 + $0xb0] sm:$0xff]
        %v854 = vld [vmem:[%s720 + $0xb8] sm:$0xff]
        %v855 = vld [vmem:[%s720 + $0xc0] sm:$0xff]
        %v856 = vld [vmem:[%s720 + $0xc8] sm:$0xff]
        %v857 = vld [vmem:[%s720 + $0xd0] sm:$0xff]
        %v858 = vld [vmem:[%s720 + $0xd8] sm:$0xff]
        %v859 = vld [vmem:[%s720 + $0xe0] sm:$0xff]
        %v860 = vld [vmem:[%s720 + $0xe8] sm:$0xff]
        %v861 = vld [vmem:[%s720 + $0xf0] sm:$0xff]
        %v862 = vld [vmem:[%s720 + $0xf8] sm:$0xff]
        %v863 = vld [vmem:[%s720 + $0x100] sm:$0xff]
        %v864 = vld [vmem:[%s720 + $0x108] sm:$0xff]
        %v865 = vld [vmem:[%s720 + $0x110] sm:$0xff]
        %v866 = vld [vmem:[%s720 + $0x118] sm:$0xff]
        %v867 = vld [vmem:[%s720 + $0x120] sm:$0xff]
        %v868 = vld [vmem:[%s720 + $0x128] sm:$0xff]
        %v869 = vld [vmem:[%s720 + $0x130] sm:$0xff]
        %v870 = vld [vmem:[%s720 + $0x138] sm:$0xff]
        %v871 = vld [vmem:[%s720 + $0x140] sm:$0xff]
        %v872 = vld [vmem:[%s720 + $0x148] sm:$0xff]
        %v873 = vld [vmem:[%s720 + $0x150] sm:$0xff]
        %v874 = vld [vmem:[%s720 + $0x158] sm:$0xff]
        %v875 = vld [vmem:[%s729] sm:$0xff]
        %v876 = vld [vmem:[%s729 + $0x8] sm:$0xff]
        %v877 = vld [vmem:[%s729 + $0x10] sm:$0xff]
        %v878 = vld [vmem:[%s729 + $0x18] sm:$0xff]
        %v879 = vld [vmem:[%s729 + $0x20] sm:$0xff]
        %v880 = vld [vmem:[%s729 + $0x28] sm:$0xff]
        %v881 = vld [vmem:[%s729 + $0x30] sm:$0xff]
        %v882 = vld [vmem:[%s729 + $0x38] sm:$0xff]
        %v883 = vld [vmem:[%s729 + $0x40] sm:$0xff]
        %v884 = vld [vmem:[%s729 + $0x48] sm:$0xff]
        %v885 = vld [vmem:[%s729 + $0x50] sm:$0xff]
        %v886 = vld [vmem:[%s729 + $0x58] sm:$0xff]
        %v887 = vld [vmem:[%s729 + $0x60] sm:$0xff]
        %v888 = vld [vmem:[%s729 + $0x68] sm:$0xff]
        %v889 = vld [vmem:[%s729 + $0x70] sm:$0xff]
        %v890 = vld [vmem:[%s729 + $0x78] sm:$0xff]
        %v891 = vld [vmem:[%s729 + $0x80] sm:$0xff]
        %v892 = vld [vmem:[%s729 + $0x88] sm:$0xff]
        %v893 = vld [vmem:[%s729 + $0x90] sm:$0xff]
        %v894 = vld [vmem:[%s729 + $0x98] sm:$0xff]
        %v895 = vld [vmem:[%s729 + $0xa0] sm:$0xff]
        %v896 = vld [vmem:[%s729 + $0xa8] sm:$0xff]
        %v897 = vld [vmem:[%s729 + $0xb0] sm:$0xff]
        %v898 = vld [vmem:[%s729 + $0xb8] sm:$0xff]
        %v899 = vld [vmem:[%s729 + $0xc0] sm:$0xff]
        %v900 = vld [vmem:[%s729 + $0xc8] sm:$0xff]
        %v901 = vld [vmem:[%s729 + $0xd0] sm:$0xff]
        %v902 = vld [vmem:[%s729 + $0xd8] sm:$0xff]
        %v903 = vld [vmem:[%s729 + $0xe0] sm:$0xff]
        %v904 = vld [vmem:[%s729 + $0xe8] sm:$0xff]
        %v905 = vld [vmem:[%s729 + $0xf0] sm:$0xff]
        %v906 = vld [vmem:[%s729 + $0xf8] sm:$0xff]
        %v907 = vld [vmem:[%s729 + $0x100] sm:$0xff]
        %v908 = vld [vmem:[%s729 + $0x108] sm:$0xff]
        %v909 = vld [vmem:[%s729 + $0x110] sm:$0xff]
        %v910 = vld [vmem:[%s729 + $0x118] sm:$0xff]
        %v911 = vld [vmem:[%s729 + $0x120] sm:$0xff]
        %v912 = vld [vmem:[%s729 + $0x128] sm:$0xff]
        %v913 = vld [vmem:[%s729 + $0x130] sm:$0xff]
        %v914 = vld [vmem:[%s729 + $0x138] sm:$0xff]
        %v915 = vld [vmem:[%s729 + $0x140] sm:$0xff]
        %v916 = vld [vmem:[%s729 + $0x148] sm:$0xff]
        %v917 = vld [vmem:[%s729 + $0x150] sm:$0xff]
        %v918 = vld [vmem:[%s729 + $0x158] sm:$0xff]
        %v919 = vsub.f32 %v831, %v875
        %v920 = vsub.f32 %v832, %v876
        %v921 = vsub.f32 %v833, %v877
        %v922 = vsub.f32 %v834, %v878
        %v923 = vsub.f32 %v835, %v879
        %v924 = vsub.f32 %v836, %v880
        %v925 = vsub.f32 %v837, %v881
        %v926 = vsub.f32 %v838, %v882
        %v927 = vsub.f32 %v839, %v883
        %v928 = vsub.f32 %v840, %v884
        %v929 = vsub.f32 %v841, %v885
        %v930 = vsub.f32 %v842, %v886
        %v931 = vsub.f32 %v843, %v887
        %v932 = vsub.f32 %v844, %v888
        %v933 = vsub.f32 %v845, %v889
        %v934 = vsub.f32 %v846, %v890
        %v935 = vsub.f32 %v847, %v891
        %v936 = vsub.f32 %v848, %v892
        %v937 = vsub.f32 %v849, %v893
        %v938 = vsub.f32 %v850, %v894
        %v939 = vsub.f32 %v851, %v895
        %v940 = vsub.f32 %v852, %v896
        %v941 = vsub.f32 %v853, %v897
        %v942 = vsub.f32 %v854, %v898
        %v943 = vsub.f32 %v855, %v899
        %v944 = vsub.f32 %v856, %v900
        %v945 = vsub.f32 %v857, %v901
        %v946 = vsub.f32 %v858, %v902
        %v947 = vsub.f32 %v859, %v903
        %v948 = vsub.f32 %v860, %v904
        %v949 = vsub.f32 %v861, %v905
        %v950 = vsub.f32 %v862, %v906
        %v951 = vsub.f32 %v863, %v907
        %v952 = vsub.f32 %v864, %v908
        %v953 = vsub.f32 %v865, %v909
        %v954 = vsub.f32 %v866, %v910
        %v955 = vsub.f32 %v867, %v911
        %v956 = vsub.f32 %v868, %v912
        %v957 = vsub.f32 %v869, %v913
        %v958 = vsub.f32 %v870, %v914
        %v959 = vsub.f32 %v871, %v915
        %v960 = vsub.f32 %v872, %v916
        %v961 = vsub.f32 %v873, %v917
        %v962 = vsub.f32 %v874, %v918
        %v963 = vmul.f32 %v919, %v919
        %v964 = vmul.f32 %v920, %v920
        %v965 = vmul.f32 %v921, %v921
        %v966 = vmul.f32 %v922, %v922
        %v967 = vmul.f32 %v923, %v923
        %v968 = vmul.f32 %v924, %v924
        %v969 = vmul.f32 %v925, %v925
        %v970 = vmul.f32 %v926, %v926
        %v971 = vmul.f32 %v927, %v927
        %v972 = vmul.f32 %v928, %v928
        %v973 = vmul.f32 %v929, %v929
        %v974 = vmul.f32 %v930, %v930
        %v975 = vmul.f32 %v931, %v931
        %v976 = vmul.f32 %v932, %v932
        %v977 = vmul.f32 %v933, %v933
        %v978 = vmul.f32 %v934, %v934
        %v979 = vmul.f32 %v935, %v935
        %v980 = vmul.f32 %v936, %v936
        %v981 = vmul.f32 %v937, %v937
        %v982 = vmul.f32 %v938, %v938
        %v983 = vmul.f32 %v939, %v939
        %v984 = vmul.f32 %v940, %v940
        %v985 = vmul.f32 %v941, %v941
        %v986 = vmul.f32 %v942, %v942
        %v987 = vmul.f32 %v943, %v943
        %v988 = vmul.f32 %v944, %v944
        %v989 = vmul.f32 %v945, %v945
        %v990 = vmul.f32 %v946, %v946
        %v991 = vmul.f32 %v947, %v947
        %v992 = vmul.f32 %v948, %v948
        %v993 = vmul.f32 %v949, %v949
        %v994 = vmul.f32 %v950, %v950
        %v995 = vmul.f32 %v951, %v951
        %v996 = vmul.f32 %v952, %v952
        %v997 = vmul.f32 %v953, %v953
        %v998 = vmul.f32 %v954, %v954
        %v999 = vmul.f32 %v955, %v955
        %v1000 = vmul.f32 %v956, %v956
        %v1001 = vmul.f32 %v957, %v957
        %v1002 = vmul.f32 %v958, %v958
        %v1003 = vmul.f32 %v959, %v959
        %v1004 = vmul.f32 %v960, %v960
        %v1005 = vmul.f32 %v961, %v961
        %v1006 = vmul.f32 %v962, %v962
        %vm1007 = vcmask 392192
        %v1008 = vsel %vm1007, %v964, 0.0
        %v1009 = vadd.f32 %v963, %v1008
        %1010 = vadd.xlane.f32.xlu0 %v1009
        %v1011 = vpop.xlane.xlu0 %1010
        %v1012 = vsel %vm1007, %v966, 0.0
        %v1013 = vadd.f32 %v965, %v1012
        %1014 = vadd.xlane.f32.xlu0 %v1013
        %v1015 = vpop.xlane.xlu0 %1014
        %v1016 = vsel %vm1007, %v968, 0.0
        %v1017 = vadd.f32 %v967, %v1016
        %1018 = vadd.xlane.f32.xlu0 %v1017
        %v1019 = vpop.xlane.xlu0 %1018
        %v1020 = vsel %vm1007, %v970, 0.0
        %v1021 = vadd.f32 %v969, %v1020
        %1022 = vadd.xlane.f32.xlu0 %v1021
        %v1023 = vpop.xlane.xlu0 %1022
        %v1024 = vsel %vm1007, %v972, 0.0
        %v1025 = vadd.f32 %v971, %v1024
        %1026 = vadd.xlane.f32.xlu0 %v1025
        %v1027 = vpop.xlane.xlu0 %1026
        %v1028 = vsel %vm1007, %v974, 0.0
        %v1029 = vadd.f32 %v973, %v1028
        %1030 = vadd.xlane.f32.xlu0 %v1029
        %v1031 = vpop.xlane.xlu0 %1030
        %v1032 = vsel %vm1007, %v976, 0.0
        %v1033 = vadd.f32 %v975, %v1032
        %1034 = vadd.xlane.f32.xlu0 %v1033
        %v1035 = vpop.xlane.xlu0 %1034
        %v1036 = vsel %vm1007, %v978, 0.0
        %v1037 = vadd.f32 %v977, %v1036
        %1038 = vadd.xlane.f32.xlu0 %v1037
        %v1039 = vpop.xlane.xlu0 %1038
        %v1040 = vsel %vm1007, %v980, 0.0
        %v1041 = vadd.f32 %v979, %v1040
        %1042 = vadd.xlane.f32.xlu0 %v1041
        %v1043 = vpop.xlane.xlu0 %1042
        %v1044 = vsel %vm1007, %v982, 0.0
        %v1045 = vadd.f32 %v981, %v1044
        %1046 = vadd.xlane.f32.xlu0 %v1045
        %v1047 = vpop.xlane.xlu0 %1046
        %v1048 = vsel %vm1007, %v984, 0.0
        %v1049 = vadd.f32 %v983, %v1048
        %1050 = vadd.xlane.f32.xlu0 %v1049
        %v1051 = vpop.xlane.xlu0 %1050
        %v1052 = vsel %vm1007, %v986, 0.0
        %v1053 = vadd.f32 %v985, %v1052
        %1054 = vadd.xlane.f32.xlu0 %v1053
        %v1055 = vpop.xlane.xlu0 %1054
        %v1056 = vsel %vm1007, %v988, 0.0
        %v1057 = vadd.f32 %v987, %v1056
        %1058 = vadd.xlane.f32.xlu0 %v1057
        %v1059 = vpop.xlane.xlu0 %1058
        %v1060 = vsel %vm1007, %v990, 0.0
        %v1061 = vadd.f32 %v989, %v1060
        %1062 = vadd.xlane.f32.xlu0 %v1061
        %v1063 = vpop.xlane.xlu0 %1062
        %v1064 = vsel %vm1007, %v992, 0.0
        %v1065 = vadd.f32 %v991, %v1064
        %1066 = vadd.xlane.f32.xlu0 %v1065
        %v1067 = vpop.xlane.xlu0 %1066
        %v1068 = vsel %vm1007, %v994, 0.0
        %v1069 = vadd.f32 %v993, %v1068
        %1070 = vadd.xlane.f32.xlu0 %v1069
        %v1071 = vpop.xlane.xlu0 %1070
        %v1072 = vsel %vm1007, %v996, 0.0
        %v1073 = vadd.f32 %v995, %v1072
        %1074 = vadd.xlane.f32.xlu0 %v1073
        %v1075 = vpop.xlane.xlu0 %1074
        %v1076 = vsel %vm1007, %v998, 0.0
        %v1077 = vadd.f32 %v997, %v1076
        %1078 = vadd.xlane.f32.xlu0 %v1077
        %v1079 = vpop.xlane.xlu0 %1078
        %v1080 = vsel %vm1007, %v1000, 0.0
        %v1081 = vadd.f32 %v999, %v1080
        %1082 = vadd.xlane.f32.xlu0 %v1081
        %v1083 = vpop.xlane.xlu0 %1082
        %v1084 = vsel %vm1007, %v1002, 0.0
        %v1085 = vadd.f32 %v1001, %v1084
        %1086 = vadd.xlane.f32.xlu0 %v1085
        %v1087 = vpop.xlane.xlu0 %1086
        %v1088 = vsel %vm1007, %v1004, 0.0
        %v1089 = vadd.f32 %v1003, %v1088
        %1090 = vadd.xlane.f32.xlu0 %v1089
        %v1091 = vpop.xlane.xlu0 %1090
        %v1092 = vsel %vm1007, %v1006, 0.0
        %v1093 = vadd.f32 %v1005, %v1092
        %1094 = vadd.xlane.f32.xlu0 %v1093
        %v1095 = vpop.xlane.xlu0 %1094
        %v1096 = vadd.f32 %v1011, %v1015
        %v1097 = vadd.f32 %v1096, %v1019
        %v1098 = vadd.f32 %v1097, %v1023
        %v1099 = vadd.f32 %v1098, %v1027
        %v1100 = vadd.f32 %v1099, %v1031
        %v1101 = vadd.f32 %v1100, %v1035
        %v1102 = vadd.f32 %v1101, %v1039
        %v1103 = vadd.f32 %v1102, %v1043
        %v1104 = vadd.f32 %v1103, %v1047
        %v1105 = vadd.f32 %v1104, %v1051
        %v1106 = vadd.f32 %v1105, %v1055
        %v1107 = vadd.f32 %v1106, %v1059
        %v1108 = vadd.f32 %v1107, %v1063
        %v1109 = vadd.f32 %v1108, %v1067
        %v1110 = vadd.f32 %v1109, %v1071
        %v1111 = vadd.f32 %v1110, %v1075
        %v1112 = vadd.f32 %v1111, %v1079
        %v1113 = vadd.f32 %v1112, %v1083
        %v1114 = vadd.f32 %v1113, %v1087
        %v1115 = vadd.f32 %v1114, %v1091
        %v1116 = vadd.f32 %v1115, %v1095
        %v1117 = vrot.slane %v1116, 4
        %v1118 = vadd.f32 %v1116, %v1117
        %v1119 = vrot.slane %v1118, 2
        %v1120 = vadd.f32 %v1118, %v1119
        %v1121 = vrot.slane %v1120, 1
        %v1122 = vadd.f32 %v1120, %v1121
        %v1123 = vld [vmem:[%s2] sm:$0xff]
        %v1124 = vld [vmem:[%s2 + $0x8] sm:$0xff]
        %v1125 = vld [vmem:[%s2 + $0x10] sm:$0xff]
        %v1126 = vld [vmem:[%s2 + $0x18] sm:$0xff]
        %v1127 = vld [vmem:[%s2 + $0x20] sm:$0xff]
        %v1128 = vld [vmem:[%s2 + $0x28] sm:$0xff]
        %v1129 = vld [vmem:[%s2 + $0x30] sm:$0xff]
        %v1130 = vld [vmem:[%s2 + $0x38] sm:$0xff]
        %v1131 = vld [vmem:[%s2 + $0x40] sm:$0xff]
        %v1132 = vld [vmem:[%s2 + $0x48] sm:$0xff]
        %v1133 = vld [vmem:[%s2 + $0x50] sm:$0xff]
        %v1134 = vld [vmem:[%s2 + $0x58] sm:$0xff]
        %v1135 = vld [vmem:[%s2 + $0x60] sm:$0xff]
        %v1136 = vld [vmem:[%s2 + $0x68] sm:$0xff]
        %v1137 = vld [vmem:[%s2 + $0x70] sm:$0xff]
        %v1138 = vld [vmem:[%s2 + $0x78] sm:$0xff]
        %v1139 = vld [vmem:[%s2 + $0x80] sm:$0xff]
        %v1140 = vld [vmem:[%s2 + $0x88] sm:$0xff]
        %v1141 = vld [vmem:[%s2 + $0x90] sm:$0xff]
        %v1142 = vld [vmem:[%s2 + $0x98] sm:$0xff]
        %v1143 = vld [vmem:[%s2 + $0xa0] sm:$0xff]
        %v1144 = vld [vmem:[%s2 + $0xa8] sm:$0xff]
        %v1145 = vld [vmem:[#allocation7] sm:$0xff]
        %v1146 = vld [vmem:[#allocation7 + $0x8] sm:$0xff]
        %v1147 = vld [vmem:[#allocation7 + $0x10] sm:$0xff]
        %v1148 = vld [vmem:[#allocation7 + $0x18] sm:$0xff]
        %v1149 = vld [vmem:[#allocation7 + $0x20] sm:$0xff]
        %v1150 = vld [vmem:[#allocation7 + $0x28] sm:$0xff]
        %v1151 = vld [vmem:[#allocation7 + $0x30] sm:$0xff]
        %v1152 = vld [vmem:[#allocation7 + $0x38] sm:$0xff]
        %v1153 = vld [vmem:[#allocation7 + $0x40] sm:$0xff]
        %v1154 = vld [vmem:[#allocation7 + $0x48] sm:$0xff]
        %v1155 = vld [vmem:[#allocation7 + $0x50] sm:$0xff]
        %v1156 = vld [vmem:[#allocation7 + $0x58] sm:$0xff]
        %v1157 = vld [vmem:[#allocation7 + $0x60] sm:$0xff]
        %v1158 = vld [vmem:[#allocation7 + $0x68] sm:$0xff]
        %v1159 = vld [vmem:[#allocation7 + $0x70] sm:$0xff]
        %v1160 = vld [vmem:[#allocation7 + $0x78] sm:$0xff]
        %v1161 = vld [vmem:[#allocation7 + $0x80] sm:$0xff]
        %v1162 = vld [vmem:[#allocation7 + $0x88] sm:$0xff]
        %v1163 = vld [vmem:[#allocation7 + $0x90] sm:$0xff]
        %v1164 = vld [vmem:[#allocation7 + $0x98] sm:$0xff]
        %v1165 = vld [vmem:[#allocation7 + $0xa0] sm:$0x77]
        %v1166 = vsub.f32 %v831, 0.5
        %v1167 = vsub.f32 %v832, 0.5
        %v1168 = vsub.f32 %v833, 0.5
        %v1169 = vsub.f32 %v834, 0.5
        %v1170 = vsub.f32 %v835, 0.5
        %v1171 = vsub.f32 %v836, 0.5
        %v1172 = vsub.f32 %v837, 0.5
        %v1173 = vsub.f32 %v838, 0.5
        %v1174 = vsub.f32 %v839, 0.5
        %v1175 = vsub.f32 %v840, 0.5
        %v1176 = vsub.f32 %v841, 0.5
        %v1177 = vsub.f32 %v842, 0.5
        %v1178 = vsub.f32 %v843, 0.5
        %v1179 = vsub.f32 %v844, 0.5
        %v1180 = vsub.f32 %v845, 0.5
        %v1181 = vsub.f32 %v846, 0.5
        %v1182 = vsub.f32 %v847, 0.5
        %v1183 = vsub.f32 %v848, 0.5
        %v1184 = vsub.f32 %v849, 0.5
        %v1185 = vsub.f32 %v850, 0.5
        %v1186 = vsub.f32 %v851, 0.5
        %v1187 = vsub.f32 %v852, 0.5
        %v1188 = vsub.f32 %v853, 0.5
        %v1189 = vsub.f32 %v854, 0.5
        %v1190 = vsub.f32 %v855, 0.5
        %v1191 = vsub.f32 %v856, 0.5
        %v1192 = vsub.f32 %v857, 0.5
        %v1193 = vsub.f32 %v858, 0.5
        %v1194 = vsub.f32 %v859, 0.5
        %v1195 = vsub.f32 %v860, 0.5
        %v1196 = vsub.f32 %v861, 0.5
        %v1197 = vsub.f32 %v862, 0.5
        %v1198 = vsub.f32 %v863, 0.5
        %v1199 = vsub.f32 %v864, 0.5
        %v1200 = vsub.f32 %v865, 0.5
        %v1201 = vsub.f32 %v866, 0.5
        %v1202 = vsub.f32 %v867, 0.5
        %v1203 = vsub.f32 %v868, 0.5
        %v1204 = vsub.f32 %v869, 0.5
        %v1205 = vsub.f32 %v870, 0.5
        %v1206 = vsub.f32 %v871, 0.5
        %v1207 = vsub.f32 %v872, 0.5
        %v1208 = vsub.f32 %v873, 0.5
        %v1209 = vsub.f32 %v874, 0.5
        %v1210 = vsub.f32 %v875, 0.5
        %v1211 = vsub.f32 %v876, 0.5
        %v1212 = vsub.f32 %v877, 0.5
        %v1213 = vsub.f32 %v878, 0.5
        %v1214 = vsub.f32 %v879, 0.5
        %v1215 = vsub.f32 %v880, 0.5
        %v1216 = vsub.f32 %v881, 0.5
        %v1217 = vsub.f32 %v882, 0.5
        %v1218 = vsub.f32 %v883, 0.5
        %v1219 = vsub.f32 %v884, 0.5
        %v1220 = vsub.f32 %v885, 0.5
        %v1221 = vsub.f32 %v886, 0.5
        %v1222 = vsub.f32 %v887, 0.5
        %v1223 = vsub.f32 %v888, 0.5
        %v1224 = vsub.f32 %v889, 0.5
        %v1225 = vsub.f32 %v890, 0.5
        %v1226 = vsub.f32 %v891, 0.5
        %v1227 = vsub.f32 %v892, 0.5
        %v1228 = vsub.f32 %v893, 0.5
        %v1229 = vsub.f32 %v894, 0.5
        %v1230 = vsub.f32 %v895, 0.5
        %v1231 = vsub.f32 %v896, 0.5
        %v1232 = vsub.f32 %v897, 0.5
        %v1233 = vsub.f32 %v898, 0.5
        %v1234 = vsub.f32 %v899, 0.5
        %v1235 = vsub.f32 %v900, 0.5
        %v1236 = vsub.f32 %v901, 0.5
        %v1237 = vsub.f32 %v902, 0.5
        %v1238 = vsub.f32 %v903, 0.5
        %v1239 = vsub.f32 %v904, 0.5
        %v1240 = vsub.f32 %v905, 0.5
        %v1241 = vsub.f32 %v906, 0.5
        %v1242 = vsub.f32 %v907, 0.5
        %v1243 = vsub.f32 %v908, 0.5
        %v1244 = vsub.f32 %v909, 0.5
        %v1245 = vsub.f32 %v910, 0.5
        %v1246 = vsub.f32 %v911, 0.5
        %v1247 = vsub.f32 %v912, 0.5
        %v1248 = vsub.f32 %v913, 0.5
        %v1249 = vsub.f32 %v914, 0.5
        %v1250 = vsub.f32 %v915, 0.5
        %v1251 = vsub.f32 %v916, 0.5
        %v1252 = vsub.f32 %v917, 0.5
        %v1253 = vsub.f32 %v918, 0.5
        %v1254 = vpack.c.bf16 %v1168, %v1166
        %v1255 = vpack.c.bf16 %v1169, %v1167
        %v1256 = vpack.c.bf16 %v1172, %v1170
        %v1257 = vpack.c.bf16 %v1173, %v1171
        %v1258 = vpack.c.bf16 %v1176, %v1174
        %v1259 = vpack.c.bf16 %v1177, %v1175
        %v1260 = vpack.c.bf16 %v1180, %v1178
        %v1261 = vpack.c.bf16 %v1181, %v1179
        %v1262 = vpack.c.bf16 %v1184, %v1182
        %v1263 = vpack.c.bf16 %v1185, %v1183
        %v1264 = vpack.c.bf16 %v1188, %v1186
        %v1265 = vpack.c.bf16 %v1189, %v1187
        %v1266 = vpack.c.bf16 %v1192, %v1190
        %v1267 = vpack.c.bf16 %v1193, %v1191
        %v1268 = vpack.c.bf16 %v1196, %v1194
        %v1269 = vpack.c.bf16 %v1197, %v1195
        %v1270 = vpack.c.bf16 %v1200, %v1198
        %v1271 = vpack.c.bf16 %v1201, %v1199
        %v1272 = vpack.c.bf16 %v1204, %v1202
        %v1273 = vpack.c.bf16 %v1205, %v1203
        %v1274 = vpack.c.bf16 %v1208, %v1206
        %v1275 = vpack.c.bf16 %v1209, %v1207
        %v1298 = vunpack.c.l.b16 %v1123
        %v1299 = vunpack.c.h.b16 %v1123
        %v1300 = vunpack.c.l.b16 %v1124
        %v1301 = vunpack.c.h.b16 %v1124
        %v1302 = vunpack.c.l.b16 %v1125
        %v1303 = vunpack.c.h.b16 %v1125
        %v1304 = vunpack.c.l.b16 %v1126
        %v1305 = vunpack.c.h.b16 %v1126
        %v1306 = vunpack.c.l.b16 %v1127
        %v1307 = vunpack.c.h.b16 %v1127
        %v1308 = vunpack.c.l.b16 %v1128
        %v1309 = vunpack.c.h.b16 %v1128
        %v1310 = vunpack.c.l.b16 %v1129
        %v1311 = vunpack.c.h.b16 %v1129
        %v1312 = vunpack.c.l.b16 %v1130
        %v1313 = vunpack.c.h.b16 %v1130
        %v1314 = vunpack.c.l.b16 %v1131
        %v1315 = vunpack.c.h.b16 %v1131
        %v1316 = vunpack.c.l.b16 %v1132
        %v1317 = vunpack.c.h.b16 %v1132
        %v1318 = vunpack.c.l.b16 %v1133
        %v1319 = vunpack.c.h.b16 %v1133
        %v1320 = vunpack.c.l.b16 %v1134
        %v1321 = vunpack.c.h.b16 %v1134
        %v1322 = vunpack.c.l.b16 %v1135
        %v1323 = vunpack.c.h.b16 %v1135
        %v1324 = vunpack.c.l.b16 %v1136
        %v1325 = vunpack.c.h.b16 %v1136
        %v1326 = vunpack.c.l.b16 %v1137
        %v1327 = vunpack.c.h.b16 %v1137
        %v1328 = vunpack.c.l.b16 %v1138
        %v1329 = vunpack.c.h.b16 %v1138
        %v1330 = vunpack.c.l.b16 %v1139
        %v1331 = vunpack.c.h.b16 %v1139
        %v1332 = vunpack.c.l.b16 %v1140
        %v1333 = vunpack.c.h.b16 %v1140
        %v1334 = vunpack.c.l.b16 %v1141
        %v1335 = vunpack.c.h.b16 %v1141
        %v1336 = vunpack.c.l.b16 %v1142
        %v1337 = vunpack.c.h.b16 %v1142
        %v1338 = vunpack.c.l.b16 %v1143
        %v1339 = vunpack.c.h.b16 %v1143
        %v1340 = vunpack.c.l.b16 %v1144
        %v1341 = vunpack.c.h.b16 %v1144
        %v1342 = vpack.c.b16 %v1300, %v1298
        %v1343 = vpack.c.b16 %v1301, %v1299
        %v1344 = vpack.c.b16 %v1304, %v1302
        %v1345 = vpack.c.b16 %v1305, %v1303
        %v1346 = vpack.c.b16 %v1308, %v1306
        %v1347 = vpack.c.b16 %v1309, %v1307
        %v1348 = vpack.c.b16 %v1312, %v1310
        %v1349 = vpack.c.b16 %v1313, %v1311
        %v1350 = vpack.c.b16 %v1316, %v1314
        %v1351 = vpack.c.b16 %v1317, %v1315
        %v1352 = vpack.c.b16 %v1320, %v1318
        %v1353 = vpack.c.b16 %v1321, %v1319
        %v1354 = vpack.c.b16 %v1324, %v1322
        %v1355 = vpack.c.b16 %v1325, %v1323
        %v1356 = vpack.c.b16 %v1328, %v1326
        %v1357 = vpack.c.b16 %v1329, %v1327
        %v1358 = vpack.c.b16 %v1332, %v1330
        %v1359 = vpack.c.b16 %v1333, %v1331
        %v1360 = vpack.c.b16 %v1336, %v1334
        %v1361 = vpack.c.b16 %v1337, %v1335
        %v1362 = vpack.c.b16 %v1340, %v1338
        %v1363 = vpack.c.b16 %v1341, %v1339
        %v1387 = vsel %vm1007, %v1255, 0
        %v1390 = vsel %vm1007, %v1257, 0
        %v1393 = vsel %vm1007, %v1259, 0
        %v1396 = vsel %vm1007, %v1261, 0
        %v1399 = vsel %vm1007, %v1263, 0
        %v1402 = vsel %vm1007, %v1265, 0
        %v1405 = vsel %vm1007, %v1267, 0
        %v1408 = vsel %vm1007, %v1269, 0
        %v1411 = vsel %vm1007, %v1271, 0
        %v1414 = vsel %vm1007, %v1273, 0
        %v1417 = vsel %vm1007, %v1275, 0
        %1419 = vmatprep.subr.bf16.mxu0 %v1343
        %1420 = vmatpush1.bf16.msra.mxu0 %v1342
        %1421 = vmatprep.subr.bf16.mxu0 %v1345
        %1422 = vmatpush1.bf16.msra.mxu0 %v1344
        %1423 = vmatprep.subr.bf16.mxu0 %v1347
        %1424 = vmatpush1.bf16.msra.mxu0 %v1346
        %1425 = vmatprep.subr.bf16.mxu0 %v1349
        %1426 = vmatpush1.bf16.msra.mxu0 %v1348
        %1427 = vmatprep.subr.bf16.mxu0 %v1351
        %1428 = vmatpush1.bf16.msra.mxu0 %v1350
        %1429 = vmatprep.subr.bf16.mxu0 %v1353
        %1430 = vmatpush1.bf16.msra.mxu0 %v1352
        %1431 = vmatprep.subr.bf16.mxu0 %v1355
        %1432 = vmatpush1.bf16.msra.mxu0 %v1354
        %1433 = vmatprep.subr.bf16.mxu0 %v1357
        %1434 = vmatpush1.bf16.msra.mxu0 %v1356
        %1435 = vmatprep.subr.bf16.mxu0 %v1359
        %1436 = vmatpush1.bf16.msra.mxu0 %v1358
        %1437 = vmatprep.subr.bf16.mxu0 %v1361
        %1438 = vmatpush1.bf16.msra.mxu0 %v1360
        %1439 = vmatprep.subr.bf16.mxu0 %v1363
        %1440 = vmatpush1.bf16.msra.mxu0 %v1362
        %1441 = vmatprep.subr.bf16.mxu0 0
        %1442 = vmatpush1.bf16.msra.mxu0 0
        %1443 = vmatprep.subr.bf16.mxu0 0
        %1444 = vmatpush1.bf16.msra.mxu0 0
        %1445 = vmatprep.subr.bf16.mxu0 0
        %1446 = vmatpush1.bf16.msra.mxu0 0
        %1447 = vmatprep.subr.bf16.mxu0 0
        %1448 = vmatpush1.bf16.msra.mxu0 0
        %1449 = vmatprep.subr.bf16.mxu0 0
        %1450 = vmatpush1.bf16.msra.mxu0 0
        %1451 = vmatprep.mubr.bf16.mxu0 %v1387
        %1452 = vmatmul.mubr.bf16.gmra.mrb[0].mxu0 %v1254
        %v1453 = vpop.f32.mrb[0].mxu0
        %v1454 = vadd.f32 0.0, %v1453
        %v1455 = vpop.f32.mrb[0].mxu0
        %v1456 = vadd.f32 0.0, %v1455
        %v1457 = vpop.f32.mrb[0].mxu0
        %v1458 = vadd.f32 0.0, %v1457
        %v1459 = vpop.f32.mrb[0].mxu0
        %v1460 = vadd.f32 0.0, %v1459
        %1461 = vmatprep.mubr.bf16.mxu0 %v1390
        %1462 = vmatmul.mubr.bf16.gmra.mrb[0].mxu0 %v1256
        %v1463 = vpop.f32.mrb[0].mxu0
        %v1464 = vadd.f32 0.0, %v1463
        %v1465 = vpop.f32.mrb[0].mxu0
        %v1466 = vadd.f32 0.0, %v1465
        %v1467 = vpop.f32.mrb[0].mxu0
        %v1468 = vadd.f32 0.0, %v1467
        %v1469 = vpop.f32.mrb[0].mxu0
        %v1470 = vadd.f32 0.0, %v1469
        %1471 = vmatprep.mubr.bf16.mxu0 %v1393
        %1472 = vmatmul.mubr.bf16.gmra.mrb[0].mxu0 %v1258
        %v1473 = vpop.f32.mrb[0].mxu0
        %v1474 = vadd.f32 0.0, %v1473
        %v1475 = vpop.f32.mrb[0].mxu0
        %v1476 = vadd.f32 0.0, %v1475
        %v1477 = vpop.f32.mrb[0].mxu0
        %v1478 = vadd.f32 0.0, %v1477
        %v1479 = vpop.f32.mrb[0].mxu0
        %v1480 = vadd.f32 0.0, %v1479
        %1481 = vmatprep.mubr.bf16.mxu0 %v1396
        %1482 = vmatmul.mubr.bf16.gmra.mrb[0].mxu0 %v1260
        %v1483 = vpop.f32.mrb[0].mxu0
        %v1484 = vadd.f32 0.0, %v1483
        %v1485 = vpop.f32.mrb[0].mxu0
        %v1486 = vadd.f32 0.0, %v1485
        %v1487 = vpop.f32.mrb[0].mxu0
        %v1488 = vadd.f32 0.0, %v1487
        %v1489 = vpop.f32.mrb[0].mxu0
        %v1490 = vadd.f32 0.0, %v1489
        %1491 = vmatprep.mubr.bf16.mxu0 %v1399
        %1492 = vmatmul.mubr.bf16.gmra.mrb[0].mxu0 %v1262
        %v1493 = vpop.f32.mrb[0].mxu0
        %v1494 = vadd.f32 0.0, %v1493
        %v1495 = vpop.f32.mrb[0].mxu0
        %v1496 = vadd.f32 0.0, %v1495
        %v1497 = vpop.f32.mrb[0].mxu0
        %v1498 = vadd.f32 0.0, %v1497
        %v1499 = vpop.f32.mrb[0].mxu0
        %v1500 = vadd.f32 0.0, %v1499
        %1501 = vmatprep.mubr.bf16.mxu0 %v1402
        %1502 = vmatmul.mubr.bf16.gmra.mrb[0].mxu0 %v1264
        %v1503 = vpop.f32.mrb[0].mxu0
        %v1504 = vadd.f32 0.0, %v1503
        %v1505 = vpop.f32.mrb[0].mxu0
        %v1506 = vadd.f32 0.0, %v1505
        %v1507 = vpop.f32.mrb[0].mxu0
        %v1508 = vadd.f32 0.0, %v1507
        %v1509 = vpop.f32.mrb[0].mxu0
        %v1510 = vadd.f32 0.0, %v1509
        %1511 = vmatprep.mubr.bf16.mxu0 %v1405
        %1512 = vmatmul.mubr.bf16.gmra.mrb[0].mxu0 %v1266
        %v1513 = vpop.f32.mrb[0].mxu0
        %v1514 = vadd.f32 0.0, %v1513
        %v1515 = vpop.f32.mrb[0].mxu0
        %v1516 = vadd.f32 0.0, %v1515
        %v1517 = vpop.f32.mrb[0].mxu0
        %v1518 = vadd.f32 0.0, %v1517
        %v1519 = vpop.f32.mrb[0].mxu0
        %v1520 = vadd.f32 0.0, %v1519
        %1521 = vmatprep.mubr.bf16.mxu0 %v1408
        %1522 = vmatmul.mubr.bf16.gmra.mrb[0].mxu0 %v1268
        %v1523 = vpop.f32.mrb[0].mxu0
        %v1524 = vadd.f32 0.0, %v1523
        %v1525 = vpop.f32.mrb[0].mxu0
        %v1526 = vadd.f32 0.0, %v1525
        %v1527 = vpop.f32.mrb[0].mxu0
        %v1528 = vadd.f32 0.0, %v1527
        %v1529 = vpop.f32.mrb[0].mxu0
        %v1530 = vadd.f32 0.0, %v1529
        %1531 = vmatprep.mubr.bf16.mxu0 %v1411
        %1532 = vmatmul.mubr.bf16.gmra.mrb[0].mxu0 %v1270
        %v1533 = vpop.f32.mrb[0].mxu0
        %v1534 = vadd.f32 0.0, %v1533
        %v1535 = vpop.f32.mrb[0].mxu0
        %v1536 = vadd.f32 0.0, %v1535
        %v1537 = vpop.f32.mrb[0].mxu0
        %v1538 = vadd.f32 0.0, %v1537
        %v1539 = vpop.f32.mrb[0].mxu0
        %v1540 = vadd.f32 0.0, %v1539
        %1541 = vmatprep.mubr.bf16.mxu0 %v1414
        %1542 = vmatmul.mubr.bf16.gmra.mrb[0].mxu0 %v1272
        %v1543 = vpop.f32.mrb[0].mxu0
        %v1544 = vadd.f32 0.0, %v1543
        %v1545 = vpop.f32.mrb[0].mxu0
        %v1546 = vadd.f32 0.0, %v1545
        %v1547 = vpop.f32.mrb[0].mxu0
        %v1548 = vadd.f32 0.0, %v1547
        %v1549 = vpop.f32.mrb[0].mxu0
        %v1550 = vadd.f32 0.0, %v1549
        %1551 = vmatprep.mubr.bf16.mxu0 %v1417
        %1552 = vmatmul.mubr.bf16.gmra.mrb[0].mxu0 %v1274
        %v1553 = vpop.f32.mrb[0].mxu0
        %v1554 = vadd.f32 0.0, %v1553
        %v1555 = vpop.f32.mrb[0].mxu0
        %v1556 = vadd.f32 0.0, %v1555
        %v1557 = vpop.f32.mrb[0].mxu0
        %v1558 = vadd.f32 0.0, %v1557
        %v1559 = vpop.f32.mrb[0].mxu0
        %v1560 = vadd.f32 0.0, %v1559
        %1561 = vdwg.mxu0
        %v1562 = vpack.c.bf16 %v1458, %v1454
        %v1563 = vpack.c.bf16 %v1460, %v1456
        %v1564 = vpack.c.bf16 %v1468, %v1464
        %v1565 = vpack.c.bf16 %v1470, %v1466
        %v1566 = vpack.c.bf16 %v1478, %v1474
        %v1567 = vpack.c.bf16 %v1480, %v1476
        %v1568 = vpack.c.bf16 %v1488, %v1484
        %v1569 = vpack.c.bf16 %v1490, %v1486
        %v1570 = vpack.c.bf16 %v1498, %v1494
        %v1571 = vpack.c.bf16 %v1500, %v1496
        %v1572 = vpack.c.bf16 %v1508, %v1504
        %v1573 = vpack.c.bf16 %v1510, %v1506
        %v1574 = vpack.c.bf16 %v1518, %v1514
        %v1575 = vpack.c.bf16 %v1520, %v1516
        %v1576 = vpack.c.bf16 %v1528, %v1524
        %v1577 = vpack.c.bf16 %v1530, %v1526
        %v1578 = vpack.c.bf16 %v1538, %v1534
        %v1579 = vpack.c.bf16 %v1540, %v1536
        %v1580 = vpack.c.bf16 %v1548, %v1544
        %v1581 = vpack.c.bf16 %v1550, %v1546
        %v1582 = vpack.c.bf16 %v1558, %v1554
        %v1583 = vpack.c.bf16 %v1560, %v1556
        %v1605 = vunpack.c.l.b16 %v1145
        %v1606 = vunpack.c.h.b16 %v1145
        %v1607 = vunpack.c.l.b16 %v1146
        %v1608 = vunpack.c.h.b16 %v1146
        %v1609 = vunpack.c.l.b16 %v1147
        %v1610 = vunpack.c.h.b16 %v1147
        %v1611 = vunpack.c.l.b16 %v1148
        %v1612 = vunpack.c.h.b16 %v1148
        %v1613 = vunpack.c.l.b16 %v1149
        %v1614 = vunpack.c.h.b16 %v1149
        %v1615 = vunpack.c.l.b16 %v1150
        %v1616 = vunpack.c.h.b16 %v1150
        %v1617 = vunpack.c.l.b16 %v1151
        %v1618 = vunpack.c.h.b16 %v1151
        %v1619 = vunpack.c.l.b16 %v1152
        %v1620 = vunpack.c.h.b16 %v1152
        %v1621 = vunpack.c.l.b16 %v1153
        %v1622 = vunpack.c.h.b16 %v1153
        %v1623 = vunpack.c.l.b16 %v1154
        %v1624 = vunpack.c.h.b16 %v1154
        %v1625 = vunpack.c.l.b16 %v1155
        %v1626 = vunpack.c.h.b16 %v1155
        %v1627 = vunpack.c.l.b16 %v1156
        %v1628 = vunpack.c.h.b16 %v1156
        %v1629 = vunpack.c.l.b16 %v1157
        %v1630 = vunpack.c.h.b16 %v1157
        %v1631 = vunpack.c.l.b16 %v1158
        %v1632 = vunpack.c.h.b16 %v1158
        %v1633 = vunpack.c.l.b16 %v1159
        %v1634 = vunpack.c.h.b16 %v1159
        %v1635 = vunpack.c.l.b16 %v1160
        %v1636 = vunpack.c.h.b16 %v1160
        %v1637 = vunpack.c.l.b16 %v1161
        %v1638 = vunpack.c.h.b16 %v1161
        %v1639 = vunpack.c.l.b16 %v1162
        %v1640 = vunpack.c.h.b16 %v1162
        %v1641 = vunpack.c.l.b16 %v1163
        %v1642 = vunpack.c.h.b16 %v1163
        %v1643 = vunpack.c.l.b16 %v1164
        %v1644 = vunpack.c.h.b16 %v1164
        %v1645 = vunpack.c.l.b16 %v1165
        %v1646 = vunpack.c.h.b16 %v1165
        %v1647 = vpack.c.b16 %v1607, %v1605
        %v1648 = vpack.c.b16 %v1608, %v1606
        %v1649 = vpack.c.b16 %v1611, %v1609
        %v1650 = vpack.c.b16 %v1612, %v1610
        %v1651 = vpack.c.b16 %v1615, %v1613
        %v1652 = vpack.c.b16 %v1616, %v1614
        %v1653 = vpack.c.b16 %v1619, %v1617
        %v1654 = vpack.c.b16 %v1620, %v1618
        %v1655 = vpack.c.b16 %v1623, %v1621
        %v1656 = vpack.c.b16 %v1624, %v1622
        %v1657 = vpack.c.b16 %v1627, %v1625
        %v1658 = vpack.c.b16 %v1628, %v1626
        %v1659 = vpack.c.b16 %v1631, %v1629
        %v1660 = vpack.c.b16 %v1632, %v1630
        %v1661 = vpack.c.b16 %v1635, %v1633
        %v1662 = vpack.c.b16 %v1636, %v1634
        %v1663 = vpack.c.b16 %v1639, %v1637
        %v1664 = vpack.c.b16 %v1640, %v1638
        %v1665 = vpack.c.b16 %v1643, %v1641
        %v1666 = vpack.c.b16 %v1644, %v1642
        %v1667 = vpack.c.b16 %v1645, %v1645
        %v1668 = vpack.c.b16 %v1646, %v1646
        %v1681 = vsel %vm1007, %v1648, 0
        %v1684 = vsel %vm1007, %v1650, 0
        %v1687 = vsel %vm1007, %v1652, 0
        %v1690 = vsel %vm1007, %v1654, 0
        %v1693 = vsel %vm1007, %v1656, 0
        %v1696 = vsel %vm1007, %v1658, 0
        %v1699 = vsel %vm1007, %v1660, 0
        %v1702 = vsel %vm1007, %v1662, 0
        %v1705 = vsel %vm1007, %v1664, 0
        %v1708 = vsel %vm1007, %v1666, 0
        %v1711 = vsel %vm1007, %v1668, 0
        %1713 = vmatprep.subr.bf16.mxu0 %v1563
        %1714 = vmatpush1.bf16.msra.mxu0 %v1562
        %1715 = vmatprep.subr.bf16.mxu0 %v1565
        %1716 = vmatpush1.bf16.msra.mxu0 %v1564
        %1717 = vmatprep.subr.bf16.mxu0 %v1567
        %1718 = vmatpush1.bf16.msra.mxu0 %v1566
        %1719 = vmatprep.subr.bf16.mxu0 %v1569
        %1720 = vmatpush1.bf16.msra.mxu0 %v1568
        %1721 = vmatprep.subr.bf16.mxu0 %v1571
        %1722 = vmatpush1.bf16.msra.mxu0 %v1570
        %1723 = vmatprep.subr.bf16.mxu0 %v1573
        %1724 = vmatpush1.bf16.msra.mxu0 %v1572
        %1725 = vmatprep.subr.bf16.mxu0 %v1575
        %1726 = vmatpush1.bf16.msra.mxu0 %v1574
        %1727 = vmatprep.subr.bf16.mxu0 %v1577
        %1728 = vmatpush1.bf16.msra.mxu0 %v1576
        %1729 = vmatprep.subr.bf16.mxu0 %v1579
        %1730 = vmatpush1.bf16.msra.mxu0 %v1578
        %1731 = vmatprep.subr.bf16.mxu0 %v1581
        %1732 = vmatpush1.bf16.msra.mxu0 %v1580
        %1733 = vmatprep.subr.bf16.mxu0 %v1583
        %1734 = vmatpush1.bf16.msra.mxu0 %v1582
        %1735 = vmatprep.subr.bf16.mxu0 0
        %1736 = vmatpush1.bf16.msra.mxu0 0
        %1737 = vmatprep.subr.bf16.mxu0 0
        %1738 = vmatpush1.bf16.msra.mxu0 0
        %1739 = vmatprep.subr.bf16.mxu0 0
        %1740 = vmatpush1.bf16.msra.mxu0 0
        %1741 = vmatprep.subr.bf16.mxu0 0
        %1742 = vmatpush1.bf16.msra.mxu0 0
        %1743 = vmatprep.subr.bf16.mxu0 0
        %1744 = vmatpush1.bf16.msra.mxu0 0
        %1745 = vmatprep.mubr.bf16.mxu0 %v1681
        %1746 = vmatmul.mubr.bf16.gmra.mrb[0].mxu0 %v1647
        %v1747 = vpop.f32.mrb[0].mxu0
        %v1748 = vadd.f32 0.0, %v1747
        %v1749 = vpop.f32.mrb[0].mxu0
        %v1750 = vadd.f32 0.0, %v1749
        %v1751 = vpop.f32.mrb[0].mxu0
        %v1752 = vadd.f32 0.0, %v1751
        %v1753 = vpop.f32.mrb[0].mxu0
        %v1754 = vadd.f32 0.0, %v1753
        %1755 = vmatprep.mubr.bf16.mxu0 %v1684
        %1756 = vmatmul.mubr.bf16.gmra.mrb[0].mxu0 %v1649
        %v1757 = vpop.f32.mrb[0].mxu0
        %v1758 = vadd.f32 0.0, %v1757
        %v1759 = vpop.f32.mrb[0].mxu0
        %v1760 = vadd.f32 0.0, %v1759
        %v1761 = vpop.f32.mrb[0].mxu0
        %v1762 = vadd.f32 0.0, %v1761
        %v1763 = vpop.f32.mrb[0].mxu0
        %v1764 = vadd.f32 0.0, %v1763
        %1765 = vmatprep.mubr.bf16.mxu0 %v1687
        %1766 = vmatmul.mubr.bf16.gmra.mrb[0].mxu0 %v1651
        %v1767 = vpop.f32.mrb[0].mxu0
        %v1768 = vadd.f32 0.0, %v1767
        %v1769 = vpop.f32.mrb[0].mxu0
        %v1770 = vadd.f32 0.0, %v1769
        %v1771 = vpop.f32.mrb[0].mxu0
        %v1772 = vadd.f32 0.0, %v1771
        %v1773 = vpop.f32.mrb[0].mxu0
        %v1774 = vadd.f32 0.0, %v1773
        %1775 = vmatprep.mubr.bf16.mxu0 %v1690
        %1776 = vmatmul.mubr.bf16.gmra.mrb[0].mxu0 %v1653
        %v1777 = vpop.f32.mrb[0].mxu0
        %v1778 = vadd.f32 0.0, %v1777
        %v1779 = vpop.f32.mrb[0].mxu0
        %v1780 = vadd.f32 0.0, %v1779
        %v1781 = vpop.f32.mrb[0].mxu0
        %v1782 = vadd.f32 0.0, %v1781
        %v1783 = vpop.f32.mrb[0].mxu0
        %v1784 = vadd.f32 0.0, %v1783
        %1785 = vmatprep.mubr.bf16.mxu0 %v1693
        %1786 = vmatmul.mubr.bf16.gmra.mrb[0].mxu0 %v1655
        %v1787 = vpop.f32.mrb[0].mxu0
        %v1788 = vadd.f32 0.0, %v1787
        %v1789 = vpop.f32.mrb[0].mxu0
        %v1790 = vadd.f32 0.0, %v1789
        %v1791 = vpop.f32.mrb[0].mxu0
        %v1792 = vadd.f32 0.0, %v1791
        %v1793 = vpop.f32.mrb[0].mxu0
        %v1794 = vadd.f32 0.0, %v1793
        %1795 = vmatprep.mubr.bf16.mxu0 %v1696
        %1796 = vmatmul.mubr.bf16.gmra.mrb[0].mxu0 %v1657
        %v1797 = vpop.f32.mrb[0].mxu0
        %v1798 = vadd.f32 0.0, %v1797
        %v1799 = vpop.f32.mrb[0].mxu0
        %v1800 = vadd.f32 0.0, %v1799
        %v1801 = vpop.f32.mrb[0].mxu0
        %v1802 = vadd.f32 0.0, %v1801
        %v1803 = vpop.f32.mrb[0].mxu0
        %v1804 = vadd.f32 0.0, %v1803
        %1805 = vmatprep.mubr.bf16.mxu0 %v1699
        %1806 = vmatmul.mubr.bf16.gmra.mrb[0].mxu0 %v1659
        %v1807 = vpop.f32.mrb[0].mxu0
        %v1808 = vadd.f32 0.0, %v1807
        %v1809 = vpop.f32.mrb[0].mxu0
        %v1810 = vadd.f32 0.0, %v1809
        %v1811 = vpop.f32.mrb[0].mxu0
        %v1812 = vadd.f32 0.0, %v1811
        %v1813 = vpop.f32.mrb[0].mxu0
        %v1814 = vadd.f32 0.0, %v1813
        %1815 = vmatprep.mubr.bf16.mxu0 %v1702
        %1816 = vmatmul.mubr.bf16.gmra.mrb[0].mxu0 %v1661
        %v1817 = vpop.f32.mrb[0].mxu0
        %v1818 = vadd.f32 0.0, %v1817
        %v1819 = vpop.f32.mrb[0].mxu0
        %v1820 = vadd.f32 0.0, %v1819
        %v1821 = vpop.f32.mrb[0].mxu0
        %v1822 = vadd.f32 0.0, %v1821
        %v1823 = vpop.f32.mrb[0].mxu0
        %v1824 = vadd.f32 0.0, %v1823
        %1825 = vmatprep.mubr.bf16.mxu0 %v1705
        %1826 = vmatmul.mubr.bf16.gmra.mrb[0].mxu0 %v1663
        %v1827 = vpop.f32.mrb[0].mxu0
        %v1828 = vadd.f32 0.0, %v1827
        %v1829 = vpop.f32.mrb[0].mxu0
        %v1830 = vadd.f32 0.0, %v1829
        %v1831 = vpop.f32.mrb[0].mxu0
        %v1832 = vadd.f32 0.0, %v1831
        %v1833 = vpop.f32.mrb[0].mxu0
        %v1834 = vadd.f32 0.0, %v1833
        %1835 = vmatprep.mubr.bf16.mxu0 %v1708
        %1836 = vmatmul.mubr.bf16.gmra.mrb[0].mxu0 %v1665
        %v1837 = vpop.f32.mrb[0].mxu0
        %v1838 = vadd.f32 0.0, %v1837
        %v1839 = vpop.f32.mrb[0].mxu0
        %v1840 = vadd.f32 0.0, %v1839
        %v1841 = vpop.f32.mrb[0].mxu0
        %v1842 = vadd.f32 0.0, %v1841
        %v1843 = vpop.f32.mrb[0].mxu0
        %v1844 = vadd.f32 0.0, %v1843
        %1845 = vmatprep.mubr.bf16.mxu0 %v1711
        %1846 = vmatmul.mubr.bf16.gmra.mrb[0].mxu0 %v1667
        %v1847 = vpop.f32.mrb[0].mxu0
        %v1848 = vadd.f32 0.0, %v1847
        %v1849 = vpop.f32.mrb[0].mxu0
        %v1850 = vadd.f32 0.0, %v1849
        %v1851 = vpop.f32.mrb[0].mxu0
        %v1852 = vpop.f32.mrb[0].mxu0
        %1853 = vdwg.mxu0
        %v1854 = vpack.c.bf16 %v1212, %v1210
        %v1855 = vpack.c.bf16 %v1213, %v1211
        %v1856 = vpack.c.bf16 %v1216, %v1214
        %v1857 = vpack.c.bf16 %v1217, %v1215
        %v1858 = vpack.c.bf16 %v1220, %v1218
        %v1859 = vpack.c.bf16 %v1221, %v1219
        %v1860 = vpack.c.bf16 %v1224, %v1222
        %v1861 = vpack.c.bf16 %v1225, %v1223
        %v1862 = vpack.c.bf16 %v1228, %v1226
        %v1863 = vpack.c.bf16 %v1229, %v1227
        %v1864 = vpack.c.bf16 %v1232, %v1230
        %v1865 = vpack.c.bf16 %v1233, %v1231
        %v1866 = vpack.c.bf16 %v1236, %v1234
        %v1867 = vpack.c.bf16 %v1237, %v1235
        %v1868 = vpack.c.bf16 %v1240, %v1238
        %v1869 = vpack.c.bf16 %v1241, %v1239
        %v1870 = vpack.c.bf16 %v1244, %v1242
        %v1871 = vpack.c.bf16 %v1245, %v1243
        %v1872 = vpack.c.bf16 %v1248, %v1246
        %v1873 = vpack.c.bf16 %v1249, %v1247
        %v1874 = vpack.c.bf16 %v1252, %v1250
        %v1875 = vpack.c.bf16 %v1253, %v1251
        %v1877 = vsel %vm1007, %v1855, 0
        %v1880 = vsel %vm1007, %v1857, 0
        %v1883 = vsel %vm1007, %v1859, 0
        %v1886 = vsel %vm1007, %v1861, 0
        %v1889 = vsel %vm1007, %v1863, 0
        %v1892 = vsel %vm1007, %v1865, 0
        %v1895 = vsel %vm1007, %v1867, 0
        %v1898 = vsel %vm1007, %v1869, 0
        %v1901 = vsel %vm1007, %v1871, 0
        %v1904 = vsel %vm1007, %v1873, 0
        %v1907 = vsel %vm1007, %v1875, 0
        %1909 = vmatprep.subr.bf16.mxu0 %v1343
        %1910 = vmatpush1.bf16.msra.mxu0 %v1342
        %1911 = vmatprep.subr.bf16.mxu0 %v1345
        %1912 = vmatpush1.bf16.msra.mxu0 %v1344
        %1913 = vmatprep.subr.bf16.mxu0 %v1347
        %1914 = vmatpush1.bf16.msra.mxu0 %v1346
        %1915 = vmatprep.subr.bf16.mxu0 %v1349
        %1916 = vmatpush1.bf16.msra.mxu0 %v1348
        %1917 = vmatprep.subr.bf16.mxu0 %v1351
        %1918 = vmatpush1.bf16.msra.mxu0 %v1350
        %1919 = vmatprep.subr.bf16.mxu0 %v1353
        %1920 = vmatpush1.bf16.msra.mxu0 %v1352
        %1921 = vmatprep.subr.bf16.mxu0 %v1355
        %1922 = vmatpush1.bf16.msra.mxu0 %v1354
        %1923 = vmatprep.subr.bf16.mxu0 %v1357
        %1924 = vmatpush1.bf16.msra.mxu0 %v1356
        %1925 = vmatprep.subr.bf16.mxu0 %v1359
        %1926 = vmatpush1.bf16.msra.mxu0 %v1358
        %1927 = vmatprep.subr.bf16.mxu0 %v1361
        %1928 = vmatpush1.bf16.msra.mxu0 %v1360
        %1929 = vmatprep.subr.bf16.mxu0 %v1363
        %1930 = vmatpush1.bf16.msra.mxu0 %v1362
        %1931 = vmatprep.subr.bf16.mxu0 0
        %1932 = vmatpush1.bf16.msra.mxu0 0
        %1933 = vmatprep.subr.bf16.mxu0 0
        %1934 = vmatpush1.bf16.msra.mxu0 0
        %1935 = vmatprep.subr.bf16.mxu0 0
        %1936 = vmatpush1.bf16.msra.mxu0 0
        %1937 = vmatprep.subr.bf16.mxu0 0
        %1938 = vmatpush1.bf16.msra.mxu0 0
        %1939 = vmatprep.subr.bf16.mxu0 0
        %1940 = vmatpush1.bf16.msra.mxu0 0
        %1941 = vmatprep.mubr.bf16.mxu0 %v1877
        %1942 = vmatmul.mubr.bf16.gmra.mrb[0].mxu0 %v1854
        %v1943 = vpop.f32.mrb[0].mxu0
        %v1944 = vadd.f32 0.0, %v1943
        %v1945 = vpop.f32.mrb[0].mxu0
        %v1946 = vadd.f32 0.0, %v1945
        %v1947 = vpop.f32.mrb[0].mxu0
        %v1948 = vadd.f32 0.0, %v1947
        %v1949 = vpop.f32.mrb[0].mxu0
        %v1950 = vadd.f32 0.0, %v1949
        %1951 = vmatprep.mubr.bf16.mxu0 %v1880
        %1952 = vmatmul.mubr.bf16.gmra.mrb[0].mxu0 %v1856
        %v1953 = vpop.f32.mrb[0].mxu0
        %v1954 = vadd.f32 0.0, %v1953
        %v1955 = vpop.f32.mrb[0].mxu0
        %v1956 = vadd.f32 0.0, %v1955
        %v1957 = vpop.f32.mrb[0].mxu0
        %v1958 = vadd.f32 0.0, %v1957
        %v1959 = vpop.f32.mrb[0].mxu0
        %v1960 = vadd.f32 0.0, %v1959
        %1961 = vmatprep.mubr.bf16.mxu0 %v1883
        %1962 = vmatmul.mubr.bf16.gmra.mrb[0].mxu0 %v1858
        %v1963 = vpop.f32.mrb[0].mxu0
        %v1964 = vadd.f32 0.0, %v1963
        %v1965 = vpop.f32.mrb[0].mxu0
        %v1966 = vadd.f32 0.0, %v1965
        %v1967 = vpop.f32.mrb[0].mxu0
        %v1968 = vadd.f32 0.0, %v1967
        %v1969 = vpop.f32.mrb[0].mxu0
        %v1970 = vadd.f32 0.0, %v1969
        %1971 = vmatprep.mubr.bf16.mxu0 %v1886
        %1972 = vmatmul.mubr.bf16.gmra.mrb[0].mxu0 %v1860
        %v1973 = vpop.f32.mrb[0].mxu0
        %v1974 = vadd.f32 0.0, %v1973
        %v1975 = vpop.f32.mrb[0].mxu0
        %v1976 = vadd.f32 0.0, %v1975
        %v1977 = vpop.f32.mrb[0].mxu0
        %v1978 = vadd.f32 0.0, %v1977
        %v1979 = vpop.f32.mrb[0].mxu0
        %v1980 = vadd.f32 0.0, %v1979
        %1981 = vmatprep.mubr.bf16.mxu0 %v1889
        %1982 = vmatmul.mubr.bf16.gmra.mrb[0].mxu0 %v1862
        %v1983 = vpop.f32.mrb[0].mxu0
        %v1984 = vadd.f32 0.0, %v1983
        %v1985 = vpop.f32.mrb[0].mxu0
        %v1986 = vadd.f32 0.0, %v1985
        %v1987 = vpop.f32.mrb[0].mxu0
        %v1988 = vadd.f32 0.0, %v1987
        %v1989 = vpop.f32.mrb[0].mxu0
        %v1990 = vadd.f32 0.0, %v1989
        %1991 = vmatprep.mubr.bf16.mxu0 %v1892
        %1992 = vmatmul.mubr.bf16.gmra.mrb[0].mxu0 %v1864
        %v1993 = vpop.f32.mrb[0].mxu0
        %v1994 = vadd.f32 0.0, %v1993
        %v1995 = vpop.f32.mrb[0].mxu0
        %v1996 = vadd.f32 0.0, %v1995
        %v1997 = vpop.f32.mrb[0].mxu0
        %v1998 = vadd.f32 0.0, %v1997
        %v1999 = vpop.f32.mrb[0].mxu0
        %v2000 = vadd.f32 0.0, %v1999
        %2001 = vmatprep.mubr.bf16.mxu0 %v1895
        %2002 = vmatmul.mubr.bf16.gmra.mrb[0].mxu0 %v1866
        %v2003 = vpop.f32.mrb[0].mxu0
        %v2004 = vadd.f32 0.0, %v2003
        %v2005 = vpop.f32.mrb[0].mxu0
        %v2006 = vadd.f32 0.0, %v2005
        %v2007 = vpop.f32.mrb[0].mxu0
        %v2008 = vadd.f32 0.0, %v2007
        %v2009 = vpop.f32.mrb[0].mxu0
        %v2010 = vadd.f32 0.0, %v2009
        %2011 = vmatprep.mubr.bf16.mxu0 %v1898
        %2012 = vmatmul.mubr.bf16.gmra.mrb[0].mxu0 %v1868
        %v2013 = vpop.f32.mrb[0].mxu0
        %v2014 = vadd.f32 0.0, %v2013
        %v2015 = vpop.f32.mrb[0].mxu0
        %v2016 = vadd.f32 0.0, %v2015
        %v2017 = vpop.f32.mrb[0].mxu0
        %v2018 = vadd.f32 0.0, %v2017
        %v2019 = vpop.f32.mrb[0].mxu0
        %v2020 = vadd.f32 0.0, %v2019
        %2021 = vmatprep.mubr.bf16.mxu0 %v1901
        %2022 = vmatmul.mubr.bf16.gmra.mrb[0].mxu0 %v1870
        %v2023 = vpop.f32.mrb[0].mxu0
        %v2024 = vadd.f32 0.0, %v2023
        %v2025 = vpop.f32.mrb[0].mxu0
        %v2026 = vadd.f32 0.0, %v2025
        %v2027 = vpop.f32.mrb[0].mxu0
        %v2028 = vadd.f32 0.0, %v2027
        %v2029 = vpop.f32.mrb[0].mxu0
        %v2030 = vadd.f32 0.0, %v2029
        %2031 = vmatprep.mubr.bf16.mxu0 %v1904
        %2032 = vmatmul.mubr.bf16.gmra.mrb[0].mxu0 %v1872
        %v2033 = vpop.f32.mrb[0].mxu0
        %v2034 = vadd.f32 0.0, %v2033
        %v2035 = vpop.f32.mrb[0].mxu0
        %v2036 = vadd.f32 0.0, %v2035
        %v2037 = vpop.f32.mrb[0].mxu0
        %v2038 = vadd.f32 0.0, %v2037
        %v2039 = vpop.f32.mrb[0].mxu0
        %v2040 = vadd.f32 0.0, %v2039
        %2041 = vmatprep.mubr.bf16.mxu0 %v1907
        %2042 = vmatmul.mubr.bf16.gmra.mrb[0].mxu0 %v1874
        %v2043 = vpop.f32.mrb[0].mxu0
        %v2044 = vadd.f32 0.0, %v2043
        %v2045 = vpop.f32.mrb[0].mxu0
        %v2046 = vadd.f32 0.0, %v2045
        %v2047 = vpop.f32.mrb[0].mxu0
        %v2048 = vadd.f32 0.0, %v2047
        %v2049 = vpop.f32.mrb[0].mxu0
        %v2050 = vadd.f32 0.0, %v2049
        %2051 = vdwg.mxu0
        %v2052 = vpack.c.bf16 %v1948, %v1944
        %v2053 = vpack.c.bf16 %v1950, %v1946
        %v2054 = vpack.c.bf16 %v1958, %v1954
        %v2055 = vpack.c.bf16 %v1960, %v1956
        %v2056 = vpack.c.bf16 %v1968, %v1964
        %v2057 = vpack.c.bf16 %v1970, %v1966
        %v2058 = vpack.c.bf16 %v1978, %v1974
        %v2059 = vpack.c.bf16 %v1980, %v1976
        %v2060 = vpack.c.bf16 %v1988, %v1984
        %v2061 = vpack.c.bf16 %v1990, %v1986
        %v2062 = vpack.c.bf16 %v1998, %v1994
        %v2063 = vpack.c.bf16 %v2000, %v1996
        %v2064 = vpack.c.bf16 %v2008, %v2004
        %v2065 = vpack.c.bf16 %v2010, %v2006
        %v2066 = vpack.c.bf16 %v2018, %v2014
        %v2067 = vpack.c.bf16 %v2020, %v2016
        %v2068 = vpack.c.bf16 %v2028, %v2024
        %v2069 = vpack.c.bf16 %v2030, %v2026
        %v2070 = vpack.c.bf16 %v2038, %v2034
        %v2071 = vpack.c.bf16 %v2040, %v2036
        %v2072 = vpack.c.bf16 %v2048, %v2044
        %v2073 = vpack.c.bf16 %v2050, %v2046
        %2074 = vmatprep.subr.bf16.mxu0 %v2053
        %2075 = vmatpush1.bf16.msra.mxu0 %v2052
        %2076 = vmatprep.subr.bf16.mxu0 %v2055
        %2077 = vmatpush1.bf16.msra.mxu0 %v2054
        %2078 = vmatprep.subr.bf16.mxu0 %v2057
        %2079 = vmatpush1.bf16.msra.mxu0 %v2056
        %2080 = vmatprep.subr.bf16.mxu0 %v2059
        %2081 = vmatpush1.bf16.msra.mxu0 %v2058
        %2082 = vmatprep.subr.bf16.mxu0 %v2061
        %2083 = vmatpush1.bf16.msra.mxu0 %v2060
        %2084 = vmatprep.subr.bf16.mxu0 %v2063
        %2085 = vmatpush1.bf16.msra.mxu0 %v2062
        %2086 = vmatprep.subr.bf16.mxu0 %v2065
        %2087 = vmatpush1.bf16.msra.mxu0 %v2064
        %2088 = vmatprep.subr.bf16.mxu0 %v2067
        %2089 = vmatpush1.bf16.msra.mxu0 %v2066
        %2090 = vmatprep.subr.bf16.mxu0 %v2069
        %2091 = vmatpush1.bf16.msra.mxu0 %v2068
        %2092 = vmatprep.subr.bf16.mxu0 %v2071
        %2093 = vmatpush1.bf16.msra.mxu0 %v2070
        %2094 = vmatprep.subr.bf16.mxu0 %v2073
        %2095 = vmatpush1.bf16.msra.mxu0 %v2072
        %2096 = vmatprep.subr.bf16.mxu0 0
        %2097 = vmatpush1.bf16.msra.mxu0 0
        %2098 = vmatprep.subr.bf16.mxu0 0
        %2099 = vmatpush1.bf16.msra.mxu0 0
        %2100 = vmatprep.subr.bf16.mxu0 0
        %2101 = vmatpush1.bf16.msra.mxu0 0
        %2102 = vmatprep.subr.bf16.mxu0 0
        %2103 = vmatpush1.bf16.msra.mxu0 0
        %2104 = vmatprep.subr.bf16.mxu0 0
        %2105 = vmatpush1.bf16.msra.mxu0 0
        %2106 = vmatprep.mubr.bf16.mxu0 %v1681
        %2107 = vmatmul.mubr.bf16.gmra.mrb[0].mxu0 %v1647
        %v2108 = vpop.f32.mrb[0].mxu0
        %v2109 = vadd.f32 0.0, %v2108
        %v2110 = vpop.f32.mrb[0].mxu0
        %v2111 = vadd.f32 0.0, %v2110
        %v2112 = vpop.f32.mrb[0].mxu0
        %v2113 = vadd.f32 0.0, %v2112
        %v2114 = vpop.f32.mrb[0].mxu0
        %v2115 = vadd.f32 0.0, %v2114
        %2116 = vmatprep.mubr.bf16.mxu0 %v1684
        %2117 = vmatmul.mubr.bf16.gmra.mrb[0].mxu0 %v1649
        %v2118 = vpop.f32.mrb[0].mxu0
        %v2119 = vadd.f32 0.0, %v2118
        %v2120 = vpop.f32.mrb[0].mxu0
        %v2121 = vadd.f32 0.0, %v2120
        %v2122 = vpop.f32.mrb[0].mxu0
        %v2123 = vadd.f32 0.0, %v2122
        %v2124 = vpop.f32.mrb[0].mxu0
        %v2125 = vadd.f32 0.0, %v2124
        %2126 = vmatprep.mubr.bf16.mxu0 %v1687
        %2127 = vmatmul.mubr.bf16.gmra.mrb[0].mxu0 %v1651
        %v2128 = vpop.f32.mrb[0].mxu0
        %v2129 = vadd.f32 0.0, %v2128
        %v2130 = vpop.f32.mrb[0].mxu0
        %v2131 = vadd.f32 0.0, %v2130
        %v2132 = vpop.f32.mrb[0].mxu0
        %v2133 = vadd.f32 0.0, %v2132
        %v2134 = vpop.f32.mrb[0].mxu0
        %v2135 = vadd.f32 0.0, %v2134
        %2136 = vmatprep.mubr.bf16.mxu0 %v1690
        %2137 = vmatmul.mubr.bf16.gmra.mrb[0].mxu0 %v1653
        %v2138 = vpop.f32.mrb[0].mxu0
        %v2139 = vadd.f32 0.0, %v2138
        %v2140 = vpop.f32.mrb[0].mxu0
        %v2141 = vadd.f32 0.0, %v2140
        %v2142 = vpop.f32.mrb[0].mxu0
        %v2143 = vadd.f32 0.0, %v2142
        %v2144 = vpop.f32.mrb[0].mxu0
        %v2145 = vadd.f32 0.0, %v2144
        %2146 = vmatprep.mubr.bf16.mxu0 %v1693
        %2147 = vmatmul.mubr.bf16.gmra.mrb[0].mxu0 %v1655
        %v2148 = vpop.f32.mrb[0].mxu0
        %v2149 = vadd.f32 0.0, %v2148
        %v2150 = vpop.f32.mrb[0].mxu0
        %v2151 = vadd.f32 0.0, %v2150
        %v2152 = vpop.f32.mrb[0].mxu0
        %v2153 = vadd.f32 0.0, %v2152
        %v2154 = vpop.f32.mrb[0].mxu0
        %v2155 = vadd.f32 0.0, %v2154
        %2156 = vmatprep.mubr.bf16.mxu0 %v1696
        %2157 = vmatmul.mubr.bf16.gmra.mrb[0].mxu0 %v1657
        %v2158 = vpop.f32.mrb[0].mxu0
        %v2159 = vadd.f32 0.0, %v2158
        %v2160 = vpop.f32.mrb[0].mxu0
        %v2161 = vadd.f32 0.0, %v2160
        %v2162 = vpop.f32.mrb[0].mxu0
        %v2163 = vadd.f32 0.0, %v2162
        %v2164 = vpop.f32.mrb[0].mxu0
        %v2165 = vadd.f32 0.0, %v2164
        %2166 = vmatprep.mubr.bf16.mxu0 %v1699
        %2167 = vmatmul.mubr.bf16.gmra.mrb[0].mxu0 %v1659
        %v2168 = vpop.f32.mrb[0].mxu0
        %v2169 = vadd.f32 0.0, %v2168
        %v2170 = vpop.f32.mrb[0].mxu0
        %v2171 = vadd.f32 0.0, %v2170
        %v2172 = vpop.f32.mrb[0].mxu0
        %v2173 = vadd.f32 0.0, %v2172
        %v2174 = vpop.f32.mrb[0].mxu0
        %v2175 = vadd.f32 0.0, %v2174
        %2176 = vmatprep.mubr.bf16.mxu0 %v1702
        %2177 = vmatmul.mubr.bf16.gmra.mrb[0].mxu0 %v1661
        %v2178 = vpop.f32.mrb[0].mxu0
        %v2179 = vadd.f32 0.0, %v2178
        %v2180 = vpop.f32.mrb[0].mxu0
        %v2181 = vadd.f32 0.0, %v2180
        %v2182 = vpop.f32.mrb[0].mxu0
        %v2183 = vadd.f32 0.0, %v2182
        %v2184 = vpop.f32.mrb[0].mxu0
        %v2185 = vadd.f32 0.0, %v2184
        %2186 = vmatprep.mubr.bf16.mxu0 %v1705
        %2187 = vmatmul.mubr.bf16.gmra.mrb[0].mxu0 %v1663
        %v2188 = vpop.f32.mrb[0].mxu0
        %v2189 = vadd.f32 0.0, %v2188
        %v2190 = vpop.f32.mrb[0].mxu0
        %v2191 = vadd.f32 0.0, %v2190
        %v2192 = vpop.f32.mrb[0].mxu0
        %v2193 = vadd.f32 0.0, %v2192
        %v2194 = vpop.f32.mrb[0].mxu0
        %v2195 = vadd.f32 0.0, %v2194
        %2196 = vmatprep.mubr.bf16.mxu0 %v1708
        %2197 = vmatmul.mubr.bf16.gmra.mrb[0].mxu0 %v1665
        %v2198 = vpop.f32.mrb[0].mxu0
        %v2199 = vadd.f32 0.0, %v2198
        %v2200 = vpop.f32.mrb[0].mxu0
        %v2201 = vadd.f32 0.0, %v2200
        %v2202 = vpop.f32.mrb[0].mxu0
        %v2203 = vadd.f32 0.0, %v2202
        %v2204 = vpop.f32.mrb[0].mxu0
        %v2205 = vadd.f32 0.0, %v2204
        %2206 = vmatprep.mubr.bf16.mxu0 %v1711
        %2207 = vmatmul.mubr.bf16.gmra.mrb[0].mxu0 %v1667
        %v2208 = vpop.f32.mrb[0].mxu0
        %v2209 = vadd.f32 0.0, %v2208
        %v2210 = vpop.f32.mrb[0].mxu0
        %v2211 = vadd.f32 0.0, %v2210
        %v2212 = vpop.f32.mrb[0].mxu0
        %v2213 = vpop.f32.mrb[0].mxu0
        %2214 = vdwg.mxu0
        %v2215 = vmul.f32 %v1166, %v1166
        %v2216 = vmul.f32 %v1167, %v1167
        %v2217 = vmul.f32 %v1168, %v1168
        %v2218 = vmul.f32 %v1169, %v1169
        %v2219 = vmul.f32 %v1170, %v1170
        %v2220 = vmul.f32 %v1171, %v1171
        %v2221 = vmul.f32 %v1172, %v1172
        %v2222 = vmul.f32 %v1173, %v1173
        %v2223 = vmul.f32 %v1174, %v1174
        %v2224 = vmul.f32 %v1175, %v1175
        %v2225 = vmul.f32 %v1176, %v1176
        %v2226 = vmul.f32 %v1177, %v1177
        %v2227 = vmul.f32 %v1178, %v1178
        %v2228 = vmul.f32 %v1179, %v1179
        %v2229 = vmul.f32 %v1180, %v1180
        %v2230 = vmul.f32 %v1181, %v1181
        %v2231 = vmul.f32 %v1182, %v1182
        %v2232 = vmul.f32 %v1183, %v1183
        %v2233 = vmul.f32 %v1184, %v1184
        %v2234 = vmul.f32 %v1185, %v1185
        %v2235 = vmul.f32 %v1186, %v1186
        %v2236 = vmul.f32 %v1187, %v1187
        %v2237 = vmul.f32 %v1188, %v1188
        %v2238 = vmul.f32 %v1189, %v1189
        %v2239 = vmul.f32 %v1190, %v1190
        %v2240 = vmul.f32 %v1191, %v1191
        %v2241 = vmul.f32 %v1192, %v1192
        %v2242 = vmul.f32 %v1193, %v1193
        %v2243 = vmul.f32 %v1194, %v1194
        %v2244 = vmul.f32 %v1195, %v1195
        %v2245 = vmul.f32 %v1196, %v1196
        %v2246 = vmul.f32 %v1197, %v1197
        %v2247 = vmul.f32 %v1198, %v1198
        %v2248 = vmul.f32 %v1199, %v1199
        %v2249 = vmul.f32 %v1200, %v1200
        %v2250 = vmul.f32 %v1201, %v1201
        %v2251 = vmul.f32 %v1202, %v1202
        %v2252 = vmul.f32 %v1203, %v1203
        %v2253 = vmul.f32 %v1204, %v1204
        %v2254 = vmul.f32 %v1205, %v1205
        %v2255 = vmul.f32 %v1206, %v1206
        %v2256 = vmul.f32 %v1207, %v1207
        %v2257 = vmul.f32 %v1208, %v1208
        %v2258 = vmul.f32 %v1209, %v1209
        %v2259 = vpack.c.bf16 %v2217, %v2215
        %v2260 = vpack.c.bf16 %v2218, %v2216
        %v2261 = vpack.c.bf16 %v2221, %v2219
        %v2262 = vpack.c.bf16 %v2222, %v2220
        %v2263 = vpack.c.bf16 %v2225, %v2223
        %v2264 = vpack.c.bf16 %v2226, %v2224
        %v2265 = vpack.c.bf16 %v2229, %v2227
        %v2266 = vpack.c.bf16 %v2230, %v2228
        %v2267 = vpack.c.bf16 %v2233, %v2231
        %v2268 = vpack.c.bf16 %v2234, %v2232
        %v2269 = vpack.c.bf16 %v2237, %v2235
        %v2270 = vpack.c.bf16 %v2238, %v2236
        %v2271 = vpack.c.bf16 %v2241, %v2239
        %v2272 = vpack.c.bf16 %v2242, %v2240
        %v2273 = vpack.c.bf16 %v2245, %v2243
        %v2274 = vpack.c.bf16 %v2246, %v2244
        %v2275 = vpack.c.bf16 %v2249, %v2247
        %v2276 = vpack.c.bf16 %v2250, %v2248
        %v2277 = vpack.c.bf16 %v2253, %v2251
        %v2278 = vpack.c.bf16 %v2254, %v2252
        %v2279 = vpack.c.bf16 %v2257, %v2255
        %v2280 = vpack.c.bf16 %v2258, %v2256
        %v2282 = vsel %vm1007, %v2260, 0
        %v2285 = vsel %vm1007, %v2262, 0
        %v2288 = vsel %vm1007, %v2264, 0
        %v2291 = vsel %vm1007, %v2266, 0
        %v2294 = vsel %vm1007, %v2268, 0
        %v2297 = vsel %vm1007, %v2270, 0
        %v2300 = vsel %vm1007, %v2272, 0
        %v2303 = vsel %vm1007, %v2274, 0
        %v2306 = vsel %vm1007, %v2276, 0
        %v2309 = vsel %vm1007, %v2278, 0
        %v2312 = vsel %vm1007, %v2280, 0
        %2314 = vmatprep.subr.bf16.mxu0 %v1343
        %2315 = vmatpush1.bf16.msra.mxu0 %v1342
        %2316 = vmatprep.subr.bf16.mxu0 %v1345
        %2317 = vmatpush1.bf16.msra.mxu0 %v1344
        %2318 = vmatprep.subr.bf16.mxu0 %v1347
        %2319 = vmatpush1.bf16.msra.mxu0 %v1346
        %2320 = vmatprep.subr.bf16.mxu0 %v1349
        %2321 = vmatpush1.bf16.msra.mxu0 %v1348
        %2322 = vmatprep.subr.bf16.mxu0 %v1351
        %2323 = vmatpush1.bf16.msra.mxu0 %v1350
        %2324 = vmatprep.subr.bf16.mxu0 %v1353
        %2325 = vmatpush1.bf16.msra.mxu0 %v1352
        %2326 = vmatprep.subr.bf16.mxu0 %v1355
        %2327 = vmatpush1.bf16.msra.mxu0 %v1354
        %2328 = vmatprep.subr.bf16.mxu0 %v1357
        %2329 = vmatpush1.bf16.msra.mxu0 %v1356
        %2330 = vmatprep.subr.bf16.mxu0 %v1359
        %2331 = vmatpush1.bf16.msra.mxu0 %v1358
        %2332 = vmatprep.subr.bf16.mxu0 %v1361
        %2333 = vmatpush1.bf16.msra.mxu0 %v1360
        %2334 = vmatprep.subr.bf16.mxu0 %v1363
        %2335 = vmatpush1.bf16.msra.mxu0 %v1362
        %2336 = vmatprep.subr.bf16.mxu0 0
        %2337 = vmatpush1.bf16.msra.mxu0 0
        %2338 = vmatprep.subr.bf16.mxu0 0
        %2339 = vmatpush1.bf16.msra.mxu0 0
        %2340 = vmatprep.subr.bf16.mxu0 0
        %2341 = vmatpush1.bf16.msra.mxu0 0
        %2342 = vmatprep.subr.bf16.mxu0 0
        %2343 = vmatpush1.bf16.msra.mxu0 0
        %2344 = vmatprep.subr.bf16.mxu0 0
        %2345 = vmatpush1.bf16.msra.mxu0 0
        %2346 = vmatprep.mubr.bf16.mxu0 %v2282
        %2347 = vmatmul.mubr.bf16.gmra.mrb[0].mxu0 %v2259
        %v2348 = vpop.f32.mrb[0].mxu0
        %v2349 = vadd.f32 0.0, %v2348
        %v2350 = vpop.f32.mrb[0].mxu0
        %v2351 = vadd.f32 0.0, %v2350
        %v2352 = vpop.f32.mrb[0].mxu0
        %v2353 = vadd.f32 0.0, %v2352
        %v2354 = vpop.f32.mrb[0].mxu0
        %v2355 = vadd.f32 0.0, %v2354
        %2356 = vmatprep.mubr.bf16.mxu0 %v2285
        %2357 = vmatmul.mubr.bf16.gmra.mrb[0].mxu0 %v2261
        %v2358 = vpop.f32.mrb[0].mxu0
        %v2359 = vadd.f32 0.0, %v2358
        %v2360 = vpop.f32.mrb[0].mxu0
        %v2361 = vadd.f32 0.0, %v2360
        %v2362 = vpop.f32.mrb[0].mxu0
        %v2363 = vadd.f32 0.0, %v2362
        %v2364 = vpop.f32.mrb[0].mxu0
        %v2365 = vadd.f32 0.0, %v2364
        %2366 = vmatprep.mubr.bf16.mxu0 %v2288
        %2367 = vmatmul.mubr.bf16.gmra.mrb[0].mxu0 %v2263
        %v2368 = vpop.f32.mrb[0].mxu0
        %v2369 = vadd.f32 0.0, %v2368
        %v2370 = vpop.f32.mrb[0].mxu0
        %v2371 = vadd.f32 0.0, %v2370
        %v2372 = vpop.f32.mrb[0].mxu0
        %v2373 = vadd.f32 0.0, %v2372
        %v2374 = vpop.f32.mrb[0].mxu0
        %v2375 = vadd.f32 0.0, %v2374
        %2376 = vmatprep.mubr.bf16.mxu0 %v2291
        %2377 = vmatmul.mubr.bf16.gmra.mrb[0].mxu0 %v2265
        %v2378 = vpop.f32.mrb[0].mxu0
        %v2379 = vadd.f32 0.0, %v2378
        %v2380 = vpop.f32.mrb[0].mxu0
        %v2381 = vadd.f32 0.0, %v2380
        %v2382 = vpop.f32.mrb[0].mxu0
        %v2383 = vadd.f32 0.0, %v2382
        %v2384 = vpop.f32.mrb[0].mxu0
        %v2385 = vadd.f32 0.0, %v2384
        %2386 = vmatprep.mubr.bf16.mxu0 %v2294
        %2387 = vmatmul.mubr.bf16.gmra.mrb[0].mxu0 %v2267
        %v2388 = vpop.f32.mrb[0].mxu0
        %v2389 = vadd.f32 0.0, %v2388
        %v2390 = vpop.f32.mrb[0].mxu0
        %v2391 = vadd.f32 0.0, %v2390
        %v2392 = vpop.f32.mrb[0].mxu0
        %v2393 = vadd.f32 0.0, %v2392
        %v2394 = vpop.f32.mrb[0].mxu0
        %v2395 = vadd.f32 0.0, %v2394
        %2396 = vmatprep.mubr.bf16.mxu0 %v2297
        %2397 = vmatmul.mubr.bf16.gmra.mrb[0].mxu0 %v2269
        %v2398 = vpop.f32.mrb[0].mxu0
        %v2399 = vadd.f32 0.0, %v2398
        %v2400 = vpop.f32.mrb[0].mxu0
        %v2401 = vadd.f32 0.0, %v2400
        %v2402 = vpop.f32.mrb[0].mxu0
        %v2403 = vadd.f32 0.0, %v2402
        %v2404 = vpop.f32.mrb[0].mxu0
        %v2405 = vadd.f32 0.0, %v2404
        %2406 = vmatprep.mubr.bf16.mxu0 %v2300
        %2407 = vmatmul.mubr.bf16.gmra.mrb[0].mxu0 %v2271
        %v2408 = vpop.f32.mrb[0].mxu0
        %v2409 = vadd.f32 0.0, %v2408
        %v2410 = vpop.f32.mrb[0].mxu0
        %v2411 = vadd.f32 0.0, %v2410
        %v2412 = vpop.f32.mrb[0].mxu0
        %v2413 = vadd.f32 0.0, %v2412
        %v2414 = vpop.f32.mrb[0].mxu0
        %v2415 = vadd.f32 0.0, %v2414
        %2416 = vmatprep.mubr.bf16.mxu0 %v2303
        %2417 = vmatmul.mubr.bf16.gmra.mrb[0].mxu0 %v2273
        %v2418 = vpop.f32.mrb[0].mxu0
        %v2419 = vadd.f32 0.0, %v2418
        %v2420 = vpop.f32.mrb[0].mxu0
        %v2421 = vadd.f32 0.0, %v2420
        %v2422 = vpop.f32.mrb[0].mxu0
        %v2423 = vadd.f32 0.0, %v2422
        %v2424 = vpop.f32.mrb[0].mxu0
        %v2425 = vadd.f32 0.0, %v2424
        %2426 = vmatprep.mubr.bf16.mxu0 %v2306
        %2427 = vmatmul.mubr.bf16.gmra.mrb[0].mxu0 %v2275
        %v2428 = vpop.f32.mrb[0].mxu0
        %v2429 = vadd.f32 0.0, %v2428
        %v2430 = vpop.f32.mrb[0].mxu0
        %v2431 = vadd.f32 0.0, %v2430
        %v2432 = vpop.f32.mrb[0].mxu0
        %v2433 = vadd.f32 0.0, %v2432
        %v2434 = vpop.f32.mrb[0].mxu0
        %v2435 = vadd.f32 0.0, %v2434
        %2436 = vmatprep.mubr.bf16.mxu0 %v2309
        %2437 = vmatmul.mubr.bf16.gmra.mrb[0].mxu0 %v2277
        %v2438 = vpop.f32.mrb[0].mxu0
        %v2439 = vadd.f32 0.0, %v2438
        %v2440 = vpop.f32.mrb[0].mxu0
        %v2441 = vadd.f32 0.0, %v2440
        %v2442 = vpop.f32.mrb[0].mxu0
        %v2443 = vadd.f32 0.0, %v2442
        %v2444 = vpop.f32.mrb[0].mxu0
        %v2445 = vadd.f32 0.0, %v2444
        %2446 = vmatprep.mubr.bf16.mxu0 %v2312
        %2447 = vmatmul.mubr.bf16.gmra.mrb[0].mxu0 %v2279
        %v2448 = vpop.f32.mrb[0].mxu0
        %v2449 = vadd.f32 0.0, %v2448
        %v2450 = vpop.f32.mrb[0].mxu0
        %v2451 = vadd.f32 0.0, %v2450
        %v2452 = vpop.f32.mrb[0].mxu0
        %v2453 = vadd.f32 0.0, %v2452
        %v2454 = vpop.f32.mrb[0].mxu0
        %v2455 = vadd.f32 0.0, %v2454
        %2456 = vdwg.mxu0
        %v2457 = vpack.c.bf16 %v2353, %v2349
        %v2458 = vpack.c.bf16 %v2355, %v2351
        %v2459 = vpack.c.bf16 %v2363, %v2359
        %v2460 = vpack.c.bf16 %v2365, %v2361
        %v2461 = vpack.c.bf16 %v2373, %v2369
        %v2462 = vpack.c.bf16 %v2375, %v2371
        %v2463 = vpack.c.bf16 %v2383, %v2379
        %v2464 = vpack.c.bf16 %v2385, %v2381
        %v2465 = vpack.c.bf16 %v2393, %v2389
        %v2466 = vpack.c.bf16 %v2395, %v2391
        %v2467 = vpack.c.bf16 %v2403, %v2399
        %v2468 = vpack.c.bf16 %v2405, %v2401
        %v2469 = vpack.c.bf16 %v2413, %v2409
        %v2470 = vpack.c.bf16 %v2415, %v2411
        %v2471 = vpack.c.bf16 %v2423, %v2419
        %v2472 = vpack.c.bf16 %v2425, %v2421
        %v2473 = vpack.c.bf16 %v2433, %v2429
        %v2474 = vpack.c.bf16 %v2435, %v2431
        %v2475 = vpack.c.bf16 %v2443, %v2439
        %v2476 = vpack.c.bf16 %v2445, %v2441
        %v2477 = vpack.c.bf16 %v2453, %v2449
        %v2478 = vpack.c.bf16 %v2455, %v2451
        %2479 = vmatprep.subr.bf16.mxu0 %v2458
        %2480 = vmatpush1.bf16.msra.mxu0 %v2457
        %2481 = vmatprep.subr.bf16.mxu0 %v2460
        %2482 = vmatpush1.bf16.msra.mxu0 %v2459
        %2483 = vmatprep.subr.bf16.mxu0 %v2462
        %2484 = vmatpush1.bf16.msra.mxu0 %v2461
        %2485 = vmatprep.subr.bf16.mxu0 %v2464
        %2486 = vmatpush1.bf16.msra.mxu0 %v2463
        %2487 = vmatprep.subr.bf16.mxu0 %v2466
        %2488 = vmatpush1.bf16.msra.mxu0 %v2465
        %2489 = vmatprep.subr.bf16.mxu0 %v2468
        %2490 = vmatpush1.bf16.msra.mxu0 %v2467
        %2491 = vmatprep.subr.bf16.mxu0 %v2470
        %2492 = vmatpush1.bf16.msra.mxu0 %v2469
        %2493 = vmatprep.subr.bf16.mxu0 %v2472
        %2494 = vmatpush1.bf16.msra.mxu0 %v2471
        %2495 = vmatprep.subr.bf16.mxu0 %v2474
        %2496 = vmatpush1.bf16.msra.mxu0 %v2473
        %2497 = vmatprep.subr.bf16.mxu0 %v2476
        %2498 = vmatpush1.bf16.msra.mxu0 %v2475
        %2499 = vmatprep.subr.bf16.mxu0 %v2478
        %2500 = vmatpush1.bf16.msra.mxu0 %v2477
        %2501 = vmatprep.subr.bf16.mxu0 0
        %2502 = vmatpush1.bf16.msra.mxu0 0
        %2503 = vmatprep.subr.bf16.mxu0 0
        %2504 = vmatpush1.bf16.msra.mxu0 0
        %2505 = vmatprep.subr.bf16.mxu0 0
        %2506 = vmatpush1.bf16.msra.mxu0 0
        %2507 = vmatprep.subr.bf16.mxu0 0
        %2508 = vmatpush1.bf16.msra.mxu0 0
        %2509 = vmatprep.subr.bf16.mxu0 0
        %2510 = vmatpush1.bf16.msra.mxu0 0
        %2511 = vmatprep.mubr.bf16.mxu0 %v1681
        %2512 = vmatmul.mubr.bf16.gmra.mrb[0].mxu0 %v1647
        %v2513 = vpop.f32.mrb[0].mxu0
        %v2514 = vadd.f32 0.0, %v2513
        %v2515 = vpop.f32.mrb[0].mxu0
        %v2516 = vadd.f32 0.0, %v2515
        %v2517 = vpop.f32.mrb[0].mxu0
        %v2518 = vadd.f32 0.0, %v2517
        %v2519 = vpop.f32.mrb[0].mxu0
        %v2520 = vadd.f32 0.0, %v2519
        %2521 = vmatprep.mubr.bf16.mxu0 %v1684
        %2522 = vmatmul.mubr.bf16.gmra.mrb[0].mxu0 %v1649
        %v2523 = vpop.f32.mrb[0].mxu0
        %v2524 = vadd.f32 0.0, %v2523
        %v2525 = vpop.f32.mrb[0].mxu0
        %v2526 = vadd.f32 0.0, %v2525
        %v2527 = vpop.f32.mrb[0].mxu0
        %v2528 = vadd.f32 0.0, %v2527
        %v2529 = vpop.f32.mrb[0].mxu0
        %v2530 = vadd.f32 0.0, %v2529
        %2531 = vmatprep.mubr.bf16.mxu0 %v1687
        %2532 = vmatmul.mubr.bf16.gmra.mrb[0].mxu0 %v1651
        %v2533 = vpop.f32.mrb[0].mxu0
        %v2534 = vadd.f32 0.0, %v2533
        %v2535 = vpop.f32.mrb[0].mxu0
        %v2536 = vadd.f32 0.0, %v2535
        %v2537 = vpop.f32.mrb[0].mxu0
        %v2538 = vadd.f32 0.0, %v2537
        %v2539 = vpop.f32.mrb[0].mxu0
        %v2540 = vadd.f32 0.0, %v2539
        %2541 = vmatprep.mubr.bf16.mxu0 %v1690
        %2542 = vmatmul.mubr.bf16.gmra.mrb[0].mxu0 %v1653
        %v2543 = vpop.f32.mrb[0].mxu0
        %v2544 = vadd.f32 0.0, %v2543
        %v2545 = vpop.f32.mrb[0].mxu0
        %v2546 = vadd.f32 0.0, %v2545
        %v2547 = vpop.f32.mrb[0].mxu0
        %v2548 = vadd.f32 0.0, %v2547
        %v2549 = vpop.f32.mrb[0].mxu0
        %v2550 = vadd.f32 0.0, %v2549
        %2551 = vmatprep.mubr.bf16.mxu0 %v1693
        %2552 = vmatmul.mubr.bf16.gmra.mrb[0].mxu0 %v1655
        %v2553 = vpop.f32.mrb[0].mxu0
        %v2554 = vadd.f32 0.0, %v2553
        %v2555 = vpop.f32.mrb[0].mxu0
        %v2556 = vadd.f32 0.0, %v2555
        %v2557 = vpop.f32.mrb[0].mxu0
        %v2558 = vadd.f32 0.0, %v2557
        %v2559 = vpop.f32.mrb[0].mxu0
        %v2560 = vadd.f32 0.0, %v2559
        %2561 = vmatprep.mubr.bf16.mxu0 %v1696
        %2562 = vmatmul.mubr.bf16.gmra.mrb[0].mxu0 %v1657
        %v2563 = vpop.f32.mrb[0].mxu0
        %v2564 = vadd.f32 0.0, %v2563
        %v2565 = vpop.f32.mrb[0].mxu0
        %v2566 = vadd.f32 0.0, %v2565
        %v2567 = vpop.f32.mrb[0].mxu0
        %v2568 = vadd.f32 0.0, %v2567
        %v2569 = vpop.f32.mrb[0].mxu0
        %v2570 = vadd.f32 0.0, %v2569
        %2571 = vmatprep.mubr.bf16.mxu0 %v1699
        %2572 = vmatmul.mubr.bf16.gmra.mrb[0].mxu0 %v1659
        %v2573 = vpop.f32.mrb[0].mxu0
        %v2574 = vadd.f32 0.0, %v2573
        %v2575 = vpop.f32.mrb[0].mxu0
        %v2576 = vadd.f32 0.0, %v2575
        %v2577 = vpop.f32.mrb[0].mxu0
        %v2578 = vadd.f32 0.0, %v2577
        %v2579 = vpop.f32.mrb[0].mxu0
        %v2580 = vadd.f32 0.0, %v2579
        %2581 = vmatprep.mubr.bf16.mxu0 %v1702
        %2582 = vmatmul.mubr.bf16.gmra.mrb[0].mxu0 %v1661
        %v2583 = vpop.f32.mrb[0].mxu0
        %v2584 = vadd.f32 0.0, %v2583
        %v2585 = vpop.f32.mrb[0].mxu0
        %v2586 = vadd.f32 0.0, %v2585
        %v2587 = vpop.f32.mrb[0].mxu0
        %v2588 = vadd.f32 0.0, %v2587
        %v2589 = vpop.f32.mrb[0].mxu0
        %v2590 = vadd.f32 0.0, %v2589
        %2591 = vmatprep.mubr.bf16.mxu0 %v1705
        %2592 = vmatmul.mubr.bf16.gmra.mrb[0].mxu0 %v1663
        %v2593 = vpop.f32.mrb[0].mxu0
        %v2594 = vadd.f32 0.0, %v2593
        %v2595 = vpop.f32.mrb[0].mxu0
        %v2596 = vadd.f32 0.0, %v2595
        %v2597 = vpop.f32.mrb[0].mxu0
        %v2598 = vadd.f32 0.0, %v2597
        %v2599 = vpop.f32.mrb[0].mxu0
        %v2600 = vadd.f32 0.0, %v2599
        %2601 = vmatprep.mubr.bf16.mxu0 %v1708
        %2602 = vmatmul.mubr.bf16.gmra.mrb[0].mxu0 %v1665
        %v2603 = vpop.f32.mrb[0].mxu0
        %v2604 = vadd.f32 0.0, %v2603
        %v2605 = vpop.f32.mrb[0].mxu0
        %v2606 = vadd.f32 0.0, %v2605
        %v2607 = vpop.f32.mrb[0].mxu0
        %v2608 = vadd.f32 0.0, %v2607
        %v2609 = vpop.f32.mrb[0].mxu0
        %v2610 = vadd.f32 0.0, %v2609
        %2611 = vmatprep.mubr.bf16.mxu0 %v1711
        %2612 = vmatmul.mubr.bf16.gmra.mrb[0].mxu0 %v1667
        %v2613 = vpop.f32.mrb[0].mxu0
        %v2614 = vadd.f32 0.0, %v2613
        %v2615 = vpop.f32.mrb[0].mxu0
        %v2616 = vadd.f32 0.0, %v2615
        %v2617 = vpop.f32.mrb[0].mxu0
        %v2618 = vpop.f32.mrb[0].mxu0
        %2619 = vdwg.mxu0
        %v2620 = vmul.f32 %v1210, %v1210
        %v2621 = vmul.f32 %v1211, %v1211
        %v2622 = vmul.f32 %v1212, %v1212
        %v2623 = vmul.f32 %v1213, %v1213
        %v2624 = vmul.f32 %v1214, %v1214
        %v2625 = vmul.f32 %v1215, %v1215
        %v2626 = vmul.f32 %v1216, %v1216
        %v2627 = vmul.f32 %v1217, %v1217
        %v2628 = vmul.f32 %v1218, %v1218
        %v2629 = vmul.f32 %v1219, %v1219
        %v2630 = vmul.f32 %v1220, %v1220
        %v2631 = vmul.f32 %v1221, %v1221
        %v2632 = vmul.f32 %v1222, %v1222
        %v2633 = vmul.f32 %v1223, %v1223
        %v2634 = vmul.f32 %v1224, %v1224
        %v2635 = vmul.f32 %v1225, %v1225
        %v2636 = vmul.f32 %v1226, %v1226
        %v2637 = vmul.f32 %v1227, %v1227
        %v2638 = vmul.f32 %v1228, %v1228
        %v2639 = vmul.f32 %v1229, %v1229
        %v2640 = vmul.f32 %v1230, %v1230
        %v2641 = vmul.f32 %v1231, %v1231
        %v2642 = vmul.f32 %v1232, %v1232
        %v2643 = vmul.f32 %v1233, %v1233
        %v2644 = vmul.f32 %v1234, %v1234
        %v2645 = vmul.f32 %v1235, %v1235
        %v2646 = vmul.f32 %v1236, %v1236
        %v2647 = vmul.f32 %v1237, %v1237
        %v2648 = vmul.f32 %v1238, %v1238
        %v2649 = vmul.f32 %v1239, %v1239
        %v2650 = vmul.f32 %v1240, %v1240
        %v2651 = vmul.f32 %v1241, %v1241
        %v2652 = vmul.f32 %v1242, %v1242
        %v2653 = vmul.f32 %v1243, %v1243
        %v2654 = vmul.f32 %v1244, %v1244
        %v2655 = vmul.f32 %v1245, %v1245
        %v2656 = vmul.f32 %v1246, %v1246
        %v2657 = vmul.f32 %v1247, %v1247
        %v2658 = vmul.f32 %v1248, %v1248
        %v2659 = vmul.f32 %v1249, %v1249
        %v2660 = vmul.f32 %v1250, %v1250
        %v2661 = vmul.f32 %v1251, %v1251
        %v2662 = vmul.f32 %v1252, %v1252
        %v2663 = vmul.f32 %v1253, %v1253
        %v2664 = vpack.c.bf16 %v2622, %v2620
        %v2665 = vpack.c.bf16 %v2623, %v2621
        %v2666 = vpack.c.bf16 %v2626, %v2624
        %v2667 = vpack.c.bf16 %v2627, %v2625
        %v2668 = vpack.c.bf16 %v2630, %v2628
        %v2669 = vpack.c.bf16 %v2631, %v2629
        %v2670 = vpack.c.bf16 %v2634, %v2632
        %v2671 = vpack.c.bf16 %v2635, %v2633
        %v2672 = vpack.c.bf16 %v2638, %v2636
        %v2673 = vpack.c.bf16 %v2639, %v2637
        %v2674 = vpack.c.bf16 %v2642, %v2640
        %v2675 = vpack.c.bf16 %v2643, %v2641
        %v2676 = vpack.c.bf16 %v2646, %v2644
        %v2677 = vpack.c.bf16 %v2647, %v2645
        %v2678 = vpack.c.bf16 %v2650, %v2648
        %v2679 = vpack.c.bf16 %v2651, %v2649
        %v2680 = vpack.c.bf16 %v2654, %v2652
        %v2681 = vpack.c.bf16 %v2655, %v2653
        %v2682 = vpack.c.bf16 %v2658, %v2656
        %v2683 = vpack.c.bf16 %v2659, %v2657
        %v2684 = vpack.c.bf16 %v2662, %v2660
        %v2685 = vpack.c.bf16 %v2663, %v2661
        %v2687 = vsel %vm1007, %v2665, 0
        %v2690 = vsel %vm1007, %v2667, 0
        %v2693 = vsel %vm1007, %v2669, 0
        %v2696 = vsel %vm1007, %v2671, 0
        %v2699 = vsel %vm1007, %v2673, 0
        %v2702 = vsel %vm1007, %v2675, 0
        %v2705 = vsel %vm1007, %v2677, 0
        %v2708 = vsel %vm1007, %v2679, 0
        %v2711 = vsel %vm1007, %v2681, 0
        %v2714 = vsel %vm1007, %v2683, 0
        %v2717 = vsel %vm1007, %v2685, 0
        %2719 = vmatprep.subr.bf16.mxu0 %v1343
        %2720 = vmatpush1.bf16.msra.mxu0 %v1342
        %2721 = vmatprep.subr.bf16.mxu0 %v1345
        %2722 = vmatpush1.bf16.msra.mxu0 %v1344
        %2723 = vmatprep.subr.bf16.mxu0 %v1347
        %2724 = vmatpush1.bf16.msra.mxu0 %v1346
        %2725 = vmatprep.subr.bf16.mxu0 %v1349
        %2726 = vmatpush1.bf16.msra.mxu0 %v1348
        %2727 = vmatprep.subr.bf16.mxu0 %v1351
        %2728 = vmatpush1.bf16.msra.mxu0 %v1350
        %2729 = vmatprep.subr.bf16.mxu0 %v1353
        %2730 = vmatpush1.bf16.msra.mxu0 %v1352
        %2731 = vmatprep.subr.bf16.mxu0 %v1355
        %2732 = vmatpush1.bf16.msra.mxu0 %v1354
        %2733 = vmatprep.subr.bf16.mxu0 %v1357
        %2734 = vmatpush1.bf16.msra.mxu0 %v1356
        %2735 = vmatprep.subr.bf16.mxu0 %v1359
        %2736 = vmatpush1.bf16.msra.mxu0 %v1358
        %2737 = vmatprep.subr.bf16.mxu0 %v1361
        %2738 = vmatpush1.bf16.msra.mxu0 %v1360
        %2739 = vmatprep.subr.bf16.mxu0 %v1363
        %2740 = vmatpush1.bf16.msra.mxu0 %v1362
        %2741 = vmatprep.subr.bf16.mxu0 0
        %2742 = vmatpush1.bf16.msra.mxu0 0
        %2743 = vmatprep.subr.bf16.mxu0 0
        %2744 = vmatpush1.bf16.msra.mxu0 0
        %2745 = vmatprep.subr.bf16.mxu0 0
        %2746 = vmatpush1.bf16.msra.mxu0 0
        %2747 = vmatprep.subr.bf16.mxu0 0
        %2748 = vmatpush1.bf16.msra.mxu0 0
        %2749 = vmatprep.subr.bf16.mxu0 0
        %2750 = vmatpush1.bf16.msra.mxu0 0
        %2751 = vmatprep.mubr.bf16.mxu0 %v2687
        %2752 = vmatmul.mubr.bf16.gmra.mrb[0].mxu0 %v2664
        %v2753 = vpop.f32.mrb[0].mxu0
        %v2754 = vadd.f32 0.0, %v2753
        %v2755 = vpop.f32.mrb[0].mxu0
        %v2756 = vadd.f32 0.0, %v2755
        %v2757 = vpop.f32.mrb[0].mxu0
        %v2758 = vadd.f32 0.0, %v2757
        %v2759 = vpop.f32.mrb[0].mxu0
        %v2760 = vadd.f32 0.0, %v2759
        %2761 = vmatprep.mubr.bf16.mxu0 %v2690
        %2762 = vmatmul.mubr.bf16.gmra.mrb[0].mxu0 %v2666
        %v2763 = vpop.f32.mrb[0].mxu0
        %v2764 = vadd.f32 0.0, %v2763
        %v2765 = vpop.f32.mrb[0].mxu0
        %v2766 = vadd.f32 0.0, %v2765
        %v2767 = vpop.f32.mrb[0].mxu0
        %v2768 = vadd.f32 0.0, %v2767
        %v2769 = vpop.f32.mrb[0].mxu0
        %v2770 = vadd.f32 0.0, %v2769
        %2771 = vmatprep.mubr.bf16.mxu0 %v2693
        %2772 = vmatmul.mubr.bf16.gmra.mrb[0].mxu0 %v2668
        %v2773 = vpop.f32.mrb[0].mxu0
        %v2774 = vadd.f32 0.0, %v2773
        %v2775 = vpop.f32.mrb[0].mxu0
        %v2776 = vadd.f32 0.0, %v2775
        %v2777 = vpop.f32.mrb[0].mxu0
        %v2778 = vadd.f32 0.0, %v2777
        %v2779 = vpop.f32.mrb[0].mxu0
        %v2780 = vadd.f32 0.0, %v2779
        %2781 = vmatprep.mubr.bf16.mxu0 %v2696
        %2782 = vmatmul.mubr.bf16.gmra.mrb[0].mxu0 %v2670
        %v2783 = vpop.f32.mrb[0].mxu0
        %v2784 = vadd.f32 0.0, %v2783
        %v2785 = vpop.f32.mrb[0].mxu0
        %v2786 = vadd.f32 0.0, %v2785
        %v2787 = vpop.f32.mrb[0].mxu0
        %v2788 = vadd.f32 0.0, %v2787
        %v2789 = vpop.f32.mrb[0].mxu0
        %v2790 = vadd.f32 0.0, %v2789
        %2791 = vmatprep.mubr.bf16.mxu0 %v2699
        %2792 = vmatmul.mubr.bf16.gmra.mrb[0].mxu0 %v2672
        %v2793 = vpop.f32.mrb[0].mxu0
        %v2794 = vadd.f32 0.0, %v2793
        %v2795 = vpop.f32.mrb[0].mxu0
        %v2796 = vadd.f32 0.0, %v2795
        %v2797 = vpop.f32.mrb[0].mxu0
        %v2798 = vadd.f32 0.0, %v2797
        %v2799 = vpop.f32.mrb[0].mxu0
        %v2800 = vadd.f32 0.0, %v2799
        %2801 = vmatprep.mubr.bf16.mxu0 %v2702
        %2802 = vmatmul.mubr.bf16.gmra.mrb[0].mxu0 %v2674
        %v2803 = vpop.f32.mrb[0].mxu0
        %v2804 = vadd.f32 0.0, %v2803
        %v2805 = vpop.f32.mrb[0].mxu0
        %v2806 = vadd.f32 0.0, %v2805
        %v2807 = vpop.f32.mrb[0].mxu0
        %v2808 = vadd.f32 0.0, %v2807
        %v2809 = vpop.f32.mrb[0].mxu0
        %v2810 = vadd.f32 0.0, %v2809
        %2811 = vmatprep.mubr.bf16.mxu0 %v2705
        %2812 = vmatmul.mubr.bf16.gmra.mrb[0].mxu0 %v2676
        %v2813 = vpop.f32.mrb[0].mxu0
        %v2814 = vadd.f32 0.0, %v2813
        %v2815 = vpop.f32.mrb[0].mxu0
        %v2816 = vadd.f32 0.0, %v2815
        %v2817 = vpop.f32.mrb[0].mxu0
        %v2818 = vadd.f32 0.0, %v2817
        %v2819 = vpop.f32.mrb[0].mxu0
        %v2820 = vadd.f32 0.0, %v2819
        %2821 = vmatprep.mubr.bf16.mxu0 %v2708
        %2822 = vmatmul.mubr.bf16.gmra.mrb[0].mxu0 %v2678
        %v2823 = vpop.f32.mrb[0].mxu0
        %v2824 = vadd.f32 0.0, %v2823
        %v2825 = vpop.f32.mrb[0].mxu0
        %v2826 = vadd.f32 0.0, %v2825
        %v2827 = vpop.f32.mrb[0].mxu0
        %v2828 = vadd.f32 0.0, %v2827
        %v2829 = vpop.f32.mrb[0].mxu0
        %v2830 = vadd.f32 0.0, %v2829
        %2831 = vmatprep.mubr.bf16.mxu0 %v2711
        %2832 = vmatmul.mubr.bf16.gmra.mrb[0].mxu0 %v2680
        %v2833 = vpop.f32.mrb[0].mxu0
        %v2834 = vadd.f32 0.0, %v2833
        %v2835 = vpop.f32.mrb[0].mxu0
        %v2836 = vadd.f32 0.0, %v2835
        %v2837 = vpop.f32.mrb[0].mxu0
        %v2838 = vadd.f32 0.0, %v2837
        %v2839 = vpop.f32.mrb[0].mxu0
        %v2840 = vadd.f32 0.0, %v2839
        %2841 = vmatprep.mubr.bf16.mxu0 %v2714
        %2842 = vmatmul.mubr.bf16.gmra.mrb[0].mxu0 %v2682
        %v2843 = vpop.f32.mrb[0].mxu0
        %v2844 = vadd.f32 0.0, %v2843
        %v2845 = vpop.f32.mrb[0].mxu0
        %v2846 = vadd.f32 0.0, %v2845
        %v2847 = vpop.f32.mrb[0].mxu0
        %v2848 = vadd.f32 0.0, %v2847
        %v2849 = vpop.f32.mrb[0].mxu0
        %v2850 = vadd.f32 0.0, %v2849
        %2851 = vmatprep.mubr.bf16.mxu0 %v2717
        %2852 = vmatmul.mubr.bf16.gmra.mrb[0].mxu0 %v2684
        %v2853 = vpop.f32.mrb[0].mxu0
        %v2854 = vadd.f32 0.0, %v2853
        %v2855 = vpop.f32.mrb[0].mxu0
        %v2856 = vadd.f32 0.0, %v2855
        %v2857 = vpop.f32.mrb[0].mxu0
        %v2858 = vadd.f32 0.0, %v2857
        %v2859 = vpop.f32.mrb[0].mxu0
        %v2860 = vadd.f32 0.0, %v2859
        %2861 = vdwg.mxu0
        %v2862 = vpack.c.bf16 %v2758, %v2754
        %v2863 = vpack.c.bf16 %v2760, %v2756
        %v2864 = vpack.c.bf16 %v2768, %v2764
        %v2865 = vpack.c.bf16 %v2770, %v2766
        %v2866 = vpack.c.bf16 %v2778, %v2774
        %v2867 = vpack.c.bf16 %v2780, %v2776
        %v2868 = vpack.c.bf16 %v2788, %v2784
        %v2869 = vpack.c.bf16 %v2790, %v2786
        %v2870 = vpack.c.bf16 %v2798, %v2794
        %v2871 = vpack.c.bf16 %v2800, %v2796
        %v2872 = vpack.c.bf16 %v2808, %v2804
        %v2873 = vpack.c.bf16 %v2810, %v2806
        %v2874 = vpack.c.bf16 %v2818, %v2814
        %v2875 = vpack.c.bf16 %v2820, %v2816
        %v2876 = vpack.c.bf16 %v2828, %v2824
        %v2877 = vpack.c.bf16 %v2830, %v2826
        %v2878 = vpack.c.bf16 %v2838, %v2834
        %v2879 = vpack.c.bf16 %v2840, %v2836
        %v2880 = vpack.c.bf16 %v2848, %v2844
        %v2881 = vpack.c.bf16 %v2850, %v2846
        %v2882 = vpack.c.bf16 %v2858, %v2854
        %v2883 = vpack.c.bf16 %v2860, %v2856
        %2884 = vmatprep.subr.bf16.mxu0 %v2863
        %2885 = vmatpush1.bf16.msra.mxu0 %v2862
        %2886 = vmatprep.subr.bf16.mxu0 %v2865
        %2887 = vmatpush1.bf16.msra.mxu0 %v2864
        %2888 = vmatprep.subr.bf16.mxu0 %v2867
        %2889 = vmatpush1.bf16.msra.mxu0 %v2866
        %2890 = vmatprep.subr.bf16.mxu0 %v2869
        %2891 = vmatpush1.bf16.msra.mxu0 %v2868
        %2892 = vmatprep.subr.bf16.mxu0 %v2871
        %2893 = vmatpush1.bf16.msra.mxu0 %v2870
        %2894 = vmatprep.subr.bf16.mxu0 %v2873
        %2895 = vmatpush1.bf16.msra.mxu0 %v2872
        %2896 = vmatprep.subr.bf16.mxu0 %v2875
        %2897 = vmatpush1.bf16.msra.mxu0 %v2874
        %2898 = vmatprep.subr.bf16.mxu0 %v2877
        %2899 = vmatpush1.bf16.msra.mxu0 %v2876
        %2900 = vmatprep.subr.bf16.mxu0 %v2879
        %2901 = vmatpush1.bf16.msra.mxu0 %v2878
        %2902 = vmatprep.subr.bf16.mxu0 %v2881
        %2903 = vmatpush1.bf16.msra.mxu0 %v2880
        %2904 = vmatprep.subr.bf16.mxu0 %v2883
        %2905 = vmatpush1.bf16.msra.mxu0 %v2882
        %2906 = vmatprep.subr.bf16.mxu0 0
        %2907 = vmatpush1.bf16.msra.mxu0 0
        %2908 = vmatprep.subr.bf16.mxu0 0
        %2909 = vmatpush1.bf16.msra.mxu0 0
        %2910 = vmatprep.subr.bf16.mxu0 0
        %2911 = vmatpush1.bf16.msra.mxu0 0
        %2912 = vmatprep.subr.bf16.mxu0 0
        %2913 = vmatpush1.bf16.msra.mxu0 0
        %2914 = vmatprep.subr.bf16.mxu0 0
        %2915 = vmatpush1.bf16.msra.mxu0 0
        %2916 = vmatprep.mubr.bf16.mxu0 %v1681
        %2917 = vmatmul.mubr.bf16.gmra.mrb[0].mxu0 %v1647
        %v2918 = vpop.f32.mrb[0].mxu0
        %v2919 = vadd.f32 0.0, %v2918
        %v2920 = vpop.f32.mrb[0].mxu0
        %v2921 = vadd.f32 0.0, %v2920
        %v2922 = vpop.f32.mrb[0].mxu0
        %v2923 = vadd.f32 0.0, %v2922
        %v2924 = vpop.f32.mrb[0].mxu0
        %v2925 = vadd.f32 0.0, %v2924
        %2926 = vmatprep.mubr.bf16.mxu0 %v1684
        %2927 = vmatmul.mubr.bf16.gmra.mrb[0].mxu0 %v1649
        %v2928 = vpop.f32.mrb[0].mxu0
        %v2929 = vadd.f32 0.0, %v2928
        %v2930 = vpop.f32.mrb[0].mxu0
        %v2931 = vadd.f32 0.0, %v2930
        %v2932 = vpop.f32.mrb[0].mxu0
        %v2933 = vadd.f32 0.0, %v2932
        %v2934 = vpop.f32.mrb[0].mxu0
        %v2935 = vadd.f32 0.0, %v2934
        %2936 = vmatprep.mubr.bf16.mxu0 %v1687
        %2937 = vmatmul.mubr.bf16.gmra.mrb[0].mxu0 %v1651
        %v2938 = vpop.f32.mrb[0].mxu0
        %v2939 = vadd.f32 0.0, %v2938
        %v2940 = vpop.f32.mrb[0].mxu0
        %v2941 = vadd.f32 0.0, %v2940
        %v2942 = vpop.f32.mrb[0].mxu0
        %v2943 = vadd.f32 0.0, %v2942
        %v2944 = vpop.f32.mrb[0].mxu0
        %v2945 = vadd.f32 0.0, %v2944
        %2946 = vmatprep.mubr.bf16.mxu0 %v1690
        %2947 = vmatmul.mubr.bf16.gmra.mrb[0].mxu0 %v1653
        %v2948 = vpop.f32.mrb[0].mxu0
        %v2949 = vadd.f32 0.0, %v2948
        %v2950 = vpop.f32.mrb[0].mxu0
        %v2951 = vadd.f32 0.0, %v2950
        %v2952 = vpop.f32.mrb[0].mxu0
        %v2953 = vadd.f32 0.0, %v2952
        %v2954 = vpop.f32.mrb[0].mxu0
        %v2955 = vadd.f32 0.0, %v2954
        %2956 = vmatprep.mubr.bf16.mxu0 %v1693
        %2957 = vmatmul.mubr.bf16.gmra.mrb[0].mxu0 %v1655
        %v2958 = vpop.f32.mrb[0].mxu0
        %v2959 = vadd.f32 0.0, %v2958
        %v2960 = vpop.f32.mrb[0].mxu0
        %v2961 = vadd.f32 0.0, %v2960
        %v2962 = vpop.f32.mrb[0].mxu0
        %v2963 = vadd.f32 0.0, %v2962
        %v2964 = vpop.f32.mrb[0].mxu0
        %v2965 = vadd.f32 0.0, %v2964
        %2966 = vmatprep.mubr.bf16.mxu0 %v1696
        %2967 = vmatmul.mubr.bf16.gmra.mrb[0].mxu0 %v1657
        %v2968 = vpop.f32.mrb[0].mxu0
        %v2969 = vadd.f32 0.0, %v2968
        %v2970 = vpop.f32.mrb[0].mxu0
        %v2971 = vadd.f32 0.0, %v2970
        %v2972 = vpop.f32.mrb[0].mxu0
        %v2973 = vadd.f32 0.0, %v2972
        %v2974 = vpop.f32.mrb[0].mxu0
        %v2975 = vadd.f32 0.0, %v2974
        %2976 = vmatprep.mubr.bf16.mxu0 %v1699
        %2977 = vmatmul.mubr.bf16.gmra.mrb[0].mxu0 %v1659
        %v2978 = vpop.f32.mrb[0].mxu0
        %v2979 = vadd.f32 0.0, %v2978
        %v2980 = vpop.f32.mrb[0].mxu0
        %v2981 = vadd.f32 0.0, %v2980
        %v2982 = vpop.f32.mrb[0].mxu0
        %v2983 = vadd.f32 0.0, %v2982
        %v2984 = vpop.f32.mrb[0].mxu0
        %v2985 = vadd.f32 0.0, %v2984
        %2986 = vmatprep.mubr.bf16.mxu0 %v1702
        %2987 = vmatmul.mubr.bf16.gmra.mrb[0].mxu0 %v1661
        %v2988 = vpop.f32.mrb[0].mxu0
        %v2989 = vadd.f32 0.0, %v2988
        %v2990 = vpop.f32.mrb[0].mxu0
        %v2991 = vadd.f32 0.0, %v2990
        %v2992 = vpop.f32.mrb[0].mxu0
        %v2993 = vadd.f32 0.0, %v2992
        %v2994 = vpop.f32.mrb[0].mxu0
        %v2995 = vadd.f32 0.0, %v2994
        %2996 = vmatprep.mubr.bf16.mxu0 %v1705
        %2997 = vmatmul.mubr.bf16.gmra.mrb[0].mxu0 %v1663
        %v2998 = vpop.f32.mrb[0].mxu0
        %v2999 = vadd.f32 0.0, %v2998
        %v3000 = vpop.f32.mrb[0].mxu0
        %v3001 = vadd.f32 0.0, %v3000
        %v3002 = vpop.f32.mrb[0].mxu0
        %v3003 = vadd.f32 0.0, %v3002
        %v3004 = vpop.f32.mrb[0].mxu0
        %v3005 = vadd.f32 0.0, %v3004
        %3006 = vmatprep.mubr.bf16.mxu0 %v1708
        %3007 = vmatmul.mubr.bf16.gmra.mrb[0].mxu0 %v1665
        %v3008 = vpop.f32.mrb[0].mxu0
        %v3009 = vadd.f32 0.0, %v3008
        %v3010 = vpop.f32.mrb[0].mxu0
        %v3011 = vadd.f32 0.0, %v3010
        %v3012 = vpop.f32.mrb[0].mxu0
        %v3013 = vadd.f32 0.0, %v3012
        %v3014 = vpop.f32.mrb[0].mxu0
        %v3015 = vadd.f32 0.0, %v3014
        %3016 = vmatprep.mubr.bf16.mxu0 %v1711
        %3017 = vmatmul.mubr.bf16.gmra.mrb[0].mxu0 %v1667
        %v3018 = vpop.f32.mrb[0].mxu0
        %v3019 = vadd.f32 0.0, %v3018
        %v3020 = vpop.f32.mrb[0].mxu0
        %v3021 = vadd.f32 0.0, %v3020
        %v3022 = vpop.f32.mrb[0].mxu0
        %v3023 = vpop.f32.mrb[0].mxu0
        %3024 = vdwg.mxu0
        %v3025 = vmul.f32 %v1166, %v1210
        %v3026 = vmul.f32 %v1167, %v1211
        %v3027 = vmul.f32 %v1168, %v1212
        %v3028 = vmul.f32 %v1169, %v1213
        %v3029 = vmul.f32 %v1170, %v1214
        %v3030 = vmul.f32 %v1171, %v1215
        %v3031 = vmul.f32 %v1172, %v1216
        %v3032 = vmul.f32 %v1173, %v1217
        %v3033 = vmul.f32 %v1174, %v1218
        %v3034 = vmul.f32 %v1175, %v1219
        %v3035 = vmul.f32 %v1176, %v1220
        %v3036 = vmul.f32 %v1177, %v1221
        %v3037 = vmul.f32 %v1178, %v1222
        %v3038 = vmul.f32 %v1179, %v1223
        %v3039 = vmul.f32 %v1180, %v1224
        %v3040 = vmul.f32 %v1181, %v1225
        %v3041 = vmul.f32 %v1182, %v1226
        %v3042 = vmul.f32 %v1183, %v1227
        %v3043 = vmul.f32 %v1184, %v1228
        %v3044 = vmul.f32 %v1185, %v1229
        %v3045 = vmul.f32 %v1186, %v1230
        %v3046 = vmul.f32 %v1187, %v1231
        %v3047 = vmul.f32 %v1188, %v1232
        %v3048 = vmul.f32 %v1189, %v1233
        %v3049 = vmul.f32 %v1190, %v1234
        %v3050 = vmul.f32 %v1191, %v1235
        %v3051 = vmul.f32 %v1192, %v1236
        %v3052 = vmul.f32 %v1193, %v1237
        %v3053 = vmul.f32 %v1194, %v1238
        %v3054 = vmul.f32 %v1195, %v1239
        %v3055 = vmul.f32 %v1196, %v1240
        %v3056 = vmul.f32 %v1197, %v1241
        %v3057 = vmul.f32 %v1198, %v1242
        %v3058 = vmul.f32 %v1199, %v1243
        %v3059 = vmul.f32 %v1200, %v1244
        %v3060 = vmul.f32 %v1201, %v1245
        %v3061 = vmul.f32 %v1202, %v1246
        %v3062 = vmul.f32 %v1203, %v1247
        %v3063 = vmul.f32 %v1204, %v1248
        %v3064 = vmul.f32 %v1205, %v1249
        %v3065 = vmul.f32 %v1206, %v1250
        %v3066 = vmul.f32 %v1207, %v1251
        %v3067 = vmul.f32 %v1208, %v1252
        %v3068 = vmul.f32 %v1209, %v1253
        %v3069 = vpack.c.bf16 %v3027, %v3025
        %v3070 = vpack.c.bf16 %v3028, %v3026
        %v3071 = vpack.c.bf16 %v3031, %v3029
        %v3072 = vpack.c.bf16 %v3032, %v3030
        %v3073 = vpack.c.bf16 %v3035, %v3033
        %v3074 = vpack.c.bf16 %v3036, %v3034
        %v3075 = vpack.c.bf16 %v3039, %v3037
        %v3076 = vpack.c.bf16 %v3040, %v3038
        %v3077 = vpack.c.bf16 %v3043, %v3041
        %v3078 = vpack.c.bf16 %v3044, %v3042
        %v3079 = vpack.c.bf16 %v3047, %v3045
        %v3080 = vpack.c.bf16 %v3048, %v3046
        %v3081 = vpack.c.bf16 %v3051, %v3049
        %v3082 = vpack.c.bf16 %v3052, %v3050
        %v3083 = vpack.c.bf16 %v3055, %v3053
        %v3084 = vpack.c.bf16 %v3056, %v3054
        %v3085 = vpack.c.bf16 %v3059, %v3057
        %v3086 = vpack.c.bf16 %v3060, %v3058
        %v3087 = vpack.c.bf16 %v3063, %v3061
        %v3088 = vpack.c.bf16 %v3064, %v3062
        %v3089 = vpack.c.bf16 %v3067, %v3065
        %v3090 = vpack.c.bf16 %v3068, %v3066
        %v3092 = vsel %vm1007, %v3070, 0
        %v3095 = vsel %vm1007, %v3072, 0
        %v3098 = vsel %vm1007, %v3074, 0
        %v3101 = vsel %vm1007, %v3076, 0
        %v3104 = vsel %vm1007, %v3078, 0
        %v3107 = vsel %vm1007, %v3080, 0
        %v3110 = vsel %vm1007, %v3082, 0
        %v3113 = vsel %vm1007, %v3084, 0
        %v3116 = vsel %vm1007, %v3086, 0
        %v3119 = vsel %vm1007, %v3088, 0
        %v3122 = vsel %vm1007, %v3090, 0
        %3124 = vmatprep.subr.bf16.mxu0 %v1343
        %3125 = vmatpush1.bf16.msra.mxu0 %v1342
        %3126 = vmatprep.subr.bf16.mxu0 %v1345
        %3127 = vmatpush1.bf16.msra.mxu0 %v1344
        %3128 = vmatprep.subr.bf16.mxu0 %v1347
        %3129 = vmatpush1.bf16.msra.mxu0 %v1346
        %3130 = vmatprep.subr.bf16.mxu0 %v1349
        %3131 = vmatpush1.bf16.msra.mxu0 %v1348
        %3132 = vmatprep.subr.bf16.mxu0 %v1351
        %3133 = vmatpush1.bf16.msra.mxu0 %v1350
        %3134 = vmatprep.subr.bf16.mxu0 %v1353
        %3135 = vmatpush1.bf16.msra.mxu0 %v1352
        %3136 = vmatprep.subr.bf16.mxu0 %v1355
        %3137 = vmatpush1.bf16.msra.mxu0 %v1354
        %3138 = vmatprep.subr.bf16.mxu0 %v1357
        %3139 = vmatpush1.bf16.msra.mxu0 %v1356
        %3140 = vmatprep.subr.bf16.mxu0 %v1359
        %3141 = vmatpush1.bf16.msra.mxu0 %v1358
        %3142 = vmatprep.subr.bf16.mxu0 %v1361
        %3143 = vmatpush1.bf16.msra.mxu0 %v1360
        %3144 = vmatprep.subr.bf16.mxu0 %v1363
        %3145 = vmatpush1.bf16.msra.mxu0 %v1362
        %3146 = vmatprep.subr.bf16.mxu0 0
        %3147 = vmatpush1.bf16.msra.mxu0 0
        %3148 = vmatprep.subr.bf16.mxu0 0
        %3149 = vmatpush1.bf16.msra.mxu0 0
        %3150 = vmatprep.subr.bf16.mxu0 0
        %3151 = vmatpush1.bf16.msra.mxu0 0
        %3152 = vmatprep.subr.bf16.mxu0 0
        %3153 = vmatpush1.bf16.msra.mxu0 0
        %3154 = vmatprep.subr.bf16.mxu0 0
        %3155 = vmatpush1.bf16.msra.mxu0 0
        %3156 = vmatprep.mubr.bf16.mxu0 %v3092
        %3157 = vmatmul.mubr.bf16.gmra.mrb[0].mxu0 %v3069
        %v3158 = vpop.f32.mrb[0].mxu0
        %v3159 = vadd.f32 0.0, %v3158
        %v3160 = vpop.f32.mrb[0].mxu0
        %v3161 = vadd.f32 0.0, %v3160
        %v3162 = vpop.f32.mrb[0].mxu0
        %v3163 = vadd.f32 0.0, %v3162
        %v3164 = vpop.f32.mrb[0].mxu0
        %v3165 = vadd.f32 0.0, %v3164
        %3166 = vmatprep.mubr.bf16.mxu0 %v3095
        %3167 = vmatmul.mubr.bf16.gmra.mrb[0].mxu0 %v3071
        %v3168 = vpop.f32.mrb[0].mxu0
        %v3169 = vadd.f32 0.0, %v3168
        %v3170 = vpop.f32.mrb[0].mxu0
        %v3171 = vadd.f32 0.0, %v3170
        %v3172 = vpop.f32.mrb[0].mxu0
        %v3173 = vadd.f32 0.0, %v3172
        %v3174 = vpop.f32.mrb[0].mxu0
        %v3175 = vadd.f32 0.0, %v3174
        %3176 = vmatprep.mubr.bf16.mxu0 %v3098
        %3177 = vmatmul.mubr.bf16.gmra.mrb[0].mxu0 %v3073
        %v3178 = vpop.f32.mrb[0].mxu0
        %v3179 = vadd.f32 0.0, %v3178
        %v3180 = vpop.f32.mrb[0].mxu0
        %v3181 = vadd.f32 0.0, %v3180
        %v3182 = vpop.f32.mrb[0].mxu0
        %v3183 = vadd.f32 0.0, %v3182
        %v3184 = vpop.f32.mrb[0].mxu0
        %v3185 = vadd.f32 0.0, %v3184
        %3186 = vmatprep.mubr.bf16.mxu0 %v3101
        %3187 = vmatmul.mubr.bf16.gmra.mrb[0].mxu0 %v3075
        %v3188 = vpop.f32.mrb[0].mxu0
        %v3189 = vadd.f32 0.0, %v3188
        %v3190 = vpop.f32.mrb[0].mxu0
        %v3191 = vadd.f32 0.0, %v3190
        %v3192 = vpop.f32.mrb[0].mxu0
        %v3193 = vadd.f32 0.0, %v3192
        %v3194 = vpop.f32.mrb[0].mxu0
        %v3195 = vadd.f32 0.0, %v3194
        %3196 = vmatprep.mubr.bf16.mxu0 %v3104
        %3197 = vmatmul.mubr.bf16.gmra.mrb[0].mxu0 %v3077
        %v3198 = vpop.f32.mrb[0].mxu0
        %v3199 = vadd.f32 0.0, %v3198
        %v3200 = vpop.f32.mrb[0].mxu0
        %v3201 = vadd.f32 0.0, %v3200
        %v3202 = vpop.f32.mrb[0].mxu0
        %v3203 = vadd.f32 0.0, %v3202
        %v3204 = vpop.f32.mrb[0].mxu0
        %v3205 = vadd.f32 0.0, %v3204
        %3206 = vmatprep.mubr.bf16.mxu0 %v3107
        %3207 = vmatmul.mubr.bf16.gmra.mrb[0].mxu0 %v3079
        %v3208 = vpop.f32.mrb[0].mxu0
        %v3209 = vadd.f32 0.0, %v3208
        %v3210 = vpop.f32.mrb[0].mxu0
        %v3211 = vadd.f32 0.0, %v3210
        %v3212 = vpop.f32.mrb[0].mxu0
        %v3213 = vadd.f32 0.0, %v3212
        %v3214 = vpop.f32.mrb[0].mxu0
        %v3215 = vadd.f32 0.0, %v3214
        %3216 = vmatprep.mubr.bf16.mxu0 %v3110
        %3217 = vmatmul.mubr.bf16.gmra.mrb[0].mxu0 %v3081
        %v3218 = vpop.f32.mrb[0].mxu0
        %v3219 = vadd.f32 0.0, %v3218
        %v3220 = vpop.f32.mrb[0].mxu0
        %v3221 = vadd.f32 0.0, %v3220
        %v3222 = vpop.f32.mrb[0].mxu0
        %v3223 = vadd.f32 0.0, %v3222
        %v3224 = vpop.f32.mrb[0].mxu0
        %v3225 = vadd.f32 0.0, %v3224
        %3226 = vmatprep.mubr.bf16.mxu0 %v3113
        %3227 = vmatmul.mubr.bf16.gmra.mrb[0].mxu0 %v3083
        %v3228 = vpop.f32.mrb[0].mxu0
        %v3229 = vadd.f32 0.0, %v3228
        %v3230 = vpop.f32.mrb[0].mxu0
        %v3231 = vadd.f32 0.0, %v3230
        %v3232 = vpop.f32.mrb[0].mxu0
        %v3233 = vadd.f32 0.0, %v3232
        %v3234 = vpop.f32.mrb[0].mxu0
        %v3235 = vadd.f32 0.0, %v3234
        %3236 = vmatprep.mubr.bf16.mxu0 %v3116
        %3237 = vmatmul.mubr.bf16.gmra.mrb[0].mxu0 %v3085
        %v3238 = vpop.f32.mrb[0].mxu0
        %v3239 = vadd.f32 0.0, %v3238
        %v3240 = vpop.f32.mrb[0].mxu0
        %v3241 = vadd.f32 0.0, %v3240
        %v3242 = vpop.f32.mrb[0].mxu0
        %v3243 = vadd.f32 0.0, %v3242
        %v3244 = vpop.f32.mrb[0].mxu0
        %v3245 = vadd.f32 0.0, %v3244
        %3246 = vmatprep.mubr.bf16.mxu0 %v3119
        %3247 = vmatmul.mubr.bf16.gmra.mrb[0].mxu0 %v3087
        %v3248 = vpop.f32.mrb[0].mxu0
        %v3249 = vadd.f32 0.0, %v3248
        %v3250 = vpop.f32.mrb[0].mxu0
        %v3251 = vadd.f32 0.0, %v3250
        %v3252 = vpop.f32.mrb[0].mxu0
        %v3253 = vadd.f32 0.0, %v3252
        %v3254 = vpop.f32.mrb[0].mxu0
        %v3255 = vadd.f32 0.0, %v3254
        %3256 = vmatprep.mubr.bf16.mxu0 %v3122
        %3257 = vmatmul.mubr.bf16.gmra.mrb[0].mxu0 %v3089
        %v3258 = vpop.f32.mrb[0].mxu0
        %v3259 = vadd.f32 0.0, %v3258
        %v3260 = vpop.f32.mrb[0].mxu0
        %v3261 = vadd.f32 0.0, %v3260
        %v3262 = vpop.f32.mrb[0].mxu0
        %v3263 = vadd.f32 0.0, %v3262
        %v3264 = vpop.f32.mrb[0].mxu0
        %v3265 = vadd.f32 0.0, %v3264
        %3266 = vdwg.mxu0
        %v3267 = vpack.c.bf16 %v3163, %v3159
        %v3268 = vpack.c.bf16 %v3165, %v3161
        %v3269 = vpack.c.bf16 %v3173, %v3169
        %v3270 = vpack.c.bf16 %v3175, %v3171
        %v3271 = vpack.c.bf16 %v3183, %v3179
        %v3272 = vpack.c.bf16 %v3185, %v3181
        %v3273 = vpack.c.bf16 %v3193, %v3189
        %v3274 = vpack.c.bf16 %v3195, %v3191
        %v3275 = vpack.c.bf16 %v3203, %v3199
        %v3276 = vpack.c.bf16 %v3205, %v3201
        %v3277 = vpack.c.bf16 %v3213, %v3209
        %v3278 = vpack.c.bf16 %v3215, %v3211
        %v3279 = vpack.c.bf16 %v3223, %v3219
        %v3280 = vpack.c.bf16 %v3225, %v3221
        %v3281 = vpack.c.bf16 %v3233, %v3229
        %v3282 = vpack.c.bf16 %v3235, %v3231
        %v3283 = vpack.c.bf16 %v3243, %v3239
        %v3284 = vpack.c.bf16 %v3245, %v3241
        %v3285 = vpack.c.bf16 %v3253, %v3249
        %v3286 = vpack.c.bf16 %v3255, %v3251
        %v3287 = vpack.c.bf16 %v3263, %v3259
        %v3288 = vpack.c.bf16 %v3265, %v3261
        %3289 = vmatprep.subr.bf16.mxu0 %v3268
        %3290 = vmatpush1.bf16.msra.mxu0 %v3267
        %3291 = vmatprep.subr.bf16.mxu0 %v3270
        %3292 = vmatpush1.bf16.msra.mxu0 %v3269
        %3293 = vmatprep.subr.bf16.mxu0 %v3272
        %3294 = vmatpush1.bf16.msra.mxu0 %v3271
        %3295 = vmatprep.subr.bf16.mxu0 %v3274
        %3296 = vmatpush1.bf16.msra.mxu0 %v3273
        %3297 = vmatprep.subr.bf16.mxu0 %v3276
        %3298 = vmatpush1.bf16.msra.mxu0 %v3275
        %3299 = vmatprep.subr.bf16.mxu0 %v3278
        %3300 = vmatpush1.bf16.msra.mxu0 %v3277
        %3301 = vmatprep.subr.bf16.mxu0 %v3280
        %3302 = vmatpush1.bf16.msra.mxu0 %v3279
        %3303 = vmatprep.subr.bf16.mxu0 %v3282
        %3304 = vmatpush1.bf16.msra.mxu0 %v3281
        %3305 = vmatprep.subr.bf16.mxu0 %v3284
        %3306 = vmatpush1.bf16.msra.mxu0 %v3283
        %3307 = vmatprep.subr.bf16.mxu0 %v3286
        %3308 = vmatpush1.bf16.msra.mxu0 %v3285
        %3309 = vmatprep.subr.bf16.mxu0 %v3288
        %3310 = vmatpush1.bf16.msra.mxu0 %v3287
        %3311 = vmatprep.subr.bf16.mxu0 0
        %3312 = vmatpush1.bf16.msra.mxu0 0
        %3313 = vmatprep.subr.bf16.mxu0 0
        %3314 = vmatpush1.bf16.msra.mxu0 0
        %3315 = vmatprep.subr.bf16.mxu0 0
        %3316 = vmatpush1.bf16.msra.mxu0 0
        %3317 = vmatprep.subr.bf16.mxu0 0
        %3318 = vmatpush1.bf16.msra.mxu0 0
        %3319 = vmatprep.subr.bf16.mxu0 0
        %3320 = vmatpush1.bf16.msra.mxu0 0
        %3321 = vmatprep.mubr.bf16.mxu0 %v1681
        %3322 = vmatmul.mubr.bf16.gmra.mrb[0].mxu0 %v1647
        %v3323 = vpop.f32.mrb[0].mxu0
        %v3324 = vadd.f32 0.0, %v3323
        %v3325 = vpop.f32.mrb[0].mxu0
        %v3326 = vadd.f32 0.0, %v3325
        %v3327 = vpop.f32.mrb[0].mxu0
        %v3328 = vadd.f32 0.0, %v3327
        %v3329 = vpop.f32.mrb[0].mxu0
        %v3330 = vadd.f32 0.0, %v3329
        %3331 = vmatprep.mubr.bf16.mxu0 %v1684
        %3332 = vmatmul.mubr.bf16.gmra.mrb[0].mxu0 %v1649
        %v3333 = vpop.f32.mrb[0].mxu0
        %v3334 = vadd.f32 0.0, %v3333
        %v3335 = vpop.f32.mrb[0].mxu0
        %v3336 = vadd.f32 0.0, %v3335
        %v3337 = vpop.f32.mrb[0].mxu0
        %v3338 = vadd.f32 0.0, %v3337
        %v3339 = vpop.f32.mrb[0].mxu0
        %v3340 = vadd.f32 0.0, %v3339
        %3341 = vmatprep.mubr.bf16.mxu0 %v1687
        %3342 = vmatmul.mubr.bf16.gmra.mrb[0].mxu0 %v1651
        %v3343 = vpop.f32.mrb[0].mxu0
        %v3344 = vadd.f32 0.0, %v3343
        %v3345 = vpop.f32.mrb[0].mxu0
        %v3346 = vadd.f32 0.0, %v3345
        %v3347 = vpop.f32.mrb[0].mxu0
        %v3348 = vadd.f32 0.0, %v3347
        %v3349 = vpop.f32.mrb[0].mxu0
        %v3350 = vadd.f32 0.0, %v3349
        %3351 = vmatprep.mubr.bf16.mxu0 %v1690
        %3352 = vmatmul.mubr.bf16.gmra.mrb[0].mxu0 %v1653
        %v3353 = vpop.f32.mrb[0].mxu0
        %v3354 = vadd.f32 0.0, %v3353
        %v3355 = vpop.f32.mrb[0].mxu0
        %v3356 = vadd.f32 0.0, %v3355
        %v3357 = vpop.f32.mrb[0].mxu0
        %v3358 = vadd.f32 0.0, %v3357
        %v3359 = vpop.f32.mrb[0].mxu0
        %v3360 = vadd.f32 0.0, %v3359
        %3361 = vmatprep.mubr.bf16.mxu0 %v1693
        %3362 = vmatmul.mubr.bf16.gmra.mrb[0].mxu0 %v1655
        %v3363 = vpop.f32.mrb[0].mxu0
        %v3364 = vadd.f32 0.0, %v3363
        %v3365 = vpop.f32.mrb[0].mxu0
        %v3366 = vadd.f32 0.0, %v3365
        %v3367 = vpop.f32.mrb[0].mxu0
        %v3368 = vadd.f32 0.0, %v3367
        %v3369 = vpop.f32.mrb[0].mxu0
        %v3370 = vadd.f32 0.0, %v3369
        %3371 = vmatprep.mubr.bf16.mxu0 %v1696
        %3372 = vmatmul.mubr.bf16.gmra.mrb[0].mxu0 %v1657
        %v3373 = vpop.f32.mrb[0].mxu0
        %v3374 = vadd.f32 0.0, %v3373
        %v3375 = vpop.f32.mrb[0].mxu0
        %v3376 = vadd.f32 0.0, %v3375
        %v3377 = vpop.f32.mrb[0].mxu0
        %v3378 = vadd.f32 0.0, %v3377
        %v3379 = vpop.f32.mrb[0].mxu0
        %v3380 = vadd.f32 0.0, %v3379
        %3381 = vmatprep.mubr.bf16.mxu0 %v1699
        %3382 = vmatmul.mubr.bf16.gmra.mrb[0].mxu0 %v1659
        %v3383 = vpop.f32.mrb[0].mxu0
        %v3384 = vadd.f32 0.0, %v3383
        %v3385 = vpop.f32.mrb[0].mxu0
        %v3386 = vadd.f32 0.0, %v3385
        %v3387 = vpop.f32.mrb[0].mxu0
        %v3388 = vadd.f32 0.0, %v3387
        %v3389 = vpop.f32.mrb[0].mxu0
        %v3390 = vadd.f32 0.0, %v3389
        %3391 = vmatprep.mubr.bf16.mxu0 %v1702
        %3392 = vmatmul.mubr.bf16.gmra.mrb[0].mxu0 %v1661
        %v3393 = vpop.f32.mrb[0].mxu0
        %v3394 = vadd.f32 0.0, %v3393
        %v3395 = vpop.f32.mrb[0].mxu0
        %v3396 = vadd.f32 0.0, %v3395
        %v3397 = vpop.f32.mrb[0].mxu0
        %v3398 = vadd.f32 0.0, %v3397
        %v3399 = vpop.f32.mrb[0].mxu0
        %v3400 = vadd.f32 0.0, %v3399
        %3401 = vmatprep.mubr.bf16.mxu0 %v1705
        %3402 = vmatmul.mubr.bf16.gmra.mrb[0].mxu0 %v1663
        %v3403 = vpop.f32.mrb[0].mxu0
        %v3404 = vadd.f32 0.0, %v3403
        %v3405 = vpop.f32.mrb[0].mxu0
        %v3406 = vadd.f32 0.0, %v3405
        %v3407 = vpop.f32.mrb[0].mxu0
        %v3408 = vadd.f32 0.0, %v3407
        %v3409 = vpop.f32.mrb[0].mxu0
        %v3410 = vadd.f32 0.0, %v3409
        %3411 = vmatprep.mubr.bf16.mxu0 %v1708
        %3412 = vmatmul.mubr.bf16.gmra.mrb[0].mxu0 %v1665
        %v3413 = vpop.f32.mrb[0].mxu0
        %v3414 = vadd.f32 0.0, %v3413
        %v3415 = vpop.f32.mrb[0].mxu0
        %v3416 = vadd.f32 0.0, %v3415
        %v3417 = vpop.f32.mrb[0].mxu0
        %v3418 = vadd.f32 0.0, %v3417
        %v3419 = vpop.f32.mrb[0].mxu0
        %v3420 = vadd.f32 0.0, %v3419
        %3421 = vmatprep.mubr.bf16.mxu0 %v1711
        %3422 = vmatmul.mubr.bf16.gmra.mrb[0].mxu0 %v1667
        %v3423 = vpop.f32.mrb[0].mxu0
        %v3424 = vadd.f32 0.0, %v3423
        %v3425 = vpop.f32.mrb[0].mxu0
        %v3426 = vadd.f32 0.0, %v3425
        %v3427 = vpop.f32.mrb[0].mxu0
        %v3428 = vpop.f32.mrb[0].mxu0
        %3429 = vdwg.mxu0
        %v3430 = vmul.f32 %v1748, %v1748
        %v3431 = vmul.f32 %v1750, %v1750
        %v3432 = vmul.f32 %v1752, %v1752
        %v3433 = vmul.f32 %v1754, %v1754
        %v3434 = vmul.f32 %v1758, %v1758
        %v3435 = vmul.f32 %v1760, %v1760
        %v3436 = vmul.f32 %v1762, %v1762
        %v3437 = vmul.f32 %v1764, %v1764
        %v3438 = vmul.f32 %v1768, %v1768
        %v3439 = vmul.f32 %v1770, %v1770
        %v3440 = vmul.f32 %v1772, %v1772
        %v3441 = vmul.f32 %v1774, %v1774
        %v3442 = vmul.f32 %v1778, %v1778
        %v3443 = vmul.f32 %v1780, %v1780
        %v3444 = vmul.f32 %v1782, %v1782
        %v3445 = vmul.f32 %v1784, %v1784
        %v3446 = vmul.f32 %v1788, %v1788
        %v3447 = vmul.f32 %v1790, %v1790
        %v3448 = vmul.f32 %v1792, %v1792
        %v3449 = vmul.f32 %v1794, %v1794
        %v3450 = vmul.f32 %v1798, %v1798
        %v3451 = vmul.f32 %v1800, %v1800
        %v3452 = vmul.f32 %v1802, %v1802
        %v3453 = vmul.f32 %v1804, %v1804
        %v3454 = vmul.f32 %v1808, %v1808
        %v3455 = vmul.f32 %v1810, %v1810
        %v3456 = vmul.f32 %v1812, %v1812
        %v3457 = vmul.f32 %v1814, %v1814
        %v3458 = vmul.f32 %v1818, %v1818
        %v3459 = vmul.f32 %v1820, %v1820
        %v3460 = vmul.f32 %v1822, %v1822
        %v3461 = vmul.f32 %v1824, %v1824
        %v3462 = vmul.f32 %v1828, %v1828
        %v3463 = vmul.f32 %v1830, %v1830
        %v3464 = vmul.f32 %v1832, %v1832
        %v3465 = vmul.f32 %v1834, %v1834
        %v3466 = vmul.f32 %v1838, %v1838
        %v3467 = vmul.f32 %v1840, %v1840
        %v3468 = vmul.f32 %v1842, %v1842
        %v3469 = vmul.f32 %v1844, %v1844
        %v3470 = vmul.f32 %v1848, %v1848
        %v3471 = vmul.f32 %v1850, %v1850
        %v3472 = vsub.f32 %v2514, %v3430
        %v3473 = vsub.f32 %v2516, %v3431
        %v3474 = vsub.f32 %v2518, %v3432
        %v3475 = vsub.f32 %v2520, %v3433
        %v3476 = vsub.f32 %v2524, %v3434
        %v3477 = vsub.f32 %v2526, %v3435
        %v3478 = vsub.f32 %v2528, %v3436
        %v3479 = vsub.f32 %v2530, %v3437
        %v3480 = vsub.f32 %v2534, %v3438
        %v3481 = vsub.f32 %v2536, %v3439
        %v3482 = vsub.f32 %v2538, %v3440
        %v3483 = vsub.f32 %v2540, %v3441
        %v3484 = vsub.f32 %v2544, %v3442
        %v3485 = vsub.f32 %v2546, %v3443
        %v3486 = vsub.f32 %v2548, %v3444
        %v3487 = vsub.f32 %v2550, %v3445
        %v3488 = vsub.f32 %v2554, %v3446
        %v3489 = vsub.f32 %v2556, %v3447
        %v3490 = vsub.f32 %v2558, %v3448
        %v3491 = vsub.f32 %v2560, %v3449
        %v3492 = vsub.f32 %v2564, %v3450
        %v3493 = vsub.f32 %v2566, %v3451
        %v3494 = vsub.f32 %v2568, %v3452
        %v3495 = vsub.f32 %v2570, %v3453
        %v3496 = vsub.f32 %v2574, %v3454
        %v3497 = vsub.f32 %v2576, %v3455
        %v3498 = vsub.f32 %v2578, %v3456
        %v3499 = vsub.f32 %v2580, %v3457
        %v3500 = vsub.f32 %v2584, %v3458
        %v3501 = vsub.f32 %v2586, %v3459
        %v3502 = vsub.f32 %v2588, %v3460
        %v3503 = vsub.f32 %v2590, %v3461
        %v3504 = vsub.f32 %v2594, %v3462
        %v3505 = vsub.f32 %v2596, %v3463
        %v3506 = vsub.f32 %v2598, %v3464
        %v3507 = vsub.f32 %v2600, %v3465
        %v3508 = vsub.f32 %v2604, %v3466
        %v3509 = vsub.f32 %v2606, %v3467
        %v3510 = vsub.f32 %v2608, %v3468
        %v3511 = vsub.f32 %v2610, %v3469
        %v3512 = vsub.f32 %v2614, %v3470
        %v3513 = vsub.f32 %v2616, %v3471
        %v3514 = vmul.f32 %v2109, %v2109
        %v3515 = vmul.f32 %v2111, %v2111
        %v3516 = vmul.f32 %v2113, %v2113
        %v3517 = vmul.f32 %v2115, %v2115
        %v3518 = vmul.f32 %v2119, %v2119
        %v3519 = vmul.f32 %v2121, %v2121
        %v3520 = vmul.f32 %v2123, %v2123
        %v3521 = vmul.f32 %v2125, %v2125
        %v3522 = vmul.f32 %v2129, %v2129
        %v3523 = vmul.f32 %v2131, %v2131
        %v3524 = vmul.f32 %v2133, %v2133
        %v3525 = vmul.f32 %v2135, %v2135
        %v3526 = vmul.f32 %v2139, %v2139
        %v3527 = vmul.f32 %v2141, %v2141
        %v3528 = vmul.f32 %v2143, %v2143
        %v3529 = vmul.f32 %v2145, %v2145
        %v3530 = vmul.f32 %v2149, %v2149
        %v3531 = vmul.f32 %v2151, %v2151
        %v3532 = vmul.f32 %v2153, %v2153
        %v3533 = vmul.f32 %v2155, %v2155
        %v3534 = vmul.f32 %v2159, %v2159
        %v3535 = vmul.f32 %v2161, %v2161
        %v3536 = vmul.f32 %v2163, %v2163
        %v3537 = vmul.f32 %v2165, %v2165
        %v3538 = vmul.f32 %v2169, %v2169
        %v3539 = vmul.f32 %v2171, %v2171
        %v3540 = vmul.f32 %v2173, %v2173
        %v3541 = vmul.f32 %v2175, %v2175
        %v3542 = vmul.f32 %v2179, %v2179
        %v3543 = vmul.f32 %v2181, %v2181
        %v3544 = vmul.f32 %v2183, %v2183
        %v3545 = vmul.f32 %v2185, %v2185
        %v3546 = vmul.f32 %v2189, %v2189
        %v3547 = vmul.f32 %v2191, %v2191
        %v3548 = vmul.f32 %v2193, %v2193
        %v3549 = vmul.f32 %v2195, %v2195
        %v3550 = vmul.f32 %v2199, %v2199
        %v3551 = vmul.f32 %v2201, %v2201
        %v3552 = vmul.f32 %v2203, %v2203
        %v3553 = vmul.f32 %v2205, %v2205
        %v3554 = vmul.f32 %v2209, %v2209
        %v3555 = vmul.f32 %v2211, %v2211
        %v3556 = vsub.f32 %v2919, %v3514
        %v3557 = vsub.f32 %v2921, %v3515
        %v3558 = vsub.f32 %v2923, %v3516
        %v3559 = vsub.f32 %v2925, %v3517
        %v3560 = vsub.f32 %v2929, %v3518
        %v3561 = vsub.f32 %v2931, %v3519
        %v3562 = vsub.f32 %v2933, %v3520
        %v3563 = vsub.f32 %v2935, %v3521
        %v3564 = vsub.f32 %v2939, %v3522
        %v3565 = vsub.f32 %v2941, %v3523
        %v3566 = vsub.f32 %v2943, %v3524
        %v3567 = vsub.f32 %v2945, %v3525
        %v3568 = vsub.f32 %v2949, %v3526
        %v3569 = vsub.f32 %v2951, %v3527
        %v3570 = vsub.f32 %v2953, %v3528
        %v3571 = vsub.f32 %v2955, %v3529
        %v3572 = vsub.f32 %v2959, %v3530
        %v3573 = vsub.f32 %v2961, %v3531
        %v3574 = vsub.f32 %v2963, %v3532
        %v3575 = vsub.f32 %v2965, %v3533
        %v3576 = vsub.f32 %v2969, %v3534
        %v3577 = vsub.f32 %v2971, %v3535
        %v3578 = vsub.f32 %v2973, %v3536
        %v3579 = vsub.f32 %v2975, %v3537
        %v3580 = vsub.f32 %v2979, %v3538
        %v3581 = vsub.f32 %v2981, %v3539
        %v3582 = vsub.f32 %v2983, %v3540
        %v3583 = vsub.f32 %v2985, %v3541
        %v3584 = vsub.f32 %v2989, %v3542
        %v3585 = vsub.f32 %v2991, %v3543
        %v3586 = vsub.f32 %v2993, %v3544
        %v3587 = vsub.f32 %v2995, %v3545
        %v3588 = vsub.f32 %v2999, %v3546
        %v3589 = vsub.f32 %v3001, %v3547
        %v3590 = vsub.f32 %v3003, %v3548
        %v3591 = vsub.f32 %v3005, %v3549
        %v3592 = vsub.f32 %v3009, %v3550
        %v3593 = vsub.f32 %v3011, %v3551
        %v3594 = vsub.f32 %v3013, %v3552
        %v3595 = vsub.f32 %v3015, %v3553
        %v3596 = vsub.f32 %v3019, %v3554
        %v3597 = vsub.f32 %v3021, %v3555
        %v3598 = vmul.f32 %v1748, %v2109
        %v3599 = vmul.f32 %v1750, %v2111
        %v3600 = vmul.f32 %v1752, %v2113
        %v3601 = vmul.f32 %v1754, %v2115
        %v3602 = vmul.f32 %v1758, %v2119
        %v3603 = vmul.f32 %v1760, %v2121
        %v3604 = vmul.f32 %v1762, %v2123
        %v3605 = vmul.f32 %v1764, %v2125
        %v3606 = vmul.f32 %v1768, %v2129
        %v3607 = vmul.f32 %v1770, %v2131
        %v3608 = vmul.f32 %v1772, %v2133
        %v3609 = vmul.f32 %v1774, %v2135
        %v3610 = vmul.f32 %v1778, %v2139
        %v3611 = vmul.f32 %v1780, %v2141
        %v3612 = vmul.f32 %v1782, %v2143
        %v3613 = vmul.f32 %v1784, %v2145
        %v3614 = vmul.f32 %v1788, %v2149
        %v3615 = vmul.f32 %v1790, %v2151
        %v3616 = vmul.f32 %v1792, %v2153
        %v3617 = vmul.f32 %v1794, %v2155
        %v3618 = vmul.f32 %v1798, %v2159
        %v3619 = vmul.f32 %v1800, %v2161
        %v3620 = vmul.f32 %v1802, %v2163
        %v3621 = vmul.f32 %v1804, %v2165
        %v3622 = vmul.f32 %v1808, %v2169
        %v3623 = vmul.f32 %v1810, %v2171
        %v3624 = vmul.f32 %v1812, %v2173
        %v3625 = vmul.f32 %v1814, %v2175
        %v3626 = vmul.f32 %v1818, %v2179
        %v3627 = vmul.f32 %v1820, %v2181
        %v3628 = vmul.f32 %v1822, %v2183
        %v3629 = vmul.f32 %v1824, %v2185
        %v3630 = vmul.f32 %v1828, %v2189
        %v3631 = vmul.f32 %v1830, %v2191
        %v3632 = vmul.f32 %v1832, %v2193
        %v3633 = vmul.f32 %v1834, %v2195
        %v3634 = vmul.f32 %v1838, %v2199
        %v3635 = vmul.f32 %v1840, %v2201
        %v3636 = vmul.f32 %v1842, %v2203
        %v3637 = vmul.f32 %v1844, %v2205
        %v3638 = vmul.f32 %v1848, %v2209
        %v3639 = vmul.f32 %v1850, %v2211
        %v3640 = vsub.f32 %v3324, %v3598
        %v3641 = vsub.f32 %v3326, %v3599
        %v3642 = vsub.f32 %v3328, %v3600
        %v3643 = vsub.f32 %v3330, %v3601
        %v3644 = vsub.f32 %v3334, %v3602
        %v3645 = vsub.f32 %v3336, %v3603
        %v3646 = vsub.f32 %v3338, %v3604
        %v3647 = vsub.f32 %v3340, %v3605
        %v3648 = vsub.f32 %v3344, %v3606
        %v3649 = vsub.f32 %v3346, %v3607
        %v3650 = vsub.f32 %v3348, %v3608
        %v3651 = vsub.f32 %v3350, %v3609
        %v3652 = vsub.f32 %v3354, %v3610
        %v3653 = vsub.f32 %v3356, %v3611
        %v3654 = vsub.f32 %v3358, %v3612
        %v3655 = vsub.f32 %v3360, %v3613
        %v3656 = vsub.f32 %v3364, %v3614
        %v3657 = vsub.f32 %v3366, %v3615
        %v3658 = vsub.f32 %v3368, %v3616
        %v3659 = vsub.f32 %v3370, %v3617
        %v3660 = vsub.f32 %v3374, %v3618
        %v3661 = vsub.f32 %v3376, %v3619
        %v3662 = vsub.f32 %v3378, %v3620
        %v3663 = vsub.f32 %v3380, %v3621
        %v3664 = vsub.f32 %v3384, %v3622
        %v3665 = vsub.f32 %v3386, %v3623
        %v3666 = vsub.f32 %v3388, %v3624
        %v3667 = vsub.f32 %v3390, %v3625
        %v3668 = vsub.f32 %v3394, %v3626
        %v3669 = vsub.f32 %v3396, %v3627
        %v3670 = vsub.f32 %v3398, %v3628
        %v3671 = vsub.f32 %v3400, %v3629
        %v3672 = vsub.f32 %v3404, %v3630
        %v3673 = vsub.f32 %v3406, %v3631
        %v3674 = vsub.f32 %v3408, %v3632
        %v3675 = vsub.f32 %v3410, %v3633
        %v3676 = vsub.f32 %v3414, %v3634
        %v3677 = vsub.f32 %v3416, %v3635
        %v3678 = vsub.f32 %v3418, %v3636
        %v3679 = vsub.f32 %v3420, %v3637
        %v3680 = vsub.f32 %v3424, %v3638
        %v3681 = vsub.f32 %v3426, %v3639
        %v3682 = vmul.f32 %v3640, 2.0
        %v3683 = vmul.f32 %v3641, 2.0
        %v3684 = vmul.f32 %v3642, 2.0
        %v3685 = vmul.f32 %v3643, 2.0
        %v3686 = vmul.f32 %v3644, 2.0
        %v3687 = vmul.f32 %v3645, 2.0
        %v3688 = vmul.f32 %v3646, 2.0
        %v3689 = vmul.f32 %v3647, 2.0
        %v3690 = vmul.f32 %v3648, 2.0
        %v3691 = vmul.f32 %v3649, 2.0
        %v3692 = vmul.f32 %v3650, 2.0
        %v3693 = vmul.f32 %v3651, 2.0
        %v3694 = vmul.f32 %v3652, 2.0
        %v3695 = vmul.f32 %v3653, 2.0
        %v3696 = vmul.f32 %v3654, 2.0
        %v3697 = vmul.f32 %v3655, 2.0
        %v3698 = vmul.f32 %v3656, 2.0
        %v3699 = vmul.f32 %v3657, 2.0
        %v3700 = vmul.f32 %v3658, 2.0
        %v3701 = vmul.f32 %v3659, 2.0
        %v3702 = vmul.f32 %v3660, 2.0
        %v3703 = vmul.f32 %v3661, 2.0
        %v3704 = vmul.f32 %v3662, 2.0
        %v3705 = vmul.f32 %v3663, 2.0
        %v3706 = vmul.f32 %v3664, 2.0
        %v3707 = vmul.f32 %v3665, 2.0
        %v3708 = vmul.f32 %v3666, 2.0
        %v3709 = vmul.f32 %v3667, 2.0
        %v3710 = vmul.f32 %v3668, 2.0
        %v3711 = vmul.f32 %v3669, 2.0
        %v3712 = vmul.f32 %v3670, 2.0
        %v3713 = vmul.f32 %v3671, 2.0
        %v3714 = vmul.f32 %v3672, 2.0
        %v3715 = vmul.f32 %v3673, 2.0
        %v3716 = vmul.f32 %v3674, 2.0
        %v3717 = vmul.f32 %v3675, 2.0
        %v3718 = vmul.f32 %v3676, 2.0
        %v3719 = vmul.f32 %v3677, 2.0
        %v3720 = vmul.f32 %v3678, 2.0
        %v3721 = vmul.f32 %v3679, 2.0
        %v3722 = vmul.f32 %v3680, 2.0
        %v3723 = vmul.f32 %v3681, 2.0
        %v3724 = vadd.f32 %v3682, 0.0009
        %v3725 = vadd.f32 %v3683, 0.0009
        %v3726 = vadd.f32 %v3684, 0.0009
        %v3727 = vadd.f32 %v3685, 0.0009
        %v3728 = vadd.f32 %v3686, 0.0009
        %v3729 = vadd.f32 %v3687, 0.0009
        %v3730 = vadd.f32 %v3688, 0.0009
        %v3731 = vadd.f32 %v3689, 0.0009
        %v3732 = vadd.f32 %v3690, 0.0009
        %v3733 = vadd.f32 %v3691, 0.0009
        %v3734 = vadd.f32 %v3692, 0.0009
        %v3735 = vadd.f32 %v3693, 0.0009
        %v3736 = vadd.f32 %v3694, 0.0009
        %v3737 = vadd.f32 %v3695, 0.0009
        %v3738 = vadd.f32 %v3696, 0.0009
        %v3739 = vadd.f32 %v3697, 0.0009
        %v3740 = vadd.f32 %v3698, 0.0009
        %v3741 = vadd.f32 %v3699, 0.0009
        %v3742 = vadd.f32 %v3700, 0.0009
        %v3743 = vadd.f32 %v3701, 0.0009
        %v3744 = vadd.f32 %v3702, 0.0009
        %v3745 = vadd.f32 %v3703, 0.0009
        %v3746 = vadd.f32 %v3704, 0.0009
        %v3747 = vadd.f32 %v3705, 0.0009
        %v3748 = vadd.f32 %v3706, 0.0009
        %v3749 = vadd.f32 %v3707, 0.0009
        %v3750 = vadd.f32 %v3708, 0.0009
        %v3751 = vadd.f32 %v3709, 0.0009
        %v3752 = vadd.f32 %v3710, 0.0009
        %v3753 = vadd.f32 %v3711, 0.0009
        %v3754 = vadd.f32 %v3712, 0.0009
        %v3755 = vadd.f32 %v3713, 0.0009
        %v3756 = vadd.f32 %v3714, 0.0009
        %v3757 = vadd.f32 %v3715, 0.0009
        %v3758 = vadd.f32 %v3716, 0.0009
        %v3759 = vadd.f32 %v3717, 0.0009
        %v3760 = vadd.f32 %v3718, 0.0009
        %v3761 = vadd.f32 %v3719, 0.0009
        %v3762 = vadd.f32 %v3720, 0.0009
        %v3763 = vadd.f32 %v3721, 0.0009
        %v3764 = vadd.f32 %v3722, 0.0009
        %v3765 = vadd.f32 %v3723, 0.0009
        %v3766 = vadd.f32 %v3472, %v3556
        %v3767 = vadd.f32 %v3473, %v3557
        %v3768 = vadd.f32 %v3474, %v3558
        %v3769 = vadd.f32 %v3475, %v3559
        %v3770 = vadd.f32 %v3476, %v3560
        %v3771 = vadd.f32 %v3477, %v3561
        %v3772 = vadd.f32 %v3478, %v3562
        %v3773 = vadd.f32 %v3479, %v3563
        %v3774 = vadd.f32 %v3480, %v3564
        %v3775 = vadd.f32 %v3481, %v3565
        %v3776 = vadd.f32 %v3482, %v3566
        %v3777 = vadd.f32 %v3483, %v3567
        %v3778 = vadd.f32 %v3484, %v3568
        %v3779 = vadd.f32 %v3485, %v3569
        %v3780 = vadd.f32 %v3486, %v3570
        %v3781 = vadd.f32 %v3487, %v3571
        %v3782 = vadd.f32 %v3488, %v3572
        %v3783 = vadd.f32 %v3489, %v3573
        %v3784 = vadd.f32 %v3490, %v3574
        %v3785 = vadd.f32 %v3491, %v3575
        %v3786 = vadd.f32 %v3492, %v3576
        %v3787 = vadd.f32 %v3493, %v3577
        %v3788 = vadd.f32 %v3494, %v3578
        %v3789 = vadd.f32 %v3495, %v3579
        %v3790 = vadd.f32 %v3496, %v3580
        %v3791 = vadd.f32 %v3497, %v3581
        %v3792 = vadd.f32 %v3498, %v3582
        %v3793 = vadd.f32 %v3499, %v3583
        %v3794 = vadd.f32 %v3500, %v3584
        %v3795 = vadd.f32 %v3501, %v3585
        %v3796 = vadd.f32 %v3502, %v3586
        %v3797 = vadd.f32 %v3503, %v3587
        %v3798 = vadd.f32 %v3504, %v3588
        %v3799 = vadd.f32 %v3505, %v3589
        %v3800 = vadd.f32 %v3506, %v3590
        %v3801 = vadd.f32 %v3507, %v3591
        %v3802 = vadd.f32 %v3508, %v3592
        %v3803 = vadd.f32 %v3509, %v3593
        %v3804 = vadd.f32 %v3510, %v3594
        %v3805 = vadd.f32 %v3511, %v3595
        %v3806 = vadd.f32 %v3512, %v3596
        %v3807 = vadd.f32 %v3513, %v3597
        %v3808 = vadd.f32 %v3766, 0.0009
        %v3809 = vadd.f32 %v3767, 0.0009
        %v3810 = vadd.f32 %v3768, 0.0009
        %v3811 = vadd.f32 %v3769, 0.0009
        %v3812 = vadd.f32 %v3770, 0.0009
        %v3813 = vadd.f32 %v3771, 0.0009
        %v3814 = vadd.f32 %v3772, 0.0009
        %v3815 = vadd.f32 %v3773, 0.0009
        %v3816 = vadd.f32 %v3774, 0.0009
        %v3817 = vadd.f32 %v3775, 0.0009
        %v3818 = vadd.f32 %v3776, 0.0009
        %v3819 = vadd.f32 %v3777, 0.0009
        %v3820 = vadd.f32 %v3778, 0.0009
        %v3821 = vadd.f32 %v3779, 0.0009
        %v3822 = vadd.f32 %v3780, 0.0009
        %v3823 = vadd.f32 %v3781, 0.0009
        %v3824 = vadd.f32 %v3782, 0.0009
        %v3825 = vadd.f32 %v3783, 0.0009
        %v3826 = vadd.f32 %v3784, 0.0009
        %v3827 = vadd.f32 %v3785, 0.0009
        %v3828 = vadd.f32 %v3786, 0.0009
        %v3829 = vadd.f32 %v3787, 0.0009
        %v3830 = vadd.f32 %v3788, 0.0009
        %v3831 = vadd.f32 %v3789, 0.0009
        %v3832 = vadd.f32 %v3790, 0.0009
        %v3833 = vadd.f32 %v3791, 0.0009
        %v3834 = vadd.f32 %v3792, 0.0009
        %v3835 = vadd.f32 %v3793, 0.0009
        %v3836 = vadd.f32 %v3794, 0.0009
        %v3837 = vadd.f32 %v3795, 0.0009
        %v3838 = vadd.f32 %v3796, 0.0009
        %v3839 = vadd.f32 %v3797, 0.0009
        %v3840 = vadd.f32 %v3798, 0.0009
        %v3841 = vadd.f32 %v3799, 0.0009
        %v3842 = vadd.f32 %v3800, 0.0009
        %v3843 = vadd.f32 %v3801, 0.0009
        %v3844 = vadd.f32 %v3802, 0.0009
        %v3845 = vadd.f32 %v3803, 0.0009
        %v3846 = vadd.f32 %v3804, 0.0009
        %v3847 = vadd.f32 %v3805, 0.0009
        %v3848 = vadd.f32 %v3806, 0.0009
        %v3849 = vadd.f32 %v3807, 0.0009
        %v3850 = vrcp.pop %v3808
        %v3851 = vmul.f32 %v3724, %v3850
        %v3852 = vrcp.pop %v3809
        %v3853 = vmul.f32 %v3725, %v3852
        %v3854 = vrcp.pop %v3810
        %v3855 = vmul.f32 %v3726, %v3854
        %v3856 = vrcp.pop %v3811
        %v3857 = vmul.f32 %v3727, %v3856
        %v3858 = vrcp.pop %v3812
        %v3859 = vmul.f32 %v3728, %v3858
        %v3860 = vrcp.pop %v3813
        %v3861 = vmul.f32 %v3729, %v3860
        %v3862 = vrcp.pop %v3814
        %v3863 = vmul.f32 %v3730, %v3862
        %v3864 = vrcp.pop %v3815
        %v3865 = vmul.f32 %v3731, %v3864
        %v3866 = vrcp.pop %v3816
        %v3867 = vmul.f32 %v3732, %v3866
        %v3868 = vrcp.pop %v3817
        %v3869 = vmul.f32 %v3733, %v3868
        %v3870 = vrcp.pop %v3818
        %v3871 = vmul.f32 %v3734, %v3870
        %v3872 = vrcp.pop %v3819
        %v3873 = vmul.f32 %v3735, %v3872
        %v3874 = vrcp.pop %v3820
        %v3875 = vmul.f32 %v3736, %v3874
        %v3876 = vrcp.pop %v3821
        %v3877 = vmul.f32 %v3737, %v3876
        %v3878 = vrcp.pop %v3822
        %v3879 = vmul.f32 %v3738, %v3878
        %v3880 = vrcp.pop %v3823
        %v3881 = vmul.f32 %v3739, %v3880
        %v3882 = vrcp.pop %v3824
        %v3883 = vmul.f32 %v3740, %v3882
        %v3884 = vrcp.pop %v3825
        %v3885 = vmul.f32 %v3741, %v3884
        %v3886 = vrcp.pop %v3826
        %v3887 = vmul.f32 %v3742, %v3886
        %v3888 = vrcp.pop %v3827
        %v3889 = vmul.f32 %v3743, %v3888
        %v3890 = vrcp.pop %v3828
        %v3891 = vmul.f32 %v3744, %v3890
        %v3892 = vrcp.pop %v3829
        %v3893 = vmul.f32 %v3745, %v3892
        %v3894 = vrcp.pop %v3830
        %v3895 = vmul.f32 %v3746, %v3894
        %v3896 = vrcp.pop %v3831
        %v3897 = vmul.f32 %v3747, %v3896
        %v3898 = vrcp.pop %v3832
        %v3899 = vmul.f32 %v3748, %v3898
        %v3900 = vrcp.pop %v3833
        %v3901 = vmul.f32 %v3749, %v3900
        %v3902 = vrcp.pop %v3834
        %v3903 = vmul.f32 %v3750, %v3902
        %v3904 = vrcp.pop %v3835
        %v3905 = vmul.f32 %v3751, %v3904
        %v3906 = vrcp.pop %v3836
        %v3907 = vmul.f32 %v3752, %v3906
        %v3908 = vrcp.pop %v3837
        %v3909 = vmul.f32 %v3753, %v3908
        %v3910 = vrcp.pop %v3838
        %v3911 = vmul.f32 %v3754, %v3910
        %v3912 = vrcp.pop %v3839
        %v3913 = vmul.f32 %v3755, %v3912
        %v3914 = vrcp.pop %v3840
        %v3915 = vmul.f32 %v3756, %v3914
        %v3916 = vrcp.pop %v3841
        %v3917 = vmul.f32 %v3757, %v3916
        %v3918 = vrcp.pop %v3842
        %v3919 = vmul.f32 %v3758, %v3918
        %v3920 = vrcp.pop %v3843
        %v3921 = vmul.f32 %v3759, %v3920
        %v3922 = vrcp.pop %v3844
        %v3923 = vmul.f32 %v3760, %v3922
        %v3924 = vrcp.pop %v3845
        %v3925 = vmul.f32 %v3761, %v3924
        %v3926 = vrcp.pop %v3846
        %v3927 = vmul.f32 %v3762, %v3926
        %v3928 = vrcp.pop %v3847
        %v3929 = vmul.f32 %v3763, %v3928
        %v3930 = vrcp.pop %v3848
        %v3931 = vmul.f32 %v3764, %v3930
        %v3932 = vrcp.pop %v3849
        %v3933 = vmul.f32 %v3765, %v3932
        %vm3934 = vcmask 310272
        %v3935 = vsel %vm3934, %v3853, 0.0
        %v3936 = vadd.f32 %v3851, %v3935
        %3937 = vadd.xlane.f32.xlu0 %v3936
        %v3938 = vpop.xlane.xlu0 %3937
        %v3939 = vsel %vm3934, %v3857, 0.0
        %v3940 = vadd.f32 %v3855, %v3939
        %3941 = vadd.xlane.f32.xlu0 %v3940
        %v3942 = vpop.xlane.xlu0 %3941
        %v3943 = vsel %vm3934, %v3861, 0.0
        %v3944 = vadd.f32 %v3859, %v3943
        %3945 = vadd.xlane.f32.xlu0 %v3944
        %v3946 = vpop.xlane.xlu0 %3945
        %v3947 = vsel %vm3934, %v3865, 0.0
        %v3948 = vadd.f32 %v3863, %v3947
        %3949 = vadd.xlane.f32.xlu0 %v3948
        %v3950 = vpop.xlane.xlu0 %3949
        %v3951 = vsel %vm3934, %v3869, 0.0
        %v3952 = vadd.f32 %v3867, %v3951
        %3953 = vadd.xlane.f32.xlu0 %v3952
        %v3954 = vpop.xlane.xlu0 %3953
        %v3955 = vsel %vm3934, %v3873, 0.0
        %v3956 = vadd.f32 %v3871, %v3955
        %3957 = vadd.xlane.f32.xlu0 %v3956
        %v3958 = vpop.xlane.xlu0 %3957
        %v3959 = vsel %vm3934, %v3877, 0.0
        %v3960 = vadd.f32 %v3875, %v3959
        %3961 = vadd.xlane.f32.xlu0 %v3960
        %v3962 = vpop.xlane.xlu0 %3961
        %v3963 = vsel %vm3934, %v3881, 0.0
        %v3964 = vadd.f32 %v3879, %v3963
        %3965 = vadd.xlane.f32.xlu0 %v3964
        %v3966 = vpop.xlane.xlu0 %3965
        %v3967 = vsel %vm3934, %v3885, 0.0
        %v3968 = vadd.f32 %v3883, %v3967
        %3969 = vadd.xlane.f32.xlu0 %v3968
        %v3970 = vpop.xlane.xlu0 %3969
        %v3971 = vsel %vm3934, %v3889, 0.0
        %v3972 = vadd.f32 %v3887, %v3971
        %3973 = vadd.xlane.f32.xlu0 %v3972
        %v3974 = vpop.xlane.xlu0 %3973
        %v3975 = vsel %vm3934, %v3893, 0.0
        %v3976 = vadd.f32 %v3891, %v3975
        %3977 = vadd.xlane.f32.xlu0 %v3976
        %v3978 = vpop.xlane.xlu0 %3977
        %v3979 = vsel %vm3934, %v3897, 0.0
        %v3980 = vadd.f32 %v3895, %v3979
        %3981 = vadd.xlane.f32.xlu0 %v3980
        %v3982 = vpop.xlane.xlu0 %3981
        %v3983 = vsel %vm3934, %v3901, 0.0
        %v3984 = vadd.f32 %v3899, %v3983
        %3985 = vadd.xlane.f32.xlu0 %v3984
        %v3986 = vpop.xlane.xlu0 %3985
        %v3987 = vsel %vm3934, %v3905, 0.0
        %v3988 = vadd.f32 %v3903, %v3987
        %3989 = vadd.xlane.f32.xlu0 %v3988
        %v3990 = vpop.xlane.xlu0 %3989
        %v3991 = vsel %vm3934, %v3909, 0.0
        %v3992 = vadd.f32 %v3907, %v3991
        %3993 = vadd.xlane.f32.xlu0 %v3992
        %v3994 = vpop.xlane.xlu0 %3993
        %v3995 = vsel %vm3934, %v3913, 0.0
        %v3996 = vadd.f32 %v3911, %v3995
        %3997 = vadd.xlane.f32.xlu0 %v3996
        %v3998 = vpop.xlane.xlu0 %3997
        %v3999 = vsel %vm3934, %v3917, 0.0
        %v4000 = vadd.f32 %v3915, %v3999
        %4001 = vadd.xlane.f32.xlu0 %v4000
        %v4002 = vpop.xlane.xlu0 %4001
        %v4003 = vsel %vm3934, %v3921, 0.0
        %v4004 = vadd.f32 %v3919, %v4003
        %4005 = vadd.xlane.f32.xlu0 %v4004
        %v4006 = vpop.xlane.xlu0 %4005
        %v4007 = vsel %vm3934, %v3925, 0.0
        %v4008 = vadd.f32 %v3923, %v4007
        %4009 = vadd.xlane.f32.xlu0 %v4008
        %v4010 = vpop.xlane.xlu0 %4009
        %v4011 = vsel %vm3934, %v3929, 0.0
        %v4012 = vadd.f32 %v3927, %v4011
        %4013 = vadd.xlane.f32.xlu0 %v4012
        %v4014 = vpop.xlane.xlu0 %4013
        %vm4015 = vcmask 1045504
        %v4016 = vsel %vm4015, %v3931, 0.0
        %vm4017 = vcmask 308224
        %v4018 = vsel %vm4017, %v3933, 0.0
        %v4019 = vadd.f32 %v4016, %v4018
        %4020 = vadd.xlane.f32.xlu0 %v4019
        %v4021 = vpop.xlane.xlu0 %4020
        %v4022 = vadd.f32 %v3938, %v3942
        %v4023 = vadd.f32 %v4022, %v3946
        %v4024 = vadd.f32 %v4023, %v3950
        %v4025 = vadd.f32 %v4024, %v3954
        %v4026 = vadd.f32 %v4025, %v3958
        %v4027 = vadd.f32 %v4026, %v3962
        %v4028 = vadd.f32 %v4027, %v3966
        %v4029 = vadd.f32 %v4028, %v3970
        %v4030 = vadd.f32 %v4029, %v3974
        %v4031 = vadd.f32 %v4030, %v3978
        %v4032 = vadd.f32 %v4031, %v3982
        %v4033 = vadd.f32 %v4032, %v3986
        %v4034 = vadd.f32 %v4033, %v3990
        %v4035 = vadd.f32 %v4034, %v3994
        %v4036 = vadd.f32 %v4035, %v3998
        %v4037 = vadd.f32 %v4036, %v4002
        %v4038 = vadd.f32 %v4037, %v4006
        %v4039 = vadd.f32 %v4038, %v4010
        %v4040 = vadd.f32 %v4039, %v4014
        %v4041 = vsel %vm4015, %v4021, 0.0
        %v4042 = vadd.f32 %v4040, %v4041
        %v4043 = vrot.slane %v4042, 4
        %v4044 = vadd.f32 %v4042, %v4043
        %v4045 = vrot.slane %v4044, 2
        %v4046 = vadd.f32 %v4044, %v4045
        %v4047 = vrot.slane %v4046, 1
        %v4048 = vadd.f32 %v4046, %v4047
        %v4049 = vmul.f32 %v4048, 3.6289737e-05
        %v4050 = vmax.f32 %v4049, 0.0
        %v4051 = vld [vmem:[#allocation14] sm:$0xf]
        %v4052 = vld [vmem:[#allocation14 + $0x4] sm:$0xf]
        %v4053 = vld [vmem:[#allocation14 + $0x8] sm:$0xf]
        %v4054 = vld [vmem:[#allocation14 + $0xc] sm:$0xf]
        %v4055 = vld [vmem:[#allocation14 + $0x10] sm:$0xf]
        %v4056 = vld [vmem:[#allocation14 + $0x14] sm:$0xf]
        %v4057 = vld [vmem:[#allocation14 + $0x18] sm:$0xf]
        %v4058 = vld [vmem:[#allocation14 + $0x1c] sm:$0xf]
        %v4059 = vld [vmem:[#allocation14 + $0x20] sm:$0xf]
        %v4060 = vld [vmem:[#allocation14 + $0x24] sm:$0xf]
        %v4061 = vld [vmem:[#allocation14 + $0x28] sm:$0xf]
        %v4062 = vld [vmem:[#allocation14 + $0x2c] sm:$0xf]
        %v4063 = vld [vmem:[#allocation14 + $0x30] sm:$0xf]
        %v4064 = vld [vmem:[#allocation14 + $0x34] sm:$0xf]
        %v4065 = vld [vmem:[#allocation14 + $0x38] sm:$0xf]
        %v4066 = vld [vmem:[#allocation14 + $0x3c] sm:$0xf]
        %v4067 = vld [vmem:[#allocation14 + $0x40] sm:$0xf]
        %v4068 = vld [vmem:[#allocation14 + $0x44] sm:$0xf]
        %v4069 = vld [vmem:[#allocation14 + $0x48] sm:$0xf]
        %v4070 = vld [vmem:[#allocation14 + $0x4c] sm:$0xf]
        %v4071 = vld [vmem:[#allocation14 + $0x50] sm:$0xf]
        %v4072 = vld [vmem:[#allocation14 + $0x54] sm:$0xf]
        %v4073 = vld [vmem:[#allocation16] sm:$0xff]
        %v4074 = vld [vmem:[#allocation16 + $0x8] sm:$0xff]
        %v4075 = vld [vmem:[#allocation16 + $0x10] sm:$0xff]
        %v4076 = vld [vmem:[#allocation16 + $0x18] sm:$0xff]
        %v4077 = vld [vmem:[#allocation16 + $0x20] sm:$0xff]
        %v4078 = vld [vmem:[#allocation16 + $0x28] sm:$0xff]
        %v4079 = vld [vmem:[#allocation16 + $0x30] sm:$0xff]
        %v4080 = vld [vmem:[#allocation16 + $0x38] sm:$0xff]
        %v4081 = vld [vmem:[#allocation16 + $0x40] sm:$0xff]
        %v4082 = vld [vmem:[#allocation16 + $0x48] sm:$0xff]
        %v4083 = vld [vmem:[#allocation16 + $0x50] sm:$0xff]
        %v4084 = vpack.c.bf16 %v833, %v831
        %v4085 = vpack.c.bf16 %v834, %v832
        %v4086 = vpack.c.bf16 %v837, %v835
        %v4087 = vpack.c.bf16 %v838, %v836
        %v4088 = vpack.c.bf16 %v841, %v839
        %v4089 = vpack.c.bf16 %v842, %v840
        %v4090 = vpack.c.bf16 %v845, %v843
        %v4091 = vpack.c.bf16 %v846, %v844
        %v4092 = vpack.c.bf16 %v849, %v847
        %v4093 = vpack.c.bf16 %v850, %v848
        %v4094 = vpack.c.bf16 %v853, %v851
        %v4095 = vpack.c.bf16 %v854, %v852
        %v4096 = vpack.c.bf16 %v857, %v855
        %v4097 = vpack.c.bf16 %v858, %v856
        %v4098 = vpack.c.bf16 %v861, %v859
        %v4099 = vpack.c.bf16 %v862, %v860
        %v4100 = vpack.c.bf16 %v865, %v863
        %v4101 = vpack.c.bf16 %v866, %v864
        %v4102 = vpack.c.bf16 %v869, %v867
        %v4103 = vpack.c.bf16 %v870, %v868
        %v4104 = vpack.c.bf16 %v873, %v871
        %v4105 = vpack.c.bf16 %v874, %v872
        %v4128 = vunpack.c.l.b16 %v4051
        %v4129 = vunpack.c.l.b16 %v4052
        %v4130 = vunpack.c.l.b16 %v4053
        %v4131 = vunpack.c.l.b16 %v4054
        %v4132 = vunpack.c.l.b16 %v4055
        %v4133 = vunpack.c.l.b16 %v4056
        %v4134 = vunpack.c.l.b16 %v4057
        %v4135 = vunpack.c.l.b16 %v4058
        %v4136 = vunpack.c.l.b16 %v4059
        %v4137 = vunpack.c.l.b16 %v4060
        %v4138 = vunpack.c.l.b16 %v4061
        %v4139 = vunpack.c.l.b16 %v4062
        %v4140 = vunpack.c.l.b16 %v4063
        %v4141 = vunpack.c.l.b16 %v4064
        %v4142 = vunpack.c.l.b16 %v4065
        %v4143 = vunpack.c.l.b16 %v4066
        %v4144 = vunpack.c.l.b16 %v4067
        %v4145 = vunpack.c.l.b16 %v4068
        %v4146 = vunpack.c.l.b16 %v4069
        %v4147 = vunpack.c.l.b16 %v4070
        %v4148 = vunpack.c.l.b16 %v4071
        %v4149 = vunpack.c.l.b16 %v4072
        %v4150 = vpack.c.b16 %v4129, %v4128
        %v4151 = vpack.c.b16 %v4131, %v4130
        %v4152 = vpack.c.b16 %v4133, %v4132
        %v4153 = vpack.c.b16 %v4135, %v4134
        %v4154 = vpack.c.b16 %v4137, %v4136
        %v4155 = vpack.c.b16 %v4139, %v4138
        %v4156 = vpack.c.b16 %v4141, %v4140
        %v4157 = vpack.c.b16 %v4143, %v4142
        %v4158 = vpack.c.b16 %v4145, %v4144
        %v4159 = vpack.c.b16 %v4147, %v4146
        %v4160 = vpack.c.b16 %v4149, %v4148
        %v4173 = vsel %vm1007, %v4085, 0
        %v4176 = vsel %vm1007, %v4087, 0
        %v4179 = vsel %vm1007, %v4089, 0
        %v4182 = vsel %vm1007, %v4091, 0
        %v4185 = vsel %vm1007, %v4093, 0
        %v4188 = vsel %vm1007, %v4095, 0
        %v4191 = vsel %vm1007, %v4097, 0
        %v4194 = vsel %vm1007, %v4099, 0
        %v4197 = vsel %vm1007, %v4101, 0
        %v4200 = vsel %vm1007, %v4103, 0
        %v4203 = vsel %vm1007, %v4105, 0
        %4205 = vmatprep.subr.bf16.mxu0 0
        %4206 = vmatpush1.bf16.msra.mxu0 %v4150
        %4207 = vmatprep.subr.bf16.mxu0 0
        %4208 = vmatpush1.bf16.msra.mxu0 %v4151
        %4209 = vmatprep.subr.bf16.mxu0 0
        %4210 = vmatpush1.bf16.msra.mxu0 %v4152
        %4211 = vmatprep.subr.bf16.mxu0 0
        %4212 = vmatpush1.bf16.msra.mxu0 %v4153
        %4213 = vmatprep.subr.bf16.mxu0 0
        %4214 = vmatpush1.bf16.msra.mxu0 %v4154
        %4215 = vmatprep.subr.bf16.mxu0 0
        %4216 = vmatpush1.bf16.msra.mxu0 %v4155
        %4217 = vmatprep.subr.bf16.mxu0 0
        %4218 = vmatpush1.bf16.msra.mxu0 %v4156
        %4219 = vmatprep.subr.bf16.mxu0 0
        %4220 = vmatpush1.bf16.msra.mxu0 %v4157
        %4221 = vmatprep.subr.bf16.mxu0 0
        %4222 = vmatpush1.bf16.msra.mxu0 %v4158
        %4223 = vmatprep.subr.bf16.mxu0 0
        %4224 = vmatpush1.bf16.msra.mxu0 %v4159
        %4225 = vmatprep.subr.bf16.mxu0 0
        %4226 = vmatpush1.bf16.msra.mxu0 %v4160
        %4227 = vmatprep.subr.bf16.mxu0 0
        %4228 = vmatpush1.bf16.msra.mxu0 0
        %4229 = vmatprep.subr.bf16.mxu0 0
        %4230 = vmatpush1.bf16.msra.mxu0 0
        %4231 = vmatprep.subr.bf16.mxu0 0
        %4232 = vmatpush1.bf16.msra.mxu0 0
        %4233 = vmatprep.subr.bf16.mxu0 0
        %4234 = vmatpush1.bf16.msra.mxu0 0
        %4235 = vmatprep.subr.bf16.mxu0 0
        %4236 = vmatpush1.bf16.msra.mxu0 0
        %4237 = vmatprep.mubr.bf16.mxu0 %v4173
        %4238 = vmatmul.mubr.bf16.gmra.mrb[0].mxu0 %v4084
        %v4239 = vpop.f32.mrb[0].mxu0
        %v4240 = vadd.f32 0.0, %v4239
        %v4241 = vpop.f32.mrb[0].mxu0
        %v4242 = vpop.f32.mrb[0].mxu0
        %v4243 = vadd.f32 0.0, %v4242
        %v4244 = vpop.f32.mrb[0].mxu0
        %4245 = vmatprep.mubr.bf16.mxu0 %v4176
        %4246 = vmatmul.mubr.bf16.gmra.mrb[0].mxu0 %v4086
        %v4247 = vpop.f32.mrb[0].mxu0
        %v4248 = vadd.f32 0.0, %v4247
        %v4249 = vpop.f32.mrb[0].mxu0
        %v4250 = vpop.f32.mrb[0].mxu0
        %v4251 = vadd.f32 0.0, %v4250
        %v4252 = vpop.f32.mrb[0].mxu0
        %4253 = vmatprep.mubr.bf16.mxu0 %v4179
        %4254 = vmatmul.mubr.bf16.gmra.mrb[0].mxu0 %v4088
        %v4255 = vpop.f32.mrb[0].mxu0
        %v4256 = vadd.f32 0.0, %v4255
        %v4257 = vpop.f32.mrb[0].mxu0
        %v4258 = vpop.f32.mrb[0].mxu0
        %v4259 = vadd.f32 0.0, %v4258
        %v4260 = vpop.f32.mrb[0].mxu0
        %4261 = vmatprep.mubr.bf16.mxu0 %v4182
        %4262 = vmatmul.mubr.bf16.gmra.mrb[0].mxu0 %v4090
        %v4263 = vpop.f32.mrb[0].mxu0
        %v4264 = vadd.f32 0.0, %v4263
        %v4265 = vpop.f32.mrb[0].mxu0
        %v4266 = vpop.f32.mrb[0].mxu0
        %v4267 = vadd.f32 0.0, %v4266
        %v4268 = vpop.f32.mrb[0].mxu0
        %4269 = vmatprep.mubr.bf16.mxu0 %v4185
        %4270 = vmatmul.mubr.bf16.gmra.mrb[0].mxu0 %v4092
        %v4271 = vpop.f32.mrb[0].mxu0
        %v4272 = vadd.f32 0.0, %v4271
        %v4273 = vpop.f32.mrb[0].mxu0
        %v4274 = vpop.f32.mrb[0].mxu0
        %v4275 = vadd.f32 0.0, %v4274
        %v4276 = vpop.f32.mrb[0].mxu0
        %4277 = vmatprep.mubr.bf16.mxu0 %v4188
        %4278 = vmatmul.mubr.bf16.gmra.mrb[0].mxu0 %v4094
        %v4279 = vpop.f32.mrb[0].mxu0
        %v4280 = vadd.f32 0.0, %v4279
        %v4281 = vpop.f32.mrb[0].mxu0
        %v4282 = vpop.f32.mrb[0].mxu0
        %v4283 = vadd.f32 0.0, %v4282
        %v4284 = vpop.f32.mrb[0].mxu0
        %4285 = vmatprep.mubr.bf16.mxu0 %v4191
        %4286 = vmatmul.mubr.bf16.gmra.mrb[0].mxu0 %v4096
        %v4287 = vpop.f32.mrb[0].mxu0
        %v4288 = vadd.f32 0.0, %v4287
        %v4289 = vpop.f32.mrb[0].mxu0
        %v4290 = vpop.f32.mrb[0].mxu0
        %v4291 = vadd.f32 0.0, %v4290
        %v4292 = vpop.f32.mrb[0].mxu0
        %4293 = vmatprep.mubr.bf16.mxu0 %v4194
        %4294 = vmatmul.mubr.bf16.gmra.mrb[0].mxu0 %v4098
        %v4295 = vpop.f32.mrb[0].mxu0
        %v4296 = vadd.f32 0.0, %v4295
        %v4297 = vpop.f32.mrb[0].mxu0
        %v4298 = vpop.f32.mrb[0].mxu0
        %v4299 = vadd.f32 0.0, %v4298
        %v4300 = vpop.f32.mrb[0].mxu0
        %4301 = vmatprep.mubr.bf16.mxu0 %v4197
        %4302 = vmatmul.mubr.bf16.gmra.mrb[0].mxu0 %v4100
        %v4303 = vpop.f32.mrb[0].mxu0
        %v4304 = vadd.f32 0.0, %v4303
        %v4305 = vpop.f32.mrb[0].mxu0
        %v4306 = vpop.f32.mrb[0].mxu0
        %v4307 = vadd.f32 0.0, %v4306
        %v4308 = vpop.f32.mrb[0].mxu0
        %4309 = vmatprep.mubr.bf16.mxu0 %v4200
        %4310 = vmatmul.mubr.bf16.gmra.mrb[0].mxu0 %v4102
        %v4311 = vpop.f32.mrb[0].mxu0
        %v4312 = vadd.f32 0.0, %v4311
        %v4313 = vpop.f32.mrb[0].mxu0
        %v4314 = vpop.f32.mrb[0].mxu0
        %v4315 = vadd.f32 0.0, %v4314
        %v4316 = vpop.f32.mrb[0].mxu0
        %4317 = vmatprep.mubr.bf16.mxu0 %v4203
        %4318 = vmatmul.mubr.bf16.gmra.mrb[0].mxu0 %v4104
        %v4319 = vpop.f32.mrb[0].mxu0
        %v4320 = vadd.f32 0.0, %v4319
        %v4321 = vpop.f32.mrb[0].mxu0
        %v4322 = vpop.f32.mrb[0].mxu0
        %v4323 = vadd.f32 0.0, %v4322
        %v4324 = vpop.f32.mrb[0].mxu0
        %4325 = vdwg.mxu0
        %v4326 = vpack.c.bf16 %v4243, %v4240
        %v4327 = vpack.c.bf16 %v4251, %v4248
        %v4328 = vpack.c.bf16 %v4259, %v4256
        %v4329 = vpack.c.bf16 %v4267, %v4264
        %v4330 = vpack.c.bf16 %v4275, %v4272
        %v4331 = vpack.c.bf16 %v4283, %v4280
        %v4332 = vpack.c.bf16 %v4291, %v4288
        %v4333 = vpack.c.bf16 %v4299, %v4296
        %v4334 = vpack.c.bf16 %v4307, %v4304
        %v4335 = vpack.c.bf16 %v4315, %v4312
        %v4336 = vpack.c.bf16 %v4323, %v4320
        %v4348 = vunpack.c.l.b16 %v4073
        %v4349 = vunpack.c.h.b16 %v4073
        %v4350 = vunpack.c.l.b16 %v4074
        %v4351 = vunpack.c.h.b16 %v4074
        %v4352 = vunpack.c.l.b16 %v4075
        %v4353 = vunpack.c.h.b16 %v4075
        %v4354 = vunpack.c.l.b16 %v4076
        %v4355 = vunpack.c.h.b16 %v4076
        %v4356 = vunpack.c.l.b16 %v4077
        %v4357 = vunpack.c.h.b16 %v4077
        %v4358 = vunpack.c.l.b16 %v4078
        %v4359 = vunpack.c.h.b16 %v4078
        %v4360 = vunpack.c.l.b16 %v4079
        %v4361 = vunpack.c.h.b16 %v4079
        %v4362 = vunpack.c.l.b16 %v4080
        %v4363 = vunpack.c.h.b16 %v4080
        %v4364 = vunpack.c.l.b16 %v4081
        %v4365 = vunpack.c.h.b16 %v4081
        %v4366 = vunpack.c.l.b16 %v4082
        %v4367 = vunpack.c.h.b16 %v4082
        %v4368 = vunpack.c.l.b16 %v4083
        %v4369 = vunpack.c.h.b16 %v4083
        %v4370 = vpack.c.b16 %v4350, %v4348
        %v4371 = vpack.c.b16 %v4351, %v4349
        %v4372 = vpack.c.b16 %v4354, %v4352
        %v4373 = vpack.c.b16 %v4355, %v4353
        %v4374 = vpack.c.b16 %v4358, %v4356
        %v4375 = vpack.c.b16 %v4359, %v4357
        %v4376 = vpack.c.b16 %v4362, %v4360
        %v4377 = vpack.c.b16 %v4363, %v4361
        %v4378 = vpack.c.b16 %v4366, %v4364
        %v4379 = vpack.c.b16 %v4367, %v4365
        %v4380 = vpack.c.b16 %v4368, %v4368
        %v4381 = vpack.c.b16 %v4369, %v4369
        %v4389 = vsel %vm1007, %v4371, 0
        %v4392 = vsel %vm1007, %v4373, 0
        %v4395 = vsel %vm1007, %v4375, 0
        %v4398 = vsel %vm1007, %v4377, 0
        %v4401 = vsel %vm1007, %v4379, 0
        %v4404 = vsel %vm1007, %v4381, 0
        %4406 = vmatprep.subr.bf16.mxu0 0
        %4407 = vmatpush1.bf16.msra.mxu0 %v4326
        %4408 = vmatprep.subr.bf16.mxu0 0
        %4409 = vmatpush1.bf16.msra.mxu0 %v4327
        %4410 = vmatprep.subr.bf16.mxu0 0
        %4411 = vmatpush1.bf16.msra.mxu0 %v4328
        %4412 = vmatprep.subr.bf16.mxu0 0
        %4413 = vmatpush1.bf16.msra.mxu0 %v4329
        %4414 = vmatprep.subr.bf16.mxu0 0
        %4415 = vmatpush1.bf16.msra.mxu0 %v4330
        %4416 = vmatprep.subr.bf16.mxu0 0
        %4417 = vmatpush1.bf16.msra.mxu0 %v4331
        %4418 = vmatprep.subr.bf16.mxu0 0
        %4419 = vmatpush1.bf16.msra.mxu0 %v4332
        %4420 = vmatprep.subr.bf16.mxu0 0
        %4421 = vmatpush1.bf16.msra.mxu0 %v4333
        %4422 = vmatprep.subr.bf16.mxu0 0
        %4423 = vmatpush1.bf16.msra.mxu0 %v4334
        %4424 = vmatprep.subr.bf16.mxu0 0
        %4425 = vmatpush1.bf16.msra.mxu0 %v4335
        %4426 = vmatprep.subr.bf16.mxu0 0
        %4427 = vmatpush1.bf16.msra.mxu0 %v4336
        %4428 = vmatprep.subr.bf16.mxu0 0
        %4429 = vmatpush1.bf16.msra.mxu0 0
        %4430 = vmatprep.subr.bf16.mxu0 0
        %4431 = vmatpush1.bf16.msra.mxu0 0
        %4432 = vmatprep.subr.bf16.mxu0 0
        %4433 = vmatpush1.bf16.msra.mxu0 0
        %4434 = vmatprep.subr.bf16.mxu0 0
        %4435 = vmatpush1.bf16.msra.mxu0 0
        %4436 = vmatprep.subr.bf16.mxu0 0
        %4437 = vmatpush1.bf16.msra.mxu0 0
        %4438 = vmatprep.mubr.bf16.mxu0 %v4389
        %4439 = vmatmul.mubr.bf16.gmra.mrb[0].mxu0 %v4370
        %v4440 = vpop.f32.mrb[0].mxu0
        %v4441 = vadd.f32 0.0, %v4440
        %v4442 = vpop.f32.mrb[0].mxu0
        %v4443 = vpop.f32.mrb[0].mxu0
        %v4444 = vadd.f32 0.0, %v4443
        %v4445 = vpop.f32.mrb[0].mxu0
        %4446 = vmatprep.mubr.bf16.mxu0 %v4392
        %4447 = vmatmul.mubr.bf16.gmra.mrb[0].mxu0 %v4372
        %v4448 = vpop.f32.mrb[0].mxu0
        %v4449 = vadd.f32 0.0, %v4448
        %v4450 = vpop.f32.mrb[0].mxu0
        %v4451 = vpop.f32.mrb[0].mxu0
        %v4452 = vadd.f32 0.0, %v4451
        %v4453 = vpop.f32.mrb[0].mxu0
        %4454 = vmatprep.mubr.bf16.mxu0 %v4395
        %4455 = vmatmul.mubr.bf16.gmra.mrb[0].mxu0 %v4374
        %v4456 = vpop.f32.mrb[0].mxu0
        %v4457 = vadd.f32 0.0, %v4456
        %v4458 = vpop.f32.mrb[0].mxu0
        %v4459 = vpop.f32.mrb[0].mxu0
        %v4460 = vadd.f32 0.0, %v4459
        %v4461 = vpop.f32.mrb[0].mxu0
        %4462 = vmatprep.mubr.bf16.mxu0 %v4398
        %4463 = vmatmul.mubr.bf16.gmra.mrb[0].mxu0 %v4376
        %v4464 = vpop.f32.mrb[0].mxu0
        %v4465 = vadd.f32 0.0, %v4464
        %v4466 = vpop.f32.mrb[0].mxu0
        %v4467 = vpop.f32.mrb[0].mxu0
        %v4468 = vadd.f32 0.0, %v4467
        %v4469 = vpop.f32.mrb[0].mxu0
        %4470 = vmatprep.mubr.bf16.mxu0 %v4401
        %4471 = vmatmul.mubr.bf16.gmra.mrb[0].mxu0 %v4378
        %v4472 = vpop.f32.mrb[0].mxu0
        %v4473 = vadd.f32 0.0, %v4472
        %v4474 = vpop.f32.mrb[0].mxu0
        %v4475 = vpop.f32.mrb[0].mxu0
        %v4476 = vadd.f32 0.0, %v4475
        %v4477 = vpop.f32.mrb[0].mxu0
        %4478 = vmatprep.mubr.bf16.mxu0 %v4404
        %4479 = vmatmul.mubr.bf16.gmra.mrb[0].mxu0 %v4380
        %v4480 = vpop.f32.mrb[0].mxu0
        %v4481 = vadd.f32 0.0, %v4480
        %v4482 = vpop.f32.mrb[0].mxu0
        %v4483 = vpop.f32.mrb[0].mxu0
        %v4484 = vpop.f32.mrb[0].mxu0
        %4485 = vdwg.mxu0
        %v4486 = vpack.c.bf16 %v877, %v875
        %v4487 = vpack.c.bf16 %v878, %v876
        %v4488 = vpack.c.bf16 %v881, %v879
        %v4489 = vpack.c.bf16 %v882, %v880
        %v4490 = vpack.c.bf16 %v885, %v883
        %v4491 = vpack.c.bf16 %v886, %v884
        %v4492 = vpack.c.bf16 %v889, %v887
        %v4493 = vpack.c.bf16 %v890, %v888
        %v4494 = vpack.c.bf16 %v893, %v891
        %v4495 = vpack.c.bf16 %v894, %v892
        %v4496 = vpack.c.bf16 %v897, %v895
        %v4497 = vpack.c.bf16 %v898, %v896
        %v4498 = vpack.c.bf16 %v901, %v899
        %v4499 = vpack.c.bf16 %v902, %v900
        %v4500 = vpack.c.bf16 %v905, %v903
        %v4501 = vpack.c.bf16 %v906, %v904
        %v4502 = vpack.c.bf16 %v909, %v907
        %v4503 = vpack.c.bf16 %v910, %v908
        %v4504 = vpack.c.bf16 %v913, %v911
        %v4505 = vpack.c.bf16 %v914, %v912
        %v4506 = vpack.c.bf16 %v917, %v915
        %v4507 = vpack.c.bf16 %v918, %v916
        %v4509 = vsel %vm1007, %v4487, 0
        %v4512 = vsel %vm1007, %v4489, 0
        %v4515 = vsel %vm1007, %v4491, 0
        %v4518 = vsel %vm1007, %v4493, 0
        %v4521 = vsel %vm1007, %v4495, 0
        %v4524 = vsel %vm1007, %v4497, 0
        %v4527 = vsel %vm1007, %v4499, 0
        %v4530 = vsel %vm1007, %v4501, 0
        %v4533 = vsel %vm1007, %v4503, 0
        %v4536 = vsel %vm1007, %v4505, 0
        %v4539 = vsel %vm1007, %v4507, 0
        %4541 = vmatprep.subr.bf16.mxu0 0
        %4542 = vmatpush1.bf16.msra.mxu0 %v4150
        %4543 = vmatprep.subr.bf16.mxu0 0
        %4544 = vmatpush1.bf16.msra.mxu0 %v4151
        %4545 = vmatprep.subr.bf16.mxu0 0
        %4546 = vmatpush1.bf16.msra.mxu0 %v4152
        %4547 = vmatprep.subr.bf16.mxu0 0
        %4548 = vmatpush1.bf16.msra.mxu0 %v4153
        %4549 = vmatprep.subr.bf16.mxu0 0
        %4550 = vmatpush1.bf16.msra.mxu0 %v4154
        %4551 = vmatprep.subr.bf16.mxu0 0
        %4552 = vmatpush1.bf16.msra.mxu0 %v4155
        %4553 = vmatprep.subr.bf16.mxu0 0
        %4554 = vmatpush1.bf16.msra.mxu0 %v4156
        %4555 = vmatprep.subr.bf16.mxu0 0
        %4556 = vmatpush1.bf16.msra.mxu0 %v4157
        %4557 = vmatprep.subr.bf16.mxu0 0
        %4558 = vmatpush1.bf16.msra.mxu0 %v4158
        %4559 = vmatprep.subr.bf16.mxu0 0
        %4560 = vmatpush1.bf16.msra.mxu0 %v4159
        %4561 = vmatprep.subr.bf16.mxu0 0
        %4562 = vmatpush1.bf16.msra.mxu0 %v4160
        %4563 = vmatprep.subr.bf16.mxu0 0
        %4564 = vmatpush1.bf16.msra.mxu0 0
        %4565 = vmatprep.subr.bf16.mxu0 0
        %4566 = vmatpush1.bf16.msra.mxu0 0
        %4567 = vmatprep.subr.bf16.mxu0 0
        %4568 = vmatpush1.bf16.msra.mxu0 0
        %4569 = vmatprep.subr.bf16.mxu0 0
        %4570 = vmatpush1.bf16.msra.mxu0 0
        %4571 = vmatprep.subr.bf16.mxu0 0
        %4572 = vmatpush1.bf16.msra.mxu0 0
        %4573 = vmatprep.mubr.bf16.mxu0 %v4509
        %4574 = vmatmul.mubr.bf16.gmra.mrb[0].mxu0 %v4486
        %v4575 = vpop.f32.mrb[0].mxu0
        %v4576 = vadd.f32 0.0, %v4575
        %v4577 = vpop.f32.mrb[0].mxu0
        %v4578 = vpop.f32.mrb[0].mxu0
        %v4579 = vadd.f32 0.0, %v4578
        %v4580 = vpop.f32.mrb[0].mxu0
        %4581 = vmatprep.mubr.bf16.mxu0 %v4512
        %4582 = vmatmul.mubr.bf16.gmra.mrb[0].mxu0 %v4488
        %v4583 = vpop.f32.mrb[0].mxu0
        %v4584 = vadd.f32 0.0, %v4583
        %v4585 = vpop.f32.mrb[0].mxu0
        %v4586 = vpop.f32.mrb[0].mxu0
        %v4587 = vadd.f32 0.0, %v4586
        %v4588 = vpop.f32.mrb[0].mxu0
        %4589 = vmatprep.mubr.bf16.mxu0 %v4515
        %4590 = vmatmul.mubr.bf16.gmra.mrb[0].mxu0 %v4490
        %v4591 = vpop.f32.mrb[0].mxu0
        %v4592 = vadd.f32 0.0, %v4591
        %v4593 = vpop.f32.mrb[0].mxu0
        %v4594 = vpop.f32.mrb[0].mxu0
        %v4595 = vadd.f32 0.0, %v4594
        %v4596 = vpop.f32.mrb[0].mxu0
        %4597 = vmatprep.mubr.bf16.mxu0 %v4518
        %4598 = vmatmul.mubr.bf16.gmra.mrb[0].mxu0 %v4492
        %v4599 = vpop.f32.mrb[0].mxu0
        %v4600 = vadd.f32 0.0, %v4599
        %v4601 = vpop.f32.mrb[0].mxu0
        %v4602 = vpop.f32.mrb[0].mxu0
        %v4603 = vadd.f32 0.0, %v4602
        %v4604 = vpop.f32.mrb[0].mxu0
        %4605 = vmatprep.mubr.bf16.mxu0 %v4521
        %4606 = vmatmul.mubr.bf16.gmra.mrb[0].mxu0 %v4494
        %v4607 = vpop.f32.mrb[0].mxu0
        %v4608 = vadd.f32 0.0, %v4607
        %v4609 = vpop.f32.mrb[0].mxu0
        %v4610 = vpop.f32.mrb[0].mxu0
        %v4611 = vadd.f32 0.0, %v4610
        %v4612 = vpop.f32.mrb[0].mxu0
        %4613 = vmatprep.mubr.bf16.mxu0 %v4524
        %4614 = vmatmul.mubr.bf16.gmra.mrb[0].mxu0 %v4496
        %v4615 = vpop.f32.mrb[0].mxu0
        %v4616 = vadd.f32 0.0, %v4615
        %v4617 = vpop.f32.mrb[0].mxu0
        %v4618 = vpop.f32.mrb[0].mxu0
        %v4619 = vadd.f32 0.0, %v4618
        %v4620 = vpop.f32.mrb[0].mxu0
        %4621 = vmatprep.mubr.bf16.mxu0 %v4527
        %4622 = vmatmul.mubr.bf16.gmra.mrb[0].mxu0 %v4498
        %v4623 = vpop.f32.mrb[0].mxu0
        %v4624 = vadd.f32 0.0, %v4623
        %v4625 = vpop.f32.mrb[0].mxu0
        %v4626 = vpop.f32.mrb[0].mxu0
        %v4627 = vadd.f32 0.0, %v4626
        %v4628 = vpop.f32.mrb[0].mxu0
        %4629 = vmatprep.mubr.bf16.mxu0 %v4530
        %4630 = vmatmul.mubr.bf16.gmra.mrb[0].mxu0 %v4500
        %v4631 = vpop.f32.mrb[0].mxu0
        %v4632 = vadd.f32 0.0, %v4631
        %v4633 = vpop.f32.mrb[0].mxu0
        %v4634 = vpop.f32.mrb[0].mxu0
        %v4635 = vadd.f32 0.0, %v4634
        %v4636 = vpop.f32.mrb[0].mxu0
        %4637 = vmatprep.mubr.bf16.mxu0 %v4533
        %4638 = vmatmul.mubr.bf16.gmra.mrb[0].mxu0 %v4502
        %v4639 = vpop.f32.mrb[0].mxu0
        %v4640 = vadd.f32 0.0, %v4639
        %v4641 = vpop.f32.mrb[0].mxu0
        %v4642 = vpop.f32.mrb[0].mxu0
        %v4643 = vadd.f32 0.0, %v4642
        %v4644 = vpop.f32.mrb[0].mxu0
        %4645 = vmatprep.mubr.bf16.mxu0 %v4536
        %4646 = vmatmul.mubr.bf16.gmra.mrb[0].mxu0 %v4504
        %v4647 = vpop.f32.mrb[0].mxu0
        %v4648 = vadd.f32 0.0, %v4647
        %v4649 = vpop.f32.mrb[0].mxu0
        %v4650 = vpop.f32.mrb[0].mxu0
        %v4651 = vadd.f32 0.0, %v4650
        %v4652 = vpop.f32.mrb[0].mxu0
        %4653 = vmatprep.mubr.bf16.mxu0 %v4539
        %4654 = vmatmul.mubr.bf16.gmra.mrb[0].mxu0 %v4506
        %v4655 = vpop.f32.mrb[0].mxu0
        %v4656 = vadd.f32 0.0, %v4655
        %v4657 = vpop.f32.mrb[0].mxu0
        %v4658 = vpop.f32.mrb[0].mxu0
        %v4659 = vadd.f32 0.0, %v4658
        %v4660 = vpop.f32.mrb[0].mxu0
        %4661 = vdwg.mxu0
        %v4662 = vpack.c.bf16 %v4579, %v4576
        %v4663 = vpack.c.bf16 %v4587, %v4584
        %v4664 = vpack.c.bf16 %v4595, %v4592
        %v4665 = vpack.c.bf16 %v4603, %v4600
        %v4666 = vpack.c.bf16 %v4611, %v4608
        %v4667 = vpack.c.bf16 %v4619, %v4616
        %v4668 = vpack.c.bf16 %v4627, %v4624
        %v4669 = vpack.c.bf16 %v4635, %v4632
        %v4670 = vpack.c.bf16 %v4643, %v4640
        %v4671 = vpack.c.bf16 %v4651, %v4648
        %v4672 = vpack.c.bf16 %v4659, %v4656
        %4673 = vmatprep.subr.bf16.mxu0 0
        %4674 = vmatpush1.bf16.msra.mxu0 %v4662
        %4675 = vmatprep.subr.bf16.mxu0 0
        %4676 = vmatpush1.bf16.msra.mxu0 %v4663
        %4677 = vmatprep.subr.bf16.mxu0 0
        %4678 = vmatpush1.bf16.msra.mxu0 %v4664
        %4679 = vmatprep.subr.bf16.mxu0 0
        %4680 = vmatpush1.bf16.msra.mxu0 %v4665
        %4681 = vmatprep.subr.bf16.mxu0 0
        %4682 = vmatpush1.bf16.msra.mxu0 %v4666
        %4683 = vmatprep.subr.bf16.mxu0 0
        %4684 = vmatpush1.bf16.msra.mxu0 %v4667
        %4685 = vmatprep.subr.bf16.mxu0 0
        %4686 = vmatpush1.bf16.msra.mxu0 %v4668
        %4687 = vmatprep.subr.bf16.mxu0 0
        %4688 = vmatpush1.bf16.msra.mxu0 %v4669
        %4689 = vmatprep.subr.bf16.mxu0 0
        %4690 = vmatpush1.bf16.msra.mxu0 %v4670
        %4691 = vmatprep.subr.bf16.mxu0 0
        %4692 = vmatpush1.bf16.msra.mxu0 %v4671
        %4693 = vmatprep.subr.bf16.mxu0 0
        %4694 = vmatpush1.bf16.msra.mxu0 %v4672
        %4695 = vmatprep.subr.bf16.mxu0 0
        %4696 = vmatpush1.bf16.msra.mxu0 0
        %4697 = vmatprep.subr.bf16.mxu0 0
        %4698 = vmatpush1.bf16.msra.mxu0 0
        %4699 = vmatprep.subr.bf16.mxu0 0
        %4700 = vmatpush1.bf16.msra.mxu0 0
        %4701 = vmatprep.subr.bf16.mxu0 0
        %4702 = vmatpush1.bf16.msra.mxu0 0
        %4703 = vmatprep.subr.bf16.mxu0 0
        %4704 = vmatpush1.bf16.msra.mxu0 0
        %4705 = vmatprep.mubr.bf16.mxu0 %v4389
        %4706 = vmatmul.mubr.bf16.gmra.mrb[0].mxu0 %v4370
        %v4707 = vpop.f32.mrb[0].mxu0
        %v4708 = vadd.f32 0.0, %v4707
        %v4709 = vpop.f32.mrb[0].mxu0
        %v4710 = vpop.f32.mrb[0].mxu0
        %v4711 = vadd.f32 0.0, %v4710
        %v4712 = vpop.f32.mrb[0].mxu0
        %4713 = vmatprep.mubr.bf16.mxu0 %v4392
        %4714 = vmatmul.mubr.bf16.gmra.mrb[0].mxu0 %v4372
        %v4715 = vpop.f32.mrb[0].mxu0
        %v4716 = vadd.f32 0.0, %v4715
        %v4717 = vpop.f32.mrb[0].mxu0
        %v4718 = vpop.f32.mrb[0].mxu0
        %v4719 = vadd.f32 0.0, %v4718
        %v4720 = vpop.f32.mrb[0].mxu0
        %4721 = vmatprep.mubr.bf16.mxu0 %v4395
        %4722 = vmatmul.mubr.bf16.gmra.mrb[0].mxu0 %v4374
        %v4723 = vpop.f32.mrb[0].mxu0
        %v4724 = vadd.f32 0.0, %v4723
        %v4725 = vpop.f32.mrb[0].mxu0
        %v4726 = vpop.f32.mrb[0].mxu0
        %v4727 = vadd.f32 0.0, %v4726
        %v4728 = vpop.f32.mrb[0].mxu0
        %4729 = vmatprep.mubr.bf16.mxu0 %v4398
        %4730 = vmatmul.mubr.bf16.gmra.mrb[0].mxu0 %v4376
        %v4731 = vpop.f32.mrb[0].mxu0
        %v4732 = vadd.f32 0.0, %v4731
        %v4733 = vpop.f32.mrb[0].mxu0
        %v4734 = vpop.f32.mrb[0].mxu0
        %v4735 = vadd.f32 0.0, %v4734
        %v4736 = vpop.f32.mrb[0].mxu0
        %4737 = vmatprep.mubr.bf16.mxu0 %v4401
        %4738 = vmatmul.mubr.bf16.gmra.mrb[0].mxu0 %v4378
        %v4739 = vpop.f32.mrb[0].mxu0
        %v4740 = vadd.f32 0.0, %v4739
        %v4741 = vpop.f32.mrb[0].mxu0
        %v4742 = vpop.f32.mrb[0].mxu0
        %v4743 = vadd.f32 0.0, %v4742
        %v4744 = vpop.f32.mrb[0].mxu0
        %4745 = vmatprep.mubr.bf16.mxu0 %v4404
        %4746 = vmatmul.mubr.bf16.gmra.mrb[0].mxu0 %v4380
        %v4747 = vpop.f32.mrb[0].mxu0
        %v4748 = vadd.f32 0.0, %v4747
        %v4749 = vpop.f32.mrb[0].mxu0
        %v4750 = vpop.f32.mrb[0].mxu0
        %v4751 = vpop.f32.mrb[0].mxu0
        %4752 = vdwg.mxu0
        %v4753 = vld [vmem:[%s3] sm:$0xf]
        %v4754 = vld [vmem:[%s3 + $0x4] sm:$0xf]
        %v4755 = vld [vmem:[%s3 + $0x8] sm:$0xf]
        %v4756 = vld [vmem:[%s3 + $0xc] sm:$0xf]
        %v4757 = vld [vmem:[%s3 + $0x10] sm:$0xf]
        %v4758 = vld [vmem:[%s3 + $0x14] sm:$0xf]
        %v4759 = vld [vmem:[%s3 + $0x18] sm:$0xf]
        %v4760 = vld [vmem:[%s3 + $0x1c] sm:$0xf]
        %v4761 = vld [vmem:[%s3 + $0x20] sm:$0xf]
        %v4762 = vld [vmem:[%s3 + $0x24] sm:$0xf]
        %v4763 = vld [vmem:[%s3 + $0x28] sm:$0xf]
        %v4764 = vld [vmem:[#allocation8] sm:$0xf]
        %v4765 = vld [vmem:[#allocation8 + $0x4] sm:$0xf]
        %v4766 = vld [vmem:[#allocation8 + $0x8] sm:$0xf]
        %v4767 = vld [vmem:[#allocation8 + $0xc] sm:$0xf]
        %v4768 = vld [vmem:[#allocation8 + $0x10] sm:$0xf]
        %v4769 = vld [vmem:[#allocation8 + $0x14] sm:$0xf]
        %v4770 = vld [vmem:[#allocation8 + $0x18] sm:$0xf]
        %v4771 = vld [vmem:[#allocation8 + $0x1c] sm:$0xf]
        %v4772 = vld [vmem:[#allocation8 + $0x20] sm:$0xf]
        %v4773 = vld [vmem:[#allocation8 + $0x24] sm:$0x7]
        %v4774 = vsub.f32 %v4441, 0.5
        %v4775 = vsub.f32 %v4444, 0.5
        %v4776 = vsub.f32 %v4449, 0.5
        %v4777 = vsub.f32 %v4452, 0.5
        %v4778 = vsub.f32 %v4457, 0.5
        %v4779 = vsub.f32 %v4460, 0.5
        %v4780 = vsub.f32 %v4465, 0.5
        %v4781 = vsub.f32 %v4468, 0.5
        %v4782 = vsub.f32 %v4473, 0.5
        %v4783 = vsub.f32 %v4476, 0.5
        %v4784 = vsub.f32 %v4481, 0.5
        %v4785 = vsub.f32 %v4708, 0.5
        %v4786 = vsub.f32 %v4711, 0.5
        %v4787 = vsub.f32 %v4716, 0.5
        %v4788 = vsub.f32 %v4719, 0.5
        %v4789 = vsub.f32 %v4724, 0.5
        %v4790 = vsub.f32 %v4727, 0.5
        %v4791 = vsub.f32 %v4732, 0.5
        %v4792 = vsub.f32 %v4735, 0.5
        %v4793 = vsub.f32 %v4740, 0.5
        %v4794 = vsub.f32 %v4743, 0.5
        %v4795 = vsub.f32 %v4748, 0.5
        %v4796 = vpack.c.bf16 %v4775, %v4774
        %v4797 = vpack.c.bf16 %v4777, %v4776
        %v4798 = vpack.c.bf16 %v4779, %v4778
        %v4799 = vpack.c.bf16 %v4781, %v4780
        %v4800 = vpack.c.bf16 %v4783, %v4782
        %v4801 = vpack.c.bf16 %v4784, %v4784
        %v4813 = vunpack.c.l.b16 %v4753
        %v4814 = vunpack.c.l.b16 %v4754
        %v4815 = vunpack.c.l.b16 %v4755
        %v4816 = vunpack.c.l.b16 %v4756
        %v4817 = vunpack.c.l.b16 %v4757
        %v4818 = vunpack.c.l.b16 %v4758
        %v4819 = vunpack.c.l.b16 %v4759
        %v4820 = vunpack.c.l.b16 %v4760
        %v4821 = vunpack.c.l.b16 %v4761
        %v4822 = vunpack.c.l.b16 %v4762
        %v4823 = vunpack.c.l.b16 %v4763
        %v4824 = vpack.c.b16 %v4814, %v4813
        %v4825 = vpack.c.b16 %v4816, %v4815
        %v4826 = vpack.c.b16 %v4818, %v4817
        %v4827 = vpack.c.b16 %v4820, %v4819
        %v4828 = vpack.c.b16 %v4822, %v4821
        %v4829 = vpack.c.b16 %v4823, %v4823
        %vm4835 = vcmask 719872
        %v4837 = vsel %vm4835, %v4796, 0
        %v4840 = vsel %vm4835, %v4797, 0
        %v4843 = vsel %vm4835, %v4798, 0
        %v4846 = vsel %vm4835, %v4799, 0
        %v4849 = vsel %vm4835, %v4800, 0
        %v4852 = vsel %vm4835, %v4801, 0
        %vm4854 = vcmask 1043456
        %v4856 = vsel %vm4854, %v4829, 0
        %4858 = vmatprep.subr.bf16.mxu0 0
        %4859 = vmatpush1.bf16.msra.mxu0 %v4824
        %4860 = vmatprep.subr.bf16.mxu0 0
        %4861 = vmatpush1.bf16.msra.mxu0 %v4825
        %4862 = vmatprep.subr.bf16.mxu0 0
        %4863 = vmatpush1.bf16.msra.mxu0 %v4826
        %4864 = vmatprep.subr.bf16.mxu0 0
        %4865 = vmatpush1.bf16.msra.mxu0 %v4827
        %4866 = vmatprep.subr.bf16.mxu0 0
        %4867 = vmatpush1.bf16.msra.mxu0 %v4828
        %4868 = vmatprep.subr.bf16.mxu0 0
        %4869 = vmatpush1.bf16.msra.mxu0 %v4856
        %4870 = vmatprep.subr.bf16.mxu0 0
        %4871 = vmatpush1.bf16.msra.mxu0 0
        %4872 = vmatprep.subr.bf16.mxu0 0
        %4873 = vmatpush1.bf16.msra.mxu0 0
        %4874 = vmatprep.subr.bf16.mxu0 0
        %4875 = vmatpush1.bf16.msra.mxu0 0
        %4876 = vmatprep.subr.bf16.mxu0 0
        %4877 = vmatpush1.bf16.msra.mxu0 0
        %4878 = vmatprep.subr.bf16.mxu0 0
        %4879 = vmatpush1.bf16.msra.mxu0 0
        %4880 = vmatprep.subr.bf16.mxu0 0
        %4881 = vmatpush1.bf16.msra.mxu0 0
        %4882 = vmatprep.subr.bf16.mxu0 0
        %4883 = vmatpush1.bf16.msra.mxu0 0
        %4884 = vmatprep.subr.bf16.mxu0 0
        %4885 = vmatpush1.bf16.msra.mxu0 0
        %4886 = vmatprep.subr.bf16.mxu0 0
        %4887 = vmatpush1.bf16.msra.mxu0 0
        %4888 = vmatprep.subr.bf16.mxu0 0
        %4889 = vmatpush1.bf16.msra.mxu0 0
        %4890 = vmatprep.mubr.bf16.mxu0 0
        %4891 = vmatmul.mubr.bf16.gmra.mrb[0].mxu0 %v4837
        %v4892 = vpop.f32.mrb[0].mxu0
        %v4893 = vadd.f32 0.0, %v4892
        %v4894 = vpop.f32.mrb[0].mxu0
        %v4895 = vpop.f32.mrb[0].mxu0
        %v4896 = vadd.f32 0.0, %v4895
        %v4897 = vpop.f32.mrb[0].mxu0
        %4898 = vmatprep.mubr.bf16.mxu0 0
        %4899 = vmatmul.mubr.bf16.gmra.mrb[0].mxu0 %v4840
        %v4900 = vpop.f32.mrb[0].mxu0
        %v4901 = vadd.f32 0.0, %v4900
        %v4902 = vpop.f32.mrb[0].mxu0
        %v4903 = vpop.f32.mrb[0].mxu0
        %v4904 = vadd.f32 0.0, %v4903
        %v4905 = vpop.f32.mrb[0].mxu0
        %4906 = vmatprep.mubr.bf16.mxu0 0
        %4907 = vmatmul.mubr.bf16.gmra.mrb[0].mxu0 %v4843
        %v4908 = vpop.f32.mrb[0].mxu0
        %v4909 = vadd.f32 0.0, %v4908
        %v4910 = vpop.f32.mrb[0].mxu0
        %v4911 = vpop.f32.mrb[0].mxu0
        %v4912 = vadd.f32 0.0, %v4911
        %v4913 = vpop.f32.mrb[0].mxu0
        %4914 = vmatprep.mubr.bf16.mxu0 0
        %4915 = vmatmul.mubr.bf16.gmra.mrb[0].mxu0 %v4846
        %v4916 = vpop.f32.mrb[0].mxu0
        %v4917 = vadd.f32 0.0, %v4916
        %v4918 = vpop.f32.mrb[0].mxu0
        %v4919 = vpop.f32.mrb[0].mxu0
        %v4920 = vadd.f32 0.0, %v4919
        %v4921 = vpop.f32.mrb[0].mxu0
        %4922 = vmatprep.mubr.bf16.mxu0 0
        %4923 = vmatmul.mubr.bf16.gmra.mrb[0].mxu0 %v4849
        %v4924 = vpop.f32.mrb[0].mxu0
        %v4925 = vadd.f32 0.0, %v4924
        %v4926 = vpop.f32.mrb[0].mxu0
        %v4927 = vpop.f32.mrb[0].mxu0
        %v4928 = vadd.f32 0.0, %v4927
        %v4929 = vpop.f32.mrb[0].mxu0
        %4930 = vmatprep.mubr.bf16.mxu0 0
        %4931 = vmatmul.mubr.bf16.gmra.mrb[0].mxu0 %v4852
        %v4932 = vpop.f32.mrb[0].mxu0
        %v4933 = vadd.f32 0.0, %v4932
        %v4934 = vpop.f32.mrb[0].mxu0
        %v4935 = vpop.f32.mrb[0].mxu0
        %v4936 = vpop.f32.mrb[0].mxu0
        %4937 = vdwg.mxu0
        %v4938 = vpack.c.bf16 %v4896, %v4893
        %v4939 = vpack.c.bf16 %v4904, %v4901
        %v4940 = vpack.c.bf16 %v4912, %v4909
        %v4941 = vpack.c.bf16 %v4920, %v4917
        %v4942 = vpack.c.bf16 %v4928, %v4925
        %v4943 = vpack.c.bf16 %v4933, %v4933
        %v4954 = vunpack.c.l.b16 %v4764
        %v4955 = vunpack.c.l.b16 %v4765
        %v4956 = vunpack.c.l.b16 %v4766
        %v4957 = vunpack.c.l.b16 %v4767
        %v4958 = vunpack.c.l.b16 %v4768
        %v4959 = vunpack.c.l.b16 %v4769
        %v4960 = vunpack.c.l.b16 %v4770
        %v4961 = vunpack.c.l.b16 %v4771
        %v4962 = vunpack.c.l.b16 %v4772
        %v4963 = vunpack.c.l.b16 %v4773
        %v4964 = vpack.c.b16 %v4955, %v4954
        %v4965 = vpack.c.b16 %v4957, %v4956
        %v4966 = vpack.c.b16 %v4959, %v4958
        %v4967 = vpack.c.b16 %v4961, %v4960
        %v4968 = vpack.c.b16 %v4963, %v4962
        %v4970 = vsel %vm4835, %v4964, 0
        %v4973 = vsel %vm4835, %v4965, 0
        %v4976 = vsel %vm4835, %v4966, 0
        %v4979 = vsel %vm4835, %v4967, 0
        %v4982 = vsel %vm4835, %v4968, 0
        %v4985 = vsel %vm4854, %v4943, 0
        %4987 = vmatprep.subr.bf16.mxu0 0
        %4988 = vmatpush1.bf16.msra.mxu0 %v4938
        %4989 = vmatprep.subr.bf16.mxu0 0
        %4990 = vmatpush1.bf16.msra.mxu0 %v4939
        %4991 = vmatprep.subr.bf16.mxu0 0
        %4992 = vmatpush1.bf16.msra.mxu0 %v4940
        %4993 = vmatprep.subr.bf16.mxu0 0
        %4994 = vmatpush1.bf16.msra.mxu0 %v4941
        %4995 = vmatprep.subr.bf16.mxu0 0
        %4996 = vmatpush1.bf16.msra.mxu0 %v4942
        %4997 = vmatprep.subr.bf16.mxu0 0
        %4998 = vmatpush1.bf16.msra.mxu0 %v4985
        %4999 = vmatprep.subr.bf16.mxu0 0
        %5000 = vmatpush1.bf16.msra.mxu0 0
        %5001 = vmatprep.subr.bf16.mxu0 0
        %5002 = vmatpush1.bf16.msra.mxu0 0
        %5003 = vmatprep.subr.bf16.mxu0 0
        %5004 = vmatpush1.bf16.msra.mxu0 0
        %5005 = vmatprep.subr.bf16.mxu0 0
        %5006 = vmatpush1.bf16.msra.mxu0 0
        %5007 = vmatprep.subr.bf16.mxu0 0
        %5008 = vmatpush1.bf16.msra.mxu0 0
        %5009 = vmatprep.subr.bf16.mxu0 0
        %5010 = vmatpush1.bf16.msra.mxu0 0
        %5011 = vmatprep.subr.bf16.mxu0 0
        %5012 = vmatpush1.bf16.msra.mxu0 0
        %5013 = vmatprep.subr.bf16.mxu0 0
        %5014 = vmatpush1.bf16.msra.mxu0 0
        %5015 = vmatprep.subr.bf16.mxu0 0
        %5016 = vmatpush1.bf16.msra.mxu0 0
        %5017 = vmatprep.subr.bf16.mxu0 0
        %5018 = vmatpush1.bf16.msra.mxu0 0
        %5019 = vmatprep.mubr.bf16.mxu0 0
        %5020 = vmatmul.mubr.bf16.gmra.mrb[0].mxu0 %v4970
        %v5021 = vpop.f32.mrb[0].mxu0
        %v5022 = vadd.f32 0.0, %v5021
        %v5023 = vpop.f32.mrb[0].mxu0
        %v5024 = vpop.f32.mrb[0].mxu0
        %v5025 = vadd.f32 0.0, %v5024
        %v5026 = vpop.f32.mrb[0].mxu0
        %5027 = vmatprep.mubr.bf16.mxu0 0
        %5028 = vmatmul.mubr.bf16.gmra.mrb[0].mxu0 %v4973
        %v5029 = vpop.f32.mrb[0].mxu0
        %v5030 = vadd.f32 0.0, %v5029
        %v5031 = vpop.f32.mrb[0].mxu0
        %v5032 = vpop.f32.mrb[0].mxu0
        %v5033 = vadd.f32 0.0, %v5032
        %v5034 = vpop.f32.mrb[0].mxu0
        %5035 = vmatprep.mubr.bf16.mxu0 0
        %5036 = vmatmul.mubr.bf16.gmra.mrb[0].mxu0 %v4976
        %v5037 = vpop.f32.mrb[0].mxu0
        %v5038 = vadd.f32 0.0, %v5037
        %v5039 = vpop.f32.mrb[0].mxu0
        %v5040 = vpop.f32.mrb[0].mxu0
        %v5041 = vadd.f32 0.0, %v5040
        %v5042 = vpop.f32.mrb[0].mxu0
        %5043 = vmatprep.mubr.bf16.mxu0 0
        %5044 = vmatmul.mubr.bf16.gmra.mrb[0].mxu0 %v4979
        %v5045 = vpop.f32.mrb[0].mxu0
        %v5046 = vadd.f32 0.0, %v5045
        %v5047 = vpop.f32.mrb[0].mxu0
        %v5048 = vpop.f32.mrb[0].mxu0
        %v5049 = vadd.f32 0.0, %v5048
        %v5050 = vpop.f32.mrb[0].mxu0
        %5051 = vmatprep.mubr.bf16.mxu0 0
        %5052 = vmatmul.mubr.bf16.gmra.mrb[0].mxu0 %v4982
        %v5053 = vpop.f32.mrb[0].mxu0
        %v5054 = vadd.f32 0.0, %v5053
        %v5055 = vpop.f32.mrb[0].mxu0
        %v5056 = vpop.f32.mrb[0].mxu0
        %v5057 = vadd.f32 0.0, %v5056
        %v5058 = vpop.f32.mrb[0].mxu0
        %5059 = vdwg.mxu0
        %v5060 = vpack.c.bf16 %v4786, %v4785
        %v5061 = vpack.c.bf16 %v4788, %v4787
        %v5062 = vpack.c.bf16 %v4790, %v4789
        %v5063 = vpack.c.bf16 %v4792, %v4791
        %v5064 = vpack.c.bf16 %v4794, %v4793
        %v5065 = vpack.c.bf16 %v4795, %v4795
        %v5067 = vsel %vm4835, %v5060, 0
        %v5070 = vsel %vm4835, %v5061, 0
        %v5073 = vsel %vm4835, %v5062, 0
        %v5076 = vsel %vm4835, %v5063, 0
        %v5079 = vsel %vm4835, %v5064, 0
        %v5082 = vsel %vm4835, %v5065, 0
        %5084 = vmatprep.subr.bf16.mxu0 0
        %5085 = vmatpush1.bf16.msra.mxu0 %v4824
        %5086 = vmatprep.subr.bf16.mxu0 0
        %5087 = vmatpush1.bf16.msra.mxu0 %v4825
        %5088 = vmatprep.subr.bf16.mxu0 0
        %5089 = vmatpush1.bf16.msra.mxu0 %v4826
        %5090 = vmatprep.subr.bf16.mxu0 0
        %5091 = vmatpush1.bf16.msra.mxu0 %v4827
        %5092 = vmatprep.subr.bf16.mxu0 0
        %5093 = vmatpush1.bf16.msra.mxu0 %v4828
        %5094 = vmatprep.subr.bf16.mxu0 0
        %5095 = vmatpush1.bf16.msra.mxu0 %v4856
        %5096 = vmatprep.subr.bf16.mxu0 0
        %5097 = vmatpush1.bf16.msra.mxu0 0
        %5098 = vmatprep.subr.bf16.mxu0 0
        %5099 = vmatpush1.bf16.msra.mxu0 0
        %5100 = vmatprep.subr.bf16.mxu0 0
        %5101 = vmatpush1.bf16.msra.mxu0 0
        %5102 = vmatprep.subr.bf16.mxu0 0
        %5103 = vmatpush1.bf16.msra.mxu0 0
        %5104 = vmatprep.subr.bf16.mxu0 0
        %5105 = vmatpush1.bf16.msra.mxu0 0
        %5106 = vmatprep.subr.bf16.mxu0 0
        %5107 = vmatpush1.bf16.msra.mxu0 0
        %5108 = vmatprep.subr.bf16.mxu0 0
        %5109 = vmatpush1.bf16.msra.mxu0 0
        %5110 = vmatprep.subr.bf16.mxu0 0
        %5111 = vmatpush1.bf16.msra.mxu0 0
        %5112 = vmatprep.subr.bf16.mxu0 0
        %5113 = vmatpush1.bf16.msra.mxu0 0
        %5114 = vmatprep.subr.bf16.mxu0 0
        %5115 = vmatpush1.bf16.msra.mxu0 0
        %5116 = vmatprep.mubr.bf16.mxu0 0
        %5117 = vmatmul.mubr.bf16.gmra.mrb[0].mxu0 %v5067
        %v5118 = vpop.f32.mrb[0].mxu0
        %v5119 = vadd.f32 0.0, %v5118
        %v5120 = vpop.f32.mrb[0].mxu0
        %v5121 = vpop.f32.mrb[0].mxu0
        %v5122 = vadd.f32 0.0, %v5121
        %v5123 = vpop.f32.mrb[0].mxu0
        %5124 = vmatprep.mubr.bf16.mxu0 0
        %5125 = vmatmul.mubr.bf16.gmra.mrb[0].mxu0 %v5070
        %v5126 = vpop.f32.mrb[0].mxu0
        %v5127 = vadd.f32 0.0, %v5126
        %v5128 = vpop.f32.mrb[0].mxu0
        %v5129 = vpop.f32.mrb[0].mxu0
        %v5130 = vadd.f32 0.0, %v5129
        %v5131 = vpop.f32.mrb[0].mxu0
        %5132 = vmatprep.mubr.bf16.mxu0 0
        %5133 = vmatmul.mubr.bf16.gmra.mrb[0].mxu0 %v5073
        %v5134 = vpop.f32.mrb[0].mxu0
        %v5135 = vadd.f32 0.0, %v5134
        %v5136 = vpop.f32.mrb[0].mxu0
        %v5137 = vpop.f32.mrb[0].mxu0
        %v5138 = vadd.f32 0.0, %v5137
        %v5139 = vpop.f32.mrb[0].mxu0
        %5140 = vmatprep.mubr.bf16.mxu0 0
        %5141 = vmatmul.mubr.bf16.gmra.mrb[0].mxu0 %v5076
        %v5142 = vpop.f32.mrb[0].mxu0
        %v5143 = vadd.f32 0.0, %v5142
        %v5144 = vpop.f32.mrb[0].mxu0
        %v5145 = vpop.f32.mrb[0].mxu0
        %v5146 = vadd.f32 0.0, %v5145
        %v5147 = vpop.f32.mrb[0].mxu0
        %5148 = vmatprep.mubr.bf16.mxu0 0
        %5149 = vmatmul.mubr.bf16.gmra.mrb[0].mxu0 %v5079
        %v5150 = vpop.f32.mrb[0].mxu0
        %v5151 = vadd.f32 0.0, %v5150
        %v5152 = vpop.f32.mrb[0].mxu0
        %v5153 = vpop.f32.mrb[0].mxu0
        %v5154 = vadd.f32 0.0, %v5153
        %v5155 = vpop.f32.mrb[0].mxu0
        %5156 = vmatprep.mubr.bf16.mxu0 0
        %5157 = vmatmul.mubr.bf16.gmra.mrb[0].mxu0 %v5082
        %v5158 = vpop.f32.mrb[0].mxu0
        %v5159 = vadd.f32 0.0, %v5158
        %v5160 = vpop.f32.mrb[0].mxu0
        %v5161 = vpop.f32.mrb[0].mxu0
        %v5162 = vpop.f32.mrb[0].mxu0
        %5163 = vdwg.mxu0
        %v5164 = vpack.c.bf16 %v5122, %v5119
        %v5165 = vpack.c.bf16 %v5130, %v5127
        %v5166 = vpack.c.bf16 %v5138, %v5135
        %v5167 = vpack.c.bf16 %v5146, %v5143
        %v5168 = vpack.c.bf16 %v5154, %v5151
        %v5169 = vpack.c.bf16 %v5159, %v5159
        %v5171 = vsel %vm4854, %v5169, 0
        %5173 = vmatprep.subr.bf16.mxu0 0
        %5174 = vmatpush1.bf16.msra.mxu0 %v5164
        %5175 = vmatprep.subr.bf16.mxu0 0
        %5176 = vmatpush1.bf16.msra.mxu0 %v5165
        %5177 = vmatprep.subr.bf16.mxu0 0
        %5178 = vmatpush1.bf16.msra.mxu0 %v5166
        %5179 = vmatprep.subr.bf16.mxu0 0
        %5180 = vmatpush1.bf16.msra.mxu0 %v5167
        %5181 = vmatprep.subr.bf16.mxu0 0
        %5182 = vmatpush1.bf16.msra.mxu0 %v5168
        %5183 = vmatprep.subr.bf16.mxu0 0
        %5184 = vmatpush1.bf16.msra.mxu0 %v5171
        %5185 = vmatprep.subr.bf16.mxu0 0
        %5186 = vmatpush1.bf16.msra.mxu0 0
        %5187 = vmatprep.subr.bf16.mxu0 0
        %5188 = vmatpush1.bf16.msra.mxu0 0
        %5189 = vmatprep.subr.bf16.mxu0 0
        %5190 = vmatpush1.bf16.msra.mxu0 0
        %5191 = vmatprep.subr.bf16.mxu0 0
        %5192 = vmatpush1.bf16.msra.mxu0 0
        %5193 = vmatprep.subr.bf16.mxu0 0
        %5194 = vmatpush1.bf16.msra.mxu0 0
        %5195 = vmatprep.subr.bf16.mxu0 0
        %5196 = vmatpush1.bf16.msra.mxu0 0
        %5197 = vmatprep.subr.bf16.mxu0 0
        %5198 = vmatpush1.bf16.msra.mxu0 0
        %5199 = vmatprep.subr.bf16.mxu0 0
        %5200 = vmatpush1.bf16.msra.mxu0 0
        %5201 = vmatprep.subr.bf16.mxu0 0
        %5202 = vmatpush1.bf16.msra.mxu0 0
        %5203 = vmatprep.subr.bf16.mxu0 0
        %5204 = vmatpush1.bf16.msra.mxu0 0
        %5205 = vmatprep.mubr.bf16.mxu0 0
        %5206 = vmatmul.mubr.bf16.gmra.mrb[0].mxu0 %v4970
        %v5207 = vpop.f32.mrb[0].mxu0
        %v5208 = vadd.f32 0.0, %v5207
        %v5209 = vpop.f32.mrb[0].mxu0
        %v5210 = vpop.f32.mrb[0].mxu0
        %v5211 = vadd.f32 0.0, %v5210
        %v5212 = vpop.f32.mrb[0].mxu0
        %5213 = vmatprep.mubr.bf16.mxu0 0
        %5214 = vmatmul.mubr.bf16.gmra.mrb[0].mxu0 %v4973
        %v5215 = vpop.f32.mrb[0].mxu0
        %v5216 = vadd.f32 0.0, %v5215
        %v5217 = vpop.f32.mrb[0].mxu0
        %v5218 = vpop.f32.mrb[0].mxu0
        %v5219 = vadd.f32 0.0, %v5218
        %v5220 = vpop.f32.mrb[0].mxu0
        %5221 = vmatprep.mubr.bf16.mxu0 0
        %5222 = vmatmul.mubr.bf16.gmra.mrb[0].mxu0 %v4976
        %v5223 = vpop.f32.mrb[0].mxu0
        %v5224 = vadd.f32 0.0, %v5223
        %v5225 = vpop.f32.mrb[0].mxu0
        %v5226 = vpop.f32.mrb[0].mxu0
        %v5227 = vadd.f32 0.0, %v5226
        %v5228 = vpop.f32.mrb[0].mxu0
        %5229 = vmatprep.mubr.bf16.mxu0 0
        %5230 = vmatmul.mubr.bf16.gmra.mrb[0].mxu0 %v4979
        %v5231 = vpop.f32.mrb[0].mxu0
        %v5232 = vadd.f32 0.0, %v5231
        %v5233 = vpop.f32.mrb[0].mxu0
        %v5234 = vpop.f32.mrb[0].mxu0
        %v5235 = vadd.f32 0.0, %v5234
        %v5236 = vpop.f32.mrb[0].mxu0
        %5237 = vmatprep.mubr.bf16.mxu0 0
        %5238 = vmatmul.mubr.bf16.gmra.mrb[0].mxu0 %v4982
        %v5239 = vpop.f32.mrb[0].mxu0
        %v5240 = vadd.f32 0.0, %v5239
        %v5241 = vpop.f32.mrb[0].mxu0
        %v5242 = vpop.f32.mrb[0].mxu0
        %v5243 = vadd.f32 0.0, %v5242
        %v5244 = vpop.f32.mrb[0].mxu0
        %5245 = vdwg.mxu0
        %v5246 = vmul.f32 %v4774, %v4774
        %v5247 = vmul.f32 %v4775, %v4775
        %v5248 = vmul.f32 %v4776, %v4776
        %v5249 = vmul.f32 %v4777, %v4777
        %v5250 = vmul.f32 %v4778, %v4778
        %v5251 = vmul.f32 %v4779, %v4779
        %v5252 = vmul.f32 %v4780, %v4780
        %v5253 = vmul.f32 %v4781, %v4781
        %v5254 = vmul.f32 %v4782, %v4782
        %v5255 = vmul.f32 %v4783, %v4783
        %v5256 = vmul.f32 %v4784, %v4784
        %v5257 = vpack.c.bf16 %v5247, %v5246
        %v5258 = vpack.c.bf16 %v5249, %v5248
        %v5259 = vpack.c.bf16 %v5251, %v5250
        %v5260 = vpack.c.bf16 %v5253, %v5252
        %v5261 = vpack.c.bf16 %v5255, %v5254
        %v5262 = vpack.c.bf16 %v5256, %v5256
        %v5264 = vsel %vm4835, %v5257, 0
        %v5267 = vsel %vm4835, %v5258, 0
        %v5270 = vsel %vm4835, %v5259, 0
        %v5273 = vsel %vm4835, %v5260, 0
        %v5276 = vsel %vm4835, %v5261, 0
        %v5279 = vsel %vm4835, %v5262, 0
        %5281 = vmatprep.subr.bf16.mxu0 0
        %5282 = vmatpush1.bf16.msra.mxu0 %v4824
        %5283 = vmatprep.subr.bf16.mxu0 0
        %5284 = vmatpush1.bf16.msra.mxu0 %v4825
        %5285 = vmatprep.subr.bf16.mxu0 0
        %5286 = vmatpush1.bf16.msra.mxu0 %v4826
        %5287 = vmatprep.subr.bf16.mxu0 0
        %5288 = vmatpush1.bf16.msra.mxu0 %v4827
        %5289 = vmatprep.subr.bf16.mxu0 0
        %5290 = vmatpush1.bf16.msra.mxu0 %v4828
        %5291 = vmatprep.subr.bf16.mxu0 0
        %5292 = vmatpush1.bf16.msra.mxu0 %v4856
        %5293 = vmatprep.subr.bf16.mxu0 0
        %5294 = vmatpush1.bf16.msra.mxu0 0
        %5295 = vmatprep.subr.bf16.mxu0 0
        %5296 = vmatpush1.bf16.msra.mxu0 0
        %5297 = vmatprep.subr.bf16.mxu0 0
        %5298 = vmatpush1.bf16.msra.mxu0 0
        %5299 = vmatprep.subr.bf16.mxu0 0
        %5300 = vmatpush1.bf16.msra.mxu0 0
        %5301 = vmatprep.subr.bf16.mxu0 0
        %5302 = vmatpush1.bf16.msra.mxu0 0
        %5303 = vmatprep.subr.bf16.mxu0 0
        %5304 = vmatpush1.bf16.msra.mxu0 0
        %5305 = vmatprep.subr.bf16.mxu0 0
        %5306 = vmatpush1.bf16.msra.mxu0 0
        %5307 = vmatprep.subr.bf16.mxu0 0
        %5308 = vmatpush1.bf16.msra.mxu0 0
        %5309 = vmatprep.subr.bf16.mxu0 0
        %5310 = vmatpush1.bf16.msra.mxu0 0
        %5311 = vmatprep.subr.bf16.mxu0 0
        %5312 = vmatpush1.bf16.msra.mxu0 0
        %5313 = vmatprep.mubr.bf16.mxu0 0
        %5314 = vmatmul.mubr.bf16.gmra.mrb[0].mxu0 %v5264
        %v5315 = vpop.f32.mrb[0].mxu0
        %v5316 = vadd.f32 0.0, %v5315
        %v5317 = vpop.f32.mrb[0].mxu0
        %v5318 = vpop.f32.mrb[0].mxu0
        %v5319 = vadd.f32 0.0, %v5318
        %v5320 = vpop.f32.mrb[0].mxu0
        %5321 = vmatprep.mubr.bf16.mxu0 0
        %5322 = vmatmul.mubr.bf16.gmra.mrb[0].mxu0 %v5267
        %v5323 = vpop.f32.mrb[0].mxu0
        %v5324 = vadd.f32 0.0, %v5323
        %v5325 = vpop.f32.mrb[0].mxu0
        %v5326 = vpop.f32.mrb[0].mxu0
        %v5327 = vadd.f32 0.0, %v5326
        %v5328 = vpop.f32.mrb[0].mxu0
        %5329 = vmatprep.mubr.bf16.mxu0 0
        %5330 = vmatmul.mubr.bf16.gmra.mrb[0].mxu0 %v5270
        %v5331 = vpop.f32.mrb[0].mxu0
        %v5332 = vadd.f32 0.0, %v5331
        %v5333 = vpop.f32.mrb[0].mxu0
        %v5334 = vpop.f32.mrb[0].mxu0
        %v5335 = vadd.f32 0.0, %v5334
        %v5336 = vpop.f32.mrb[0].mxu0
        %5337 = vmatprep.mubr.bf16.mxu0 0
        %5338 = vmatmul.mubr.bf16.gmra.mrb[0].mxu0 %v5273
        %v5339 = vpop.f32.mrb[0].mxu0
        %v5340 = vadd.f32 0.0, %v5339
        %v5341 = vpop.f32.mrb[0].mxu0
        %v5342 = vpop.f32.mrb[0].mxu0
        %v5343 = vadd.f32 0.0, %v5342
        %v5344 = vpop.f32.mrb[0].mxu0
        %5345 = vmatprep.mubr.bf16.mxu0 0
        %5346 = vmatmul.mubr.bf16.gmra.mrb[0].mxu0 %v5276
        %v5347 = vpop.f32.mrb[0].mxu0
        %v5348 = vadd.f32 0.0, %v5347
        %v5349 = vpop.f32.mrb[0].mxu0
        %v5350 = vpop.f32.mrb[0].mxu0
        %v5351 = vadd.f32 0.0, %v5350
        %v5352 = vpop.f32.mrb[0].mxu0
        %5353 = vmatprep.mubr.bf16.mxu0 0
        %5354 = vmatmul.mubr.bf16.gmra.mrb[0].mxu0 %v5279
        %v5355 = vpop.f32.mrb[0].mxu0
        %v5356 = vadd.f32 0.0, %v5355
        %v5357 = vpop.f32.mrb[0].mxu0
        %v5358 = vpop.f32.mrb[0].mxu0
        %v5359 = vpop.f32.mrb[0].mxu0
        %5360 = vdwg.mxu0
        %v5361 = vpack.c.bf16 %v5319, %v5316
        %v5362 = vpack.c.bf16 %v5327, %v5324
        %v5363 = vpack.c.bf16 %v5335, %v5332
        %v5364 = vpack.c.bf16 %v5343, %v5340
        %v5365 = vpack.c.bf16 %v5351, %v5348
        %v5366 = vpack.c.bf16 %v5356, %v5356
        %v5368 = vsel %vm4854, %v5366, 0
        %5370 = vmatprep.subr.bf16.mxu0 0
        %5371 = vmatpush1.bf16.msra.mxu0 %v5361
        %5372 = vmatprep.subr.bf16.mxu0 0
        %5373 = vmatpush1.bf16.msra.mxu0 %v5362
        %5374 = vmatprep.subr.bf16.mxu0 0
        %5375 = vmatpush1.bf16.msra.mxu0 %v5363
        %5376 = vmatprep.subr.bf16.mxu0 0
        %5377 = vmatpush1.bf16.msra.mxu0 %v5364
        %5378 = vmatprep.subr.bf16.mxu0 0
        %5379 = vmatpush1.bf16.msra.mxu0 %v5365
        %5380 = vmatprep.subr.bf16.mxu0 0
        %5381 = vmatpush1.bf16.msra.mxu0 %v5368
        %5382 = vmatprep.subr.bf16.mxu0 0
        %5383 = vmatpush1.bf16.msra.mxu0 0
        %5384 = vmatprep.subr.bf16.mxu0 0
        %5385 = vmatpush1.bf16.msra.mxu0 0
        %5386 = vmatprep.subr.bf16.mxu0 0
        %5387 = vmatpush1.bf16.msra.mxu0 0
        %5388 = vmatprep.subr.bf16.mxu0 0
        %5389 = vmatpush1.bf16.msra.mxu0 0
        %5390 = vmatprep.subr.bf16.mxu0 0
        %5391 = vmatpush1.bf16.msra.mxu0 0
        %5392 = vmatprep.subr.bf16.mxu0 0
        %5393 = vmatpush1.bf16.msra.mxu0 0
        %5394 = vmatprep.subr.bf16.mxu0 0
        %5395 = vmatpush1.bf16.msra.mxu0 0
        %5396 = vmatprep.subr.bf16.mxu0 0
        %5397 = vmatpush1.bf16.msra.mxu0 0
        %5398 = vmatprep.subr.bf16.mxu0 0
        %5399 = vmatpush1.bf16.msra.mxu0 0
        %5400 = vmatprep.subr.bf16.mxu0 0
        %5401 = vmatpush1.bf16.msra.mxu0 0
        %5402 = vmatprep.mubr.bf16.mxu0 0
        %5403 = vmatmul.mubr.bf16.gmra.mrb[0].mxu0 %v4970
        %v5404 = vpop.f32.mrb[0].mxu0
        %v5405 = vadd.f32 0.0, %v5404
        %v5406 = vpop.f32.mrb[0].mxu0
        %v5407 = vpop.f32.mrb[0].mxu0
        %v5408 = vadd.f32 0.0, %v5407
        %v5409 = vpop.f32.mrb[0].mxu0
        %5410 = vmatprep.mubr.bf16.mxu0 0
        %5411 = vmatmul.mubr.bf16.gmra.mrb[0].mxu0 %v4973
        %v5412 = vpop.f32.mrb[0].mxu0
        %v5413 = vadd.f32 0.0, %v5412
        %v5414 = vpop.f32.mrb[0].mxu0
        %v5415 = vpop.f32.mrb[0].mxu0
        %v5416 = vadd.f32 0.0, %v5415
        %v5417 = vpop.f32.mrb[0].mxu0
        %5418 = vmatprep.mubr.bf16.mxu0 0
        %5419 = vmatmul.mubr.bf16.gmra.mrb[0].mxu0 %v4976
        %v5420 = vpop.f32.mrb[0].mxu0
        %v5421 = vadd.f32 0.0, %v5420
        %v5422 = vpop.f32.mrb[0].mxu0
        %v5423 = vpop.f32.mrb[0].mxu0
        %v5424 = vadd.f32 0.0, %v5423
        %v5425 = vpop.f32.mrb[0].mxu0
        %5426 = vmatprep.mubr.bf16.mxu0 0
        %5427 = vmatmul.mubr.bf16.gmra.mrb[0].mxu0 %v4979
        %v5428 = vpop.f32.mrb[0].mxu0
        %v5429 = vadd.f32 0.0, %v5428
        %v5430 = vpop.f32.mrb[0].mxu0
        %v5431 = vpop.f32.mrb[0].mxu0
        %v5432 = vadd.f32 0.0, %v5431
        %v5433 = vpop.f32.mrb[0].mxu0
        %5434 = vmatprep.mubr.bf16.mxu0 0
        %5435 = vmatmul.mubr.bf16.gmra.mrb[0].mxu0 %v4982
        %v5436 = vpop.f32.mrb[0].mxu0
        %v5437 = vadd.f32 0.0, %v5436
        %v5438 = vpop.f32.mrb[0].mxu0
        %v5439 = vpop.f32.mrb[0].mxu0
        %v5440 = vadd.f32 0.0, %v5439
        %v5441 = vpop.f32.mrb[0].mxu0
        %5442 = vdwg.mxu0
        %v5443 = vmul.f32 %v4785, %v4785
        %v5444 = vmul.f32 %v4786, %v4786
        %v5445 = vmul.f32 %v4787, %v4787
        %v5446 = vmul.f32 %v4788, %v4788
        %v5447 = vmul.f32 %v4789, %v4789
        %v5448 = vmul.f32 %v4790, %v4790
        %v5449 = vmul.f32 %v4791, %v4791
        %v5450 = vmul.f32 %v4792, %v4792
        %v5451 = vmul.f32 %v4793, %v4793
        %v5452 = vmul.f32 %v4794, %v4794
        %v5453 = vmul.f32 %v4795, %v4795
        %v5454 = vpack.c.bf16 %v5444, %v5443
        %v5455 = vpack.c.bf16 %v5446, %v5445
        %v5456 = vpack.c.bf16 %v5448, %v5447
        %v5457 = vpack.c.bf16 %v5450, %v5449
        %v5458 = vpack.c.bf16 %v5452, %v5451
        %v5459 = vpack.c.bf16 %v5453, %v5453
        %v5461 = vsel %vm4835, %v5454, 0
        %v5464 = vsel %vm4835, %v5455, 0
        %v5467 = vsel %vm4835, %v5456, 0
        %v5470 = vsel %vm4835, %v5457, 0
        %v5473 = vsel %vm4835, %v5458, 0
        %v5476 = vsel %vm4835, %v5459, 0
        %5478 = vmatprep.subr.bf16.mxu0 0
        %5479 = vmatpush1.bf16.msra.mxu0 %v4824
        %5480 = vmatprep.subr.bf16.mxu0 0
        %5481 = vmatpush1.bf16.msra.mxu0 %v4825
        %5482 = vmatprep.subr.bf16.mxu0 0
        %5483 = vmatpush1.bf16.msra.mxu0 %v4826
        %5484 = vmatprep.subr.bf16.mxu0 0
        %5485 = vmatpush1.bf16.msra.mxu0 %v4827
        %5486 = vmatprep.subr.bf16.mxu0 0
        %5487 = vmatpush1.bf16.msra.mxu0 %v4828
        %5488 = vmatprep.subr.bf16.mxu0 0
        %5489 = vmatpush1.bf16.msra.mxu0 %v4856
        %5490 = vmatprep.subr.bf16.mxu0 0
        %5491 = vmatpush1.bf16.msra.mxu0 0
        %5492 = vmatprep.subr.bf16.mxu0 0
        %5493 = vmatpush1.bf16.msra.mxu0 0
        %5494 = vmatprep.subr.bf16.mxu0 0
        %5495 = vmatpush1.bf16.msra.mxu0 0
        %5496 = vmatprep.subr.bf16.mxu0 0
        %5497 = vmatpush1.bf16.msra.mxu0 0
        %5498 = vmatprep.subr.bf16.mxu0 0
        %5499 = vmatpush1.bf16.msra.mxu0 0
        %5500 = vmatprep.subr.bf16.mxu0 0
        %5501 = vmatpush1.bf16.msra.mxu0 0
        %5502 = vmatprep.subr.bf16.mxu0 0
        %5503 = vmatpush1.bf16.msra.mxu0 0
        %5504 = vmatprep.subr.bf16.mxu0 0
        %5505 = vmatpush1.bf16.msra.mxu0 0
        %5506 = vmatprep.subr.bf16.mxu0 0
        %5507 = vmatpush1.bf16.msra.mxu0 0
        %5508 = vmatprep.subr.bf16.mxu0 0
        %5509 = vmatpush1.bf16.msra.mxu0 0
        %5510 = vmatprep.mubr.bf16.mxu0 0
        %5511 = vmatmul.mubr.bf16.gmra.mrb[0].mxu0 %v5461
        %v5512 = vpop.f32.mrb[0].mxu0
        %v5513 = vadd.f32 0.0, %v5512
        %v5514 = vpop.f32.mrb[0].mxu0
        %v5515 = vpop.f32.mrb[0].mxu0
        %v5516 = vadd.f32 0.0, %v5515
        %v5517 = vpop.f32.mrb[0].mxu0
        %5518 = vmatprep.mubr.bf16.mxu0 0
        %5519 = vmatmul.mubr.bf16.gmra.mrb[0].mxu0 %v5464
        %v5520 = vpop.f32.mrb[0].mxu0
        %v5521 = vadd.f32 0.0, %v5520
        %v5522 = vpop.f32.mrb[0].mxu0
        %v5523 = vpop.f32.mrb[0].mxu0
        %v5524 = vadd.f32 0.0, %v5523
        %v5525 = vpop.f32.mrb[0].mxu0
        %5526 = vmatprep.mubr.bf16.mxu0 0
        %5527 = vmatmul.mubr.bf16.gmra.mrb[0].mxu0 %v5467
        %v5528 = vpop.f32.mrb[0].mxu0
        %v5529 = vadd.f32 0.0, %v5528
        %v5530 = vpop.f32.mrb[0].mxu0
        %v5531 = vpop.f32.mrb[0].mxu0
        %v5532 = vadd.f32 0.0, %v5531
        %v5533 = vpop.f32.mrb[0].mxu0
        %5534 = vmatprep.mubr.bf16.mxu0 0
        %5535 = vmatmul.mubr.bf16.gmra.mrb[0].mxu0 %v5470
        %v5536 = vpop.f32.mrb[0].mxu0
        %v5537 = vadd.f32 0.0, %v5536
        %v5538 = vpop.f32.mrb[0].mxu0
        %v5539 = vpop.f32.mrb[0].mxu0
        %v5540 = vadd.f32 0.0, %v5539
        %v5541 = vpop.f32.mrb[0].mxu0
        %5542 = vmatprep.mubr.bf16.mxu0 0
        %5543 = vmatmul.mubr.bf16.gmra.mrb[0].mxu0 %v5473
        %v5544 = vpop.f32.mrb[0].mxu0
        %v5545 = vadd.f32 0.0, %v5544
        %v5546 = vpop.f32.mrb[0].mxu0
        %v5547 = vpop.f32.mrb[0].mxu0
        %v5548 = vadd.f32 0.0, %v5547
        %v5549 = vpop.f32.mrb[0].mxu0
        %5550 = vmatprep.mubr.bf16.mxu0 0
        %5551 = vmatmul.mubr.bf16.gmra.mrb[0].mxu0 %v5476
        %v5552 = vpop.f32.mrb[0].mxu0
        %v5553 = vadd.f32 0.0, %v5552
        %v5554 = vpop.f32.mrb[0].mxu0
        %v5555 = vpop.f32.mrb[0].mxu0
        %v5556 = vpop.f32.mrb[0].mxu0
        %5557 = vdwg.mxu0
        %v5558 = vpack.c.bf16 %v5516, %v5513
        %v5559 = vpack.c.bf16 %v5524, %v5521
        %v5560 = vpack.c.bf16 %v5532, %v5529
        %v5561 = vpack.c.bf16 %v5540, %v5537
        %v5562 = vpack.c.bf16 %v5548, %v5545
        %v5563 = vpack.c.bf16 %v5553, %v5553
        %v5565 = vsel %vm4854, %v5563, 0
        %5567 = vmatprep.subr.bf16.mxu0 0
        %5568 = vmatpush1.bf16.msra.mxu0 %v5558
        %5569 = vmatprep.subr.bf16.mxu0 0
        %5570 = vmatpush1.bf16.msra.mxu0 %v5559
        %5571 = vmatprep.subr.bf16.mxu0 0
        %5572 = vmatpush1.bf16.msra.mxu0 %v5560
        %5573 = vmatprep.subr.bf16.mxu0 0
        %5574 = vmatpush1.bf16.msra.mxu0 %v5561
        %5575 = vmatprep.subr.bf16.mxu0 0
        %5576 = vmatpush1.bf16.msra.mxu0 %v5562
        %5577 = vmatprep.subr.bf16.mxu0 0
        %5578 = vmatpush1.bf16.msra.mxu0 %v5565
        %5579 = vmatprep.subr.bf16.mxu0 0
        %5580 = vmatpush1.bf16.msra.mxu0 0
        %5581 = vmatprep.subr.bf16.mxu0 0
        %5582 = vmatpush1.bf16.msra.mxu0 0
        %5583 = vmatprep.subr.bf16.mxu0 0
        %5584 = vmatpush1.bf16.msra.mxu0 0
        %5585 = vmatprep.subr.bf16.mxu0 0
        %5586 = vmatpush1.bf16.msra.mxu0 0
        %5587 = vmatprep.subr.bf16.mxu0 0
        %5588 = vmatpush1.bf16.msra.mxu0 0
        %5589 = vmatprep.subr.bf16.mxu0 0
        %5590 = vmatpush1.bf16.msra.mxu0 0
        %5591 = vmatprep.subr.bf16.mxu0 0
        %5592 = vmatpush1.bf16.msra.mxu0 0
        %5593 = vmatprep.subr.bf16.mxu0 0
        %5594 = vmatpush1.bf16.msra.mxu0 0
        %5595 = vmatprep.subr.bf16.mxu0 0
        %5596 = vmatpush1.bf16.msra.mxu0 0
        %5597 = vmatprep.subr.bf16.mxu0 0
        %5598 = vmatpush1.bf16.msra.mxu0 0
        %5599 = vmatprep.mubr.bf16.mxu0 0
        %5600 = vmatmul.mubr.bf16.gmra.mrb[0].mxu0 %v4970
        %v5601 = vpop.f32.mrb[0].mxu0
        %v5602 = vadd.f32 0.0, %v5601
        %v5603 = vpop.f32.mrb[0].mxu0
        %v5604 = vpop.f32.mrb[0].mxu0
        %v5605 = vadd.f32 0.0, %v5604
        %v5606 = vpop.f32.mrb[0].mxu0
        %5607 = vmatprep.mubr.bf16.mxu0 0
        %5608 = vmatmul.mubr.bf16.gmra.mrb[0].mxu0 %v4973
        %v5609 = vpop.f32.mrb[0].mxu0
        %v5610 = vadd.f32 0.0, %v5609
        %v5611 = vpop.f32.mrb[0].mxu0
        %v5612 = vpop.f32.mrb[0].mxu0
        %v5613 = vadd.f32 0.0, %v5612
        %v5614 = vpop.f32.mrb[0].mxu0
        %5615 = vmatprep.mubr.bf16.mxu0 0
        %5616 = vmatmul.mubr.bf16.gmra.mrb[0].mxu0 %v4976
        %v5617 = vpop.f32.mrb[0].mxu0
        %v5618 = vadd.f32 0.0, %v5617
        %v5619 = vpop.f32.mrb[0].mxu0
        %v5620 = vpop.f32.mrb[0].mxu0
        %v5621 = vadd.f32 0.0, %v5620
        %v5622 = vpop.f32.mrb[0].mxu0
        %5623 = vmatprep.mubr.bf16.mxu0 0
        %5624 = vmatmul.mubr.bf16.gmra.mrb[0].mxu0 %v4979
        %v5625 = vpop.f32.mrb[0].mxu0
        %v5626 = vadd.f32 0.0, %v5625
        %v5627 = vpop.f32.mrb[0].mxu0
        %v5628 = vpop.f32.mrb[0].mxu0
        %v5629 = vadd.f32 0.0, %v5628
        %v5630 = vpop.f32.mrb[0].mxu0
        %5631 = vmatprep.mubr.bf16.mxu0 0
        %5632 = vmatmul.mubr.bf16.gmra.mrb[0].mxu0 %v4982
        %v5633 = vpop.f32.mrb[0].mxu0
        %v5634 = vadd.f32 0.0, %v5633
        %v5635 = vpop.f32.mrb[0].mxu0
        %v5636 = vpop.f32.mrb[0].mxu0
        %v5637 = vadd.f32 0.0, %v5636
        %v5638 = vpop.f32.mrb[0].mxu0
        %5639 = vdwg.mxu0
        %v5640 = vmul.f32 %v4774, %v4785
        %v5641 = vmul.f32 %v4775, %v4786
        %v5642 = vmul.f32 %v4776, %v4787
        %v5643 = vmul.f32 %v4777, %v4788
        %v5644 = vmul.f32 %v4778, %v4789
        %v5645 = vmul.f32 %v4779, %v4790
        %v5646 = vmul.f32 %v4780, %v4791
        %v5647 = vmul.f32 %v4781, %v4792
        %v5648 = vmul.f32 %v4782, %v4793
        %v5649 = vmul.f32 %v4783, %v4794
        %v5650 = vmul.f32 %v4784, %v4795
        %v5651 = vpack.c.bf16 %v5641, %v5640
        %v5652 = vpack.c.bf16 %v5643, %v5642
        %v5653 = vpack.c.bf16 %v5645, %v5644
        %v5654 = vpack.c.bf16 %v5647, %v5646
        %v5655 = vpack.c.bf16 %v5649, %v5648
        %v5656 = vpack.c.bf16 %v5650, %v5650
        %v5658 = vsel %vm4835, %v5651, 0
        %v5661 = vsel %vm4835, %v5652, 0
        %v5664 = vsel %vm4835, %v5653, 0
        %v5667 = vsel %vm4835, %v5654, 0
        %v5670 = vsel %vm4835, %v5655, 0
        %v5673 = vsel %vm4835, %v5656, 0
        %5675 = vmatprep.subr.bf16.mxu0 0
        %5676 = vmatpush1.bf16.msra.mxu0 %v4824
        %5677 = vmatprep.subr.bf16.mxu0 0
        %5678 = vmatpush1.bf16.msra.mxu0 %v4825
        %5679 = vmatprep.subr.bf16.mxu0 0
        %5680 = vmatpush1.bf16.msra.mxu0 %v4826
        %5681 = vmatprep.subr.bf16.mxu0 0
        %5682 = vmatpush1.bf16.msra.mxu0 %v4827
        %5683 = vmatprep.subr.bf16.mxu0 0
        %5684 = vmatpush1.bf16.msra.mxu0 %v4828
        %5685 = vmatprep.subr.bf16.mxu0 0
        %5686 = vmatpush1.bf16.msra.mxu0 %v4856
        %5687 = vmatprep.subr.bf16.mxu0 0
        %5688 = vmatpush1.bf16.msra.mxu0 0
        %5689 = vmatprep.subr.bf16.mxu0 0
        %5690 = vmatpush1.bf16.msra.mxu0 0
        %5691 = vmatprep.subr.bf16.mxu0 0
        %5692 = vmatpush1.bf16.msra.mxu0 0
        %5693 = vmatprep.subr.bf16.mxu0 0
        %5694 = vmatpush1.bf16.msra.mxu0 0
        %5695 = vmatprep.subr.bf16.mxu0 0
        %5696 = vmatpush1.bf16.msra.mxu0 0
        %5697 = vmatprep.subr.bf16.mxu0 0
        %5698 = vmatpush1.bf16.msra.mxu0 0
        %5699 = vmatprep.subr.bf16.mxu0 0
        %5700 = vmatpush1.bf16.msra.mxu0 0
        %5701 = vmatprep.subr.bf16.mxu0 0
        %5702 = vmatpush1.bf16.msra.mxu0 0
        %5703 = vmatprep.subr.bf16.mxu0 0
        %5704 = vmatpush1.bf16.msra.mxu0 0
        %5705 = vmatprep.subr.bf16.mxu0 0
        %5706 = vmatpush1.bf16.msra.mxu0 0
        %5707 = vmatprep.mubr.bf16.mxu0 0
        %5708 = vmatmul.mubr.bf16.gmra.mrb[0].mxu0 %v5658
        %v5709 = vpop.f32.mrb[0].mxu0
        %v5710 = vadd.f32 0.0, %v5709
        %v5711 = vpop.f32.mrb[0].mxu0
        %v5712 = vpop.f32.mrb[0].mxu0
        %v5713 = vadd.f32 0.0, %v5712
        %v5714 = vpop.f32.mrb[0].mxu0
        %5715 = vmatprep.mubr.bf16.mxu0 0
        %5716 = vmatmul.mubr.bf16.gmra.mrb[0].mxu0 %v5661
        %v5717 = vpop.f32.mrb[0].mxu0
        %v5718 = vadd.f32 0.0, %v5717
        %v5719 = vpop.f32.mrb[0].mxu0
        %v5720 = vpop.f32.mrb[0].mxu0
        %v5721 = vadd.f32 0.0, %v5720
        %v5722 = vpop.f32.mrb[0].mxu0
        %5723 = vmatprep.mubr.bf16.mxu0 0
        %5724 = vmatmul.mubr.bf16.gmra.mrb[0].mxu0 %v5664
        %v5725 = vpop.f32.mrb[0].mxu0
        %v5726 = vadd.f32 0.0, %v5725
        %v5727 = vpop.f32.mrb[0].mxu0
        %v5728 = vpop.f32.mrb[0].mxu0
        %v5729 = vadd.f32 0.0, %v5728
        %v5730 = vpop.f32.mrb[0].mxu0
        %5731 = vmatprep.mubr.bf16.mxu0 0
        %5732 = vmatmul.mubr.bf16.gmra.mrb[0].mxu0 %v5667
        %v5733 = vpop.f32.mrb[0].mxu0
        %v5734 = vadd.f32 0.0, %v5733
        %v5735 = vpop.f32.mrb[0].mxu0
        %v5736 = vpop.f32.mrb[0].mxu0
        %v5737 = vadd.f32 0.0, %v5736
        %v5738 = vpop.f32.mrb[0].mxu0
        %5739 = vmatprep.mubr.bf16.mxu0 0
        %5740 = vmatmul.mubr.bf16.gmra.mrb[0].mxu0 %v5670
        %v5741 = vpop.f32.mrb[0].mxu0
        %v5742 = vadd.f32 0.0, %v5741
        %v5743 = vpop.f32.mrb[0].mxu0
        %v5744 = vpop.f32.mrb[0].mxu0
        %v5745 = vadd.f32 0.0, %v5744
        %v5746 = vpop.f32.mrb[0].mxu0
        %5747 = vmatprep.mubr.bf16.mxu0 0
        %5748 = vmatmul.mubr.bf16.gmra.mrb[0].mxu0 %v5673
        %v5749 = vpop.f32.mrb[0].mxu0
        %v5750 = vadd.f32 0.0, %v5749
        %v5751 = vpop.f32.mrb[0].mxu0
        %v5752 = vpop.f32.mrb[0].mxu0
        %v5753 = vpop.f32.mrb[0].mxu0
        %5754 = vdwg.mxu0
        %v5755 = vpack.c.bf16 %v5713, %v5710
        %v5756 = vpack.c.bf16 %v5721, %v5718
        %v5757 = vpack.c.bf16 %v5729, %v5726
        %v5758 = vpack.c.bf16 %v5737, %v5734
        %v5759 = vpack.c.bf16 %v5745, %v5742
        %v5760 = vpack.c.bf16 %v5750, %v5750
        %v5762 = vsel %vm4854, %v5760, 0
        %5764 = vmatprep.subr.bf16.mxu0 0
        %5765 = vmatpush1.bf16.msra.mxu0 %v5755
        %5766 = vmatprep.subr.bf16.mxu0 0
        %5767 = vmatpush1.bf16.msra.mxu0 %v5756
        %5768 = vmatprep.subr.bf16.mxu0 0
        %5769 = vmatpush1.bf16.msra.mxu0 %v5757
        %5770 = vmatprep.subr.bf16.mxu0 0
        %5771 = vmatpush1.bf16.msra.mxu0 %v5758
        %5772 = vmatprep.subr.bf16.mxu0 0
        %5773 = vmatpush1.bf16.msra.mxu0 %v5759
        %5774 = vmatprep.subr.bf16.mxu0 0
        %5775 = vmatpush1.bf16.msra.mxu0 %v5762
        %5776 = vmatprep.subr.bf16.mxu0 0
        %5777 = vmatpush1.bf16.msra.mxu0 0
        %5778 = vmatprep.subr.bf16.mxu0 0
        %5779 = vmatpush1.bf16.msra.mxu0 0
        %5780 = vmatprep.subr.bf16.mxu0 0
        %5781 = vmatpush1.bf16.msra.mxu0 0
        %5782 = vmatprep.subr.bf16.mxu0 0
        %5783 = vmatpush1.bf16.msra.mxu0 0
        %5784 = vmatprep.subr.bf16.mxu0 0
        %5785 = vmatpush1.bf16.msra.mxu0 0
        %5786 = vmatprep.subr.bf16.mxu0 0
        %5787 = vmatpush1.bf16.msra.mxu0 0
        %5788 = vmatprep.subr.bf16.mxu0 0
        %5789 = vmatpush1.bf16.msra.mxu0 0
        %5790 = vmatprep.subr.bf16.mxu0 0
        %5791 = vmatpush1.bf16.msra.mxu0 0
        %5792 = vmatprep.subr.bf16.mxu0 0
        %5793 = vmatpush1.bf16.msra.mxu0 0
        %5794 = vmatprep.subr.bf16.mxu0 0
        %5795 = vmatpush1.bf16.msra.mxu0 0
        %5796 = vmatprep.mubr.bf16.mxu0 0
        %5797 = vmatmul.mubr.bf16.gmra.mrb[0].mxu0 %v4970
        %v5798 = vpop.f32.mrb[0].mxu0
        %v5799 = vadd.f32 0.0, %v5798
        %v5800 = vpop.f32.mrb[0].mxu0
        %v5801 = vpop.f32.mrb[0].mxu0
        %v5802 = vadd.f32 0.0, %v5801
        %v5803 = vpop.f32.mrb[0].mxu0
        %5804 = vmatprep.mubr.bf16.mxu0 0
        %5805 = vmatmul.mubr.bf16.gmra.mrb[0].mxu0 %v4973
        %v5806 = vpop.f32.mrb[0].mxu0
        %v5807 = vadd.f32 0.0, %v5806
        %v5808 = vpop.f32.mrb[0].mxu0
        %v5809 = vpop.f32.mrb[0].mxu0
        %v5810 = vadd.f32 0.0, %v5809
        %v5811 = vpop.f32.mrb[0].mxu0
        %5812 = vmatprep.mubr.bf16.mxu0 0
        %5813 = vmatmul.mubr.bf16.gmra.mrb[0].mxu0 %v4976
        %v5814 = vpop.f32.mrb[0].mxu0
        %v5815 = vadd.f32 0.0, %v5814
        %v5816 = vpop.f32.mrb[0].mxu0
        %v5817 = vpop.f32.mrb[0].mxu0
        %v5818 = vadd.f32 0.0, %v5817
        %v5819 = vpop.f32.mrb[0].mxu0
        %5820 = vmatprep.mubr.bf16.mxu0 0
        %5821 = vmatmul.mubr.bf16.gmra.mrb[0].mxu0 %v4979
        %v5822 = vpop.f32.mrb[0].mxu0
        %v5823 = vadd.f32 0.0, %v5822
        %v5824 = vpop.f32.mrb[0].mxu0
        %v5825 = vpop.f32.mrb[0].mxu0
        %v5826 = vadd.f32 0.0, %v5825
        %v5827 = vpop.f32.mrb[0].mxu0
        %5828 = vmatprep.mubr.bf16.mxu0 0
        %5829 = vmatmul.mubr.bf16.gmra.mrb[0].mxu0 %v4982
        %v5830 = vpop.f32.mrb[0].mxu0
        %v5831 = vadd.f32 0.0, %v5830
        %v5832 = vpop.f32.mrb[0].mxu0
        %v5833 = vpop.f32.mrb[0].mxu0
        %v5834 = vadd.f32 0.0, %v5833
        %v5835 = vpop.f32.mrb[0].mxu0
        %5836 = vdwg.mxu0
        %v5837 = vmul.f32 %v5022, %v5022
        %v5838 = vmul.f32 %v5025, %v5025
        %v5839 = vmul.f32 %v5030, %v5030
        %v5840 = vmul.f32 %v5033, %v5033
        %v5841 = vmul.f32 %v5038, %v5038
        %v5842 = vmul.f32 %v5041, %v5041
        %v5843 = vmul.f32 %v5046, %v5046
        %v5844 = vmul.f32 %v5049, %v5049
        %v5845 = vmul.f32 %v5054, %v5054
        %v5846 = vmul.f32 %v5057, %v5057
        %v5847 = vsub.f32 %v5405, %v5837
        %v5848 = vsub.f32 %v5408, %v5838
        %v5849 = vsub.f32 %v5413, %v5839
        %v5850 = vsub.f32 %v5416, %v5840
        %v5851 = vsub.f32 %v5421, %v5841
        %v5852 = vsub.f32 %v5424, %v5842
        %v5853 = vsub.f32 %v5429, %v5843
        %v5854 = vsub.f32 %v5432, %v5844
        %v5855 = vsub.f32 %v5437, %v5845
        %v5856 = vsub.f32 %v5440, %v5846
        %v5857 = vmul.f32 %v5208, %v5208
        %v5858 = vmul.f32 %v5211, %v5211
        %v5859 = vmul.f32 %v5216, %v5216
        %v5860 = vmul.f32 %v5219, %v5219
        %v5861 = vmul.f32 %v5224, %v5224
        %v5862 = vmul.f32 %v5227, %v5227
        %v5863 = vmul.f32 %v5232, %v5232
        %v5864 = vmul.f32 %v5235, %v5235
        %v5865 = vmul.f32 %v5240, %v5240
        %v5866 = vmul.f32 %v5243, %v5243
        %v5867 = vsub.f32 %v5602, %v5857
        %v5868 = vsub.f32 %v5605, %v5858
        %v5869 = vsub.f32 %v5610, %v5859
        %v5870 = vsub.f32 %v5613, %v5860
        %v5871 = vsub.f32 %v5618, %v5861
        %v5872 = vsub.f32 %v5621, %v5862
        %v5873 = vsub.f32 %v5626, %v5863
        %v5874 = vsub.f32 %v5629, %v5864
        %v5875 = vsub.f32 %v5634, %v5865
        %v5876 = vsub.f32 %v5637, %v5866
        %v5877 = vmul.f32 %v5022, %v5208
        %v5878 = vmul.f32 %v5025, %v5211
        %v5879 = vmul.f32 %v5030, %v5216
        %v5880 = vmul.f32 %v5033, %v5219
        %v5881 = vmul.f32 %v5038, %v5224
        %v5882 = vmul.f32 %v5041, %v5227
        %v5883 = vmul.f32 %v5046, %v5232
        %v5884 = vmul.f32 %v5049, %v5235
        %v5885 = vmul.f32 %v5054, %v5240
        %v5886 = vmul.f32 %v5057, %v5243
        %v5887 = vsub.f32 %v5799, %v5877
        %v5888 = vsub.f32 %v5802, %v5878
        %v5889 = vsub.f32 %v5807, %v5879
        %v5890 = vsub.f32 %v5810, %v5880
        %v5891 = vsub.f32 %v5815, %v5881
        %v5892 = vsub.f32 %v5818, %v5882
        %v5893 = vsub.f32 %v5823, %v5883
        %v5894 = vsub.f32 %v5826, %v5884
        %v5895 = vsub.f32 %v5831, %v5885
        %v5896 = vsub.f32 %v5834, %v5886
        %v5897 = vmul.f32 %v5887, 2.0
        %v5898 = vmul.f32 %v5888, 2.0
        %v5899 = vmul.f32 %v5889, 2.0
        %v5900 = vmul.f32 %v5890, 2.0
        %v5901 = vmul.f32 %v5891, 2.0
        %v5902 = vmul.f32 %v5892, 2.0
        %v5903 = vmul.f32 %v5893, 2.0
        %v5904 = vmul.f32 %v5894, 2.0
        %v5905 = vmul.f32 %v5895, 2.0
        %v5906 = vmul.f32 %v5896, 2.0
        %v5907 = vadd.f32 %v5897, 0.0009
        %v5908 = vadd.f32 %v5898, 0.0009
        %v5909 = vadd.f32 %v5899, 0.0009
        %v5910 = vadd.f32 %v5900, 0.0009
        %v5911 = vadd.f32 %v5901, 0.0009
        %v5912 = vadd.f32 %v5902, 0.0009
        %v5913 = vadd.f32 %v5903, 0.0009
        %v5914 = vadd.f32 %v5904, 0.0009
        %v5915 = vadd.f32 %v5905, 0.0009
        %v5916 = vadd.f32 %v5906, 0.0009
        %v5917 = vadd.f32 %v5847, %v5867
        %v5918 = vadd.f32 %v5848, %v5868
        %v5919 = vadd.f32 %v5849, %v5869
        %v5920 = vadd.f32 %v5850, %v5870
        %v5921 = vadd.f32 %v5851, %v5871
        %v5922 = vadd.f32 %v5852, %v5872
        %v5923 = vadd.f32 %v5853, %v5873
        %v5924 = vadd.f32 %v5854, %v5874
        %v5925 = vadd.f32 %v5855, %v5875
        %v5926 = vadd.f32 %v5856, %v5876
        %v5927 = vadd.f32 %v5917, 0.0009
        %v5928 = vadd.f32 %v5918, 0.0009
        %v5929 = vadd.f32 %v5919, 0.0009
        %v5930 = vadd.f32 %v5920, 0.0009
        %v5931 = vadd.f32 %v5921, 0.0009
        %v5932 = vadd.f32 %v5922, 0.0009
        %v5933 = vadd.f32 %v5923, 0.0009
        %v5934 = vadd.f32 %v5924, 0.0009
        %v5935 = vadd.f32 %v5925, 0.0009
        %v5936 = vadd.f32 %v5926, 0.0009
        %v5937 = vrcp.pop %v5927
        %v5938 = vmul.f32 %v5907, %v5937
        %v5939 = vrcp.pop %v5928
        %v5940 = vmul.f32 %v5908, %v5939
        %v5941 = vrcp.pop %v5929
        %v5942 = vmul.f32 %v5909, %v5941
        %v5943 = vrcp.pop %v5930
        %v5944 = vmul.f32 %v5910, %v5943
        %v5945 = vrcp.pop %v5931
        %v5946 = vmul.f32 %v5911, %v5945
        %v5947 = vrcp.pop %v5932
        %v5948 = vmul.f32 %v5912, %v5947
        %v5949 = vrcp.pop %v5933
        %v5950 = vmul.f32 %v5913, %v5949
        %v5951 = vrcp.pop %v5934
        %v5952 = vmul.f32 %v5914, %v5951
        %v5953 = vrcp.pop %v5935
        %v5954 = vmul.f32 %v5915, %v5953
        %v5955 = vrcp.pop %v5936
        %v5956 = vmul.f32 %v5916, %v5955
        %vm5957 = vcmask 637952
        %v5958 = vsel %vm5957, %v5938, 0.0
        %5959 = vadd.xlane.f32.xlu0 %v5958
        %v5960 = vpop.xlane.xlu0 %5959
        %v5961 = vsel %vm5957, %v5940, 0.0
        %5962 = vadd.xlane.f32.xlu0 %v5961
        %v5963 = vpop.xlane.xlu0 %5962
        %v5964 = vsel %vm5957, %v5942, 0.0
        %5965 = vadd.xlane.f32.xlu0 %v5964
        %v5966 = vpop.xlane.xlu0 %5965
        %v5967 = vsel %vm5957, %v5944, 0.0
        %5968 = vadd.xlane.f32.xlu0 %v5967
        %v5969 = vpop.xlane.xlu0 %5968
        %v5970 = vsel %vm5957, %v5946, 0.0
        %5971 = vadd.xlane.f32.xlu0 %v5970
        %v5972 = vpop.xlane.xlu0 %5971
        %v5973 = vsel %vm5957, %v5948, 0.0
        %5974 = vadd.xlane.f32.xlu0 %v5973
        %v5975 = vpop.xlane.xlu0 %5974
        %v5976 = vsel %vm5957, %v5950, 0.0
        %5977 = vadd.xlane.f32.xlu0 %v5976
        %v5978 = vpop.xlane.xlu0 %5977
        %v5979 = vsel %vm5957, %v5952, 0.0
        %5980 = vadd.xlane.f32.xlu0 %v5979
        %v5981 = vpop.xlane.xlu0 %5980
        %v5982 = vsel %vm5957, %v5954, 0.0
        %5983 = vadd.xlane.f32.xlu0 %v5982
        %v5984 = vpop.xlane.xlu0 %5983
        %vm5985 = vcmask 635904
        %v5986 = vsel %vm5985, %v5956, 0.0
        %5987 = vadd.xlane.f32.xlu0 %v5986
        %v5988 = vpop.xlane.xlu0 %5987
        %v5989 = vadd.f32 %v5960, %v5963
        %v5990 = vadd.f32 %v5989, %v5966
        %v5991 = vadd.f32 %v5990, %v5969
        %v5992 = vadd.f32 %v5991, %v5972
        %v5993 = vadd.f32 %v5992, %v5975
        %v5994 = vadd.f32 %v5993, %v5978
        %v5995 = vadd.f32 %v5994, %v5981
        %v5996 = vadd.f32 %v5995, %v5984
        %v5997 = vsel %vm4015, %v5988, 0.0
        %v5998 = vadd.f32 %v5996, %v5997
        %v5999 = vrot.slane %v5998, 4
        %v6000 = vadd.f32 %v5998, %v5999
        %v6001 = vrot.slane %v6000, 2
        %v6002 = vadd.f32 %v6000, %v6001
        %v6003 = vrot.slane %v6002, 1
        %v6004 = vadd.f32 %v6002, %v6003
        %v6005 = vmul.f32 %v6004, 0.00016436556
        %v6006 = vmax.f32 %v6005, 0.0
        %v6007 = vld [vmem:[%s13] sm:$0xf]
        %v6008 = vld [vmem:[%s13 + $0x4] sm:$0xf]
        %v6009 = vld [vmem:[%s13 + $0x8] sm:$0xf]
        %v6010 = vld [vmem:[%s13 + $0xc] sm:$0xf]
        %v6011 = vld [vmem:[%s13 + $0x10] sm:$0xf]
        %v6012 = vld [vmem:[%s13 + $0x14] sm:$0xf]
        %v6013 = vld [vmem:[%s13 + $0x18] sm:$0xf]
        %v6014 = vld [vmem:[%s13 + $0x1c] sm:$0xf]
        %v6015 = vld [vmem:[%s13 + $0x20] sm:$0xf]
        %v6016 = vld [vmem:[%s13 + $0x24] sm:$0xf]
        %v6017 = vld [vmem:[%s13 + $0x28] sm:$0xf]
        %v6018 = vld [vmem:[#allocation17] sm:$0xf]
        %v6019 = vld [vmem:[#allocation17 + $0x4] sm:$0xf]
        %v6020 = vld [vmem:[#allocation17 + $0x8] sm:$0xf]
        %v6021 = vld [vmem:[#allocation17 + $0xc] sm:$0xf]
        %v6022 = vld [vmem:[#allocation17 + $0x10] sm:$0xf]
        %v6023 = vld [vmem:[#allocation17 + $0x14] sm:$0x3]
        %v6024 = vpack.c.bf16 %v4444, %v4441
        %v6025 = vpack.c.bf16 %v4452, %v4449
        %v6026 = vpack.c.bf16 %v4460, %v4457
        %v6027 = vpack.c.bf16 %v4468, %v4465
        %v6028 = vpack.c.bf16 %v4476, %v4473
        %v6029 = vpack.c.bf16 %v4481, %v4481
        %v6041 = vunpack.c.l.b16 %v6007
        %v6042 = vunpack.c.l.b16 %v6008
        %v6043 = vunpack.c.l.b16 %v6009
        %v6044 = vunpack.c.l.b16 %v6010
        %v6045 = vunpack.c.l.b16 %v6011
        %v6046 = vunpack.c.l.b16 %v6012
        %v6047 = vunpack.c.l.b16 %v6013
        %v6048 = vunpack.c.l.b16 %v6014
        %v6049 = vunpack.c.l.b16 %v6015
        %v6050 = vunpack.c.l.b16 %v6016
        %v6051 = vunpack.c.l.b16 %v6017
        %v6052 = vpack.c.b16 %v6042, %v6041
        %v6053 = vpack.c.b16 %v6044, %v6043
        %v6054 = vpack.c.b16 %v6046, %v6045
        %v6055 = vpack.c.b16 %v6048, %v6047
        %v6056 = vpack.c.b16 %v6050, %v6049
        %v6057 = vpack.c.b16 %v6051, %v6051
        %v6064 = vsel %vm4835, %v6024, 0
        %v6067 = vsel %vm4835, %v6025, 0
        %v6070 = vsel %vm4835, %v6026, 0
        %v6073 = vsel %vm4835, %v6027, 0
        %v6076 = vsel %vm4835, %v6028, 0
        %v6079 = vsel %vm4835, %v6029, 0
        %v6082 = vsel %vm4854, %v6057, 0
        %6084 = vmatprep.subr.bf16.mxu0 0
        %6085 = vmatpush1.bf16.msra.mxu0 %v6052
        %6086 = vmatprep.subr.bf16.mxu0 0
        %6087 = vmatpush1.bf16.msra.mxu0 %v6053
        %6088 = vmatprep.subr.bf16.mxu0 0
        %6089 = vmatpush1.bf16.msra.mxu0 %v6054
        %6090 = vmatprep.subr.bf16.mxu0 0
        %6091 = vmatpush1.bf16.msra.mxu0 %v6055
        %6092 = vmatprep.subr.bf16.mxu0 0
        %6093 = vmatpush1.bf16.msra.mxu0 %v6056
        %6094 = vmatprep.subr.bf16.mxu0 0
        %6095 = vmatpush1.bf16.msra.mxu0 %v6082
        %6096 = vmatprep.subr.bf16.mxu0 0
        %6097 = vmatpush1.bf16.msra.mxu0 0
        %6098 = vmatprep.subr.bf16.mxu0 0
        %6099 = vmatpush1.bf16.msra.mxu0 0
        %6100 = vmatprep.subr.bf16.mxu0 0
        %6101 = vmatpush1.bf16.msra.mxu0 0
        %6102 = vmatprep.subr.bf16.mxu0 0
        %6103 = vmatpush1.bf16.msra.mxu0 0
        %6104 = vmatprep.subr.bf16.mxu0 0
        %6105 = vmatpush1.bf16.msra.mxu0 0
        %6106 = vmatprep.subr.bf16.mxu0 0
        %6107 = vmatpush1.bf16.msra.mxu0 0
        %6108 = vmatprep.subr.bf16.mxu0 0
        %6109 = vmatpush1.bf16.msra.mxu0 0
        %6110 = vmatprep.subr.bf16.mxu0 0
        %6111 = vmatpush1.bf16.msra.mxu0 0
        %6112 = vmatprep.subr.bf16.mxu0 0
        %6113 = vmatpush1.bf16.msra.mxu0 0
        %6114 = vmatprep.subr.bf16.mxu0 0
        %6115 = vmatpush1.bf16.msra.mxu0 0
        %6116 = vmatprep.mubr.bf16.mxu0 0
        %6117 = vmatmul.mubr.bf16.gmra.mrb[0].mxu0 %v6064
        %v6118 = vpop.f32.mrb[0].mxu0
        %v6119 = vadd.f32 0.0, %v6118
        %v6120 = vpop.f32.mrb[0].mxu0
        %v6121 = vpop.f32.mrb[0].mxu0
        %v6122 = vadd.f32 0.0, %v6121
        %v6123 = vpop.f32.mrb[0].mxu0
        %6124 = vmatprep.mubr.bf16.mxu0 0
        %6125 = vmatmul.mubr.bf16.gmra.mrb[0].mxu0 %v6067
        %v6126 = vpop.f32.mrb[0].mxu0
        %v6127 = vadd.f32 0.0, %v6126
        %v6128 = vpop.f32.mrb[0].mxu0
        %v6129 = vpop.f32.mrb[0].mxu0
        %v6130 = vadd.f32 0.0, %v6129
        %v6131 = vpop.f32.mrb[0].mxu0
        %6132 = vmatprep.mubr.bf16.mxu0 0
        %6133 = vmatmul.mubr.bf16.gmra.mrb[0].mxu0 %v6070
        %v6134 = vpop.f32.mrb[0].mxu0
        %v6135 = vadd.f32 0.0, %v6134
        %v6136 = vpop.f32.mrb[0].mxu0
        %v6137 = vpop.f32.mrb[0].mxu0
        %v6138 = vadd.f32 0.0, %v6137
        %v6139 = vpop.f32.mrb[0].mxu0
        %6140 = vmatprep.mubr.bf16.mxu0 0
        %6141 = vmatmul.mubr.bf16.gmra.mrb[0].mxu0 %v6073
        %v6142 = vpop.f32.mrb[0].mxu0
        %v6143 = vadd.f32 0.0, %v6142
        %v6144 = vpop.f32.mrb[0].mxu0
        %v6145 = vpop.f32.mrb[0].mxu0
        %v6146 = vadd.f32 0.0, %v6145
        %v6147 = vpop.f32.mrb[0].mxu0
        %6148 = vmatprep.mubr.bf16.mxu0 0
        %6149 = vmatmul.mubr.bf16.gmra.mrb[0].mxu0 %v6076
        %v6150 = vpop.f32.mrb[0].mxu0
        %v6151 = vadd.f32 0.0, %v6150
        %v6152 = vpop.f32.mrb[0].mxu0
        %v6153 = vpop.f32.mrb[0].mxu0
        %v6154 = vadd.f32 0.0, %v6153
        %v6155 = vpop.f32.mrb[0].mxu0
        %6156 = vmatprep.mubr.bf16.mxu0 0
        %6157 = vmatmul.mubr.bf16.gmra.mrb[0].mxu0 %v6079
        %v6158 = vpop.f32.mrb[0].mxu0
        %v6159 = vadd.f32 0.0, %v6158
        %v6160 = vpop.f32.mrb[0].mxu0
        %v6161 = vpop.f32.mrb[0].mxu0
        %v6162 = vpop.f32.mrb[0].mxu0
        %6163 = vdwg.mxu0
        %v6164 = vpack.c.bf16 %v6122, %v6119
        %v6165 = vpack.c.bf16 %v6130, %v6127
        %v6166 = vpack.c.bf16 %v6138, %v6135
        %v6167 = vpack.c.bf16 %v6146, %v6143
        %v6168 = vpack.c.bf16 %v6154, %v6151
        %v6169 = vpack.c.bf16 %v6159, %v6159
        %v6176 = vunpack.c.l.b16 %v6018
        %v6177 = vunpack.c.l.b16 %v6019
        %v6178 = vunpack.c.l.b16 %v6020
        %v6179 = vunpack.c.l.b16 %v6021
        %v6180 = vunpack.c.l.b16 %v6022
        %v6181 = vunpack.c.l.b16 %v6023
        %v6182 = vpack.c.b16 %v6177, %v6176
        %v6183 = vpack.c.b16 %v6179, %v6178
        %v6184 = vpack.c.b16 %v6181, %v6180
        %v6186 = vsel %vm4835, %v6182, 0
        %v6189 = vsel %vm4835, %v6183, 0
        %v6192 = vsel %vm4835, %v6184, 0
        %v6195 = vsel %vm4854, %v6169, 0
        %6197 = vmatprep.subr.bf16.mxu0 0
        %6198 = vmatpush1.bf16.msra.mxu0 %v6164
        %6199 = vmatprep.subr.bf16.mxu0 0
        %6200 = vmatpush1.bf16.msra.mxu0 %v6165
        %6201 = vmatprep.subr.bf16.mxu0 0
        %6202 = vmatpush1.bf16.msra.mxu0 %v6166
        %6203 = vmatprep.subr.bf16.mxu0 0
        %6204 = vmatpush1.bf16.msra.mxu0 %v6167
        %6205 = vmatprep.subr.bf16.mxu0 0
        %6206 = vmatpush1.bf16.msra.mxu0 %v6168
        %6207 = vmatprep.subr.bf16.mxu0 0
        %6208 = vmatpush1.bf16.msra.mxu0 %v6195
        %6209 = vmatprep.subr.bf16.mxu0 0
        %6210 = vmatpush1.bf16.msra.mxu0 0
        %6211 = vmatprep.subr.bf16.mxu0 0
        %6212 = vmatpush1.bf16.msra.mxu0 0
        %6213 = vmatprep.subr.bf16.mxu0 0
        %6214 = vmatpush1.bf16.msra.mxu0 0
        %6215 = vmatprep.subr.bf16.mxu0 0
        %6216 = vmatpush1.bf16.msra.mxu0 0
        %6217 = vmatprep.subr.bf16.mxu0 0
        %6218 = vmatpush1.bf16.msra.mxu0 0
        %6219 = vmatprep.subr.bf16.mxu0 0
        %6220 = vmatpush1.bf16.msra.mxu0 0
        %6221 = vmatprep.subr.bf16.mxu0 0
        %6222 = vmatpush1.bf16.msra.mxu0 0
        %6223 = vmatprep.subr.bf16.mxu0 0
        %6224 = vmatpush1.bf16.msra.mxu0 0
        %6225 = vmatprep.subr.bf16.mxu0 0
        %6226 = vmatpush1.bf16.msra.mxu0 0
        %6227 = vmatprep.subr.bf16.mxu0 0
        %6228 = vmatpush1.bf16.msra.mxu0 0
        %6229 = vmatprep.mubr.bf16.mxu0 0
        %6230 = vmatmul.mubr.bf16.gmra.mrb[0].mxu0 %v6186
        %v6231 = vpop.f32.mrb[0].mxu0
        %v6232 = vadd.f32 0.0, %v6231
        %v6233 = vpop.f32.mrb[0].mxu0
        %v6234 = vpop.f32.mrb[0].mxu0
        %v6235 = vadd.f32 0.0, %v6234
        %v6236 = vpop.f32.mrb[0].mxu0
        %6237 = vmatprep.mubr.bf16.mxu0 0
        %6238 = vmatmul.mubr.bf16.gmra.mrb[0].mxu0 %v6189
        %v6239 = vpop.f32.mrb[0].mxu0
        %v6240 = vadd.f32 0.0, %v6239
        %v6241 = vpop.f32.mrb[0].mxu0
        %v6242 = vpop.f32.mrb[0].mxu0
        %v6243 = vadd.f32 0.0, %v6242
        %v6244 = vpop.f32.mrb[0].mxu0
        %6245 = vmatprep.mubr.bf16.mxu0 0
        %6246 = vmatmul.mubr.bf16.gmra.mrb[0].mxu0 %v6192
        %v6247 = vpop.f32.mrb[0].mxu0
        %v6248 = vadd.f32 0.0, %v6247
        %v6249 = vpop.f32.mrb[0].mxu0
        %v6250 = vpop.f32.mrb[0].mxu0
        %v6251 = vadd.f32 0.0, %v6250
        %v6252 = vpop.f32.mrb[0].mxu0
        %6253 = vdwg.mxu0
        %v6254 = vpack.c.bf16 %v4711, %v4708
        %v6255 = vpack.c.bf16 %v4719, %v4716
        %v6256 = vpack.c.bf16 %v4727, %v4724
        %v6257 = vpack.c.bf16 %v4735, %v4732
        %v6258 = vpack.c.bf16 %v4743, %v4740
        %v6259 = vpack.c.bf16 %v4748, %v4748
        %v6261 = vsel %vm4835, %v6254, 0
        %v6264 = vsel %vm4835, %v6255, 0
        %v6267 = vsel %vm4835, %v6256, 0
        %v6270 = vsel %vm4835, %v6257, 0
        %v6273 = vsel %vm4835, %v6258, 0
        %v6276 = vsel %vm4835, %v6259, 0
        %6278 = vmatprep.subr.bf16.mxu0 0
        %6279 = vmatpush1.bf16.msra.mxu0 %v6052
        %6280 = vmatprep.subr.bf16.mxu0 0
        %6281 = vmatpush1.bf16.msra.mxu0 %v6053
        %6282 = vmatprep.subr.bf16.mxu0 0
        %6283 = vmatpush1.bf16.msra.mxu0 %v6054
        %6284 = vmatprep.subr.bf16.mxu0 0
        %6285 = vmatpush1.bf16.msra.mxu0 %v6055
        %6286 = vmatprep.subr.bf16.mxu0 0
        %6287 = vmatpush1.bf16.msra.mxu0 %v6056
        %6288 = vmatprep.subr.bf16.mxu0 0
        %6289 = vmatpush1.bf16.msra.mxu0 %v6082
        %6290 = vmatprep.subr.bf16.mxu0 0
        %6291 = vmatpush1.bf16.msra.mxu0 0
        %6292 = vmatprep.subr.bf16.mxu0 0
        %6293 = vmatpush1.bf16.msra.mxu0 0
        %6294 = vmatprep.subr.bf16.mxu0 0
        %6295 = vmatpush1.bf16.msra.mxu0 0
        %6296 = vmatprep.subr.bf16.mxu0 0
        %6297 = vmatpush1.bf16.msra.mxu0 0
        %6298 = vmatprep.subr.bf16.mxu0 0
        %6299 = vmatpush1.bf16.msra.mxu0 0
        %6300 = vmatprep.subr.bf16.mxu0 0
        %6301 = vmatpush1.bf16.msra.mxu0 0
        %6302 = vmatprep.subr.bf16.mxu0 0
        %6303 = vmatpush1.bf16.msra.mxu0 0
        %6304 = vmatprep.subr.bf16.mxu0 0
        %6305 = vmatpush1.bf16.msra.mxu0 0
        %6306 = vmatprep.subr.bf16.mxu0 0
        %6307 = vmatpush1.bf16.msra.mxu0 0
        %6308 = vmatprep.subr.bf16.mxu0 0
        %6309 = vmatpush1.bf16.msra.mxu0 0
        %6310 = vmatprep.mubr.bf16.mxu0 0
        %6311 = vmatmul.mubr.bf16.gmra.mrb[0].mxu0 %v6261
        %v6312 = vpop.f32.mrb[0].mxu0
        %v6313 = vadd.f32 0.0, %v6312
        %v6314 = vpop.f32.mrb[0].mxu0
        %v6315 = vpop.f32.mrb[0].mxu0
        %v6316 = vadd.f32 0.0, %v6315
        %v6317 = vpop.f32.mrb[0].mxu0
        %6318 = vmatprep.mubr.bf16.mxu0 0
        %6319 = vmatmul.mubr.bf16.gmra.mrb[0].mxu0 %v6264
        %v6320 = vpop.f32.mrb[0].mxu0
        %v6321 = vadd.f32 0.0, %v6320
        %v6322 = vpop.f32.mrb[0].mxu0
        %v6323 = vpop.f32.mrb[0].mxu0
        %v6324 = vadd.f32 0.0, %v6323
        %v6325 = vpop.f32.mrb[0].mxu0
        %6326 = vmatprep.mubr.bf16.mxu0 0
        %6327 = vmatmul.mubr.bf16.gmra.mrb[0].mxu0 %v6267
        %v6328 = vpop.f32.mrb[0].mxu0
        %v6329 = vadd.f32 0.0, %v6328
        %v6330 = vpop.f32.mrb[0].mxu0
        %v6331 = vpop.f32.mrb[0].mxu0
        %v6332 = vadd.f32 0.0, %v6331
        %v6333 = vpop.f32.mrb[0].mxu0
        %6334 = vmatprep.mubr.bf16.mxu0 0
        %6335 = vmatmul.mubr.bf16.gmra.mrb[0].mxu0 %v6270
        %v6336 = vpop.f32.mrb[0].mxu0
        %v6337 = vadd.f32 0.0, %v6336
        %v6338 = vpop.f32.mrb[0].mxu0
        %v6339 = vpop.f32.mrb[0].mxu0
        %v6340 = vadd.f32 0.0, %v6339
        %v6341 = vpop.f32.mrb[0].mxu0
        %6342 = vmatprep.mubr.bf16.mxu0 0
        %6343 = vmatmul.mubr.bf16.gmra.mrb[0].mxu0 %v6273
        %v6344 = vpop.f32.mrb[0].mxu0
        %v6345 = vadd.f32 0.0, %v6344
        %v6346 = vpop.f32.mrb[0].mxu0
        %v6347 = vpop.f32.mrb[0].mxu0
        %v6348 = vadd.f32 0.0, %v6347
        %v6349 = vpop.f32.mrb[0].mxu0
        %6350 = vmatprep.mubr.bf16.mxu0 0
        %6351 = vmatmul.mubr.bf16.gmra.mrb[0].mxu0 %v6276
        %v6352 = vpop.f32.mrb[0].mxu0
        %v6353 = vadd.f32 0.0, %v6352
        %v6354 = vpop.f32.mrb[0].mxu0
        %v6355 = vpop.f32.mrb[0].mxu0
        %v6356 = vpop.f32.mrb[0].mxu0
        %6357 = vdwg.mxu0
        %v6358 = vpack.c.bf16 %v6316, %v6313
        %v6359 = vpack.c.bf16 %v6324, %v6321
        %v6360 = vpack.c.bf16 %v6332, %v6329
        %v6361 = vpack.c.bf16 %v6340, %v6337
        %v6362 = vpack.c.bf16 %v6348, %v6345
        %v6363 = vpack.c.bf16 %v6353, %v6353
        %v6365 = vsel %vm4854, %v6363, 0
        %6367 = vmatprep.subr.bf16.mxu0 0
        %6368 = vmatpush1.bf16.msra.mxu0 %v6358
        %6369 = vmatprep.subr.bf16.mxu0 0
        %6370 = vmatpush1.bf16.msra.mxu0 %v6359
        %6371 = vmatprep.subr.bf16.mxu0 0
        %6372 = vmatpush1.bf16.msra.mxu0 %v6360
        %6373 = vmatprep.subr.bf16.mxu0 0
        %6374 = vmatpush1.bf16.msra.mxu0 %v6361
        %6375 = vmatprep.subr.bf16.mxu0 0
        %6376 = vmatpush1.bf16.msra.mxu0 %v6362
        %6377 = vmatprep.subr.bf16.mxu0 0
        %6378 = vmatpush1.bf16.msra.mxu0 %v6365
        %6379 = vmatprep.subr.bf16.mxu0 0
        %6380 = vmatpush1.bf16.msra.mxu0 0
        %6381 = vmatprep.subr.bf16.mxu0 0
        %6382 = vmatpush1.bf16.msra.mxu0 0
        %6383 = vmatprep.subr.bf16.mxu0 0
        %6384 = vmatpush1.bf16.msra.mxu0 0
        %6385 = vmatprep.subr.bf16.mxu0 0
        %6386 = vmatpush1.bf16.msra.mxu0 0
        %6387 = vmatprep.subr.bf16.mxu0 0
        %6388 = vmatpush1.bf16.msra.mxu0 0
        %6389 = vmatprep.subr.bf16.mxu0 0
        %6390 = vmatpush1.bf16.msra.mxu0 0
        %6391 = vmatprep.subr.bf16.mxu0 0
        %6392 = vmatpush1.bf16.msra.mxu0 0
        %6393 = vmatprep.subr.bf16.mxu0 0
        %6394 = vmatpush1.bf16.msra.mxu0 0
        %6395 = vmatprep.subr.bf16.mxu0 0
        %6396 = vmatpush1.bf16.msra.mxu0 0
        %6397 = vmatprep.subr.bf16.mxu0 0
        %6398 = vmatpush1.bf16.msra.mxu0 0
        %6399 = vmatprep.mubr.bf16.mxu0 0
        %6400 = vmatmul.mubr.bf16.gmra.mrb[0].mxu0 %v6186
        %v6401 = vpop.f32.mrb[0].mxu0
        %v6402 = vadd.f32 0.0, %v6401
        %v6403 = vpop.f32.mrb[0].mxu0
        %v6404 = vpop.f32.mrb[0].mxu0
        %v6405 = vadd.f32 0.0, %v6404
        %v6406 = vpop.f32.mrb[0].mxu0
        %6407 = vmatprep.mubr.bf16.mxu0 0
        %6408 = vmatmul.mubr.bf16.gmra.mrb[0].mxu0 %v6189
        %v6409 = vpop.f32.mrb[0].mxu0
        %v6410 = vadd.f32 0.0, %v6409
        %v6411 = vpop.f32.mrb[0].mxu0
        %v6412 = vpop.f32.mrb[0].mxu0
        %v6413 = vadd.f32 0.0, %v6412
        %v6414 = vpop.f32.mrb[0].mxu0
        %6415 = vmatprep.mubr.bf16.mxu0 0
        %6416 = vmatmul.mubr.bf16.gmra.mrb[0].mxu0 %v6192
        %v6417 = vpop.f32.mrb[0].mxu0
        %v6418 = vadd.f32 0.0, %v6417
        %v6419 = vpop.f32.mrb[0].mxu0
        %v6420 = vpop.f32.mrb[0].mxu0
        %v6421 = vadd.f32 0.0, %v6420
        %v6422 = vpop.f32.mrb[0].mxu0
        %6423 = vdwg.mxu0
        %v6424 = vld [vmem:[%s4] sm:$0xf]
        %v6425 = vld [vmem:[%s4 + $0x4] sm:$0xf]
        %v6426 = vld [vmem:[%s4 + $0x8] sm:$0xf]
        %v6427 = vld [vmem:[%s4 + $0xc] sm:$0xf]
        %v6428 = vld [vmem:[%s4 + $0x10] sm:$0xf]
        %v6429 = vld [vmem:[%s4 + $0x14] sm:$0x3]
        %v6430 = vld [vmem:[#allocation10] sm:$0xf]
        %v6431 = vld [vmem:[#allocation10 + $0x4] sm:$0xf]
        %v6432 = vld [vmem:[#allocation10 + $0x8] sm:$0xf]
        %v6433 = vld [vmem:[#allocation10 + $0xc] sm:$0xf]
        %v6434 = vld [vmem:[#allocation10 + $0x10] sm:$0x1]
        %v6435 = vsub.f32 %v6232, 0.5
        %v6436 = vsub.f32 %v6235, 0.5
        %v6437 = vsub.f32 %v6240, 0.5
        %v6438 = vsub.f32 %v6243, 0.5
        %v6439 = vsub.f32 %v6248, 0.5
        %v6440 = vsub.f32 %v6251, 0.5
        %v6441 = vsub.f32 %v6402, 0.5
        %v6442 = vsub.f32 %v6405, 0.5
        %v6443 = vsub.f32 %v6410, 0.5
        %v6444 = vsub.f32 %v6413, 0.5
        %v6445 = vsub.f32 %v6418, 0.5
        %v6446 = vsub.f32 %v6421, 0.5
        %v6447 = vpack.c.bf16 %v6436, %v6435
        %v6448 = vpack.c.bf16 %v6438, %v6437
        %v6449 = vpack.c.bf16 %v6440, %v6439
        %v6456 = vunpack.c.l.b16 %v6424
        %v6457 = vunpack.c.l.b16 %v6425
        %v6458 = vunpack.c.l.b16 %v6426
        %v6459 = vunpack.c.l.b16 %v6427
        %v6460 = vunpack.c.l.b16 %v6428
        %v6461 = vunpack.c.l.b16 %v6429
        %v6462 = vpack.c.b16 %v6457, %v6456
        %v6463 = vpack.c.b16 %v6459, %v6458
        %v6464 = vpack.c.b16 %v6461, %v6460
        %vm6467 = vcmask 359424
        %v6469 = vsel %vm6467, %v6447, 0
        %v6472 = vsel %vm6467, %v6448, 0
        %v6475 = vsel %vm6467, %v6449, 0
        %v6478 = vsel %vm4015, %v6464, 0
        %6480 = vmatprep.subr.bf16.mxu0 0
        %6481 = vmatpush1.bf16.msra.mxu0 %v6462
        %6482 = vmatprep.subr.bf16.mxu0 0
        %6483 = vmatpush1.bf16.msra.mxu0 %v6463
        %6484 = vmatprep.subr.bf16.mxu0 0
        %6485 = vmatpush1.bf16.msra.mxu0 %v6478
        %6486 = vmatprep.subr.bf16.mxu0 0
        %6487 = vmatpush1.bf16.msra.mxu0 0
        %6488 = vmatprep.subr.bf16.mxu0 0
        %6489 = vmatpush1.bf16.msra.mxu0 0
        %6490 = vmatprep.subr.bf16.mxu0 0
        %6491 = vmatpush1.bf16.msra.mxu0 0
        %6492 = vmatprep.subr.bf16.mxu0 0
        %6493 = vmatpush1.bf16.msra.mxu0 0
        %6494 = vmatprep.subr.bf16.mxu0 0
        %6495 = vmatpush1.bf16.msra.mxu0 0
        %6496 = vmatprep.subr.bf16.mxu0 0
        %6497 = vmatpush1.bf16.msra.mxu0 0
        %6498 = vmatprep.subr.bf16.mxu0 0
        %6499 = vmatpush1.bf16.msra.mxu0 0
        %6500 = vmatprep.subr.bf16.mxu0 0
        %6501 = vmatpush1.bf16.msra.mxu0 0
        %6502 = vmatprep.subr.bf16.mxu0 0
        %6503 = vmatpush1.bf16.msra.mxu0 0
        %6504 = vmatprep.subr.bf16.mxu0 0
        %6505 = vmatpush1.bf16.msra.mxu0 0
        %6506 = vmatprep.subr.bf16.mxu0 0
        %6507 = vmatpush1.bf16.msra.mxu0 0
        %6508 = vmatprep.subr.bf16.mxu0 0
        %6509 = vmatpush1.bf16.msra.mxu0 0
        %6510 = vmatprep.subr.bf16.mxu0 0
        %6511 = vmatpush1.bf16.msra.mxu0 0
        %6512 = vmatprep.mubr.bf16.mxu0 0
        %6513 = vmatmul.mubr.bf16.gmra.mrb[0].mxu0 %v6469
        %v6514 = vpop.f32.mrb[0].mxu0
        %v6515 = vadd.f32 0.0, %v6514
        %v6516 = vpop.f32.mrb[0].mxu0
        %v6517 = vpop.f32.mrb[0].mxu0
        %v6518 = vadd.f32 0.0, %v6517
        %v6519 = vpop.f32.mrb[0].mxu0
        %6520 = vmatprep.mubr.bf16.mxu0 0
        %6521 = vmatmul.mubr.bf16.gmra.mrb[0].mxu0 %v6472
        %v6522 = vpop.f32.mrb[0].mxu0
        %v6523 = vadd.f32 0.0, %v6522
        %v6524 = vpop.f32.mrb[0].mxu0
        %v6525 = vpop.f32.mrb[0].mxu0
        %v6526 = vadd.f32 0.0, %v6525
        %v6527 = vpop.f32.mrb[0].mxu0
        %6528 = vmatprep.mubr.bf16.mxu0 0
        %6529 = vmatmul.mubr.bf16.gmra.mrb[0].mxu0 %v6475
        %v6530 = vpop.f32.mrb[0].mxu0
        %v6531 = vadd.f32 0.0, %v6530
        %v6532 = vpop.f32.mrb[0].mxu0
        %v6533 = vpop.f32.mrb[0].mxu0
        %v6534 = vadd.f32 0.0, %v6533
        %v6535 = vpop.f32.mrb[0].mxu0
        %6536 = vdwg.mxu0
        %v6537 = vpack.c.bf16 %v6518, %v6515
        %v6538 = vpack.c.bf16 %v6526, %v6523
        %v6539 = vpack.c.bf16 %v6534, %v6531
        %v6545 = vunpack.c.l.b16 %v6430
        %v6546 = vunpack.c.l.b16 %v6431
        %v6547 = vunpack.c.l.b16 %v6432
        %v6548 = vunpack.c.l.b16 %v6433
        %v6549 = vunpack.c.l.b16 %v6434
        %v6550 = vpack.c.b16 %v6546, %v6545
        %v6551 = vpack.c.b16 %v6548, %v6547
        %v6552 = vpack.c.b16 %v6549, %v6549
        %v6554 = vsel %vm6467, %v6550, 0
        %v6557 = vsel %vm6467, %v6551, 0
        %v6560 = vsel %vm6467, %v6552, 0
        %v6563 = vsel %vm4015, %v6539, 0
        %6565 = vmatprep.subr.bf16.mxu0 0
        %6566 = vmatpush1.bf16.msra.mxu0 %v6537
        %6567 = vmatprep.subr.bf16.mxu0 0
        %6568 = vmatpush1.bf16.msra.mxu0 %v6538
        %6569 = vmatprep.subr.bf16.mxu0 0
        %6570 = vmatpush1.bf16.msra.mxu0 %v6563
        %6571 = vmatprep.subr.bf16.mxu0 0
        %6572 = vmatpush1.bf16.msra.mxu0 0
        %6573 = vmatprep.subr.bf16.mxu0 0
        %6574 = vmatpush1.bf16.msra.mxu0 0
        %6575 = vmatprep.subr.bf16.mxu0 0
        %6576 = vmatpush1.bf16.msra.mxu0 0
        %6577 = vmatprep.subr.bf16.mxu0 0
        %6578 = vmatpush1.bf16.msra.mxu0 0
        %6579 = vmatprep.subr.bf16.mxu0 0
        %6580 = vmatpush1.bf16.msra.mxu0 0
        %6581 = vmatprep.subr.bf16.mxu0 0
        %6582 = vmatpush1.bf16.msra.mxu0 0
        %6583 = vmatprep.subr.bf16.mxu0 0
        %6584 = vmatpush1.bf16.msra.mxu0 0
        %6585 = vmatprep.subr.bf16.mxu0 0
        %6586 = vmatpush1.bf16.msra.mxu0 0
        %6587 = vmatprep.subr.bf16.mxu0 0
        %6588 = vmatpush1.bf16.msra.mxu0 0
        %6589 = vmatprep.subr.bf16.mxu0 0
        %6590 = vmatpush1.bf16.msra.mxu0 0
        %6591 = vmatprep.subr.bf16.mxu0 0
        %6592 = vmatpush1.bf16.msra.mxu0 0
        %6593 = vmatprep.subr.bf16.mxu0 0
        %6594 = vmatpush1.bf16.msra.mxu0 0
        %6595 = vmatprep.subr.bf16.mxu0 0
        %6596 = vmatpush1.bf16.msra.mxu0 0
        %6597 = vmatprep.mubr.bf16.mxu0 0
        %6598 = vmatmul.mubr.bf16.gmra.mrb[0].mxu0 %v6554
        %v6599 = vpop.f32.mrb[0].mxu0
        %v6600 = vadd.f32 0.0, %v6599
        %v6601 = vpop.f32.mrb[0].mxu0
        %v6602 = vpop.f32.mrb[0].mxu0
        %v6603 = vadd.f32 0.0, %v6602
        %v6604 = vpop.f32.mrb[0].mxu0
        %6605 = vmatprep.mubr.bf16.mxu0 0
        %6606 = vmatmul.mubr.bf16.gmra.mrb[0].mxu0 %v6557
        %v6607 = vpop.f32.mrb[0].mxu0
        %v6608 = vadd.f32 0.0, %v6607
        %v6609 = vpop.f32.mrb[0].mxu0
        %v6610 = vpop.f32.mrb[0].mxu0
        %v6611 = vadd.f32 0.0, %v6610
        %v6612 = vpop.f32.mrb[0].mxu0
        %6613 = vmatprep.mubr.bf16.mxu0 0
        %6614 = vmatmul.mubr.bf16.gmra.mrb[0].mxu0 %v6560
        %v6615 = vpop.f32.mrb[0].mxu0
        %v6616 = vadd.f32 0.0, %v6615
        %v6617 = vpop.f32.mrb[0].mxu0
        %v6618 = vpop.f32.mrb[0].mxu0
        %v6619 = vpop.f32.mrb[0].mxu0
        %6620 = vdwg.mxu0
        %v6621 = vpack.c.bf16 %v6442, %v6441
        %v6622 = vpack.c.bf16 %v6444, %v6443
        %v6623 = vpack.c.bf16 %v6446, %v6445
        %v6625 = vsel %vm6467, %v6621, 0
        %v6628 = vsel %vm6467, %v6622, 0
        %v6631 = vsel %vm6467, %v6623, 0
        %6633 = vmatprep.subr.bf16.mxu0 0
        %6634 = vmatpush1.bf16.msra.mxu0 %v6462
        %6635 = vmatprep.subr.bf16.mxu0 0
        %6636 = vmatpush1.bf16.msra.mxu0 %v6463
        %6637 = vmatprep.subr.bf16.mxu0 0
        %6638 = vmatpush1.bf16.msra.mxu0 %v6478
        %6639 = vmatprep.subr.bf16.mxu0 0
        %6640 = vmatpush1.bf16.msra.mxu0 0
        %6641 = vmatprep.subr.bf16.mxu0 0
        %6642 = vmatpush1.bf16.msra.mxu0 0
        %6643 = vmatprep.subr.bf16.mxu0 0
        %6644 = vmatpush1.bf16.msra.mxu0 0
        %6645 = vmatprep.subr.bf16.mxu0 0
        %6646 = vmatpush1.bf16.msra.mxu0 0
        %6647 = vmatprep.subr.bf16.mxu0 0
        %6648 = vmatpush1.bf16.msra.mxu0 0
        %6649 = vmatprep.subr.bf16.mxu0 0
        %6650 = vmatpush1.bf16.msra.mxu0 0
        %6651 = vmatprep.subr.bf16.mxu0 0
        %6652 = vmatpush1.bf16.msra.mxu0 0
        %6653 = vmatprep.subr.bf16.mxu0 0
        %6654 = vmatpush1.bf16.msra.mxu0 0
        %6655 = vmatprep.subr.bf16.mxu0 0
        %6656 = vmatpush1.bf16.msra.mxu0 0
        %6657 = vmatprep.subr.bf16.mxu0 0
        %6658 = vmatpush1.bf16.msra.mxu0 0
        %6659 = vmatprep.subr.bf16.mxu0 0
        %6660 = vmatpush1.bf16.msra.mxu0 0
        %6661 = vmatprep.subr.bf16.mxu0 0
        %6662 = vmatpush1.bf16.msra.mxu0 0
        %6663 = vmatprep.subr.bf16.mxu0 0
        %6664 = vmatpush1.bf16.msra.mxu0 0
        %6665 = vmatprep.mubr.bf16.mxu0 0
        %6666 = vmatmul.mubr.bf16.gmra.mrb[0].mxu0 %v6625
        %v6667 = vpop.f32.mrb[0].mxu0
        %v6668 = vadd.f32 0.0, %v6667
        %v6669 = vpop.f32.mrb[0].mxu0
        %v6670 = vpop.f32.mrb[0].mxu0
        %v6671 = vadd.f32 0.0, %v6670
        %v6672 = vpop.f32.mrb[0].mxu0
        %6673 = vmatprep.mubr.bf16.mxu0 0
        %6674 = vmatmul.mubr.bf16.gmra.mrb[0].mxu0 %v6628
        %v6675 = vpop.f32.mrb[0].mxu0
        %v6676 = vadd.f32 0.0, %v6675
        %v6677 = vpop.f32.mrb[0].mxu0
        %v6678 = vpop.f32.mrb[0].mxu0
        %v6679 = vadd.f32 0.0, %v6678
        %v6680 = vpop.f32.mrb[0].mxu0
        %6681 = vmatprep.mubr.bf16.mxu0 0
        %6682 = vmatmul.mubr.bf16.gmra.mrb[0].mxu0 %v6631
        %v6683 = vpop.f32.mrb[0].mxu0
        %v6684 = vadd.f32 0.0, %v6683
        %v6685 = vpop.f32.mrb[0].mxu0
        %v6686 = vpop.f32.mrb[0].mxu0
        %v6687 = vadd.f32 0.0, %v6686
        %v6688 = vpop.f32.mrb[0].mxu0
        %6689 = vdwg.mxu0
        %v6690 = vpack.c.bf16 %v6671, %v6668
        %v6691 = vpack.c.bf16 %v6679, %v6676
        %v6692 = vpack.c.bf16 %v6687, %v6684
        %v6694 = vsel %vm4015, %v6692, 0
        %6696 = vmatprep.subr.bf16.mxu0 0
        %6697 = vmatpush1.bf16.msra.mxu0 %v6690
        %6698 = vmatprep.subr.bf16.mxu0 0
        %6699 = vmatpush1.bf16.msra.mxu0 %v6691
        %6700 = vmatprep.subr.bf16.mxu0 0
        %6701 = vmatpush1.bf16.msra.mxu0 %v6694
        %6702 = vmatprep.subr.bf16.mxu0 0
        %6703 = vmatpush1.bf16.msra.mxu0 0
        %6704 = vmatprep.subr.bf16.mxu0 0
        %6705 = vmatpush1.bf16.msra.mxu0 0
        %6706 = vmatprep.subr.bf16.mxu0 0
        %6707 = vmatpush1.bf16.msra.mxu0 0
        %6708 = vmatprep.subr.bf16.mxu0 0
        %6709 = vmatpush1.bf16.msra.mxu0 0
        %6710 = vmatprep.subr.bf16.mxu0 0
        %6711 = vmatpush1.bf16.msra.mxu0 0
        %6712 = vmatprep.subr.bf16.mxu0 0
        %6713 = vmatpush1.bf16.msra.mxu0 0
        %6714 = vmatprep.subr.bf16.mxu0 0
        %6715 = vmatpush1.bf16.msra.mxu0 0
        %6716 = vmatprep.subr.bf16.mxu0 0
        %6717 = vmatpush1.bf16.msra.mxu0 0
        %6718 = vmatprep.subr.bf16.mxu0 0
        %6719 = vmatpush1.bf16.msra.mxu0 0
        %6720 = vmatprep.subr.bf16.mxu0 0
        %6721 = vmatpush1.bf16.msra.mxu0 0
        %6722 = vmatprep.subr.bf16.mxu0 0
        %6723 = vmatpush1.bf16.msra.mxu0 0
        %6724 = vmatprep.subr.bf16.mxu0 0
        %6725 = vmatpush1.bf16.msra.mxu0 0
        %6726 = vmatprep.subr.bf16.mxu0 0
        %6727 = vmatpush1.bf16.msra.mxu0 0
        %6728 = vmatprep.mubr.bf16.mxu0 0
        %6729 = vmatmul.mubr.bf16.gmra.mrb[0].mxu0 %v6554
        %v6730 = vpop.f32.mrb[0].mxu0
        %v6731 = vadd.f32 0.0, %v6730
        %v6732 = vpop.f32.mrb[0].mxu0
        %v6733 = vpop.f32.mrb[0].mxu0
        %v6734 = vadd.f32 0.0, %v6733
        %v6735 = vpop.f32.mrb[0].mxu0
        %6736 = vmatprep.mubr.bf16.mxu0 0
        %6737 = vmatmul.mubr.bf16.gmra.mrb[0].mxu0 %v6557
        %v6738 = vpop.f32.mrb[0].mxu0
        %v6739 = vadd.f32 0.0, %v6738
        %v6740 = vpop.f32.mrb[0].mxu0
        %v6741 = vpop.f32.mrb[0].mxu0
        %v6742 = vadd.f32 0.0, %v6741
        %v6743 = vpop.f32.mrb[0].mxu0
        %6744 = vmatprep.mubr.bf16.mxu0 0
        %6745 = vmatmul.mubr.bf16.gmra.mrb[0].mxu0 %v6560
        %v6746 = vpop.f32.mrb[0].mxu0
        %v6747 = vadd.f32 0.0, %v6746
        %v6748 = vpop.f32.mrb[0].mxu0
        %v6749 = vpop.f32.mrb[0].mxu0
        %v6750 = vpop.f32.mrb[0].mxu0
        %6751 = vdwg.mxu0
        %v6752 = vmul.f32 %v6435, %v6435
        %v6753 = vmul.f32 %v6436, %v6436
        %v6754 = vmul.f32 %v6437, %v6437
        %v6755 = vmul.f32 %v6438, %v6438
        %v6756 = vmul.f32 %v6439, %v6439
        %v6757 = vmul.f32 %v6440, %v6440
        %v6758 = vpack.c.bf16 %v6753, %v6752
        %v6759 = vpack.c.bf16 %v6755, %v6754
        %v6760 = vpack.c.bf16 %v6757, %v6756
        %v6762 = vsel %vm6467, %v6758, 0
        %v6765 = vsel %vm6467, %v6759, 0
        %v6768 = vsel %vm6467, %v6760, 0
        %6770 = vmatprep.subr.bf16.mxu0 0
        %6771 = vmatpush1.bf16.msra.mxu0 %v6462
        %6772 = vmatprep.subr.bf16.mxu0 0
        %6773 = vmatpush1.bf16.msra.mxu0 %v6463
        %6774 = vmatprep.subr.bf16.mxu0 0
        %6775 = vmatpush1.bf16.msra.mxu0 %v6478
        %6776 = vmatprep.subr.bf16.mxu0 0
        %6777 = vmatpush1.bf16.msra.mxu0 0
        %6778 = vmatprep.subr.bf16.mxu0 0
        %6779 = vmatpush1.bf16.msra.mxu0 0
        %6780 = vmatprep.subr.bf16.mxu0 0
        %6781 = vmatpush1.bf16.msra.mxu0 0
        %6782 = vmatprep.subr.bf16.mxu0 0
        %6783 = vmatpush1.bf16.msra.mxu0 0
        %6784 = vmatprep.subr.bf16.mxu0 0
        %6785 = vmatpush1.bf16.msra.mxu0 0
        %6786 = vmatprep.subr.bf16.mxu0 0
        %6787 = vmatpush1.bf16.msra.mxu0 0
        %6788 = vmatprep.subr.bf16.mxu0 0
        %6789 = vmatpush1.bf16.msra.mxu0 0
        %6790 = vmatprep.subr.bf16.mxu0 0
        %6791 = vmatpush1.bf16.msra.mxu0 0
        %6792 = vmatprep.subr.bf16.mxu0 0
        %6793 = vmatpush1.bf16.msra.mxu0 0
        %6794 = vmatprep.subr.bf16.mxu0 0
        %6795 = vmatpush1.bf16.msra.mxu0 0
        %6796 = vmatprep.subr.bf16.mxu0 0
        %6797 = vmatpush1.bf16.msra.mxu0 0
        %6798 = vmatprep.subr.bf16.mxu0 0
        %6799 = vmatpush1.bf16.msra.mxu0 0
        %6800 = vmatprep.subr.bf16.mxu0 0
        %6801 = vmatpush1.bf16.msra.mxu0 0
        %6802 = vmatprep.mubr.bf16.mxu0 0
        %6803 = vmatmul.mubr.bf16.gmra.mrb[0].mxu0 %v6762
        %v6804 = vpop.f32.mrb[0].mxu0
        %v6805 = vadd.f32 0.0, %v6804
        %v6806 = vpop.f32.mrb[0].mxu0
        %v6807 = vpop.f32.mrb[0].mxu0
        %v6808 = vadd.f32 0.0, %v6807
        %v6809 = vpop.f32.mrb[0].mxu0
        %6810 = vmatprep.mubr.bf16.mxu0 0
        %6811 = vmatmul.mubr.bf16.gmra.mrb[0].mxu0 %v6765
        %v6812 = vpop.f32.mrb[0].mxu0
        %v6813 = vadd.f32 0.0, %v6812
        %v6814 = vpop.f32.mrb[0].mxu0
        %v6815 = vpop.f32.mrb[0].mxu0
        %v6816 = vadd.f32 0.0, %v6815
        %v6817 = vpop.f32.mrb[0].mxu0
        %6818 = vmatprep.mubr.bf16.mxu0 0
        %6819 = vmatmul.mubr.bf16.gmra.mrb[0].mxu0 %v6768
        %v6820 = vpop.f32.mrb[0].mxu0
        %v6821 = vadd.f32 0.0, %v6820
        %v6822 = vpop.f32.mrb[0].mxu0
        %v6823 = vpop.f32.mrb[0].mxu0
        %v6824 = vadd.f32 0.0, %v6823
        %v6825 = vpop.f32.mrb[0].mxu0
        %6826 = vdwg.mxu0
        %v6827 = vpack.c.bf16 %v6808, %v6805
        %v6828 = vpack.c.bf16 %v6816, %v6813
        %v6829 = vpack.c.bf16 %v6824, %v6821
        %v6831 = vsel %vm4015, %v6829, 0
        %6833 = vmatprep.subr.bf16.mxu0 0
        %6834 = vmatpush1.bf16.msra.mxu0 %v6827
        %6835 = vmatprep.subr.bf16.mxu0 0
        %6836 = vmatpush1.bf16.msra.mxu0 %v6828
        %6837 = vmatprep.subr.bf16.mxu0 0
        %6838 = vmatpush1.bf16.msra.mxu0 %v6831
        %6839 = vmatprep.subr.bf16.mxu0 0
        %6840 = vmatpush1.bf16.msra.mxu0 0
        %6841 = vmatprep.subr.bf16.mxu0 0
        %6842 = vmatpush1.bf16.msra.mxu0 0
        %6843 = vmatprep.subr.bf16.mxu0 0
        %6844 = vmatpush1.bf16.msra.mxu0 0
        %6845 = vmatprep.subr.bf16.mxu0 0
        %6846 = vmatpush1.bf16.msra.mxu0 0
        %6847 = vmatprep.subr.bf16.mxu0 0
        %6848 = vmatpush1.bf16.msra.mxu0 0
        %6849 = vmatprep.subr.bf16.mxu0 0
        %6850 = vmatpush1.bf16.msra.mxu0 0
        %6851 = vmatprep.subr.bf16.mxu0 0
        %6852 = vmatpush1.bf16.msra.mxu0 0
        %6853 = vmatprep.subr.bf16.mxu0 0
        %6854 = vmatpush1.bf16.msra.mxu0 0
        %6855 = vmatprep.subr.bf16.mxu0 0
        %6856 = vmatpush1.bf16.msra.mxu0 0
        %6857 = vmatprep.subr.bf16.mxu0 0
        %6858 = vmatpush1.bf16.msra.mxu0 0
        %6859 = vmatprep.subr.bf16.mxu0 0
        %6860 = vmatpush1.bf16.msra.mxu0 0
        %6861 = vmatprep.subr.bf16.mxu0 0
        %6862 = vmatpush1.bf16.msra.mxu0 0
        %6863 = vmatprep.subr.bf16.mxu0 0
        %6864 = vmatpush1.bf16.msra.mxu0 0
        %6865 = vmatprep.mubr.bf16.mxu0 0
        %6866 = vmatmul.mubr.bf16.gmra.mrb[0].mxu0 %v6554
        %v6867 = vpop.f32.mrb[0].mxu0
        %v6868 = vadd.f32 0.0, %v6867
        %v6869 = vpop.f32.mrb[0].mxu0
        %v6870 = vpop.f32.mrb[0].mxu0
        %v6871 = vadd.f32 0.0, %v6870
        %v6872 = vpop.f32.mrb[0].mxu0
        %6873 = vmatprep.mubr.bf16.mxu0 0
        %6874 = vmatmul.mubr.bf16.gmra.mrb[0].mxu0 %v6557
        %v6875 = vpop.f32.mrb[0].mxu0
        %v6876 = vadd.f32 0.0, %v6875
        %v6877 = vpop.f32.mrb[0].mxu0
        %v6878 = vpop.f32.mrb[0].mxu0
        %v6879 = vadd.f32 0.0, %v6878
        %v6880 = vpop.f32.mrb[0].mxu0
        %6881 = vmatprep.mubr.bf16.mxu0 0
        %6882 = vmatmul.mubr.bf16.gmra.mrb[0].mxu0 %v6560
        %v6883 = vpop.f32.mrb[0].mxu0
        %v6884 = vadd.f32 0.0, %v6883
        %v6885 = vpop.f32.mrb[0].mxu0
        %v6886 = vpop.f32.mrb[0].mxu0
        %v6887 = vpop.f32.mrb[0].mxu0
        %6888 = vdwg.mxu0
        %v6889 = vmul.f32 %v6441, %v6441
        %v6890 = vmul.f32 %v6442, %v6442
        %v6891 = vmul.f32 %v6443, %v6443
        %v6892 = vmul.f32 %v6444, %v6444
        %v6893 = vmul.f32 %v6445, %v6445
        %v6894 = vmul.f32 %v6446, %v6446
        %v6895 = vpack.c.bf16 %v6890, %v6889
        %v6896 = vpack.c.bf16 %v6892, %v6891
        %v6897 = vpack.c.bf16 %v6894, %v6893
        %v6899 = vsel %vm6467, %v6895, 0
        %v6902 = vsel %vm6467, %v6896, 0
        %v6905 = vsel %vm6467, %v6897, 0
        %6907 = vmatprep.subr.bf16.mxu0 0
        %6908 = vmatpush1.bf16.msra.mxu0 %v6462
        %6909 = vmatprep.subr.bf16.mxu0 0
        %6910 = vmatpush1.bf16.msra.mxu0 %v6463
        %6911 = vmatprep.subr.bf16.mxu0 0
        %6912 = vmatpush1.bf16.msra.mxu0 %v6478
        %6913 = vmatprep.subr.bf16.mxu0 0
        %6914 = vmatpush1.bf16.msra.mxu0 0
        %6915 = vmatprep.subr.bf16.mxu0 0
        %6916 = vmatpush1.bf16.msra.mxu0 0
        %6917 = vmatprep.subr.bf16.mxu0 0
        %6918 = vmatpush1.bf16.msra.mxu0 0
        %6919 = vmatprep.subr.bf16.mxu0 0
        %6920 = vmatpush1.bf16.msra.mxu0 0
        %6921 = vmatprep.subr.bf16.mxu0 0
        %6922 = vmatpush1.bf16.msra.mxu0 0
        %6923 = vmatprep.subr.bf16.mxu0 0
        %6924 = vmatpush1.bf16.msra.mxu0 0
        %6925 = vmatprep.subr.bf16.mxu0 0
        %6926 = vmatpush1.bf16.msra.mxu0 0
        %6927 = vmatprep.subr.bf16.mxu0 0
        %6928 = vmatpush1.bf16.msra.mxu0 0
        %6929 = vmatprep.subr.bf16.mxu0 0
        %6930 = vmatpush1.bf16.msra.mxu0 0
        %6931 = vmatprep.subr.bf16.mxu0 0
        %6932 = vmatpush1.bf16.msra.mxu0 0
        %6933 = vmatprep.subr.bf16.mxu0 0
        %6934 = vmatpush1.bf16.msra.mxu0 0
        %6935 = vmatprep.subr.bf16.mxu0 0
        %6936 = vmatpush1.bf16.msra.mxu0 0
        %6937 = vmatprep.subr.bf16.mxu0 0
        %6938 = vmatpush1.bf16.msra.mxu0 0
        %6939 = vmatprep.mubr.bf16.mxu0 0
        %6940 = vmatmul.mubr.bf16.gmra.mrb[0].mxu0 %v6899
        %v6941 = vpop.f32.mrb[0].mxu0
        %v6942 = vadd.f32 0.0, %v6941
        %v6943 = vpop.f32.mrb[0].mxu0
        %v6944 = vpop.f32.mrb[0].mxu0
        %v6945 = vadd.f32 0.0, %v6944
        %v6946 = vpop.f32.mrb[0].mxu0
        %6947 = vmatprep.mubr.bf16.mxu0 0
        %6948 = vmatmul.mubr.bf16.gmra.mrb[0].mxu0 %v6902
        %v6949 = vpop.f32.mrb[0].mxu0
        %v6950 = vadd.f32 0.0, %v6949
        %v6951 = vpop.f32.mrb[0].mxu0
        %v6952 = vpop.f32.mrb[0].mxu0
        %v6953 = vadd.f32 0.0, %v6952
        %v6954 = vpop.f32.mrb[0].mxu0
        %6955 = vmatprep.mubr.bf16.mxu0 0
        %6956 = vmatmul.mubr.bf16.gmra.mrb[0].mxu0 %v6905
        %v6957 = vpop.f32.mrb[0].mxu0
        %v6958 = vadd.f32 0.0, %v6957
        %v6959 = vpop.f32.mrb[0].mxu0
        %v6960 = vpop.f32.mrb[0].mxu0
        %v6961 = vadd.f32 0.0, %v6960
        %v6962 = vpop.f32.mrb[0].mxu0
        %6963 = vdwg.mxu0
        %v6964 = vpack.c.bf16 %v6945, %v6942
        %v6965 = vpack.c.bf16 %v6953, %v6950
        %v6966 = vpack.c.bf16 %v6961, %v6958
        %v6968 = vsel %vm4015, %v6966, 0
        %6970 = vmatprep.subr.bf16.mxu0 0
        %6971 = vmatpush1.bf16.msra.mxu0 %v6964
        %6972 = vmatprep.subr.bf16.mxu0 0
        %6973 = vmatpush1.bf16.msra.mxu0 %v6965
        %6974 = vmatprep.subr.bf16.mxu0 0
        %6975 = vmatpush1.bf16.msra.mxu0 %v6968
        %6976 = vmatprep.subr.bf16.mxu0 0
        %6977 = vmatpush1.bf16.msra.mxu0 0
        %6978 = vmatprep.subr.bf16.mxu0 0
        %6979 = vmatpush1.bf16.msra.mxu0 0
        %6980 = vmatprep.subr.bf16.mxu0 0
        %6981 = vmatpush1.bf16.msra.mxu0 0
        %6982 = vmatprep.subr.bf16.mxu0 0
        %6983 = vmatpush1.bf16.msra.mxu0 0
        %6984 = vmatprep.subr.bf16.mxu0 0
        %6985 = vmatpush1.bf16.msra.mxu0 0
        %6986 = vmatprep.subr.bf16.mxu0 0
        %6987 = vmatpush1.bf16.msra.mxu0 0
        %6988 = vmatprep.subr.bf16.mxu0 0
        %6989 = vmatpush1.bf16.msra.mxu0 0
        %6990 = vmatprep.subr.bf16.mxu0 0
        %6991 = vmatpush1.bf16.msra.mxu0 0
        %6992 = vmatprep.subr.bf16.mxu0 0
        %6993 = vmatpush1.bf16.msra.mxu0 0
        %6994 = vmatprep.subr.bf16.mxu0 0
        %6995 = vmatpush1.bf16.msra.mxu0 0
        %6996 = vmatprep.subr.bf16.mxu0 0
        %6997 = vmatpush1.bf16.msra.mxu0 0
        %6998 = vmatprep.subr.bf16.mxu0 0
        %6999 = vmatpush1.bf16.msra.mxu0 0
        %7000 = vmatprep.subr.bf16.mxu0 0
        %7001 = vmatpush1.bf16.msra.mxu0 0
        %7002 = vmatprep.mubr.bf16.mxu0 0
        %7003 = vmatmul.mubr.bf16.gmra.mrb[0].mxu0 %v6554
        %v7004 = vpop.f32.mrb[0].mxu0
        %v7005 = vadd.f32 0.0, %v7004
        %v7006 = vpop.f32.mrb[0].mxu0
        %v7007 = vpop.f32.mrb[0].mxu0
        %v7008 = vadd.f32 0.0, %v7007
        %v7009 = vpop.f32.mrb[0].mxu0
        %7010 = vmatprep.mubr.bf16.mxu0 0
        %7011 = vmatmul.mubr.bf16.gmra.mrb[0].mxu0 %v6557
        %v7012 = vpop.f32.mrb[0].mxu0
        %v7013 = vadd.f32 0.0, %v7012
        %v7014 = vpop.f32.mrb[0].mxu0
        %v7015 = vpop.f32.mrb[0].mxu0
        %v7016 = vadd.f32 0.0, %v7015
        %v7017 = vpop.f32.mrb[0].mxu0
        %7018 = vmatprep.mubr.bf16.mxu0 0
        %7019 = vmatmul.mubr.bf16.gmra.mrb[0].mxu0 %v6560
        %v7020 = vpop.f32.mrb[0].mxu0
        %v7021 = vadd.f32 0.0, %v7020
        %v7022 = vpop.f32.mrb[0].mxu0
        %v7023 = vpop.f32.mrb[0].mxu0
        %v7024 = vpop.f32.mrb[0].mxu0
        %7025 = vdwg.mxu0
        %v7026 = vmul.f32 %v6435, %v6441
        %v7027 = vmul.f32 %v6436, %v6442
        %v7028 = vmul.f32 %v6437, %v6443
        %v7029 = vmul.f32 %v6438, %v6444
        %v7030 = vmul.f32 %v6439, %v6445
        %v7031 = vmul.f32 %v6440, %v6446
        %v7032 = vpack.c.bf16 %v7027, %v7026
        %v7033 = vpack.c.bf16 %v7029, %v7028
        %v7034 = vpack.c.bf16 %v7031, %v7030
        %v7036 = vsel %vm6467, %v7032, 0
        %v7039 = vsel %vm6467, %v7033, 0
        %v7042 = vsel %vm6467, %v7034, 0
        %7044 = vmatprep.subr.bf16.mxu0 0
        %7045 = vmatpush1.bf16.msra.mxu0 %v6462
        %7046 = vmatprep.subr.bf16.mxu0 0
        %7047 = vmatpush1.bf16.msra.mxu0 %v6463
        %7048 = vmatprep.subr.bf16.mxu0 0
        %7049 = vmatpush1.bf16.msra.mxu0 %v6478
        %7050 = vmatprep.subr.bf16.mxu0 0
        %7051 = vmatpush1.bf16.msra.mxu0 0
        %7052 = vmatprep.subr.bf16.mxu0 0
        %7053 = vmatpush1.bf16.msra.mxu0 0
        %7054 = vmatprep.subr.bf16.mxu0 0
        %7055 = vmatpush1.bf16.msra.mxu0 0
        %7056 = vmatprep.subr.bf16.mxu0 0
        %7057 = vmatpush1.bf16.msra.mxu0 0
        %7058 = vmatprep.subr.bf16.mxu0 0
        %7059 = vmatpush1.bf16.msra.mxu0 0
        %7060 = vmatprep.subr.bf16.mxu0 0
        %7061 = vmatpush1.bf16.msra.mxu0 0
        %7062 = vmatprep.subr.bf16.mxu0 0
        %7063 = vmatpush1.bf16.msra.mxu0 0
        %7064 = vmatprep.subr.bf16.mxu0 0
        %7065 = vmatpush1.bf16.msra.mxu0 0
        %7066 = vmatprep.subr.bf16.mxu0 0
        %7067 = vmatpush1.bf16.msra.mxu0 0
        %7068 = vmatprep.subr.bf16.mxu0 0
        %7069 = vmatpush1.bf16.msra.mxu0 0
        %7070 = vmatprep.subr.bf16.mxu0 0
        %7071 = vmatpush1.bf16.msra.mxu0 0
        %7072 = vmatprep.subr.bf16.mxu0 0
        %7073 = vmatpush1.bf16.msra.mxu0 0
        %7074 = vmatprep.subr.bf16.mxu0 0
        %7075 = vmatpush1.bf16.msra.mxu0 0
        %7076 = vmatprep.mubr.bf16.mxu0 0
        %7077 = vmatmul.mubr.bf16.gmra.mrb[0].mxu0 %v7036
        %v7078 = vpop.f32.mrb[0].mxu0
        %v7079 = vadd.f32 0.0, %v7078
        %v7080 = vpop.f32.mrb[0].mxu0
        %v7081 = vpop.f32.mrb[0].mxu0
        %v7082 = vadd.f32 0.0, %v7081
        %v7083 = vpop.f32.mrb[0].mxu0
        %7084 = vmatprep.mubr.bf16.mxu0 0
        %7085 = vmatmul.mubr.bf16.gmra.mrb[0].mxu0 %v7039
        %v7086 = vpop.f32.mrb[0].mxu0
        %v7087 = vadd.f32 0.0, %v7086
        %v7088 = vpop.f32.mrb[0].mxu0
        %v7089 = vpop.f32.mrb[0].mxu0
        %v7090 = vadd.f32 0.0, %v7089
        %v7091 = vpop.f32.mrb[0].mxu0
        %7092 = vmatprep.mubr.bf16.mxu0 0
        %7093 = vmatmul.mubr.bf16.gmra.mrb[0].mxu0 %v7042
        %v7094 = vpop.f32.mrb[0].mxu0
        %v7095 = vadd.f32 0.0, %v7094
        %v7096 = vpop.f32.mrb[0].mxu0
        %v7097 = vpop.f32.mrb[0].mxu0
        %v7098 = vadd.f32 0.0, %v7097
        %v7099 = vpop.f32.mrb[0].mxu0
        %7100 = vdwg.mxu0
        %v7101 = vpack.c.bf16 %v7082, %v7079
        %v7102 = vpack.c.bf16 %v7090, %v7087
        %v7103 = vpack.c.bf16 %v7098, %v7095
        %v7105 = vsel %vm4015, %v7103, 0
        %7107 = vmatprep.subr.bf16.mxu0 0
        %7108 = vmatpush1.bf16.msra.mxu0 %v7101
        %7109 = vmatprep.subr.bf16.mxu0 0
        %7110 = vmatpush1.bf16.msra.mxu0 %v7102
        %7111 = vmatprep.subr.bf16.mxu0 0
        %7112 = vmatpush1.bf16.msra.mxu0 %v7105
        %7113 = vmatprep.subr.bf16.mxu0 0
        %7114 = vmatpush1.bf16.msra.mxu0 0
        %7115 = vmatprep.subr.bf16.mxu0 0
        %7116 = vmatpush1.bf16.msra.mxu0 0
        %7117 = vmatprep.subr.bf16.mxu0 0
        %7118 = vmatpush1.bf16.msra.mxu0 0
        %7119 = vmatprep.subr.bf16.mxu0 0
        %7120 = vmatpush1.bf16.msra.mxu0 0
        %7121 = vmatprep.subr.bf16.mxu0 0
        %7122 = vmatpush1.bf16.msra.mxu0 0
        %7123 = vmatprep.subr.bf16.mxu0 0
        %7124 = vmatpush1.bf16.msra.mxu0 0
        %7125 = vmatprep.subr.bf16.mxu0 0
        %7126 = vmatpush1.bf16.msra.mxu0 0
        %7127 = vmatprep.subr.bf16.mxu0 0
        %7128 = vmatpush1.bf16.msra.mxu0 0
        %7129 = vmatprep.subr.bf16.mxu0 0
        %7130 = vmatpush1.bf16.msra.mxu0 0
        %7131 = vmatprep.subr.bf16.mxu0 0
        %7132 = vmatpush1.bf16.msra.mxu0 0
        %7133 = vmatprep.subr.bf16.mxu0 0
        %7134 = vmatpush1.bf16.msra.mxu0 0
        %7135 = vmatprep.subr.bf16.mxu0 0
        %7136 = vmatpush1.bf16.msra.mxu0 0
        %7137 = vmatprep.subr.bf16.mxu0 0
        %7138 = vmatpush1.bf16.msra.mxu0 0
        %7139 = vmatprep.mubr.bf16.mxu0 0
        %7140 = vmatmul.mubr.bf16.gmra.mrb[0].mxu0 %v6554
        %v7141 = vpop.f32.mrb[0].mxu0
        %v7142 = vadd.f32 0.0, %v7141
        %v7143 = vpop.f32.mrb[0].mxu0
        %v7144 = vpop.f32.mrb[0].mxu0
        %v7145 = vadd.f32 0.0, %v7144
        %v7146 = vpop.f32.mrb[0].mxu0
        %7147 = vmatprep.mubr.bf16.mxu0 0
        %7148 = vmatmul.mubr.bf16.gmra.mrb[0].mxu0 %v6557
        %v7149 = vpop.f32.mrb[0].mxu0
        %v7150 = vadd.f32 0.0, %v7149
        %v7151 = vpop.f32.mrb[0].mxu0
        %v7152 = vpop.f32.mrb[0].mxu0
        %v7153 = vadd.f32 0.0, %v7152
        %v7154 = vpop.f32.mrb[0].mxu0
        %7155 = vmatprep.mubr.bf16.mxu0 0
        %7156 = vmatmul.mubr.bf16.gmra.mrb[0].mxu0 %v6560
        %v7157 = vpop.f32.mrb[0].mxu0
        %v7158 = vadd.f32 0.0, %v7157
        %v7159 = vpop.f32.mrb[0].mxu0
        %v7160 = vpop.f32.mrb[0].mxu0
        %v7161 = vpop.f32.mrb[0].mxu0
        %7162 = vdwg.mxu0
        %v7163 = vmul.f32 %v6600, %v6600
        %v7164 = vmul.f32 %v6603, %v6603
        %v7165 = vmul.f32 %v6608, %v6608
        %v7166 = vmul.f32 %v6611, %v6611
        %v7167 = vmul.f32 %v6616, %v6616
        %v7168 = vsub.f32 %v6868, %v7163
        %v7169 = vsub.f32 %v6871, %v7164
        %v7170 = vsub.f32 %v6876, %v7165
        %v7171 = vsub.f32 %v6879, %v7166
        %v7172 = vsub.f32 %v6884, %v7167
        %v7173 = vmul.f32 %v6731, %v6731
        %v7174 = vmul.f32 %v6734, %v6734
        %v7175 = vmul.f32 %v6739, %v6739
        %v7176 = vmul.f32 %v6742, %v6742
        %v7177 = vmul.f32 %v6747, %v6747
        %v7178 = vsub.f32 %v7005, %v7173
        %v7179 = vsub.f32 %v7008, %v7174
        %v7180 = vsub.f32 %v7013, %v7175
        %v7181 = vsub.f32 %v7016, %v7176
        %v7182 = vsub.f32 %v7021, %v7177
        %v7183 = vmul.f32 %v6600, %v6731
        %v7184 = vmul.f32 %v6603, %v6734
        %v7185 = vmul.f32 %v6608, %v6739
        %v7186 = vmul.f32 %v6611, %v6742
        %v7187 = vmul.f32 %v6616, %v6747
        %v7188 = vsub.f32 %v7142, %v7183
        %v7189 = vsub.f32 %v7145, %v7184
        %v7190 = vsub.f32 %v7150, %v7185
        %v7191 = vsub.f32 %v7153, %v7186
        %v7192 = vsub.f32 %v7158, %v7187
        %v7193 = vmul.f32 %v7188, 2.0
        %v7194 = vmul.f32 %v7189, 2.0
        %v7195 = vmul.f32 %v7190, 2.0
        %v7196 = vmul.f32 %v7191, 2.0
        %v7197 = vmul.f32 %v7192, 2.0
        %v7198 = vadd.f32 %v7193, 0.0009
        %v7199 = vadd.f32 %v7194, 0.0009
        %v7200 = vadd.f32 %v7195, 0.0009
        %v7201 = vadd.f32 %v7196, 0.0009
        %v7202 = vadd.f32 %v7197, 0.0009
        %v7203 = vadd.f32 %v7168, %v7178
        %v7204 = vadd.f32 %v7169, %v7179
        %v7205 = vadd.f32 %v7170, %v7180
        %v7206 = vadd.f32 %v7171, %v7181
        %v7207 = vadd.f32 %v7172, %v7182
        %v7208 = vadd.f32 %v7203, 0.0009
        %v7209 = vadd.f32 %v7204, 0.0009
        %v7210 = vadd.f32 %v7205, 0.0009
        %v7211 = vadd.f32 %v7206, 0.0009
        %v7212 = vadd.f32 %v7207, 0.0009
        %v7213 = vrcp.pop %v7208
        %v7214 = vmul.f32 %v7198, %v7213
        %v7215 = vrcp.pop %v7209
        %v7216 = vmul.f32 %v7199, %v7215
        %v7217 = vrcp.pop %v7210
        %v7218 = vmul.f32 %v7200, %v7217
        %v7219 = vrcp.pop %v7211
        %v7220 = vmul.f32 %v7201, %v7219
        %v7221 = vrcp.pop %v7212
        %v7222 = vmul.f32 %v7202, %v7221
        %vm7223 = vcmask 277504
        %v7224 = vsel %vm7223, %v7214, 0.0
        %7225 = vadd.xlane.f32.xlu0 %v7224
        %v7226 = vpop.xlane.xlu0 %7225
        %v7227 = vsel %vm7223, %v7216, 0.0
        %7228 = vadd.xlane.f32.xlu0 %v7227
        %v7229 = vpop.xlane.xlu0 %7228
        %v7230 = vsel %vm7223, %v7218, 0.0
        %7231 = vadd.xlane.f32.xlu0 %v7230
        %v7232 = vpop.xlane.xlu0 %7231
        %v7233 = vsel %vm7223, %v7220, 0.0
        %7234 = vadd.xlane.f32.xlu0 %v7233
        %v7235 = vpop.xlane.xlu0 %7234
        %vm7236 = vcmask 271360
        %v7237 = vsel %vm7236, %v7222, 0.0
        %7238 = vadd.xlane.f32.xlu0 %v7237
        %v7239 = vpop.xlane.xlu0 %7238
        %v7240 = vadd.f32 %v7226, %v7229
        %v7241 = vadd.f32 %v7240, %v7232
        %v7242 = vadd.f32 %v7241, %v7235
        %vm7243 = vcmask 1041408
        %v7244 = vsel %vm7243, %v7239, 0.0
        %v7245 = vadd.f32 %v7242, %v7244
        %v7246 = vrot.slane %v7245, 4
        %v7247 = vadd.f32 %v7245, %v7246
        %v7248 = vrot.slane %v7247, 2
        %v7249 = vadd.f32 %v7247, %v7248
        %v7250 = vrot.slane %v7249, 1
        %v7251 = vadd.f32 %v7249, %v7250
        %v7252 = vmul.f32 %v7251, 0.00086505193
        %v7253 = vmax.f32 %v7252, 0.0
        %v7254 = vld [vmem:[%s14] sm:$0xf]
        %v7255 = vld [vmem:[%s14 + $0x4] sm:$0xf]
        %v7256 = vld [vmem:[%s14 + $0x8] sm:$0xf]
        %v7257 = vld [vmem:[%s14 + $0xc] sm:$0xf]
        %v7258 = vld [vmem:[%s14 + $0x10] sm:$0xf]
        %v7259 = vld [vmem:[%s14 + $0x14] sm:$0x3]
        %v7260 = vld [vmem:[#allocation19] sm:$0xf]
        %v7261 = vld [vmem:[#allocation19 + $0x4] sm:$0xf]
        %v7262 = vld [vmem:[#allocation19 + $0x8] sm:$0x7]
        %v7263 = vpack.c.bf16 %v6235, %v6232
        %v7264 = vpack.c.bf16 %v6243, %v6240
        %v7265 = vpack.c.bf16 %v6251, %v6248
        %v7272 = vunpack.c.l.b16 %v7254
        %v7273 = vunpack.c.l.b16 %v7255
        %v7274 = vunpack.c.l.b16 %v7256
        %v7275 = vunpack.c.l.b16 %v7257
        %v7276 = vunpack.c.l.b16 %v7258
        %v7277 = vunpack.c.l.b16 %v7259
        %v7278 = vpack.c.b16 %v7273, %v7272
        %v7279 = vpack.c.b16 %v7275, %v7274
        %v7280 = vpack.c.b16 %v7277, %v7276
        %v7284 = vsel %vm6467, %v7263, 0
        %v7287 = vsel %vm6467, %v7264, 0
        %v7290 = vsel %vm6467, %v7265, 0
        %v7293 = vsel %vm4015, %v7280, 0
        %7295 = vmatprep.subr.bf16.mxu0 0
        %7296 = vmatpush1.bf16.msra.mxu0 %v7278
        %7297 = vmatprep.subr.bf16.mxu0 0
        %7298 = vmatpush1.bf16.msra.mxu0 %v7279
        %7299 = vmatprep.subr.bf16.mxu0 0
        %7300 = vmatpush1.bf16.msra.mxu0 %v7293
        %7301 = vmatprep.subr.bf16.mxu0 0
        %7302 = vmatpush1.bf16.msra.mxu0 0
        %7303 = vmatprep.subr.bf16.mxu0 0
        %7304 = vmatpush1.bf16.msra.mxu0 0
        %7305 = vmatprep.subr.bf16.mxu0 0
        %7306 = vmatpush1.bf16.msra.mxu0 0
        %7307 = vmatprep.subr.bf16.mxu0 0
        %7308 = vmatpush1.bf16.msra.mxu0 0
        %7309 = vmatprep.subr.bf16.mxu0 0
        %7310 = vmatpush1.bf16.msra.mxu0 0
        %7311 = vmatprep.subr.bf16.mxu0 0
        %7312 = vmatpush1.bf16.msra.mxu0 0
        %7313 = vmatprep.subr.bf16.mxu0 0
        %7314 = vmatpush1.bf16.msra.mxu0 0
        %7315 = vmatprep.subr.bf16.mxu0 0
        %7316 = vmatpush1.bf16.msra.mxu0 0
        %7317 = vmatprep.subr.bf16.mxu0 0
        %7318 = vmatpush1.bf16.msra.mxu0 0
        %7319 = vmatprep.subr.bf16.mxu0 0
        %7320 = vmatpush1.bf16.msra.mxu0 0
        %7321 = vmatprep.subr.bf16.mxu0 0
        %7322 = vmatpush1.bf16.msra.mxu0 0
        %7323 = vmatprep.subr.bf16.mxu0 0
        %7324 = vmatpush1.bf16.msra.mxu0 0
        %7325 = vmatprep.subr.bf16.mxu0 0
        %7326 = vmatpush1.bf16.msra.mxu0 0
        %7327 = vmatprep.mubr.bf16.mxu0 0
        %7328 = vmatmul.mubr.bf16.gmra.mrb[0].mxu0 %v7284
        %v7329 = vpop.f32.mrb[0].mxu0
        %v7330 = vadd.f32 0.0, %v7329
        %v7331 = vpop.f32.mrb[0].mxu0
        %v7332 = vpop.f32.mrb[0].mxu0
        %v7333 = vadd.f32 0.0, %v7332
        %v7334 = vpop.f32.mrb[0].mxu0
        %7335 = vmatprep.mubr.bf16.mxu0 0
        %7336 = vmatmul.mubr.bf16.gmra.mrb[0].mxu0 %v7287
        %v7337 = vpop.f32.mrb[0].mxu0
        %v7338 = vadd.f32 0.0, %v7337
        %v7339 = vpop.f32.mrb[0].mxu0
        %v7340 = vpop.f32.mrb[0].mxu0
        %v7341 = vadd.f32 0.0, %v7340
        %v7342 = vpop.f32.mrb[0].mxu0
        %7343 = vmatprep.mubr.bf16.mxu0 0
        %7344 = vmatmul.mubr.bf16.gmra.mrb[0].mxu0 %v7290
        %v7345 = vpop.f32.mrb[0].mxu0
        %v7346 = vadd.f32 0.0, %v7345
        %v7347 = vpop.f32.mrb[0].mxu0
        %v7348 = vpop.f32.mrb[0].mxu0
        %v7349 = vadd.f32 0.0, %v7348
        %v7350 = vpop.f32.mrb[0].mxu0
        %7351 = vdwg.mxu0
        %v7352 = vpack.c.bf16 %v7333, %v7330
        %v7353 = vpack.c.bf16 %v7341, %v7338
        %v7354 = vpack.c.bf16 %v7349, %v7346
        %v7358 = vunpack.c.l.b16 %v7260
        %v7359 = vunpack.c.l.b16 %v7261
        %v7360 = vunpack.c.l.b16 %v7262
        %v7361 = vpack.c.b16 %v7359, %v7358
        %v7362 = vpack.c.b16 %v7360, %v7360
        %v7364 = vsel %vm6467, %v7361, 0
        %v7367 = vsel %vm6467, %v7362, 0
        %v7370 = vsel %vm4015, %v7354, 0
        %7372 = vmatprep.subr.bf16.mxu0 0
        %7373 = vmatpush1.bf16.msra.mxu0 %v7352
        %7374 = vmatprep.subr.bf16.mxu0 0
        %7375 = vmatpush1.bf16.msra.mxu0 %v7353
        %7376 = vmatprep.subr.bf16.mxu0 0
        %7377 = vmatpush1.bf16.msra.mxu0 %v7370
        %7378 = vmatprep.subr.bf16.mxu0 0
        %7379 = vmatpush1.bf16.msra.mxu0 0
        %7380 = vmatprep.subr.bf16.mxu0 0
        %7381 = vmatpush1.bf16.msra.mxu0 0
        %7382 = vmatprep.subr.bf16.mxu0 0
        %7383 = vmatpush1.bf16.msra.mxu0 0
        %7384 = vmatprep.subr.bf16.mxu0 0
        %7385 = vmatpush1.bf16.msra.mxu0 0
        %7386 = vmatprep.subr.bf16.mxu0 0
        %7387 = vmatpush1.bf16.msra.mxu0 0
        %7388 = vmatprep.subr.bf16.mxu0 0
        %7389 = vmatpush1.bf16.msra.mxu0 0
        %7390 = vmatprep.subr.bf16.mxu0 0
        %7391 = vmatpush1.bf16.msra.mxu0 0
        %7392 = vmatprep.subr.bf16.mxu0 0
        %7393 = vmatpush1.bf16.msra.mxu0 0
        %7394 = vmatprep.subr.bf16.mxu0 0
        %7395 = vmatpush1.bf16.msra.mxu0 0
        %7396 = vmatprep.subr.bf16.mxu0 0
        %7397 = vmatpush1.bf16.msra.mxu0 0
        %7398 = vmatprep.subr.bf16.mxu0 0
        %7399 = vmatpush1.bf16.msra.mxu0 0
        %7400 = vmatprep.subr.bf16.mxu0 0
        %7401 = vmatpush1.bf16.msra.mxu0 0
        %7402 = vmatprep.subr.bf16.mxu0 0
        %7403 = vmatpush1.bf16.msra.mxu0 0
        %7404 = vmatprep.mubr.bf16.mxu0 0
        %7405 = vmatmul.mubr.bf16.gmra.mrb[0].mxu0 %v7364
        %v7406 = vpop.f32.mrb[0].mxu0
        %v7407 = vadd.f32 0.0, %v7406
        %v7408 = vpop.f32.mrb[0].mxu0
        %v7409 = vpop.f32.mrb[0].mxu0
        %v7410 = vadd.f32 0.0, %v7409
        %v7411 = vpop.f32.mrb[0].mxu0
        %7412 = vmatprep.mubr.bf16.mxu0 0
        %7413 = vmatmul.mubr.bf16.gmra.mrb[0].mxu0 %v7367
        %v7414 = vpop.f32.mrb[0].mxu0
        %v7415 = vadd.f32 0.0, %v7414
        %v7416 = vpop.f32.mrb[0].mxu0
        %v7417 = vpop.f32.mrb[0].mxu0
        %v7418 = vpop.f32.mrb[0].mxu0
        %7419 = vdwg.mxu0
        %v7420 = vpack.c.bf16 %v6405, %v6402
        %v7421 = vpack.c.bf16 %v6413, %v6410
        %v7422 = vpack.c.bf16 %v6421, %v6418
        %v7424 = vsel %vm6467, %v7420, 0
        %v7427 = vsel %vm6467, %v7421, 0
        %v7430 = vsel %vm6467, %v7422, 0
        %7432 = vmatprep.subr.bf16.mxu0 0
        %7433 = vmatpush1.bf16.msra.mxu0 %v7278
        %7434 = vmatprep.subr.bf16.mxu0 0
        %7435 = vmatpush1.bf16.msra.mxu0 %v7279
        %7436 = vmatprep.subr.bf16.mxu0 0
        %7437 = vmatpush1.bf16.msra.mxu0 %v7293
        %7438 = vmatprep.subr.bf16.mxu0 0
        %7439 = vmatpush1.bf16.msra.mxu0 0
        %7440 = vmatprep.subr.bf16.mxu0 0
        %7441 = vmatpush1.bf16.msra.mxu0 0
        %7442 = vmatprep.subr.bf16.mxu0 0
        %7443 = vmatpush1.bf16.msra.mxu0 0
        %7444 = vmatprep.subr.bf16.mxu0 0
        %7445 = vmatpush1.bf16.msra.mxu0 0
        %7446 = vmatprep.subr.bf16.mxu0 0
        %7447 = vmatpush1.bf16.msra.mxu0 0
        %7448 = vmatprep.subr.bf16.mxu0 0
        %7449 = vmatpush1.bf16.msra.mxu0 0
        %7450 = vmatprep.subr.bf16.mxu0 0
        %7451 = vmatpush1.bf16.msra.mxu0 0
        %7452 = vmatprep.subr.bf16.mxu0 0
        %7453 = vmatpush1.bf16.msra.mxu0 0
        %7454 = vmatprep.subr.bf16.mxu0 0
        %7455 = vmatpush1.bf16.msra.mxu0 0
        %7456 = vmatprep.subr.bf16.mxu0 0
        %7457 = vmatpush1.bf16.msra.mxu0 0
        %7458 = vmatprep.subr.bf16.mxu0 0
        %7459 = vmatpush1.bf16.msra.mxu0 0
        %7460 = vmatprep.subr.bf16.mxu0 0
        %7461 = vmatpush1.bf16.msra.mxu0 0
        %7462 = vmatprep.subr.bf16.mxu0 0
        %7463 = vmatpush1.bf16.msra.mxu0 0
        %7464 = vmatprep.mubr.bf16.mxu0 0
        %7465 = vmatmul.mubr.bf16.gmra.mrb[0].mxu0 %v7424
        %v7466 = vpop.f32.mrb[0].mxu0
        %v7467 = vadd.f32 0.0, %v7466
        %v7468 = vpop.f32.mrb[0].mxu0
        %v7469 = vpop.f32.mrb[0].mxu0
        %v7470 = vadd.f32 0.0, %v7469
        %v7471 = vpop.f32.mrb[0].mxu0
        %7472 = vmatprep.mubr.bf16.mxu0 0
        %7473 = vmatmul.mubr.bf16.gmra.mrb[0].mxu0 %v7427
        %v7474 = vpop.f32.mrb[0].mxu0
        %v7475 = vadd.f32 0.0, %v7474
        %v7476 = vpop.f32.mrb[0].mxu0
        %v7477 = vpop.f32.mrb[0].mxu0
        %v7478 = vadd.f32 0.0, %v7477
        %v7479 = vpop.f32.mrb[0].mxu0
        %7480 = vmatprep.mubr.bf16.mxu0 0
        %7481 = vmatmul.mubr.bf16.gmra.mrb[0].mxu0 %v7430
        %v7482 = vpop.f32.mrb[0].mxu0
        %v7483 = vadd.f32 0.0, %v7482
        %v7484 = vpop.f32.mrb[0].mxu0
        %v7485 = vpop.f32.mrb[0].mxu0
        %v7486 = vadd.f32 0.0, %v7485
        %v7487 = vpop.f32.mrb[0].mxu0
        %7488 = vdwg.mxu0
        %v7489 = vpack.c.bf16 %v7470, %v7467
        %v7490 = vpack.c.bf16 %v7478, %v7475
        %v7491 = vpack.c.bf16 %v7486, %v7483
        %v7493 = vsel %vm4015, %v7491, 0
        %7495 = vmatprep.subr.bf16.mxu0 0
        %7496 = vmatpush1.bf16.msra.mxu0 %v7489
        %7497 = vmatprep.subr.bf16.mxu0 0
        %7498 = vmatpush1.bf16.msra.mxu0 %v7490
        %7499 = vmatprep.subr.bf16.mxu0 0
        %7500 = vmatpush1.bf16.msra.mxu0 %v7493
        %7501 = vmatprep.subr.bf16.mxu0 0
        %7502 = vmatpush1.bf16.msra.mxu0 0
        %7503 = vmatprep.subr.bf16.mxu0 0
        %7504 = vmatpush1.bf16.msra.mxu0 0
        %7505 = vmatprep.subr.bf16.mxu0 0
        %7506 = vmatpush1.bf16.msra.mxu0 0
        %7507 = vmatprep.subr.bf16.mxu0 0
        %7508 = vmatpush1.bf16.msra.mxu0 0
        %7509 = vmatprep.subr.bf16.mxu0 0
        %7510 = vmatpush1.bf16.msra.mxu0 0
        %7511 = vmatprep.subr.bf16.mxu0 0
        %7512 = vmatpush1.bf16.msra.mxu0 0
        %7513 = vmatprep.subr.bf16.mxu0 0
        %7514 = vmatpush1.bf16.msra.mxu0 0
        %7515 = vmatprep.subr.bf16.mxu0 0
        %7516 = vmatpush1.bf16.msra.mxu0 0
        %7517 = vmatprep.subr.bf16.mxu0 0
        %7518 = vmatpush1.bf16.msra.mxu0 0
        %7519 = vmatprep.subr.bf16.mxu0 0
        %7520 = vmatpush1.bf16.msra.mxu0 0
        %7521 = vmatprep.subr.bf16.mxu0 0
        %7522 = vmatpush1.bf16.msra.mxu0 0
        %7523 = vmatprep.subr.bf16.mxu0 0
        %7524 = vmatpush1.bf16.msra.mxu0 0
        %7525 = vmatprep.subr.bf16.mxu0 0
        %7526 = vmatpush1.bf16.msra.mxu0 0
        %7527 = vmatprep.mubr.bf16.mxu0 0
        %7528 = vmatmul.mubr.bf16.gmra.mrb[0].mxu0 %v7364
        %v7529 = vpop.f32.mrb[0].mxu0
        %v7530 = vadd.f32 0.0, %v7529
        %v7531 = vpop.f32.mrb[0].mxu0
        %v7532 = vpop.f32.mrb[0].mxu0
        %v7533 = vadd.f32 0.0, %v7532
        %v7534 = vpop.f32.mrb[0].mxu0
        %7535 = vmatprep.mubr.bf16.mxu0 0
        %7536 = vmatmul.mubr.bf16.gmra.mrb[0].mxu0 %v7367
        %v7537 = vpop.f32.mrb[0].mxu0
        %v7538 = vadd.f32 0.0, %v7537
        %v7539 = vpop.f32.mrb[0].mxu0
        %v7540 = vpop.f32.mrb[0].mxu0
        %v7541 = vpop.f32.mrb[0].mxu0
        %7542 = vdwg.mxu0
        %v7543 = vld [vmem:[%s5] sm:$0xf]
        %v7544 = vld [vmem:[%s5 + $0x4] sm:$0xf]
        %v7545 = vld [vmem:[%s5 + $0x8] sm:$0x7]
        %v7546 = vld [vmem:[#allocation11] sm:$0xf]
        %v7547 = vld [vmem:[#allocation11 + $0x4] sm:$0x3]
        %v7548 = vsub.f32 %v7407, 0.5
        %v7549 = vsub.f32 %v7410, 0.5
        %v7550 = vsub.f32 %v7415, 0.5
        %v7551 = vsub.f32 %v7530, 0.5
        %v7552 = vsub.f32 %v7533, 0.5
        %v7553 = vsub.f32 %v7538, 0.5
        %v7554 = vpack.c.bf16 %v7549, %v7548
        %v7555 = vpack.c.bf16 %v7550, %v7550
        %v7559 = vunpack.c.l.b16 %v7543
        %v7560 = vunpack.c.l.b16 %v7544
        %v7561 = vunpack.c.l.b16 %v7545
        %v7562 = vpack.c.b16 %v7560, %v7559
        %v7563 = vpack.c.b16 %v7561, %v7561
        %vm7565 = vcmask 179200
        %v7567 = vsel %vm7565, %v7554, 0
        %v7570 = vsel %vm7565, %v7555, 0
        %vm7572 = vcmask 1042432
        %v7574 = vsel %vm7572, %v7563, 0
        %7576 = vmatprep.subr.bf16.mxu0 0
        %7577 = vmatpush1.bf16.msra.mxu0 %v7562
        %7578 = vmatprep.subr.bf16.mxu0 0
        %7579 = vmatpush1.bf16.msra.mxu0 %v7574
        %7580 = vmatprep.subr.bf16.mxu0 0
        %7581 = vmatpush1.bf16.msra.mxu0 0
        %7582 = vmatprep.subr.bf16.mxu0 0
        %7583 = vmatpush1.bf16.msra.mxu0 0
        %7584 = vmatprep.subr.bf16.mxu0 0
        %7585 = vmatpush1.bf16.msra.mxu0 0
        %7586 = vmatprep.subr.bf16.mxu0 0
        %7587 = vmatpush1.bf16.msra.mxu0 0
        %7588 = vmatprep.subr.bf16.mxu0 0
        %7589 = vmatpush1.bf16.msra.mxu0 0
        %7590 = vmatprep.subr.bf16.mxu0 0
        %7591 = vmatpush1.bf16.msra.mxu0 0
        %7592 = vmatprep.subr.bf16.mxu0 0
        %7593 = vmatpush1.bf16.msra.mxu0 0
        %7594 = vmatprep.subr.bf16.mxu0 0
        %7595 = vmatpush1.bf16.msra.mxu0 0
        %7596 = vmatprep.subr.bf16.mxu0 0
        %7597 = vmatpush1.bf16.msra.mxu0 0
        %7598 = vmatprep.subr.bf16.mxu0 0
        %7599 = vmatpush1.bf16.msra.mxu0 0
        %7600 = vmatprep.subr.bf16.mxu0 0
        %7601 = vmatpush1.bf16.msra.mxu0 0
        %7602 = vmatprep.subr.bf16.mxu0 0
        %7603 = vmatpush1.bf16.msra.mxu0 0
        %7604 = vmatprep.subr.bf16.mxu0 0
        %7605 = vmatpush1.bf16.msra.mxu0 0
        %7606 = vmatprep.subr.bf16.mxu0 0
        %7607 = vmatpush1.bf16.msra.mxu0 0
        %7608 = vmatprep.mubr.bf16.mxu0 0
        %7609 = vmatmul.mubr.bf16.gmra.mrb[0].mxu0 %v7567
        %v7610 = vpop.f32.mrb[0].mxu0
        %v7611 = vadd.f32 0.0, %v7610
        %v7612 = vpop.f32.mrb[0].mxu0
        %v7613 = vpop.f32.mrb[0].mxu0
        %v7614 = vadd.f32 0.0, %v7613
        %v7615 = vpop.f32.mrb[0].mxu0
        %7616 = vmatprep.mubr.bf16.mxu0 0
        %7617 = vmatmul.mubr.bf16.gmra.mrb[0].mxu0 %v7570
        %v7618 = vpop.f32.mrb[0].mxu0
        %v7619 = vadd.f32 0.0, %v7618
        %v7620 = vpop.f32.mrb[0].mxu0
        %v7621 = vpop.f32.mrb[0].mxu0
        %v7622 = vpop.f32.mrb[0].mxu0
        %7623 = vdwg.mxu0
        %v7624 = vpack.c.bf16 %v7614, %v7611
        %v7625 = vpack.c.bf16 %v7619, %v7619
        %v7628 = vunpack.c.l.b16 %v7546
        %v7629 = vunpack.c.l.b16 %v7547
        %v7630 = vpack.c.b16 %v7629, %v7628
        %v7632 = vsel %vm7565, %v7630, 0
        %v7635 = vsel %vm7572, %v7625, 0
        %7637 = vmatprep.subr.bf16.mxu0 0
        %7638 = vmatpush1.bf16.msra.mxu0 %v7624
        %7639 = vmatprep.subr.bf16.mxu0 0
        %7640 = vmatpush1.bf16.msra.mxu0 %v7635
        %7641 = vmatprep.subr.bf16.mxu0 0
        %7642 = vmatpush1.bf16.msra.mxu0 0
        %7643 = vmatprep.subr.bf16.mxu0 0
        %7644 = vmatpush1.bf16.msra.mxu0 0
        %7645 = vmatprep.subr.bf16.mxu0 0
        %7646 = vmatpush1.bf16.msra.mxu0 0
        %7647 = vmatprep.subr.bf16.mxu0 0
        %7648 = vmatpush1.bf16.msra.mxu0 0
        %7649 = vmatprep.subr.bf16.mxu0 0
        %7650 = vmatpush1.bf16.msra.mxu0 0
        %7651 = vmatprep.subr.bf16.mxu0 0
        %7652 = vmatpush1.bf16.msra.mxu0 0
        %7653 = vmatprep.subr.bf16.mxu0 0
        %7654 = vmatpush1.bf16.msra.mxu0 0
        %7655 = vmatprep.subr.bf16.mxu0 0
        %7656 = vmatpush1.bf16.msra.mxu0 0
        %7657 = vmatprep.subr.bf16.mxu0 0
        %7658 = vmatpush1.bf16.msra.mxu0 0
        %7659 = vmatprep.subr.bf16.mxu0 0
        %7660 = vmatpush1.bf16.msra.mxu0 0
        %7661 = vmatprep.subr.bf16.mxu0 0
        %7662 = vmatpush1.bf16.msra.mxu0 0
        %7663 = vmatprep.subr.bf16.mxu0 0
        %7664 = vmatpush1.bf16.msra.mxu0 0
        %7665 = vmatprep.subr.bf16.mxu0 0
        %7666 = vmatpush1.bf16.msra.mxu0 0
        %7667 = vmatprep.subr.bf16.mxu0 0
        %7668 = vmatpush1.bf16.msra.mxu0 0
        %7669 = vmatprep.mubr.bf16.mxu0 0
        %7670 = vmatmul.mubr.bf16.gmra.mrb[0].mxu0 %v7632
        %v7671 = vpop.f32.mrb[0].mxu0
        %v7672 = vadd.f32 0.0, %v7671
        %v7673 = vpop.f32.mrb[0].mxu0
        %v7674 = vpop.f32.mrb[0].mxu0
        %v7675 = vadd.f32 0.0, %v7674
        %v7676 = vpop.f32.mrb[0].mxu0
        %7677 = vdwg.mxu0
        %v7678 = vpack.c.bf16 %v7552, %v7551
        %v7679 = vpack.c.bf16 %v7553, %v7553
        %v7681 = vsel %vm7565, %v7678, 0
        %v7684 = vsel %vm7565, %v7679, 0
        %7686 = vmatprep.subr.bf16.mxu0 0
        %7687 = vmatpush1.bf16.msra.mxu0 %v7562
        %7688 = vmatprep.subr.bf16.mxu0 0
        %7689 = vmatpush1.bf16.msra.mxu0 %v7574
        %7690 = vmatprep.subr.bf16.mxu0 0
        %7691 = vmatpush1.bf16.msra.mxu0 0
        %7692 = vmatprep.subr.bf16.mxu0 0
        %7693 = vmatpush1.bf16.msra.mxu0 0
        %7694 = vmatprep.subr.bf16.mxu0 0
        %7695 = vmatpush1.bf16.msra.mxu0 0
        %7696 = vmatprep.subr.bf16.mxu0 0
        %7697 = vmatpush1.bf16.msra.mxu0 0
        %7698 = vmatprep.subr.bf16.mxu0 0
        %7699 = vmatpush1.bf16.msra.mxu0 0
        %7700 = vmatprep.subr.bf16.mxu0 0
        %7701 = vmatpush1.bf16.msra.mxu0 0
        %7702 = vmatprep.subr.bf16.mxu0 0
        %7703 = vmatpush1.bf16.msra.mxu0 0
        %7704 = vmatprep.subr.bf16.mxu0 0
        %7705 = vmatpush1.bf16.msra.mxu0 0
        %7706 = vmatprep.subr.bf16.mxu0 0
        %7707 = vmatpush1.bf16.msra.mxu0 0
        %7708 = vmatprep.subr.bf16.mxu0 0
        %7709 = vmatpush1.bf16.msra.mxu0 0
        %7710 = vmatprep.subr.bf16.mxu0 0
        %7711 = vmatpush1.bf16.msra.mxu0 0
        %7712 = vmatprep.subr.bf16.mxu0 0
        %7713 = vmatpush1.bf16.msra.mxu0 0
        %7714 = vmatprep.subr.bf16.mxu0 0
        %7715 = vmatpush1.bf16.msra.mxu0 0
        %7716 = vmatprep.subr.bf16.mxu0 0
        %7717 = vmatpush1.bf16.msra.mxu0 0
        %7718 = vmatprep.mubr.bf16.mxu0 0
        %7719 = vmatmul.mubr.bf16.gmra.mrb[0].mxu0 %v7681
        %v7720 = vpop.f32.mrb[0].mxu0
        %v7721 = vadd.f32 0.0, %v7720
        %v7722 = vpop.f32.mrb[0].mxu0
        %v7723 = vpop.f32.mrb[0].mxu0
        %v7724 = vadd.f32 0.0, %v7723
        %v7725 = vpop.f32.mrb[0].mxu0
        %7726 = vmatprep.mubr.bf16.mxu0 0
        %7727 = vmatmul.mubr.bf16.gmra.mrb[0].mxu0 %v7684
        %v7728 = vpop.f32.mrb[0].mxu0
        %v7729 = vadd.f32 0.0, %v7728
        %v7730 = vpop.f32.mrb[0].mxu0
        %v7731 = vpop.f32.mrb[0].mxu0
        %v7732 = vpop.f32.mrb[0].mxu0
        %7733 = vdwg.mxu0
        %v7734 = vpack.c.bf16 %v7724, %v7721
        %v7735 = vpack.c.bf16 %v7729, %v7729
        %v7737 = vsel %vm7572, %v7735, 0
        %7739 = vmatprep.subr.bf16.mxu0 0
        %7740 = vmatpush1.bf16.msra.mxu0 %v7734
        %7741 = vmatprep.subr.bf16.mxu0 0
        %7742 = vmatpush1.bf16.msra.mxu0 %v7737
        %7743 = vmatprep.subr.bf16.mxu0 0
        %7744 = vmatpush1.bf16.msra.mxu0 0
        %7745 = vmatprep.subr.bf16.mxu0 0
        %7746 = vmatpush1.bf16.msra.mxu0 0
        %7747 = vmatprep.subr.bf16.mxu0 0
        %7748 = vmatpush1.bf16.msra.mxu0 0
        %7749 = vmatprep.subr.bf16.mxu0 0
        %7750 = vmatpush1.bf16.msra.mxu0 0
        %7751 = vmatprep.subr.bf16.mxu0 0
        %7752 = vmatpush1.bf16.msra.mxu0 0
        %7753 = vmatprep.subr.bf16.mxu0 0
        %7754 = vmatpush1.bf16.msra.mxu0 0
        %7755 = vmatprep.subr.bf16.mxu0 0
        %7756 = vmatpush1.bf16.msra.mxu0 0
        %7757 = vmatprep.subr.bf16.mxu0 0
        %7758 = vmatpush1.bf16.msra.mxu0 0
        %7759 = vmatprep.subr.bf16.mxu0 0
        %7760 = vmatpush1.bf16.msra.mxu0 0
        %7761 = vmatprep.subr.bf16.mxu0 0
        %7762 = vmatpush1.bf16.msra.mxu0 0
        %7763 = vmatprep.subr.bf16.mxu0 0
        %7764 = vmatpush1.bf16.msra.mxu0 0
        %7765 = vmatprep.subr.bf16.mxu0 0
        %7766 = vmatpush1.bf16.msra.mxu0 0
        %7767 = vmatprep.subr.bf16.mxu0 0
        %7768 = vmatpush1.bf16.msra.mxu0 0
        %7769 = vmatprep.subr.bf16.mxu0 0
        %7770 = vmatpush1.bf16.msra.mxu0 0
        %7771 = vmatprep.mubr.bf16.mxu0 0
        %7772 = vmatmul.mubr.bf16.gmra.mrb[0].mxu0 %v7632
        %v7773 = vpop.f32.mrb[0].mxu0
        %v7774 = vadd.f32 0.0, %v7773
        %v7775 = vpop.f32.mrb[0].mxu0
        %v7776 = vpop.f32.mrb[0].mxu0
        %v7777 = vadd.f32 0.0, %v7776
        %v7778 = vpop.f32.mrb[0].mxu0
        %7779 = vdwg.mxu0
        %v7780 = vmul.f32 %v7548, %v7548
        %v7781 = vmul.f32 %v7549, %v7549
        %v7782 = vmul.f32 %v7550, %v7550
        %v7783 = vpack.c.bf16 %v7781, %v7780
        %v7784 = vpack.c.bf16 %v7782, %v7782
        %v7786 = vsel %vm7565, %v7783, 0
        %v7789 = vsel %vm7565, %v7784, 0
        %7791 = vmatprep.subr.bf16.mxu0 0
        %7792 = vmatpush1.bf16.msra.mxu0 %v7562
        %7793 = vmatprep.subr.bf16.mxu0 0
        %7794 = vmatpush1.bf16.msra.mxu0 %v7574
        %7795 = vmatprep.subr.bf16.mxu0 0
        %7796 = vmatpush1.bf16.msra.mxu0 0
        %7797 = vmatprep.subr.bf16.mxu0 0
        %7798 = vmatpush1.bf16.msra.mxu0 0
        %7799 = vmatprep.subr.bf16.mxu0 0
        %7800 = vmatpush1.bf16.msra.mxu0 0
        %7801 = vmatprep.subr.bf16.mxu0 0
        %7802 = vmatpush1.bf16.msra.mxu0 0
        %7803 = vmatprep.subr.bf16.mxu0 0
        %7804 = vmatpush1.bf16.msra.mxu0 0
        %7805 = vmatprep.subr.bf16.mxu0 0
        %7806 = vmatpush1.bf16.msra.mxu0 0
        %7807 = vmatprep.subr.bf16.mxu0 0
        %7808 = vmatpush1.bf16.msra.mxu0 0
        %7809 = vmatprep.subr.bf16.mxu0 0
        %7810 = vmatpush1.bf16.msra.mxu0 0
        %7811 = vmatprep.subr.bf16.mxu0 0
        %7812 = vmatpush1.bf16.msra.mxu0 0
        %7813 = vmatprep.subr.bf16.mxu0 0
        %7814 = vmatpush1.bf16.msra.mxu0 0
        %7815 = vmatprep.subr.bf16.mxu0 0
        %7816 = vmatpush1.bf16.msra.mxu0 0
        %7817 = vmatprep.subr.bf16.mxu0 0
        %7818 = vmatpush1.bf16.msra.mxu0 0
        %7819 = vmatprep.subr.bf16.mxu0 0
        %7820 = vmatpush1.bf16.msra.mxu0 0
        %7821 = vmatprep.subr.bf16.mxu0 0
        %7822 = vmatpush1.bf16.msra.mxu0 0
        %7823 = vmatprep.mubr.bf16.mxu0 0
        %7824 = vmatmul.mubr.bf16.gmra.mrb[0].mxu0 %v7786
        %v7825 = vpop.f32.mrb[0].mxu0
        %v7826 = vadd.f32 0.0, %v7825
        %v7827 = vpop.f32.mrb[0].mxu0
        %v7828 = vpop.f32.mrb[0].mxu0
        %v7829 = vadd.f32 0.0, %v7828
        %v7830 = vpop.f32.mrb[0].mxu0
        %7831 = vmatprep.mubr.bf16.mxu0 0
        %7832 = vmatmul.mubr.bf16.gmra.mrb[0].mxu0 %v7789
        %v7833 = vpop.f32.mrb[0].mxu0
        %v7834 = vadd.f32 0.0, %v7833
        %v7835 = vpop.f32.mrb[0].mxu0
        %v7836 = vpop.f32.mrb[0].mxu0
        %v7837 = vpop.f32.mrb[0].mxu0
        %7838 = vdwg.mxu0
        %v7839 = vpack.c.bf16 %v7829, %v7826
        %v7840 = vpack.c.bf16 %v7834, %v7834
        %v7842 = vsel %vm7572, %v7840, 0
        %7844 = vmatprep.subr.bf16.mxu0 0
        %7845 = vmatpush1.bf16.msra.mxu0 %v7839
        %7846 = vmatprep.subr.bf16.mxu0 0
        %7847 = vmatpush1.bf16.msra.mxu0 %v7842
        %7848 = vmatprep.subr.bf16.mxu0 0
        %7849 = vmatpush1.bf16.msra.mxu0 0
        %7850 = vmatprep.subr.bf16.mxu0 0
        %7851 = vmatpush1.bf16.msra.mxu0 0
        %7852 = vmatprep.subr.bf16.mxu0 0
        %7853 = vmatpush1.bf16.msra.mxu0 0
        %7854 = vmatprep.subr.bf16.mxu0 0
        %7855 = vmatpush1.bf16.msra.mxu0 0
        %7856 = vmatprep.subr.bf16.mxu0 0
        %7857 = vmatpush1.bf16.msra.mxu0 0
        %7858 = vmatprep.subr.bf16.mxu0 0
        %7859 = vmatpush1.bf16.msra.mxu0 0
        %7860 = vmatprep.subr.bf16.mxu0 0
        %7861 = vmatpush1.bf16.msra.mxu0 0
        %7862 = vmatprep.subr.bf16.mxu0 0
        %7863 = vmatpush1.bf16.msra.mxu0 0
        %7864 = vmatprep.subr.bf16.mxu0 0
        %7865 = vmatpush1.bf16.msra.mxu0 0
        %7866 = vmatprep.subr.bf16.mxu0 0
        %7867 = vmatpush1.bf16.msra.mxu0 0
        %7868 = vmatprep.subr.bf16.mxu0 0
        %7869 = vmatpush1.bf16.msra.mxu0 0
        %7870 = vmatprep.subr.bf16.mxu0 0
        %7871 = vmatpush1.bf16.msra.mxu0 0
        %7872 = vmatprep.subr.bf16.mxu0 0
        %7873 = vmatpush1.bf16.msra.mxu0 0
        %7874 = vmatprep.subr.bf16.mxu0 0
        %7875 = vmatpush1.bf16.msra.mxu0 0
        %7876 = vmatprep.mubr.bf16.mxu0 0
        %7877 = vmatmul.mubr.bf16.gmra.mrb[0].mxu0 %v7632
        %v7878 = vpop.f32.mrb[0].mxu0
        %v7879 = vadd.f32 0.0, %v7878
        %v7880 = vpop.f32.mrb[0].mxu0
        %v7881 = vpop.f32.mrb[0].mxu0
        %v7882 = vadd.f32 0.0, %v7881
        %v7883 = vpop.f32.mrb[0].mxu0
        %7884 = vdwg.mxu0
        %v7885 = vmul.f32 %v7551, %v7551
        %v7886 = vmul.f32 %v7552, %v7552
        %v7887 = vmul.f32 %v7553, %v7553
        %v7888 = vpack.c.bf16 %v7886, %v7885
        %v7889 = vpack.c.bf16 %v7887, %v7887
        %v7891 = vsel %vm7565, %v7888, 0
        %v7894 = vsel %vm7565, %v7889, 0
        %7896 = vmatprep.subr.bf16.mxu0 0
        %7897 = vmatpush1.bf16.msra.mxu0 %v7562
        %7898 = vmatprep.subr.bf16.mxu0 0
        %7899 = vmatpush1.bf16.msra.mxu0 %v7574
        %7900 = vmatprep.subr.bf16.mxu0 0
        %7901 = vmatpush1.bf16.msra.mxu0 0
        %7902 = vmatprep.subr.bf16.mxu0 0
        %7903 = vmatpush1.bf16.msra.mxu0 0
        %7904 = vmatprep.subr.bf16.mxu0 0
        %7905 = vmatpush1.bf16.msra.mxu0 0
        %7906 = vmatprep.subr.bf16.mxu0 0
        %7907 = vmatpush1.bf16.msra.mxu0 0
        %7908 = vmatprep.subr.bf16.mxu0 0
        %7909 = vmatpush1.bf16.msra.mxu0 0
        %7910 = vmatprep.subr.bf16.mxu0 0
        %7911 = vmatpush1.bf16.msra.mxu0 0
        %7912 = vmatprep.subr.bf16.mxu0 0
        %7913 = vmatpush1.bf16.msra.mxu0 0
        %7914 = vmatprep.subr.bf16.mxu0 0
        %7915 = vmatpush1.bf16.msra.mxu0 0
        %7916 = vmatprep.subr.bf16.mxu0 0
        %7917 = vmatpush1.bf16.msra.mxu0 0
        %7918 = vmatprep.subr.bf16.mxu0 0
        %7919 = vmatpush1.bf16.msra.mxu0 0
        %7920 = vmatprep.subr.bf16.mxu0 0
        %7921 = vmatpush1.bf16.msra.mxu0 0
        %7922 = vmatprep.subr.bf16.mxu0 0
        %7923 = vmatpush1.bf16.msra.mxu0 0
        %7924 = vmatprep.subr.bf16.mxu0 0
        %7925 = vmatpush1.bf16.msra.mxu0 0
        %7926 = vmatprep.subr.bf16.mxu0 0
        %7927 = vmatpush1.bf16.msra.mxu0 0
        %7928 = vmatprep.mubr.bf16.mxu0 0
        %7929 = vmatmul.mubr.bf16.gmra.mrb[0].mxu0 %v7891
        %v7930 = vpop.f32.mrb[0].mxu0
        %v7931 = vadd.f32 0.0, %v7930
        %v7932 = vpop.f32.mrb[0].mxu0
        %v7933 = vpop.f32.mrb[0].mxu0
        %v7934 = vadd.f32 0.0, %v7933
        %v7935 = vpop.f32.mrb[0].mxu0
        %7936 = vmatprep.mubr.bf16.mxu0 0
        %7937 = vmatmul.mubr.bf16.gmra.mrb[0].mxu0 %v7894
        %v7938 = vpop.f32.mrb[0].mxu0
        %v7939 = vadd.f32 0.0, %v7938
        %v7940 = vpop.f32.mrb[0].mxu0
        %v7941 = vpop.f32.mrb[0].mxu0
        %v7942 = vpop.f32.mrb[0].mxu0
        %7943 = vdwg.mxu0
        %v7944 = vpack.c.bf16 %v7934, %v7931
        %v7945 = vpack.c.bf16 %v7939, %v7939
        %v7947 = vsel %vm7572, %v7945, 0
        %7949 = vmatprep.subr.bf16.mxu0 0
        %7950 = vmatpush1.bf16.msra.mxu0 %v7944
        %7951 = vmatprep.subr.bf16.mxu0 0
        %7952 = vmatpush1.bf16.msra.mxu0 %v7947
        %7953 = vmatprep.subr.bf16.mxu0 0
        %7954 = vmatpush1.bf16.msra.mxu0 0
        %7955 = vmatprep.subr.bf16.mxu0 0
        %7956 = vmatpush1.bf16.msra.mxu0 0
        %7957 = vmatprep.subr.bf16.mxu0 0
        %7958 = vmatpush1.bf16.msra.mxu0 0
        %7959 = vmatprep.subr.bf16.mxu0 0
        %7960 = vmatpush1.bf16.msra.mxu0 0
        %7961 = vmatprep.subr.bf16.mxu0 0
        %7962 = vmatpush1.bf16.msra.mxu0 0
        %7963 = vmatprep.subr.bf16.mxu0 0
        %7964 = vmatpush1.bf16.msra.mxu0 0
        %7965 = vmatprep.subr.bf16.mxu0 0
        %7966 = vmatpush1.bf16.msra.mxu0 0
        %7967 = vmatprep.subr.bf16.mxu0 0
        %7968 = vmatpush1.bf16.msra.mxu0 0
        %7969 = vmatprep.subr.bf16.mxu0 0
        %7970 = vmatpush1.bf16.msra.mxu0 0
        %7971 = vmatprep.subr.bf16.mxu0 0
        %7972 = vmatpush1.bf16.msra.mxu0 0
        %7973 = vmatprep.subr.bf16.mxu0 0
        %7974 = vmatpush1.bf16.msra.mxu0 0
        %7975 = vmatprep.subr.bf16.mxu0 0
        %7976 = vmatpush1.bf16.msra.mxu0 0
        %7977 = vmatprep.subr.bf16.mxu0 0
        %7978 = vmatpush1.bf16.msra.mxu0 0
        %7979 = vmatprep.subr.bf16.mxu0 0
        %7980 = vmatpush1.bf16.msra.mxu0 0
        %7981 = vmatprep.mubr.bf16.mxu0 0
        %7982 = vmatmul.mubr.bf16.gmra.mrb[0].mxu0 %v7632
        %v7983 = vpop.f32.mrb[0].mxu0
        %v7984 = vadd.f32 0.0, %v7983
        %v7985 = vpop.f32.mrb[0].mxu0
        %v7986 = vpop.f32.mrb[0].mxu0
        %v7987 = vadd.f32 0.0, %v7986
        %v7988 = vpop.f32.mrb[0].mxu0
        %7989 = vdwg.mxu0
        %v7990 = vmul.f32 %v7548, %v7551
        %v7991 = vmul.f32 %v7549, %v7552
        %v7992 = vmul.f32 %v7550, %v7553
        %v7993 = vpack.c.bf16 %v7991, %v7990
        %v7994 = vpack.c.bf16 %v7992, %v7992
        %v7996 = vsel %vm7565, %v7993, 0
        %v7999 = vsel %vm7565, %v7994, 0
        %8001 = vmatprep.subr.bf16.mxu0 0
        %8002 = vmatpush1.bf16.msra.mxu0 %v7562
        %8003 = vmatprep.subr.bf16.mxu0 0
        %8004 = vmatpush1.bf16.msra.mxu0 %v7574
        %8005 = vmatprep.subr.bf16.mxu0 0
        %8006 = vmatpush1.bf16.msra.mxu0 0
        %8007 = vmatprep.subr.bf16.mxu0 0
        %8008 = vmatpush1.bf16.msra.mxu0 0
        %8009 = vmatprep.subr.bf16.mxu0 0
        %8010 = vmatpush1.bf16.msra.mxu0 0
        %8011 = vmatprep.subr.bf16.mxu0 0
        %8012 = vmatpush1.bf16.msra.mxu0 0
        %8013 = vmatprep.subr.bf16.mxu0 0
        %8014 = vmatpush1.bf16.msra.mxu0 0
        %8015 = vmatprep.subr.bf16.mxu0 0
        %8016 = vmatpush1.bf16.msra.mxu0 0
        %8017 = vmatprep.subr.bf16.mxu0 0
        %8018 = vmatpush1.bf16.msra.mxu0 0
        %8019 = vmatprep.subr.bf16.mxu0 0
        %8020 = vmatpush1.bf16.msra.mxu0 0
        %8021 = vmatprep.subr.bf16.mxu0 0
        %8022 = vmatpush1.bf16.msra.mxu0 0
        %8023 = vmatprep.subr.bf16.mxu0 0
        %8024 = vmatpush1.bf16.msra.mxu0 0
        %8025 = vmatprep.subr.bf16.mxu0 0
        %8026 = vmatpush1.bf16.msra.mxu0 0
        %8027 = vmatprep.subr.bf16.mxu0 0
        %8028 = vmatpush1.bf16.msra.mxu0 0
        %8029 = vmatprep.subr.bf16.mxu0 0
        %8030 = vmatpush1.bf16.msra.mxu0 0
        %8031 = vmatprep.subr.bf16.mxu0 0
        %8032 = vmatpush1.bf16.msra.mxu0 0
        %8033 = vmatprep.mubr.bf16.mxu0 0
        %8034 = vmatmul.mubr.bf16.gmra.mrb[0].mxu0 %v7996
        %v8035 = vpop.f32.mrb[0].mxu0
        %v8036 = vadd.f32 0.0, %v8035
        %v8037 = vpop.f32.mrb[0].mxu0
        %v8038 = vpop.f32.mrb[0].mxu0
        %v8039 = vadd.f32 0.0, %v8038
        %v8040 = vpop.f32.mrb[0].mxu0
        %8041 = vmatprep.mubr.bf16.mxu0 0
        %8042 = vmatmul.mubr.bf16.gmra.mrb[0].mxu0 %v7999
        %v8043 = vpop.f32.mrb[0].mxu0
        %v8044 = vadd.f32 0.0, %v8043
        %v8045 = vpop.f32.mrb[0].mxu0
        %v8046 = vpop.f32.mrb[0].mxu0
        %v8047 = vpop.f32.mrb[0].mxu0
        %8048 = vdwg.mxu0
        %v8049 = vpack.c.bf16 %v8039, %v8036
        %v8050 = vpack.c.bf16 %v8044, %v8044
        %v8052 = vsel %vm7572, %v8050, 0
        %8054 = vmatprep.subr.bf16.mxu0 0
        %8055 = vmatpush1.bf16.msra.mxu0 %v8049
        %8056 = vmatprep.subr.bf16.mxu0 0
        %8057 = vmatpush1.bf16.msra.mxu0 %v8052
        %8058 = vmatprep.subr.bf16.mxu0 0
        %8059 = vmatpush1.bf16.msra.mxu0 0
        %8060 = vmatprep.subr.bf16.mxu0 0
        %8061 = vmatpush1.bf16.msra.mxu0 0
        %8062 = vmatprep.subr.bf16.mxu0 0
        %8063 = vmatpush1.bf16.msra.mxu0 0
        %8064 = vmatprep.subr.bf16.mxu0 0
        %8065 = vmatpush1.bf16.msra.mxu0 0
        %8066 = vmatprep.subr.bf16.mxu0 0
        %8067 = vmatpush1.bf16.msra.mxu0 0
        %8068 = vmatprep.subr.bf16.mxu0 0
        %8069 = vmatpush1.bf16.msra.mxu0 0
        %8070 = vmatprep.subr.bf16.mxu0 0
        %8071 = vmatpush1.bf16.msra.mxu0 0
        %8072 = vmatprep.subr.bf16.mxu0 0
        %8073 = vmatpush1.bf16.msra.mxu0 0
        %8074 = vmatprep.subr.bf16.mxu0 0
        %8075 = vmatpush1.bf16.msra.mxu0 0
        %8076 = vmatprep.subr.bf16.mxu0 0
        %8077 = vmatpush1.bf16.msra.mxu0 0
        %8078 = vmatprep.subr.bf16.mxu0 0
        %8079 = vmatpush1.bf16.msra.mxu0 0
        %8080 = vmatprep.subr.bf16.mxu0 0
        %8081 = vmatpush1.bf16.msra.mxu0 0
        %8082 = vmatprep.subr.bf16.mxu0 0
        %8083 = vmatpush1.bf16.msra.mxu0 0
        %8084 = vmatprep.subr.bf16.mxu0 0
        %8085 = vmatpush1.bf16.msra.mxu0 0
        %8086 = vmatprep.mubr.bf16.mxu0 0
        %8087 = vmatmul.mubr.bf16.gmra.mrb[0].mxu0 %v7632
        %v8088 = vpop.f32.mrb[0].mxu0
        %v8089 = vadd.f32 0.0, %v8088
        %v8090 = vpop.f32.mrb[0].mxu0
        %v8091 = vpop.f32.mrb[0].mxu0
        %v8092 = vadd.f32 0.0, %v8091
        %v8093 = vpop.f32.mrb[0].mxu0
        %8094 = vdwg.mxu0
        %v8095 = vmul.f32 %v7672, %v7672
        %v8096 = vmul.f32 %v7675, %v7675
        %v8097 = vsub.f32 %v7879, %v8095
        %v8098 = vsub.f32 %v7882, %v8096
        %v8099 = vmul.f32 %v7774, %v7774
        %v8100 = vmul.f32 %v7777, %v7777
        %v8101 = vsub.f32 %v7984, %v8099
        %v8102 = vsub.f32 %v7987, %v8100
        %v8103 = vmul.f32 %v7672, %v7774
        %v8104 = vmul.f32 %v7675, %v7777
        %v8105 = vsub.f32 %v8089, %v8103
        %v8106 = vsub.f32 %v8092, %v8104
        %v8107 = vmul.f32 %v8105, 2.0
        %v8108 = vmul.f32 %v8106, 2.0
        %v8109 = vadd.f32 %v8107, 0.0009
        %v8110 = vadd.f32 %v8108, 0.0009
        %v8111 = vadd.f32 %v8097, %v8101
        %v8112 = vadd.f32 %v8098, %v8102
        %v8113 = vadd.f32 %v8111, 0.0009
        %v8114 = vadd.f32 %v8112, 0.0009
        %v8115 = vrcp.pop %v8113
        %v8116 = vmul.f32 %v8109, %v8115
        %v8117 = vrcp.pop %v8114
        %v8118 = vmul.f32 %v8110, %v8117
        %vm8119 = vcmask 97280
        %v8120 = vsel %vm8119, %v8116, 0.0
        %8121 = vadd.xlane.f32.xlu0 %v8120
        %v8122 = vpop.xlane.xlu0 %8121
        %vm8123 = vcmask 93184
        %v8124 = vsel %vm8123, %v8118, 0.0
        %8125 = vadd.xlane.f32.xlu0 %v8124
        %v8126 = vpop.xlane.xlu0 %8125
        %v8127 = vsel %vm4854, %v8126, 0.0
        %v8128 = vadd.f32 %v8122, %v8127
        %v8129 = vrot.slane %v8128, 4
        %v8130 = vadd.f32 %v8128, %v8129
        %v8131 = vrot.slane %v8130, 2
        %v8132 = vadd.f32 %v8130, %v8131
        %v8133 = vrot.slane %v8132, 1
        %v8134 = vadd.f32 %v8132, %v8133
        %v8135 = vmul.f32 %v8134, 0.0069444445
        %v8136 = vmax.f32 %v8135, 0.0
        %v8137 = vld [vmem:[%s15] sm:$0xf]
        %v8138 = vld [vmem:[%s15 + $0x4] sm:$0xf]
        %v8139 = vld [vmem:[%s15 + $0x8] sm:$0x7]
        %v8140 = vld [vmem:[#allocation20] sm:$0xf]
        %v8141 = vld [vmem:[#allocation20 + $0x4] sm:$0x3]
        %v8142 = vpack.c.bf16 %v7410, %v7407
        %v8143 = vpack.c.bf16 %v7415, %v7415
        %v8147 = vunpack.c.l.b16 %v8137
        %v8148 = vunpack.c.l.b16 %v8138
        %v8149 = vunpack.c.l.b16 %v8139
        %v8150 = vpack.c.b16 %v8148, %v8147
        %v8151 = vpack.c.b16 %v8149, %v8149
        %v8154 = vsel %vm7565, %v8142, 0
        %v8157 = vsel %vm7565, %v8143, 0
        %v8160 = vsel %vm7572, %v8151, 0
        %8162 = vmatprep.subr.bf16.mxu0 0
        %8163 = vmatpush1.bf16.msra.mxu0 %v8150
        %8164 = vmatprep.subr.bf16.mxu0 0
        %8165 = vmatpush1.bf16.msra.mxu0 %v8160
        %8166 = vmatprep.subr.bf16.mxu0 0
        %8167 = vmatpush1.bf16.msra.mxu0 0
        %8168 = vmatprep.subr.bf16.mxu0 0
        %8169 = vmatpush1.bf16.msra.mxu0 0
        %8170 = vmatprep.subr.bf16.mxu0 0
        %8171 = vmatpush1.bf16.msra.mxu0 0
        %8172 = vmatprep.subr.bf16.mxu0 0
        %8173 = vmatpush1.bf16.msra.mxu0 0
        %8174 = vmatprep.subr.bf16.mxu0 0
        %8175 = vmatpush1.bf16.msra.mxu0 0
        %8176 = vmatprep.subr.bf16.mxu0 0
        %8177 = vmatpush1.bf16.msra.mxu0 0
        %8178 = vmatprep.subr.bf16.mxu0 0
        %8179 = vmatpush1.bf16.msra.mxu0 0
        %8180 = vmatprep.subr.bf16.mxu0 0
        %8181 = vmatpush1.bf16.msra.mxu0 0
        %8182 = vmatprep.subr.bf16.mxu0 0
        %8183 = vmatpush1.bf16.msra.mxu0 0
        %8184 = vmatprep.subr.bf16.mxu0 0
        %8185 = vmatpush1.bf16.msra.mxu0 0
        %8186 = vmatprep.subr.bf16.mxu0 0
        %8187 = vmatpush1.bf16.msra.mxu0 0
        %8188 = vmatprep.subr.bf16.mxu0 0
        %8189 = vmatpush1.bf16.msra.mxu0 0
        %8190 = vmatprep.subr.bf16.mxu0 0
        %8191 = vmatpush1.bf16.msra.mxu0 0
        %8192 = vmatprep.subr.bf16.mxu0 0
        %8193 = vmatpush1.bf16.msra.mxu0 0
        %8194 = vmatprep.mubr.bf16.mxu0 0
        %8195 = vmatmul.mubr.bf16.gmra.mrb[0].mxu0 %v8154
        %v8196 = vpop.f32.mrb[0].mxu0
        %v8197 = vadd.f32 0.0, %v8196
        %v8198 = vpop.f32.mrb[0].mxu0
        %v8199 = vpop.f32.mrb[0].mxu0
        %v8200 = vadd.f32 0.0, %v8199
        %v8201 = vpop.f32.mrb[0].mxu0
        %8202 = vmatprep.mubr.bf16.mxu0 0
        %8203 = vmatmul.mubr.bf16.gmra.mrb[0].mxu0 %v8157
        %v8204 = vpop.f32.mrb[0].mxu0
        %v8205 = vadd.f32 0.0, %v8204
        %v8206 = vpop.f32.mrb[0].mxu0
        %v8207 = vpop.f32.mrb[0].mxu0
        %v8208 = vpop.f32.mrb[0].mxu0
        %8209 = vdwg.mxu0
        %v8210 = vpack.c.bf16 %v8200, %v8197
        %v8211 = vpack.c.bf16 %v8205, %v8205
        %v8214 = vunpack.c.l.b16 %v8140
        %v8215 = vunpack.c.l.b16 %v8141
        %v8216 = vpack.c.b16 %v8215, %v8214
        %v8218 = vsel %vm7565, %v8216, 0
        %v8221 = vsel %vm7572, %v8211, 0
        %8223 = vmatprep.subr.bf16.mxu0 0
        %8224 = vmatpush1.bf16.msra.mxu0 %v8210
        %8225 = vmatprep.subr.bf16.mxu0 0
        %8226 = vmatpush1.bf16.msra.mxu0 %v8221
        %8227 = vmatprep.subr.bf16.mxu0 0
        %8228 = vmatpush1.bf16.msra.mxu0 0
        %8229 = vmatprep.subr.bf16.mxu0 0
        %8230 = vmatpush1.bf16.msra.mxu0 0
        %8231 = vmatprep.subr.bf16.mxu0 0
        %8232 = vmatpush1.bf16.msra.mxu0 0
        %8233 = vmatprep.subr.bf16.mxu0 0
        %8234 = vmatpush1.bf16.msra.mxu0 0
        %8235 = vmatprep.subr.bf16.mxu0 0
        %8236 = vmatpush1.bf16.msra.mxu0 0
        %8237 = vmatprep.subr.bf16.mxu0 0
        %8238 = vmatpush1.bf16.msra.mxu0 0
        %8239 = vmatprep.subr.bf16.mxu0 0
        %8240 = vmatpush1.bf16.msra.mxu0 0
        %8241 = vmatprep.subr.bf16.mxu0 0
        %8242 = vmatpush1.bf16.msra.mxu0 0
        %8243 = vmatprep.subr.bf16.mxu0 0
        %8244 = vmatpush1.bf16.msra.mxu0 0
        %8245 = vmatprep.subr.bf16.mxu0 0
        %8246 = vmatpush1.bf16.msra.mxu0 0
        %8247 = vmatprep.subr.bf16.mxu0 0
        %8248 = vmatpush1.bf16.msra.mxu0 0
        %8249 = vmatprep.subr.bf16.mxu0 0
        %8250 = vmatpush1.bf16.msra.mxu0 0
        %8251 = vmatprep.subr.bf16.mxu0 0
        %8252 = vmatpush1.bf16.msra.mxu0 0
        %8253 = vmatprep.subr.bf16.mxu0 0
        %8254 = vmatpush1.bf16.msra.mxu0 0
        %8255 = vmatprep.mubr.bf16.mxu0 0
        %8256 = vmatmul.mubr.bf16.gmra.mrb[0].mxu0 %v8218
        %v8257 = vpop.f32.mrb[0].mxu0
        %v8258 = vadd.f32 0.0, %v8257
        %v8259 = vpop.f32.mrb[0].mxu0
        %v8260 = vpop.f32.mrb[0].mxu0
        %v8261 = vadd.f32 0.0, %v8260
        %v8262 = vpop.f32.mrb[0].mxu0
        %8263 = vdwg.mxu0
        %v8264 = vpack.c.bf16 %v7533, %v7530
        %v8265 = vpack.c.bf16 %v7538, %v7538
        %v8267 = vsel %vm7565, %v8264, 0
        %v8270 = vsel %vm7565, %v8265, 0
        %8272 = vmatprep.subr.bf16.mxu0 0
        %8273 = vmatpush1.bf16.msra.mxu0 %v8150
        %8274 = vmatprep.subr.bf16.mxu0 0
        %8275 = vmatpush1.bf16.msra.mxu0 %v8160
        %8276 = vmatprep.subr.bf16.mxu0 0
        %8277 = vmatpush1.bf16.msra.mxu0 0
        %8278 = vmatprep.subr.bf16.mxu0 0
        %8279 = vmatpush1.bf16.msra.mxu0 0
        %8280 = vmatprep.subr.bf16.mxu0 0
        %8281 = vmatpush1.bf16.msra.mxu0 0
        %8282 = vmatprep.subr.bf16.mxu0 0
        %8283 = vmatpush1.bf16.msra.mxu0 0
        %8284 = vmatprep.subr.bf16.mxu0 0
        %8285 = vmatpush1.bf16.msra.mxu0 0
        %8286 = vmatprep.subr.bf16.mxu0 0
        %8287 = vmatpush1.bf16.msra.mxu0 0
        %8288 = vmatprep.subr.bf16.mxu0 0
        %8289 = vmatpush1.bf16.msra.mxu0 0
        %8290 = vmatprep.subr.bf16.mxu0 0
        %8291 = vmatpush1.bf16.msra.mxu0 0
        %8292 = vmatprep.subr.bf16.mxu0 0
        %8293 = vmatpush1.bf16.msra.mxu0 0
        %8294 = vmatprep.subr.bf16.mxu0 0
        %8295 = vmatpush1.bf16.msra.mxu0 0
        %8296 = vmatprep.subr.bf16.mxu0 0
        %8297 = vmatpush1.bf16.msra.mxu0 0
        %8298 = vmatprep.subr.bf16.mxu0 0
        %8299 = vmatpush1.bf16.msra.mxu0 0
        %8300 = vmatprep.subr.bf16.mxu0 0
        %8301 = vmatpush1.bf16.msra.mxu0 0
        %8302 = vmatprep.subr.bf16.mxu0 0
        %8303 = vmatpush1.bf16.msra.mxu0 0
        %8304 = vmatprep.mubr.bf16.mxu0 0
        %8305 = vmatmul.mubr.bf16.gmra.mrb[0].mxu0 %v8267
        %v8306 = vpop.f32.mrb[0].mxu0
        %v8307 = vadd.f32 0.0, %v8306
        %v8308 = vpop.f32.mrb[0].mxu0
        %v8309 = vpop.f32.mrb[0].mxu0
        %v8310 = vadd.f32 0.0, %v8309
        %v8311 = vpop.f32.mrb[0].mxu0
        %8312 = vmatprep.mubr.bf16.mxu0 0
        %8313 = vmatmul.mubr.bf16.gmra.mrb[0].mxu0 %v8270
        %v8314 = vpop.f32.mrb[0].mxu0
        %v8315 = vadd.f32 0.0, %v8314
        %v8316 = vpop.f32.mrb[0].mxu0
        %v8317 = vpop.f32.mrb[0].mxu0
        %v8318 = vpop.f32.mrb[0].mxu0
        %8319 = vdwg.mxu0
        %v8320 = vpack.c.bf16 %v8310, %v8307
        %v8321 = vpack.c.bf16 %v8315, %v8315
        %v8323 = vsel %vm7572, %v8321, 0
        %8325 = vmatprep.subr.bf16.mxu0 0
        %8326 = vmatpush1.bf16.msra.mxu0 %v8320
        %8327 = vmatprep.subr.bf16.mxu0 0
        %8328 = vmatpush1.bf16.msra.mxu0 %v8323
        %8329 = vmatprep.subr.bf16.mxu0 0
        %8330 = vmatpush1.bf16.msra.mxu0 0
        %8331 = vmatprep.subr.bf16.mxu0 0
        %8332 = vmatpush1.bf16.msra.mxu0 0
        %8333 = vmatprep.subr.bf16.mxu0 0
        %8334 = vmatpush1.bf16.msra.mxu0 0
        %8335 = vmatprep.subr.bf16.mxu0 0
        %8336 = vmatpush1.bf16.msra.mxu0 0
        %8337 = vmatprep.subr.bf16.mxu0 0
        %8338 = vmatpush1.bf16.msra.mxu0 0
        %8339 = vmatprep.subr.bf16.mxu0 0
        %8340 = vmatpush1.bf16.msra.mxu0 0
        %8341 = vmatprep.subr.bf16.mxu0 0
        %8342 = vmatpush1.bf16.msra.mxu0 0
        %8343 = vmatprep.subr.bf16.mxu0 0
        %8344 = vmatpush1.bf16.msra.mxu0 0
        %8345 = vmatprep.subr.bf16.mxu0 0
        %8346 = vmatpush1.bf16.msra.mxu0 0
        %8347 = vmatprep.subr.bf16.mxu0 0
        %8348 = vmatpush1.bf16.msra.mxu0 0
        %8349 = vmatprep.subr.bf16.mxu0 0
        %8350 = vmatpush1.bf16.msra.mxu0 0
        %8351 = vmatprep.subr.bf16.mxu0 0
        %8352 = vmatpush1.bf16.msra.mxu0 0
        %8353 = vmatprep.subr.bf16.mxu0 0
        %8354 = vmatpush1.bf16.msra.mxu0 0
        %8355 = vmatprep.subr.bf16.mxu0 0
        %8356 = vmatpush1.bf16.msra.mxu0 0
        %8357 = vmatprep.mubr.bf16.mxu0 0
        %8358 = vmatmul.mubr.bf16.gmra.mrb[0].mxu0 %v8218
        %v8359 = vpop.f32.mrb[0].mxu0
        %v8360 = vadd.f32 0.0, %v8359
        %v8361 = vpop.f32.mrb[0].mxu0
        %v8362 = vpop.f32.mrb[0].mxu0
        %v8363 = vadd.f32 0.0, %v8362
        %v8364 = vpop.f32.mrb[0].mxu0
        %8365 = vdwg.mxu0
        %v8366 = vld [vmem:[%s6] sm:$0xf]
        %v8367 = vld [vmem:[%s6 + $0x4] sm:$0x3]
        %v8368 = vld [vmem:[#allocation13] sm:$0x1]
        %v8369 = vsub.f32 %v8258, 0.5
        %v8370 = vsub.f32 %v8261, 0.5
        %v8371 = vsub.f32 %v8360, 0.5
        %v8372 = vsub.f32 %v8363, 0.5
        %v8373 = vpack.c.bf16 %v8370, %v8369
        %v8376 = vunpack.c.l.b16 %v8366
        %v8377 = vunpack.c.l.b16 %v8367
        %v8378 = vpack.c.b16 %v8377, %v8376
        %vm8379 = vcmask 89088
        %v8381 = vsel %vm8379, %v8373, 0
        %vm8383 = vcmask 1044480
        %v8384 = vsel %vm8383, 4294967295, 65535
        %v8385 = vsel %vm4015, %v8384, 0
        %v8387 = vand.u32 %v8378, %v8385
        %8389 = vmatprep.subr.bf16.mxu0 0
        %8390 = vmatpush1.bf16.msra.mxu0 %v8387
        %8391 = vmatprep.subr.bf16.mxu0 0
        %8392 = vmatpush1.bf16.msra.mxu0 0
        %8393 = vmatprep.subr.bf16.mxu0 0
        %8394 = vmatpush1.bf16.msra.mxu0 0
        %8395 = vmatprep.subr.bf16.mxu0 0
        %8396 = vmatpush1.bf16.msra.mxu0 0
        %8397 = vmatprep.subr.bf16.mxu0 0
        %8398 = vmatpush1.bf16.msra.mxu0 0
        %8399 = vmatprep.subr.bf16.mxu0 0
        %8400 = vmatpush1.bf16.msra.mxu0 0
        %8401 = vmatprep.subr.bf16.mxu0 0
        %8402 = vmatpush1.bf16.msra.mxu0 0
        %8403 = vmatprep.subr.bf16.mxu0 0
        %8404 = vmatpush1.bf16.msra.mxu0 0
        %8405 = vmatprep.subr.bf16.mxu0 0
        %8406 = vmatpush1.bf16.msra.mxu0 0
        %8407 = vmatprep.subr.bf16.mxu0 0
        %8408 = vmatpush1.bf16.msra.mxu0 0
        %8409 = vmatprep.subr.bf16.mxu0 0
        %8410 = vmatpush1.bf16.msra.mxu0 0
        %8411 = vmatprep.subr.bf16.mxu0 0
        %8412 = vmatpush1.bf16.msra.mxu0 0
        %8413 = vmatprep.subr.bf16.mxu0 0
        %8414 = vmatpush1.bf16.msra.mxu0 0
        %8415 = vmatprep.subr.bf16.mxu0 0
        %8416 = vmatpush1.bf16.msra.mxu0 0
        %8417 = vmatprep.subr.bf16.mxu0 0
        %8418 = vmatpush1.bf16.msra.mxu0 0
        %8419 = vmatprep.subr.bf16.mxu0 0
        %8420 = vmatpush1.bf16.msra.mxu0 0
        %8421 = vmatprep.mubr.bf16.mxu0 0
        %8422 = vmatmul.mubr.bf16.gmra.mrb[0].mxu0 %v8381
        %v8423 = vpop.f32.mrb[0].mxu0
        %v8424 = vadd.f32 0.0, %v8423
        %v8425 = vpop.f32.mrb[0].mxu0
        %v8426 = vpop.f32.mrb[0].mxu0
        %v8427 = vadd.f32 0.0, %v8426
        %v8428 = vpop.f32.mrb[0].mxu0
        %8429 = vdwg.mxu0
        %v8430 = vpack.c.bf16 %v8427, %v8424
        %v8432 = vsel %vm8379, %v8368, 0
        %v8435 = vand.u32 %v8430, %v8385
        %8437 = vmatprep.subr.bf16.mxu0 0
        %8438 = vmatpush1.bf16.msra.mxu0 %v8435
        %8439 = vmatprep.subr.bf16.mxu0 0
        %8440 = vmatpush1.bf16.msra.mxu0 0
        %8441 = vmatprep.subr.bf16.mxu0 0
        %8442 = vmatpush1.bf16.msra.mxu0 0
        %8443 = vmatprep.subr.bf16.mxu0 0
        %8444 = vmatpush1.bf16.msra.mxu0 0
        %8445 = vmatprep.subr.bf16.mxu0 0
        %8446 = vmatpush1.bf16.msra.mxu0 0
        %8447 = vmatprep.subr.bf16.mxu0 0
        %8448 = vmatpush1.bf16.msra.mxu0 0
        %8449 = vmatprep.subr.bf16.mxu0 0
        %8450 = vmatpush1.bf16.msra.mxu0 0
        %8451 = vmatprep.subr.bf16.mxu0 0
        %8452 = vmatpush1.bf16.msra.mxu0 0
        %8453 = vmatprep.subr.bf16.mxu0 0
        %8454 = vmatpush1.bf16.msra.mxu0 0
        %8455 = vmatprep.subr.bf16.mxu0 0
        %8456 = vmatpush1.bf16.msra.mxu0 0
        %8457 = vmatprep.subr.bf16.mxu0 0
        %8458 = vmatpush1.bf16.msra.mxu0 0
        %8459 = vmatprep.subr.bf16.mxu0 0
        %8460 = vmatpush1.bf16.msra.mxu0 0
        %8461 = vmatprep.subr.bf16.mxu0 0
        %8462 = vmatpush1.bf16.msra.mxu0 0
        %8463 = vmatprep.subr.bf16.mxu0 0
        %8464 = vmatpush1.bf16.msra.mxu0 0
        %8465 = vmatprep.subr.bf16.mxu0 0
        %8466 = vmatpush1.bf16.msra.mxu0 0
        %8467 = vmatprep.subr.bf16.mxu0 0
        %8468 = vmatpush1.bf16.msra.mxu0 0
        %8469 = vmatprep.mubr.bf16.mxu0 0
        %8470 = vmatmul.mubr.bf16.gmra.mrb[0].mxu0 %v8432
        %v8471 = vpop.f32.mrb[0].mxu0
        %v8472 = vadd.f32 0.0, %v8471
        %v8473 = vpop.f32.mrb[0].mxu0
        %v8474 = vpop.f32.mrb[0].mxu0
        %v8475 = vpop.f32.mrb[0].mxu0
        %8476 = vdwg.mxu0
        %v8477 = vpack.c.bf16 %v8372, %v8371
        %v8479 = vsel %vm8379, %v8477, 0
        %8481 = vmatprep.subr.bf16.mxu0 0
        %8482 = vmatpush1.bf16.msra.mxu0 %v8387
        %8483 = vmatprep.subr.bf16.mxu0 0
        %8484 = vmatpush1.bf16.msra.mxu0 0
        %8485 = vmatprep.subr.bf16.mxu0 0
        %8486 = vmatpush1.bf16.msra.mxu0 0
        %8487 = vmatprep.subr.bf16.mxu0 0
        %8488 = vmatpush1.bf16.msra.mxu0 0
        %8489 = vmatprep.subr.bf16.mxu0 0
        %8490 = vmatpush1.bf16.msra.mxu0 0
        %8491 = vmatprep.subr.bf16.mxu0 0
        %8492 = vmatpush1.bf16.msra.mxu0 0
        %8493 = vmatprep.subr.bf16.mxu0 0
        %8494 = vmatpush1.bf16.msra.mxu0 0
        %8495 = vmatprep.subr.bf16.mxu0 0
        %8496 = vmatpush1.bf16.msra.mxu0 0
        %8497 = vmatprep.subr.bf16.mxu0 0
        %8498 = vmatpush1.bf16.msra.mxu0 0
        %8499 = vmatprep.subr.bf16.mxu0 0
        %8500 = vmatpush1.bf16.msra.mxu0 0
        %8501 = vmatprep.subr.bf16.mxu0 0
        %8502 = vmatpush1.bf16.msra.mxu0 0
        %8503 = vmatprep.subr.bf16.mxu0 0
        %8504 = vmatpush1.bf16.msra.mxu0 0
        %8505 = vmatprep.subr.bf16.mxu0 0
        %8506 = vmatpush1.bf16.msra.mxu0 0
        %8507 = vmatprep.subr.bf16.mxu0 0
        %8508 = vmatpush1.bf16.msra.mxu0 0
        %8509 = vmatprep.subr.bf16.mxu0 0
        %8510 = vmatpush1.bf16.msra.mxu0 0
        %8511 = vmatprep.subr.bf16.mxu0 0
        %8512 = vmatpush1.bf16.msra.mxu0 0
        %8513 = vmatprep.mubr.bf16.mxu0 0
        %8514 = vmatmul.mubr.bf16.gmra.mrb[0].mxu0 %v8479
        %v8515 = vpop.f32.mrb[0].mxu0
        %v8516 = vadd.f32 0.0, %v8515
        %v8517 = vpop.f32.mrb[0].mxu0
        %v8518 = vpop.f32.mrb[0].mxu0
        %v8519 = vadd.f32 0.0, %v8518
        %v8520 = vpop.f32.mrb[0].mxu0
        %8521 = vdwg.mxu0
        %v8522 = vpack.c.bf16 %v8519, %v8516
        %v8524 = vand.u32 %v8522, %v8385
        %8526 = vmatprep.subr.bf16.mxu0 0
        %8527 = vmatpush1.bf16.msra.mxu0 %v8524
        %8528 = vmatprep.subr.bf16.mxu0 0
        %8529 = vmatpush1.bf16.msra.mxu0 0
        %8530 = vmatprep.subr.bf16.mxu0 0
        %8531 = vmatpush1.bf16.msra.mxu0 0
        %8532 = vmatprep.subr.bf16.mxu0 0
        %8533 = vmatpush1.bf16.msra.mxu0 0
        %8534 = vmatprep.subr.bf16.mxu0 0
        %8535 = vmatpush1.bf16.msra.mxu0 0
        %8536 = vmatprep.subr.bf16.mxu0 0
        %8537 = vmatpush1.bf16.msra.mxu0 0
        %8538 = vmatprep.subr.bf16.mxu0 0
        %8539 = vmatpush1.bf16.msra.mxu0 0
        %8540 = vmatprep.subr.bf16.mxu0 0
        %8541 = vmatpush1.bf16.msra.mxu0 0
        %8542 = vmatprep.subr.bf16.mxu0 0
        %8543 = vmatpush1.bf16.msra.mxu0 0
        %8544 = vmatprep.subr.bf16.mxu0 0
        %8545 = vmatpush1.bf16.msra.mxu0 0
        %8546 = vmatprep.subr.bf16.mxu0 0
        %8547 = vmatpush1.bf16.msra.mxu0 0
        %8548 = vmatprep.subr.bf16.mxu0 0
        %8549 = vmatpush1.bf16.msra.mxu0 0
        %8550 = vmatprep.subr.bf16.mxu0 0
        %8551 = vmatpush1.bf16.msra.mxu0 0
        %8552 = vmatprep.subr.bf16.mxu0 0
        %8553 = vmatpush1.bf16.msra.mxu0 0
        %8554 = vmatprep.subr.bf16.mxu0 0
        %8555 = vmatpush1.bf16.msra.mxu0 0
        %8556 = vmatprep.subr.bf16.mxu0 0
        %8557 = vmatpush1.bf16.msra.mxu0 0
        %8558 = vmatprep.mubr.bf16.mxu0 0
        %8559 = vmatmul.mubr.bf16.gmra.mrb[0].mxu0 %v8432
        %v8560 = vpop.f32.mrb[0].mxu0
        %v8561 = vadd.f32 0.0, %v8560
        %v8562 = vpop.f32.mrb[0].mxu0
        %v8563 = vpop.f32.mrb[0].mxu0
        %v8564 = vpop.f32.mrb[0].mxu0
        %8565 = vdwg.mxu0
        %v8566 = vmul.f32 %v8369, %v8369
        %v8567 = vmul.f32 %v8370, %v8370
        %v8568 = vpack.c.bf16 %v8567, %v8566
        %v8570 = vsel %vm8379, %v8568, 0
        %8572 = vmatprep.subr.bf16.mxu0 0
        %8573 = vmatpush1.bf16.msra.mxu0 %v8387
        %8574 = vmatprep.subr.bf16.mxu0 0
        %8575 = vmatpush1.bf16.msra.mxu0 0
        %8576 = vmatprep.subr.bf16.mxu0 0
        %8577 = vmatpush1.bf16.msra.mxu0 0
        %8578 = vmatprep.subr.bf16.mxu0 0
        %8579 = vmatpush1.bf16.msra.mxu0 0
        %8580 = vmatprep.subr.bf16.mxu0 0
        %8581 = vmatpush1.bf16.msra.mxu0 0
        %8582 = vmatprep.subr.bf16.mxu0 0
        %8583 = vmatpush1.bf16.msra.mxu0 0
        %8584 = vmatprep.subr.bf16.mxu0 0
        %8585 = vmatpush1.bf16.msra.mxu0 0
        %8586 = vmatprep.subr.bf16.mxu0 0
        %8587 = vmatpush1.bf16.msra.mxu0 0
        %8588 = vmatprep.subr.bf16.mxu0 0
        %8589 = vmatpush1.bf16.msra.mxu0 0
        %8590 = vmatprep.subr.bf16.mxu0 0
        %8591 = vmatpush1.bf16.msra.mxu0 0
        %8592 = vmatprep.subr.bf16.mxu0 0
        %8593 = vmatpush1.bf16.msra.mxu0 0
        %8594 = vmatprep.subr.bf16.mxu0 0
        %8595 = vmatpush1.bf16.msra.mxu0 0
        %8596 = vmatprep.subr.bf16.mxu0 0
        %8597 = vmatpush1.bf16.msra.mxu0 0
        %8598 = vmatprep.subr.bf16.mxu0 0
        %8599 = vmatpush1.bf16.msra.mxu0 0
        %8600 = vmatprep.subr.bf16.mxu0 0
        %8601 = vmatpush1.bf16.msra.mxu0 0
        %8602 = vmatprep.subr.bf16.mxu0 0
        %8603 = vmatpush1.bf16.msra.mxu0 0
        %8604 = vmatprep.mubr.bf16.mxu0 0
        %8605 = vmatmul.mubr.bf16.gmra.mrb[0].mxu0 %v8570
        %v8606 = vpop.f32.mrb[0].mxu0
        %v8607 = vadd.f32 0.0, %v8606
        %v8608 = vpop.f32.mrb[0].mxu0
        %v8609 = vpop.f32.mrb[0].mxu0
        %v8610 = vadd.f32 0.0, %v8609
        %v8611 = vpop.f32.mrb[0].mxu0
        %8612 = vdwg.mxu0
        %v8613 = vpack.c.bf16 %v8610, %v8607
        %v8615 = vand.u32 %v8613, %v8385
        %8617 = vmatprep.subr.bf16.mxu0 0
        %8618 = vmatpush1.bf16.msra.mxu0 %v8615
        %8619 = vmatprep.subr.bf16.mxu0 0
        %8620 = vmatpush1.bf16.msra.mxu0 0
        %8621 = vmatprep.subr.bf16.mxu0 0
        %8622 = vmatpush1.bf16.msra.mxu0 0
        %8623 = vmatprep.subr.bf16.mxu0 0
        %8624 = vmatpush1.bf16.msra.mxu0 0
        %8625 = vmatprep.subr.bf16.mxu0 0
        %8626 = vmatpush1.bf16.msra.mxu0 0
        %8627 = vmatprep.subr.bf16.mxu0 0
        %8628 = vmatpush1.bf16.msra.mxu0 0
        %8629 = vmatprep.subr.bf16.mxu0 0
        %8630 = vmatpush1.bf16.msra.mxu0 0
        %8631 = vmatprep.subr.bf16.mxu0 0
        %8632 = vmatpush1.bf16.msra.mxu0 0
        %8633 = vmatprep.subr.bf16.mxu0 0
        %8634 = vmatpush1.bf16.msra.mxu0 0
        %8635 = vmatprep.subr.bf16.mxu0 0
        %8636 = vmatpush1.bf16.msra.mxu0 0
        %8637 = vmatprep.subr.bf16.mxu0 0
        %8638 = vmatpush1.bf16.msra.mxu0 0
        %8639 = vmatprep.subr.bf16.mxu0 0
        %8640 = vmatpush1.bf16.msra.mxu0 0
        %8641 = vmatprep.subr.bf16.mxu0 0
        %8642 = vmatpush1.bf16.msra.mxu0 0
        %8643 = vmatprep.subr.bf16.mxu0 0
        %8644 = vmatpush1.bf16.msra.mxu0 0
        %8645 = vmatprep.subr.bf16.mxu0 0
        %8646 = vmatpush1.bf16.msra.mxu0 0
        %8647 = vmatprep.subr.bf16.mxu0 0
        %8648 = vmatpush1.bf16.msra.mxu0 0
        %8649 = vmatprep.mubr.bf16.mxu0 0
        %8650 = vmatmul.mubr.bf16.gmra.mrb[0].mxu0 %v8432
        %v8651 = vpop.f32.mrb[0].mxu0
        %v8652 = vadd.f32 0.0, %v8651
        %v8653 = vpop.f32.mrb[0].mxu0
        %v8654 = vpop.f32.mrb[0].mxu0
        %v8655 = vpop.f32.mrb[0].mxu0
        %8656 = vdwg.mxu0
        %v8657 = vmul.f32 %v8371, %v8371
        %v8658 = vmul.f32 %v8372, %v8372
        %v8659 = vpack.c.bf16 %v8658, %v8657
        %v8661 = vsel %vm8379, %v8659, 0
        %8663 = vmatprep.subr.bf16.mxu0 0
        %8664 = vmatpush1.bf16.msra.mxu0 %v8387
        %8665 = vmatprep.subr.bf16.mxu0 0
        %8666 = vmatpush1.bf16.msra.mxu0 0
        %8667 = vmatprep.subr.bf16.mxu0 0
        %8668 = vmatpush1.bf16.msra.mxu0 0
        %8669 = vmatprep.subr.bf16.mxu0 0
        %8670 = vmatpush1.bf16.msra.mxu0 0
        %8671 = vmatprep.subr.bf16.mxu0 0
        %8672 = vmatpush1.bf16.msra.mxu0 0
        %8673 = vmatprep.subr.bf16.mxu0 0
        %8674 = vmatpush1.bf16.msra.mxu0 0
        %8675 = vmatprep.subr.bf16.mxu0 0
        %8676 = vmatpush1.bf16.msra.mxu0 0
        %8677 = vmatprep.subr.bf16.mxu0 0
        %8678 = vmatpush1.bf16.msra.mxu0 0
        %8679 = vmatprep.subr.bf16.mxu0 0
        %8680 = vmatpush1.bf16.msra.mxu0 0
        %8681 = vmatprep.subr.bf16.mxu0 0
        %8682 = vmatpush1.bf16.msra.mxu0 0
        %8683 = vmatprep.subr.bf16.mxu0 0
        %8684 = vmatpush1.bf16.msra.mxu0 0
        %8685 = vmatprep.subr.bf16.mxu0 0
        %8686 = vmatpush1.bf16.msra.mxu0 0
        %8687 = vmatprep.subr.bf16.mxu0 0
        %8688 = vmatpush1.bf16.msra.mxu0 0
        %8689 = vmatprep.subr.bf16.mxu0 0
        %8690 = vmatpush1.bf16.msra.mxu0 0
        %8691 = vmatprep.subr.bf16.mxu0 0
        %8692 = vmatpush1.bf16.msra.mxu0 0
        %8693 = vmatprep.subr.bf16.mxu0 0
        %8694 = vmatpush1.bf16.msra.mxu0 0
        %8695 = vmatprep.mubr.bf16.mxu0 0
        %8696 = vmatmul.mubr.bf16.gmra.mrb[0].mxu0 %v8661
        %v8697 = vpop.f32.mrb[0].mxu0
        %v8698 = vadd.f32 0.0, %v8697
        %v8699 = vpop.f32.mrb[0].mxu0
        %v8700 = vpop.f32.mrb[0].mxu0
        %v8701 = vadd.f32 0.0, %v8700
        %v8702 = vpop.f32.mrb[0].mxu0
        %8703 = vdwg.mxu0
        %v8704 = vpack.c.bf16 %v8701, %v8698
        %v8706 = vand.u32 %v8704, %v8385
        %8708 = vmatprep.subr.bf16.mxu0 0
        %8709 = vmatpush1.bf16.msra.mxu0 %v8706
        %8710 = vmatprep.subr.bf16.mxu0 0
        %8711 = vmatpush1.bf16.msra.mxu0 0
        %8712 = vmatprep.subr.bf16.mxu0 0
        %8713 = vmatpush1.bf16.msra.mxu0 0
        %8714 = vmatprep.subr.bf16.mxu0 0
        %8715 = vmatpush1.bf16.msra.mxu0 0
        %8716 = vmatprep.subr.bf16.mxu0 0
        %8717 = vmatpush1.bf16.msra.mxu0 0
        %8718 = vmatprep.subr.bf16.mxu0 0
        %8719 = vmatpush1.bf16.msra.mxu0 0
        %8720 = vmatprep.subr.bf16.mxu0 0
        %8721 = vmatpush1.bf16.msra.mxu0 0
        %8722 = vmatprep.subr.bf16.mxu0 0
        %8723 = vmatpush1.bf16.msra.mxu0 0
        %8724 = vmatprep.subr.bf16.mxu0 0
        %8725 = vmatpush1.bf16.msra.mxu0 0
        %8726 = vmatprep.subr.bf16.mxu0 0
        %8727 = vmatpush1.bf16.msra.mxu0 0
        %8728 = vmatprep.subr.bf16.mxu0 0
        %8729 = vmatpush1.bf16.msra.mxu0 0
        %8730 = vmatprep.subr.bf16.mxu0 0
        %8731 = vmatpush1.bf16.msra.mxu0 0
        %8732 = vmatprep.subr.bf16.mxu0 0
        %8733 = vmatpush1.bf16.msra.mxu0 0
        %8734 = vmatprep.subr.bf16.mxu0 0
        %8735 = vmatpush1.bf16.msra.mxu0 0
        %8736 = vmatprep.subr.bf16.mxu0 0
        %8737 = vmatpush1.bf16.msra.mxu0 0
        %8738 = vmatprep.subr.bf16.mxu0 0
        %8739 = vmatpush1.bf16.msra.mxu0 0
        %8740 = vmatprep.mubr.bf16.mxu0 0
        %8741 = vmatmul.mubr.bf16.gmra.mrb[0].mxu0 %v8432
        %v8742 = vpop.f32.mrb[0].mxu0
        %v8743 = vadd.f32 0.0, %v8742
        %v8744 = vpop.f32.mrb[0].mxu0
        %v8745 = vpop.f32.mrb[0].mxu0
        %v8746 = vpop.f32.mrb[0].mxu0
        %8747 = vdwg.mxu0
        %v8748 = vmul.f32 %v8369, %v8371
        %v8749 = vmul.f32 %v8370, %v8372
        %v8750 = vpack.c.bf16 %v8749, %v8748
        %v8752 = vsel %vm8379, %v8750, 0
        %8754 = vmatprep.subr.bf16.mxu0 0
        %8755 = vmatpush1.bf16.msra.mxu0 %v8387
        %8756 = vmatprep.subr.bf16.mxu0 0
        %8757 = vmatpush1.bf16.msra.mxu0 0
        %8758 = vmatprep.subr.bf16.mxu0 0
        %8759 = vmatpush1.bf16.msra.mxu0 0
        %8760 = vmatprep.subr.bf16.mxu0 0
        %8761 = vmatpush1.bf16.msra.mxu0 0
        %8762 = vmatprep.subr.bf16.mxu0 0
        %8763 = vmatpush1.bf16.msra.mxu0 0
        %8764 = vmatprep.subr.bf16.mxu0 0
        %8765 = vmatpush1.bf16.msra.mxu0 0
        %8766 = vmatprep.subr.bf16.mxu0 0
        %8767 = vmatpush1.bf16.msra.mxu0 0
        %8768 = vmatprep.subr.bf16.mxu0 0
        %8769 = vmatpush1.bf16.msra.mxu0 0
        %8770 = vmatprep.subr.bf16.mxu0 0
        %8771 = vmatpush1.bf16.msra.mxu0 0
        %8772 = vmatprep.subr.bf16.mxu0 0
        %8773 = vmatpush1.bf16.msra.mxu0 0
        %8774 = vmatprep.subr.bf16.mxu0 0
        %8775 = vmatpush1.bf16.msra.mxu0 0
        %8776 = vmatprep.subr.bf16.mxu0 0
        %8777 = vmatpush1.bf16.msra.mxu0 0
        %8778 = vmatprep.subr.bf16.mxu0 0
        %8779 = vmatpush1.bf16.msra.mxu0 0
        %8780 = vmatprep.subr.bf16.mxu0 0
        %8781 = vmatpush1.bf16.msra.mxu0 0
        %8782 = vmatprep.subr.bf16.mxu0 0
        %8783 = vmatpush1.bf16.msra.mxu0 0
        %8784 = vmatprep.subr.bf16.mxu0 0
        %8785 = vmatpush1.bf16.msra.mxu0 0
        %8786 = vmatprep.mubr.bf16.mxu0 0
        %8787 = vmatmul.mubr.bf16.gmra.mrb[0].mxu0 %v8752
        %v8788 = vpop.f32.mrb[0].mxu0
        %v8789 = vadd.f32 0.0, %v8788
        %v8790 = vpop.f32.mrb[0].mxu0
        %v8791 = vpop.f32.mrb[0].mxu0
        %v8792 = vadd.f32 0.0, %v8791
        %v8793 = vpop.f32.mrb[0].mxu0
        %8794 = vdwg.mxu0
        %v8795 = vpack.c.bf16 %v8792, %v8789
        %v8797 = vand.u32 %v8795, %v8385
        %8799 = vmatprep.subr.bf16.mxu0 0
        %8800 = vmatpush1.bf16.msra.mxu0 %v8797
        %8801 = vmatprep.subr.bf16.mxu0 0
        %8802 = vmatpush1.bf16.msra.mxu0 0
        %8803 = vmatprep.subr.bf16.mxu0 0
        %8804 = vmatpush1.bf16.msra.mxu0 0
        %8805 = vmatprep.subr.bf16.mxu0 0
        %8806 = vmatpush1.bf16.msra.mxu0 0
        %8807 = vmatprep.subr.bf16.mxu0 0
        %8808 = vmatpush1.bf16.msra.mxu0 0
        %8809 = vmatprep.subr.bf16.mxu0 0
        %8810 = vmatpush1.bf16.msra.mxu0 0
        %8811 = vmatprep.subr.bf16.mxu0 0
        %8812 = vmatpush1.bf16.msra.mxu0 0
        %8813 = vmatprep.subr.bf16.mxu0 0
        %8814 = vmatpush1.bf16.msra.mxu0 0
        %8815 = vmatprep.subr.bf16.mxu0 0
        %8816 = vmatpush1.bf16.msra.mxu0 0
        %8817 = vmatprep.subr.bf16.mxu0 0
        %8818 = vmatpush1.bf16.msra.mxu0 0
        %8819 = vmatprep.subr.bf16.mxu0 0
        %8820 = vmatpush1.bf16.msra.mxu0 0
        %8821 = vmatprep.subr.bf16.mxu0 0
        %8822 = vmatpush1.bf16.msra.mxu0 0
        %8823 = vmatprep.subr.bf16.mxu0 0
        %8824 = vmatpush1.bf16.msra.mxu0 0
        %8825 = vmatprep.subr.bf16.mxu0 0
        %8826 = vmatpush1.bf16.msra.mxu0 0
        %8827 = vmatprep.subr.bf16.mxu0 0
        %8828 = vmatpush1.bf16.msra.mxu0 0
        %8829 = vmatprep.subr.bf16.mxu0 0
        %8830 = vmatpush1.bf16.msra.mxu0 0
        %8831 = vmatprep.mubr.bf16.mxu0 0
        %8832 = vmatmul.mubr.bf16.gmra.mrb[0].mxu0 %v8432
        %v8833 = vpop.f32.mrb[0].mxu0
        %v8834 = vadd.f32 0.0, %v8833
        %v8835 = vpop.f32.mrb[0].mxu0
        %v8836 = vpop.f32.mrb[0].mxu0
        %v8837 = vpop.f32.mrb[0].mxu0
        %8838 = vdwg.mxu0
        %v8839 = vmul.f32 %v8472, %v8472
        %v8840 = vsub.f32 %v8652, %v8839
        %v8841 = vmul.f32 %v8561, %v8561
        %v8842 = vsub.f32 %v8743, %v8841
        %v8843 = vmul.f32 %v8472, %v8561
        %v8844 = vsub.f32 %v8834, %v8843
        %v8845 = vmul.f32 %v8844, 2.0
        %v8846 = vadd.f32 %v8845, 0.0009
        %v8847 = vadd.f32 %v8840, %v8842
        %v8848 = vadd.f32 %v8847, 0.0009
        %v8849 = vrcp.pop %v8848
        %v8850 = vmul.f32 %v8846, %v8849
        %v8851 = vadd.f32 %v8472, 0.5
        %v8852 = vadd.f32 %v8561, 0.5
        %v8853 = vmul.f32 %v8851, 2.0
        %v8854 = vmul.f32 %v8853, %v8852
        %v8855 = vadd.f32 %v8854, 0.0001
        %v8856 = vmul.f32 %v8851, %v8851
        %v8857 = vmul.f32 %v8852, %v8852
        %v8858 = vadd.f32 %v8856, %v8857
        %v8859 = vadd.f32 %v8858, 0.0001
        %v8860 = vrcp.pop %v8859
        %v8861 = vmul.f32 %v8855, %v8860
        %v8862 = vmul.f32 %v8861, %v8850
        %v8863 = vadd.f32 %v8862, 0.0
        %v8864 = vadd.f32 %v8863, 0.0
        %v8865 = vmax.f32 %v8864, 0.0
        %v8866 = vlaneseq
        %v8867 = vand.u32 %v8866, 127
        %vm8868 = vcmp.eq.s32.totalorder %v8867, 0
        %v8869 = vsel %vm8868, %v4050, 0.0
        %vm8870 = vcmp.eq.s32.totalorder %v8867, 1
        %v8871 = vsel %vm8870, %v6006, %v8869
        %vm8872 = vcmp.eq.s32.totalorder %v8867, 2
        %v8873 = vsel %vm8872, %v7253, %v8871
        %vm8874 = vcmp.eq.s32.totalorder %v8867, 3
        %v8875 = vsel %vm8874, %v8136, %v8873
        %vm8876 = vcmp.eq.s32.totalorder %v8867, 4
        %8878 = vset.pattern.permute.xlu0 0
        %8879 = vperm.xlu0 %8878, %v8865
        %v8880 = vpop.permute.xlu0 %8879
        %v8882 = vsel %vm8876, %v8880, %v8875
        %vm8883 = vcmp.eq.s32.totalorder %v8867, 5
        %v8884 = vsel %vm8883, %v1122, %v8882
        %8885 = vst [vmem:[%s829] sm:$0x1] %v8884
        %s8886 = sand.u32 %s483, 1
        %s8887 = scalar_lea.sflag [#allocation4], %s8886
        %s8888 = sand.u32 %s483, 1
        %s8889 = scalar_lea.vmem [#allocation22], %s8888
        // Predicated region
        $region149: #{tpu_custom_call.1} parent=99 // pred_check
          %p8890 = pneg %p493
        $region150: #{tpu_custom_call.1} parent=99 // pred_check_branch
          %8892 = sbr.rel (%p8890) target = $region152
        $region151: #{tpu_custom_call.1} parent=99 // pred_region
          %s8894 = ssub.s32 16, 16
          %8895 = vsyncadd %s8887, %s8894
          %s8896 = smul.addr %s45, 16
          %s8897 = scalar_lea.hbm %s20, %s8896
          %s8899 = sshll.u32 %s8889, 4
          %s8900 = int_to_ptr.vmem [resolvable:$true] %s8899
          %8902 = dma.vmem_to_hbm [thread:$0]  %s8900, 16, %s8897, %s8887
        $region152: #{tpu_custom_call.1} parent=99 // pred_fallthru
          _
      $region100: #{tpu_custom_call.1} parent=5 // pred_fallthru
        _
      %p8903 = scmp.le.s32.totalorder 2, %s40
      // Predicated region
      $region153: #{tpu_custom_call.1} parent=5 // pred_check
        %p8904 = pneg %p8903
      $region154: #{tpu_custom_call.1} parent=5 // pred_check_branch
        %8906 = sbr.rel (%p8904) target = $region156
      $region155: #{tpu_custom_call.1} parent=5 // pred_region
        %s8907 = ssub.s32 %s40, 2
        // Predicated region
        $region157: #{tpu_custom_call.1} parent=155 // pred_check
          %p8908 = pneg %p499
        $region158: #{tpu_custom_call.1} parent=155 // pred_check_branch
          %8910 = sbr.rel (%p8908) target = $region160
        $region159: #{tpu_custom_call.1} parent=155 // pred_region
          %s8911 = sand.u32 %s484, 1
          %s8912 = scalar_lea.sflag [#allocation4], %s8911
          %s8913 = sand.u32 %s484, 1
          %s8914 = scalar_lea.vmem [#allocation22], %s8913
          %8915 = dma.done %s8912, 16
        $region160: #{tpu_custom_call.1} parent=155 // pred_fallthru
          _
      $region156: #{tpu_custom_call.1} parent=5 // pred_fallthru
        _
    $region6: #{tpu_custom_call.1} parent=1 // loop_footer
      %s44 = sadd.s32 1, %s40
    $region7: #{tpu_custom_call.1} parent=1 // loop_footer_branch
      %39 = sbr.rel target = $region3
    $region8: #{tpu_custom_call.1} parent=1 // loop_exit
      _
    %8916 = vsyncpa [#allocation3], 1
    %s8917 = scalar_lea.sflag [#allocation3], 1
    %8918 = vsyncpa %s8917, 1
    %8919 = vsyncpa [#allocation6], 1
    %s8920 = scalar_lea.sflag [#allocation6], 1
    %8921 = vsyncpa %s8920, 1
    %8922 = vsyncpa [#allocation9], 1
    %8923 = vsyncpa [#allocation12], 1
    %8924 = vsyncpa [#allocation15], 1
    %8925 = vsyncpa [#allocation18], 1
    %8926 = vsyncpa [#allocation21], 1
    %8927 = vsyncpa [#allocation4], 1
    %s8928 = scalar_lea.sflag [#allocation4], 1
    %8929 = vsyncpa %s8928, 1

</llo_original>
